<compile_context>
chip_gen: v7x
topology: tpu7x:2x2x1
jax: 0.10.0
libtpu: 0.0.40
codegen_flags: <defaults>
</compile_context>

<pallas_src>
import numpy as np
import jax
import jax.numpy as jnp
from jax import lax
from jax.experimental import pallas as pl
from jax.experimental.pallas import tpu as pltpu

NV = 778        # MANO vertices
NJ = 16         # MANO joints (without fingertips)
NPOSE = 135     # 15 * 3 * 3 pose-blend features
NSHAPE = 10     # shape coefficients
NCOEF = NSHAPE + NPOSE   # 145 fused blend coefficients
NCOMPS = 12     # number of PCA pose components used by the caller
CENTER_IDX = 9
PARENT = [-1, 0, 1, 2, 0, 4, 5, 0, 7, 8, 0, 10, 11, 0, 13, 14]
NEW_ORDER = [0, 13, 14, 15, 16, 1, 2, 3, 17, 4, 5, 6, 18, 10, 11, 12, 19, 7, 8, 9, 20]
TIP_IDX = [745, 317, 444, 556, 673]

# kinematic-tree depth levels (parent of LVL2[k] is LVL1[k], etc.)
LVL1 = [1, 4, 7, 10, 13]
LVL2 = [2, 5, 8, 11, 14]
LVL3 = [3, 6, 9, 12, 15]
_STACK_ORDER = [0] + LVL1 + LVL2 + LVL3
PERM = np.argsort(np.asarray(_STACK_ORDER)).tolist()   # joint j -> position in stack

HP = lax.Precision.HIGHEST


# ----------------------------- Pallas kernels ------------------------------

def blend_kernel(coeff_ref, dirs_ref, vtemp_ref, jdirs_ref, jbase_ref,
                 v_tpose_ref, j_tpose_ref):
    # coeff_ref : (bs, 145) f32   [shape(10) | pose_feat(135)]
    # dirs_ref  : (145, 2334) bf16  stacked [shapedirs; posedirs], coord-major lanes
    # vtemp_ref : (1, 2334) f32   v_template, coordinate-major
    # jdirs_ref : (10, 48) f32    J_regressor @ shapedirs  (flat index = j*3+c)
    # jbase_ref : (1, 48) f32     J_regressor @ v_template
    coeff = coeff_ref[...]
    # fused shape + pose blend-shapes: one (bs,145)@(145,2334) bf16 MXU pass,
    # f32 accumulation; halves the dominant dirs HBM stream.
    v_tpose_ref[...] = vtemp_ref[...] + jnp.dot(
        coeff.astype(jnp.bfloat16), dirs_ref[...],
        preferred_element_type=jnp.float32)
    # joint regression hoisted to a tiny K=10 matmul (kept full precision)
    j_tpose_ref[...] = jbase_ref[...] + jnp.dot(
        coeff[:, 0:NSHAPE], jdirs_ref[...],
        preferred_element_type=jnp.float32, precision=HP)


def make_skin_kernel(tb):
    def skin_kernel(w_t_ref, vt_ref, se3_ref, out_ref, aT_ref):
        # w_t_ref : (16, 778)     skinning weights^T (vertices on lanes), resident
        # vt_ref  : (tb, 3, 778)  rest-pose vertices, coordinate-major
        # se3_ref : (tb, 3, 64)   se3[b, i, k*16+j] == SE3_j[b, j, i, k]
        # out_ref : (tb, 3, 778)  posed vertices, coordinate-major (lane-dense)
        # aT_ref  : (64, 778) VMEM scratch for A^T
        wT = w_t_ref[...]                                 # (16, 778)
        for b in range(tb):                               # unrolled, tb is small
            vt = vt_ref[b]                                # (3, 778)
            # A^T rows r = c*16 + j : [vx*wT ; vy*wT ; vz*wT ; wT]
            aT_ref[0 * NJ:1 * NJ, :] = vt[0:1, :] * wT
            aT_ref[1 * NJ:2 * NJ, :] = vt[1:2, :] * wT
            aT_ref[2 * NJ:3 * NJ, :] = vt[2:3, :] * wT
            aT_ref[3 * NJ:4 * NJ, :] = wT
            out_ref[b] = jnp.dot(se3_ref[b], aT_ref[...],
                                 preferred_element_type=jnp.float32,
                                 precision=HP)
    return skin_kernel


def run_blend(coeff, dirs, vtemp_cm, jdirs, jbase):
    # NOTE: gridless (whole arrays resident) is the right call at small bs; for
    # very large bs, grid over bs with a constant dirs index_map instead.
    bs = coeff.shape[0]
    flops = 2 * bs * NCOEF * 3 * NV + 2 * bs * NSHAPE * 3 * NJ
    nbytes = (2 * dirs.size
              + 4 * (coeff.size + vtemp_cm.size + jdirs.size + jbase.size
                     + bs * 3 * NV + bs * 3 * NJ))
    return pl.pallas_call(
        blend_kernel,
        in_specs=[pl.BlockSpec(memory_space=pltpu.MemorySpace.VMEM)] * 5,
        out_specs=(pl.BlockSpec(memory_space=pltpu.MemorySpace.VMEM),
                   pl.BlockSpec(memory_space=pltpu.MemorySpace.VMEM)),
        out_shape=(jax.ShapeDtypeStruct((bs, 3 * NV), jnp.float32),
                   jax.ShapeDtypeStruct((bs, 3 * NJ), jnp.float32)),
        cost_estimate=pl.CostEstimate(flops=flops, transcendentals=0,
                                      bytes_accessed=nbytes),
    )(coeff, dirs, vtemp_cm, jdirs, jbase)


def run_skin(weights_t, v_tpose_cm3, se3_mat):
    bs = v_tpose_cm3.shape[0]
    tb = bs if bs <= 8 else 8                       # batch elements per grid step
    bs_pad = ((bs + tb - 1) // tb) * tb
    if bs_pad != bs:
        pad = bs_pad - bs
        v_tpose_cm3 = jnp.pad(v_tpose_cm3, ((0, pad), (0, 0), (0, 0)))
        se3_mat = jnp.pad(se3_mat, ((0, pad), (0, 0), (0, 0)))
    flops = bs_pad * (2 * 3 * 4 * NJ * NV + 3 * NJ * NV)
    nbytes = 4 * (weights_t.size + bs_pad * 3 * NV * 2 + bs_pad * 3 * 4 * NJ)
    out = pl.pallas_call(
        make_skin_kernel(tb),
        grid=(bs_pad // tb,),
        in_specs=[
            pl.BlockSpec((NJ, NV), lambda b: (0, 0)),          # weights stay resident
            pl.BlockSpec((tb, 3, NV), lambda b: (b, 0, 0)),
            pl.BlockSpec((tb, 3, 4 * NJ), lambda b: (b, 0, 0)),
        ],
        out_specs=pl.BlockSpec((tb, 3, NV), lambda b: (b, 0, 0)),
        out_shape=jax.ShapeDtypeStruct((bs_pad, 3, NV), jnp.float32),
        scratch_shapes=[pltpu.VMEM((4 * NJ, NV), jnp.float32)],
        compiler_params=pltpu.CompilerParams(dimension_semantics=("parallel",)),
        cost_estimate=pl.CostEstimate(flops=flops, transcendentals=0,
                                      bytes_accessed=nbytes),
    )(weights_t, v_tpose_cm3, se3_mat)
    return out[:bs]


# ------------------------------- JAX glue ----------------------------------

def rodrigues_batch(axis):
    n = axis.shape[0]
    angle = jnp.linalg.norm(axis, axis=1, keepdims=True) + 1e-8
    axes = axis / angle
    sin = jnp.sin(angle)[:, :, None]
    cos = jnp.cos(angle)[:, :, None]
    ax, ay, az = axes[:, 0], axes[:, 1], axes[:, 2]
    zeros = jnp.zeros_like(ax)
    L = jnp.stack([zeros, -az, ay,
                   az, zeros, -ax,
                   -ay, ax, zeros], axis=1).reshape(n, 3, 3)
    I = jnp.eye(3, dtype=axis.dtype)[None]
    return I + sin * L + (1.0 - cos) * jnp.matmul(L, L, precision=HP)


def kinematic_chain(root_rotation, rotation_mat, j_tpose):
    """Level-batched 16-joint chain: 3 batched SE3 compositions + 3 batched
    joint transforms instead of 30 sequential 4x4 matmuls."""
    bs = root_rotation.shape[0]
    # all 16 local rotations (root + 15 finger joints)
    R_all = jnp.concatenate([root_rotation[:, None], rotation_mat], axis=1)   # (bs,16,3,3)
    # t_i = (I - R_i) j_i = j_i - R_i j_i
    Rj = jnp.einsum('bjmn,bjn->bjm', R_all, j_tpose, precision=HP)            # (bs,16,3)
    t_all = j_tpose - Rj
    top = jnp.concatenate([R_all, t_all[..., None]], axis=3)                  # (bs,16,3,4)
    bottom = jnp.broadcast_to(
        jnp.array([0.0, 0.0, 0.0, 1.0], jnp.float32).reshape(1, 1, 1, 4),
        (bs, NJ, 1, 4))
    local = jnp.concatenate([top, bottom], axis=2)                            # (bs,16,4,4)

    lvl1 = jnp.asarray(LVL1); lvl2 = jnp.asarray(LVL2); lvl3 = jnp.asarray(LVL3)
    g0 = local[:, 0:1]                                                        # (bs,1,4,4)
    g1 = jnp.matmul(g0, local[:, lvl1], precision=HP)                         # (bs,5,4,4)
    g2 = jnp.matmul(g1, local[:, lvl2], precision=HP)                         # (bs,5,4,4)
    g3 = jnp.matmul(g2, local[:, lvl3], precision=HP)                         # (bs,5,4,4)
    stacked = jnp.concatenate([g0, g1, g2, g3], axis=1)                       # (bs,16,4,4)
    perm = jnp.asarray(PERM)
    SE3_j = stacked[:, perm]                                                  # (bs,16,4,4)

    # posed joints: child i uses Global[parent[i]]
    jh = jnp.concatenate([j_tpose, jnp.ones((bs, NJ, 1), jnp.float32)], axis=2)  # (bs,16,4)
    p1 = jnp.einsum('bmn,bjn->bjm', g0[:, 0], jh[:, lvl1], precision=HP)[..., :3]
    p2 = jnp.einsum('bjmn,bjn->bjm', g1, jh[:, lvl2], precision=HP)[..., :3]
    p3 = jnp.einsum('bjmn,bjn->bjm', g2, jh[:, lvl3], precision=HP)[..., :3]
    j_stacked = jnp.concatenate([j_tpose[:, 0:1], p1, p2, p3], axis=1)        # (bs,16,3)
    j_no_tips = j_stacked[:, perm]
    return SE3_j, j_no_tips


def finalize_cm(v_cm, j_no_tips, trans=None, scale=None):
    """Finalize in coordinate-major (lane-dense) layout; transpose last."""
    tips = v_cm[:, :, jnp.asarray(TIP_IDX)]                                   # (bs,3,5)
    j_cm = jnp.concatenate([jnp.transpose(j_no_tips, (0, 2, 1)), tips], axis=2)  # (bs,3,21)
    j_cm = j_cm[:, :, jnp.asarray(NEW_ORDER)]
    if CENTER_IDX is not None:
        center = j_cm[:, :, CENTER_IDX:CENTER_IDX + 1]                        # (bs,3,1)
        v_cm = v_cm - center
        j_cm = j_cm - center
    if scale is not None:
        v_cm = v_cm * scale[:, None, None]
        j_cm = j_cm * scale[:, None, None]
    if trans is not None:
        v_cm = v_cm + trans[:, :, None]
        j_cm = j_cm + trans[:, :, None]
    # TODO(synk): new_skel branch not implemented (module constructed with new_skel=False)
    return jnp.transpose(v_cm, (0, 2, 1)), jnp.transpose(j_cm, (0, 2, 1))


def finalize_rowmajor(v_output, j_no_tips, trans=None, scale=None):
    """Row-major finalize (used by the pure-JAX reference)."""
    tips = v_output[:, jnp.asarray(TIP_IDX)]
    j_output = jnp.concatenate([j_no_tips, tips], axis=1)
    j_output = j_output[:, jnp.asarray(NEW_ORDER)]
    if CENTER_IDX is not None:
        center = j_output[:, CENTER_IDX:CENTER_IDX + 1]
        v_output = v_output - center
        j_output = j_output - center
    if scale is not None:
        v_output = v_output * scale[:, None, None]
        j_output = j_output * scale[:, None, None]
    if trans is not None:
        v_output = v_output + trans[:, None]
        j_output = j_output + trans[:, None]
    return v_output, j_output


def pca_to_rotmats(params, pose, bs):
    axis = jnp.matmul(pose, params["hands_components"][:pose.shape[1]],
                      precision=HP) + params["hands_mean"]
    return rodrigues_batch(axis.reshape(-1, 3)).reshape(bs, 15, 3, 3)


# -------------------- one-time constant preprocessing -----------------------

def preprocess_mano_params(params):
    shapedirs = params["shapedirs"]                 # (NV, 3, 10)
    posedirs = params["posedirs"]                   # (NV, 3, 135)
    v_template = params["v_template"]               # (NV, 3)
    jreg = params["J_regressor"]                    # (16, NV)

    # coordinate-major flattening: flat index = c*NV + v ; stored bf16 (DMA-bound)
    dirs = jnp.concatenate(
        [jnp.transpose(shapedirs, (2, 1, 0)).reshape(NSHAPE, 3 * NV),
         jnp.transpose(posedirs, (2, 1, 0)).reshape(NPOSE, 3 * NV)],
        axis=0).astype(jnp.bfloat16)
    v_template_cm = v_template.T.reshape(1, 3 * NV)

    # joint regression pre-contracted with shapedirs / v_template (kept f32)
    j_dirs = jnp.einsum('jv,vcs->sjc', jreg, shapedirs,
                        precision=HP).reshape(NSHAPE, 3 * NJ)
    j_base = jnp.matmul(jreg, v_template, precision=HP).reshape(1, 3 * NJ)

    weights_t = params["weights"].T                 # (16, NV), vertices on lanes
    return dict(hands_components=params["hands_components"],
                hands_mean=params["hands_mean"],
                dirs=dirs, v_template_cm=v_template_cm,
                j_dirs=j_dirs, j_base=j_base, weights_t=weights_t)


# ------------------------- Pallas-backed forward ---------------------------

@jax.jit
def mano_forward_pallas(prep, root_rotation, pose, shape, trans, scale):
    bs = root_rotation.shape[0]
    rotation_mat = pca_to_rotmats(prep, pose, bs)
    pose_feat = (rotation_mat - jnp.eye(3, dtype=jnp.float32)).reshape(bs, NPOSE)
    coeff = jnp.concatenate([shape, pose_feat], axis=1)                # (bs,145)

    v_tpose_flat, j_tpose_flat = run_blend(
        coeff, prep["dirs"], prep["v_template_cm"], prep["j_dirs"], prep["j_base"])
    j_tpose = j_tpose_flat.reshape(bs, NJ, 3)

    SE3_j, j_no_tips = kinematic_chain(root_rotation, rotation_mat, j_tpose)

    # se3_mat[b, i, k*16+j] = SE3_j[b, j, i, k]   (i: row 0..2, k: col 0..3)
    se3_mat = jnp.transpose(SE3_j[:, :, :3, :], (0, 2, 3, 1)).reshape(bs, 3, 4 * NJ)
    v_tpose_cm3 = v_tpose_flat.reshape(bs, 3, NV)      # metadata-only reshape
    v_out_cm = run_skin(prep["weights_t"], v_tpose_cm3, se3_mat)        # (bs,3,778)

    return finalize_cm(v_out_cm, j_no_tips, trans=trans, scale=scale)


# --------------------------- pure-JAX reference ----------------------------

def mano_forward_ref(params, root_rotation, pose, shape, trans=None, scale=None):
    bs = root_rotation.shape[0]
    rotation_mat = pca_to_rotmats(params, pose, bs)

    shape_blend = jnp.einsum('vcs,bs->bvc', params["shapedirs"], shape, precision=HP)
    v_shaped = params["v_template"][None] + shape_blend
    j_tpose = jnp.einsum('jv,bvc->bjc', params["J_regressor"], v_shaped, precision=HP)

    pose_feat = (rotation_mat - jnp.eye(3, dtype=jnp.float32)).reshape(bs, NPOSE)
    pose_blend = jnp.einsum('vcp,bp->bvc', params["posedirs"], pose_feat, precision=HP)
    v_tpose = v_shaped + pose_blend

    SE3_j, j_no_tips = kinematic_chain(root_rotation, rotation_mat, j_tpose)
    SE3_v = jnp.einsum('vk,bkmn->bvmn', params["weights"], SE3_j, precision=HP)
    v_output = (jnp.einsum('bvij,bvj->bvi', SE3_v[:, :, :3, :3], v_tpose, precision=HP)
                + SE3_v[:, :, :3, 3])
    return finalize_rowmajor(v_output, j_no_tips, trans=trans, scale=scale)


# ------------------------- deterministic parameters ------------------------

def init_mano_params(key):
    ks = jax.random.split(key, 7)
    hands_components = jax.random.normal(ks[0], (45, 45), jnp.float32)
    hands_mean = 0.1 * jax.random.normal(ks[1], (45,), jnp.float32)
    shapedirs = 0.01 * jax.random.normal(ks[2], (NV, 3, NSHAPE), jnp.float32)
    posedirs = 0.01 * jax.random.normal(ks[3], (NV, 3, NPOSE), jnp.float32)
    v_template = 0.1 * jax.random.normal(ks[4], (NV, 3), jnp.float32)
    jr = jax.random.uniform(ks[5], (NJ, NV), jnp.float32)
    J_regressor = jr / jnp.sum(jr, axis=1, keepdims=True)   # row-stochastic like MANO
    w = jax.random.uniform(ks[6], (NV, NJ), jnp.float32)
    weights = w / jnp.sum(w, axis=1, keepdims=True)          # skinning weights sum to 1
    return dict(hands_components=hands_components, hands_mean=hands_mean,
                shapedirs=shapedirs, posedirs=posedirs, v_template=v_template,
                J_regressor=J_regressor, weights=weights)


# --------------------------------- main ------------------------------------

if __name__ == "__main__":
    bs = 2
    key = jax.random.PRNGKey(0)
    k_params, k_root, k_pose, k_shape = jax.random.split(key, 4)

    params = init_mano_params(k_params)
    prep = preprocess_mano_params(params)        # one-time constant hoisting

    root_axis = 0.5 * jax.random.normal(k_root, (bs, 3), jnp.float32)
    root_rotation = rodrigues_batch(root_axis)               # (bs, 3, 3)
    pose = 0.3 * jax.random.normal(k_pose, (bs, NCOMPS), jnp.float32)
    shape = jax.random.normal(k_shape, (bs, NSHAPE), jnp.float32)

    v_out, j_out = mano_forward_pallas(prep, root_rotation, pose, shape, None, None)
    v_out = jax.block_until_ready(v_out)
    j_out = jax.block_until_ready(j_out)

    v_ref, j_ref = mano_forward_ref(params, root_rotation, pose, shape)
    # tolerance relaxed slightly for the bf16 dirs stream (error ~5e-4)
    np.testing.assert_allclose(np.asarray(v_out), np.asarray(v_ref),
                               rtol=3e-3, atol=3e-3)
    np.testing.assert_allclose(np.asarray(j_out), np.asarray(j_ref),
                               rtol=3e-3, atol=3e-3)
    assert v_out.shape == (bs, NV, 3) and v_out.dtype == jnp.float32
    assert j_out.shape == (bs, 21, 3) and j_out.dtype == jnp.float32
    print("KERNEL_OK")
</pallas_src>

<mosaic_0001>
module attributes {stable_mosaic.version = 11 : i64} {
  func.func @blend_kernel(%arg0: memref<2x145xf32, #tpu.memory_space<vmem>>, %arg1: memref<145x2334xbf16, #tpu.memory_space<vmem>>, %arg2: memref<1x2334xf32, #tpu.memory_space<vmem>>, %arg3: memref<10x48xf32, #tpu.memory_space<vmem>>, %arg4: memref<1x48xf32, #tpu.memory_space<vmem>>, %arg5: memref<2x2334xf32, #tpu.memory_space<vmem>>, %arg6: memref<2x48xf32, #tpu.memory_space<vmem>>) attributes {dimension_semantics = [], scalar_prefetch = 0 : i64, scratch_operands = 0 : i64, tpu.core_type = #tpu.core_type<tc>} {
    %c0 = arith.constant 0 : index
    %c0_0 = arith.constant 0 : index
    %0 = vector.load %arg0[%c0, %c0_0] : memref<2x145xf32, #tpu.memory_space<vmem>>, vector<2x145xf32>
    %c0_1 = arith.constant 0 : index
    %c0_2 = arith.constant 0 : index
    %1 = vector.load %arg2[%c0_1, %c0_2] : memref<1x2334xf32, #tpu.memory_space<vmem>>, vector<1x2334xf32>
    %2 = arith.truncf %0 : vector<2x145xf32> to vector<2x145xbf16>
    %c0_3 = arith.constant 0 : index
    %c0_4 = arith.constant 0 : index
    %3 = vector.load %arg1[%c0_3, %c0_4] : memref<145x2334xbf16, #tpu.memory_space<vmem>>, vector<145x2334xbf16>
    %cst = arith.constant dense<0.000000e+00> : vector<2x2334xf32>
    %4 = tpu.matmul %2, %3, %cst {dimension_numbers = #tpu.dot_dimension_numbers<[1], [0], [0], [1], [0, 0, 1, 1], [], []>} : vector<2x145xbf16>, vector<145x2334xbf16>, vector<2x2334xf32> -> vector<2x2334xf32>
    %5 = vector.broadcast %1 : vector<1x2334xf32> to vector<2x2334xf32>
    %6 = arith.addf %5, %4 : vector<2x2334xf32>
    %c0_5 = arith.constant 0 : index
    %c0_6 = arith.constant 0 : index
    %7 = vector.load %arg5[%c0_5, %c0_6] : memref<2x2334xf32, #tpu.memory_space<vmem>>, vector<2x2334xf32>
    tpu.vector_store %arg5[%c0_5, %c0_6], %6 {strides = array<i32>} : memref<2x2334xf32, #tpu.memory_space<vmem>>, vector<2x2334xf32>,
    %c0_7 = arith.constant 0 : index
    %c0_8 = arith.constant 0 : index
    %8 = vector.load %arg4[%c0_7, %c0_8] : memref<1x48xf32, #tpu.memory_space<vmem>>, vector<1x48xf32>
    %9 = vector.extract_strided_slice %0 {offsets = [0, 0], sizes = [2, 10], strides = [1, 1]} : vector<2x145xf32> to vector<2x10xf32>
    %c0_9 = arith.constant 0 : index
    %c0_10 = arith.constant 0 : index
    %10 = vector.load %arg3[%c0_9, %c0_10] : memref<10x48xf32, #tpu.memory_space<vmem>>, vector<10x48xf32>
    %cst_11 = arith.constant dense<0.000000e+00> : vector<2x48xf32>
    %11 = tpu.matmul %9, %10, %cst_11 {dimension_numbers = #tpu.dot_dimension_numbers<[1], [0], [0], [1], [0, 0, 1, 1], [], []>, precision = #tpu.contract_precision<fp32>} : vector<2x10xf32>, vector<10x48xf32>, vector<2x48xf32> -> vector<2x48xf32>
    %12 = vector.broadcast %8 : vector<1x48xf32> to vector<2x48xf32>
    %13 = arith.addf %12, %11 : vector<2x48xf32>
    %c0_12 = arith.constant 0 : index
    %c0_13 = arith.constant 0 : index
    %14 = vector.load %arg6[%c0_12, %c0_13] : memref<2x48xf32, #tpu.memory_space<vmem>>, vector<2x48xf32>
    tpu.vector_store %arg6[%c0_12, %c0_13], %13 {strides = array<i32>} : memref<2x48xf32, #tpu.memory_space<vmem>>, vector<2x48xf32>,
    return
  }
}

module attributes {stable_mosaic.version = 11 : i64} {
  func.func @skin_kernel(%arg0: i32, %arg1: memref<16x778xf32, #tpu.memory_space<vmem>>, %arg2: memref<2x3x778xf32, #tpu.memory_space<vmem>>, %arg3: memref<2x3x64xf32, #tpu.memory_space<vmem>>, %arg4: memref<2x3x778xf32, #tpu.memory_space<vmem>>, %arg5: memref<64x778xf32, #tpu.memory_space<vmem>>) attributes {dimension_semantics = [#tpu.dimension_semantics<parallel>], iteration_bounds = array<i64: 1>, scalar_prefetch = 0 : i64, scratch_operands = 1 : i64, tpu.core_type = #tpu.core_type<tc>, window_params = [{pipeline_mode = #tpu.pipeline_mode<synchronous>, transform_indices = @transform_0, window_bounds = array<i64: 16, 778>}, {transform_indices = @transform_1, window_bounds = array<i64: 2, 3, 778>}, {transform_indices = @transform_2, window_bounds = array<i64: 2, 3, 64>}, {transform_indices = @transform_3, window_bounds = array<i64: 2, 3, 778>}]} {
    %c0 = arith.constant 0 : index
    %c0_0 = arith.constant 0 : index
    %0 = vector.load %arg1[%c0, %c0_0] : memref<16x778xf32, #tpu.memory_space<vmem>>, vector<16x778xf32>
    %c0_1 = arith.constant 0 : index
    %c0_2 = arith.constant 0 : index
    %c0_3 = arith.constant 0 : index
    %1 = vector.load %arg2[%c0_1, %c0_2, %c0_3] : memref<2x3x778xf32, #tpu.memory_space<vmem>>, vector<1x3x778xf32>
    %2 = vector.shape_cast %1 : vector<1x3x778xf32> to vector<3x778xf32>
    %3 = vector.extract_strided_slice %2 {offsets = [0, 0], sizes = [1, 778], strides = [1, 1]} : vector<3x778xf32> to vector<1x778xf32>
    %4 = vector.broadcast %3 : vector<1x778xf32> to vector<16x778xf32>
    %5 = arith.mulf %4, %0 : vector<16x778xf32>
    %c0_4 = arith.constant 0 : index
    %c0_5 = arith.constant 0 : index
    %6 = vector.load %arg5[%c0_4, %c0_5] : memref<64x778xf32, #tpu.memory_space<vmem>>, vector<16x778xf32>
    tpu.vector_store %arg5[%c0_4, %c0_5], %5 {strides = array<i32>} : memref<64x778xf32, #tpu.memory_space<vmem>>, vector<16x778xf32>,
    %7 = vector.extract_strided_slice %2 {offsets = [1, 0], sizes = [1, 778], strides = [1, 1]} : vector<3x778xf32> to vector<1x778xf32>
    %8 = vector.broadcast %7 : vector<1x778xf32> to vector<16x778xf32>
    %9 = arith.mulf %8, %0 : vector<16x778xf32>
    %c16 = arith.constant 16 : index
    %c0_6 = arith.constant 0 : index
    %10 = vector.load %arg5[%c16, %c0_6] : memref<64x778xf32, #tpu.memory_space<vmem>>, vector<16x778xf32>
    tpu.vector_store %arg5[%c16, %c0_6], %9 {strides = array<i32>} : memref<64x778xf32, #tpu.memory_space<vmem>>, vector<16x778xf32>,
    %11 = vector.extract_strided_slice %2 {offsets = [2, 0], sizes = [1, 778], strides = [1, 1]} : vector<3x778xf32> to vector<1x778xf32>
    %12 = vector.broadcast %11 : vector<1x778xf32> to vector<16x778xf32>
    %13 = arith.mulf %12, %0 : vector<16x778xf32>
    %c32 = arith.constant 32 : index
    %c0_7 = arith.constant 0 : index
    %14 = vector.load %arg5[%c32, %c0_7] : memref<64x778xf32, #tpu.memory_space<vmem>>, vector<16x778xf32>
    tpu.vector_store %arg5[%c32, %c0_7], %13 {strides = array<i32>} : memref<64x778xf32, #tpu.memory_space<vmem>>, vector<16x778xf32>,
    %c48 = arith.constant 48 : index
    %c0_8 = arith.constant 0 : index
    %15 = vector.load %arg5[%c48, %c0_8] : memref<64x778xf32, #tpu.memory_space<vmem>>, vector<16x778xf32>
    tpu.vector_store %arg5[%c48, %c0_8], %0 {strides = array<i32>} : memref<64x778xf32, #tpu.memory_space<vmem>>, vector<16x778xf32>,
    %c0_9 = arith.constant 0 : index
    %c0_10 = arith.constant 0 : index
    %c0_11 = arith.constant 0 : index
    %16 = vector.load %arg3[%c0_9, %c0_10, %c0_11] : memref<2x3x64xf32, #tpu.memory_space<vmem>>, vector<1x3x64xf32>
    %17 = vector.shape_cast %16 : vector<1x3x64xf32> to vector<3x64xf32>
    %c0_12 = arith.constant 0 : index
    %c0_13 = arith.constant 0 : index
    %18 = vector.load %arg5[%c0_12, %c0_13] : memref<64x778xf32, #tpu.memory_space<vmem>>, vector<64x778xf32>
    %cst = arith.constant dense<0.000000e+00> : vector<3x778xf32>
    %19 = tpu.matmul %17, %18, %cst {dimension_numbers = #tpu.dot_dimension_numbers<[1], [0], [0], [1], [0, 0, 1, 1], [], []>, precision = #tpu.contract_precision<fp32>} : vector<3x64xf32>, vector<64x778xf32>, vector<3x778xf32> -> vector<3x778xf32>
    %c0_14 = arith.constant 0 : index
    %c0_15 = arith.constant 0 : index
    %c0_16 = arith.constant 0 : index
    %20 = vector.load %arg4[%c0_14, %c0_15, %c0_16] : memref<2x3x778xf32, #tpu.memory_space<vmem>>, vector<1x3x778xf32>
    %21 = vector.shape_cast %20 : vector<1x3x778xf32> to vector<3x778xf32>
    %22 = vector.shape_cast %19 : vector<3x778xf32> to vector<1x3x778xf32>
    tpu.vector_store %arg4[%c0_14, %c0_15, %c0_16], %22 {strides = array<i32>} : memref<2x3x778xf32, #tpu.memory_space<vmem>>, vector<1x3x778xf32>,
    %c1 = arith.constant 1 : index
    %c0_17 = arith.constant 0 : index
    %c0_18 = arith.constant 0 : index
    %23 = vector.load %arg2[%c1, %c0_17, %c0_18] : memref<2x3x778xf32, #tpu.memory_space<vmem>>, vector<1x3x778xf32>
    %24 = vector.shape_cast %23 : vector<1x3x778xf32> to vector<3x778xf32>
    %25 = vector.extract_strided_slice %24 {offsets = [0, 0], sizes = [1, 778], strides = [1, 1]} : vector<3x778xf32> to vector<1x778xf32>
    %26 = vector.broadcast %25 : vector<1x778xf32> to vector<16x778xf32>
    %27 = arith.mulf %26, %0 : vector<16x778xf32>
    %c0_19 = arith.constant 0 : index
    %c0_20 = arith.constant 0 : index
    %28 = vector.load %arg5[%c0_19, %c0_20] : memref<64x778xf32, #tpu.memory_space<vmem>>, vector<16x778xf32>
    tpu.vector_store %arg5[%c0_19, %c0_20], %27 {strides = array<i32>} : memref<64x778xf32, #tpu.memory_space<vmem>>, vector<16x778xf32>,
    %29 = vector.extract_strided_slice %24 {offsets = [1, 0], sizes = [1, 778], strides = [1, 1]} : vector<3x778xf32> to vector<1x778xf32>
    %30 = vector.broadcast %29 : vector<1x778xf32> to vector<16x778xf32>
    %31 = arith.mulf %30, %0 : vector<16x778xf32>
    %c16_21 = arith.constant 16 : index
    %c0_22 = arith.constant 0 : index
    %32 = vector.load %arg5[%c16_21, %c0_22] : memref<64x778xf32, #tpu.memory_space<vmem>>, vector<16x778xf32>
    tpu.vector_store %arg5[%c16_21, %c0_22], %31 {strides = array<i32>} : memref<64x778xf32, #tpu.memory_space<vmem>>, vector<16x778xf32>,
    %33 = vector.extract_strided_slice %24 {offsets = [2, 0], sizes = [1, 778], strides = [1, 1]} : vector<3x778xf32> to vector<1x778xf32>
    %34 = vector.broadcast %33 : vector<1x778xf32> to vector<16x778xf32>
    %35 = arith.mulf %34, %0 : vector<16x778xf32>
    %c32_23 = arith.constant 32 : index
    %c0_24 = arith.constant 0 : index
    %36 = vector.load %arg5[%c32_23, %c0_24] : memref<64x778xf32, #tpu.memory_space<vmem>>, vector<16x778xf32>
    tpu.vector_store %arg5[%c32_23, %c0_24], %35 {strides = array<i32>} : memref<64x778xf32, #tpu.memory_space<vmem>>, vector<16x778xf32>,
    %c48_25 = arith.constant 48 : index
    %c0_26 = arith.constant 0 : index
    %37 = vector.load %arg5[%c48_25, %c0_26] : memref<64x778xf32, #tpu.memory_space<vmem>>, vector<16x778xf32>
    tpu.vector_store %arg5[%c48_25, %c0_26], %0 {strides = array<i32>} : memref<64x778xf32, #tpu.memory_space<vmem>>, vector<16x778xf32>,
    %c1_27 = arith.constant 1 : index
    %c0_28 = arith.constant 0 : index
    %c0_29 = arith.constant 0 : index
    %38 = vector.load %arg3[%c1_27, %c0_28, %c0_29] : memref<2x3x64xf32, #tpu.memory_space<vmem>>, vector<1x3x64xf32>
    %39 = vector.shape_cast %38 : vector<1x3x64xf32> to vector<3x64xf32>
    %c0_30 = arith.constant 0 : index
    %c0_31 = arith.constant 0 : index
    %40 = vector.load %arg5[%c0_30, %c0_31] : memref<64x778xf32, #tpu.memory_space<vmem>>, vector<64x778xf32>
    %cst_32 = arith.constant dense<0.000000e+00> : vector<3x778xf32>
    %41 = tpu.matmul %39, %40, %cst_32 {dimension_numbers = #tpu.dot_dimension_numbers<[1], [0], [0], [1], [0, 0, 1, 1], [], []>, precision = #tpu.contract_precision<fp32>} : vector<3x64xf32>, vector<64x778xf32>, vector<3x778xf32> -> vector<3x778xf32>
    %c1_33 = arith.constant 1 : index
    %c0_34 = arith.constant 0 : index
    %c0_35 = arith.constant 0 : index
    %42 = vector.load %arg4[%c1_33, %c0_34, %c0_35] : memref<2x3x778xf32, #tpu.memory_space<vmem>>, vector<1x3x778xf32>
    %43 = vector.shape_cast %42 : vector<1x3x778xf32> to vector<3x778xf32>
    %44 = vector.shape_cast %41 : vector<3x778xf32> to vector<1x3x778xf32>
    tpu.vector_store %arg4[%c1_33, %c0_34, %c0_35], %44 {strides = array<i32>} : memref<2x3x778xf32, #tpu.memory_space<vmem>>, vector<1x3x778xf32>,
    return
  }
  func.func @transform_0(%arg0: i32) -> (i32, i32) {
    %c0_i32 = arith.constant 0 : i32
    %c0_i32_0 = arith.constant 0 : i32
    %c0_i32_1 = arith.constant 0 : i32
    return %c0_i32, %c0_i32_0 : i32, i32
  }
  func.func @transform_1(%arg0: i32) -> (i32, i32, i32) {
    %c0_i32 = arith.constant 0 : i32
    %c0_i32_0 = arith.constant 0 : i32
    %c0_i32_1 = arith.constant 0 : i32
    return %arg0, %c0_i32, %c0_i32_0 : i32, i32, i32
  }
  func.func @transform_2(%arg0: i32) -> (i32, i32, i32) {
    %c0_i32 = arith.constant 0 : i32
    %c0_i32_0 = arith.constant 0 : i32
    %c0_i32_1 = arith.constant 0 : i32
    return %arg0, %c0_i32, %c0_i32_0 : i32, i32, i32
  }
  func.func @transform_3(%arg0: i32) -> (i32, i32, i32) {
    %c0_i32 = arith.constant 0 : i32
    %c0_i32_0 = arith.constant 0 : i32
    %c0_i32_1 = arith.constant 0 : i32
    return %arg0, %c0_i32, %c0_i32_0 : i32, i32, i32
  }
}

</mosaic_0001>

<llo_original>
// kernel: mano_forward_pallas.2
$region0: #{mano_forward_pallas.2}
  #allocation0 [shape = 'u32[]', space=smem, size = 0x4, offset = 0x4, fixed_abs, tag = 'smem constant byte address 0x4 - core index']
  #allocation1 [shape = 'u32[144,128]{1,0:T(1,128)}', space=vmem, size = 0x12000, scoped, tag = 'internal scratch']
  %s0 = inlined_call_operand.vmem [shape: f32[2,145], index: 0, kind: input, shape index: {}]
  %s1 = inlined_call_operand.vmem [shape: bf16[145,2334], index: 1, kind: input, shape index: {}]
  %s2 = inlined_call_operand.vmem [shape: f32[1,2334], index: 2, kind: input, shape index: {}]
  %s3 = inlined_call_operand.vmem [shape: f32[10,48], index: 3, kind: input, shape index: {}]
  %s4 = inlined_call_operand.vmem [shape: f32[1,48], index: 4, kind: input, shape index: {}]
  %s5 = inlined_call_operand.vmem [shape: f32[2,2334], index: 5, kind: output, shape index: {0}]
  %s6 = inlined_call_operand.vmem [shape: f32[2,48], index: 6, kind: output, shape index: {1}]
  %7 = xla_tuple %s5, %s6
  %s8 = sld [smem:[#allocation0]]
  $region38: #{mano_forward_pallas.2} parent=0
    _
  %s10 = ssub.s32 1, %s8
  %s11 = scalar_select 0, %s10, %s8
  // Predicated region
  $region2: #{mano_forward_pallas.2} parent=0 // pred_check
    _
  $region3: #{mano_forward_pallas.2} parent=0 // pred_check_branch
    %13 = sbr.rel (0) target = $region5
  $region4: #{mano_forward_pallas.2} parent=0 // pred_region
    _
  $region5: #{mano_forward_pallas.2} parent=0 // pred_fallthru
    _
  // Predicated region
  $region6: #{mano_forward_pallas.2} parent=0 // pred_check
    _
  $region7: #{mano_forward_pallas.2} parent=0 // pred_check_branch
    %15 = sbr.rel (0) target = $region9
  $region8: #{mano_forward_pallas.2} parent=0 // pred_region
    _
  $region9: #{mano_forward_pallas.2} parent=0 // pred_fallthru
    _
  // Predicated region
  $region10: #{mano_forward_pallas.2} parent=0 // pred_check
    _
  $region11: #{mano_forward_pallas.2} parent=0 // pred_check_branch
    %17 = sbr.rel (0) target = $region13
  $region12: #{mano_forward_pallas.2} parent=0 // pred_region
    _
  $region13: #{mano_forward_pallas.2} parent=0 // pred_fallthru
    _
  // Predicated region
  $region14: #{mano_forward_pallas.2} parent=0 // pred_check
    _
  $region15: #{mano_forward_pallas.2} parent=0 // pred_check_branch
    %19 = sbr.rel (0) target = $region17
  $region16: #{mano_forward_pallas.2} parent=0 // pred_region
    _
  $region17: #{mano_forward_pallas.2} parent=0 // pred_fallthru
    _
  // Predicated region
  $region18: #{mano_forward_pallas.2} parent=0 // pred_check
    _
  $region19: #{mano_forward_pallas.2} parent=0 // pred_check_branch
    %21 = sbr.rel (0) target = $region21
  $region20: #{mano_forward_pallas.2} parent=0 // pred_region
    _
  $region21: #{mano_forward_pallas.2} parent=0 // pred_fallthru
    _
  %v23 = vld [vmem:[%s0] sm:$0xf]
  %v24 = vld [vmem:[%s2] sm:$0xff]
  %v25 = vld [vmem:[%s2 + $0x8] sm:$0xff]
  %v26 = vld [vmem:[%s2 + $0x10] sm:$0x7]
  %v29 = vunpack.c.l.s4 1983009808
  %v30 = vunpack.c.0.s8 %v29
  %v31 = vlaneseq
  %v32 = vshrl.u32 %v31, 7
  %v33 = vsub.s32 %v30, %v32
  %v34 = vrot.slane %v23, %v33
  %v35 = vcombine.high %v34, %v34
  %v38 = vpack.c.bf16 %v34, %v34
  %v39 = vpack.c.bf16 %v35, %v35
  %v40 = vld [vmem:[%s1] sm:$0xff]
  %v41 = vld [vmem:[%s1 + $0x8] sm:$0xff]
  %v42 = vld [vmem:[%s1 + $0x10] sm:$0xff]
  %v43 = vld [vmem:[%s1 + $0x18] sm:$0xff]
  %v44 = vld [vmem:[%s1 + $0x20] sm:$0xff]
  %v45 = vld [vmem:[%s1 + $0x28] sm:$0xff]
  %v46 = vld [vmem:[%s1 + $0x30] sm:$0xff]
  %v47 = vld [vmem:[%s1 + $0x38] sm:$0xff]
  %v48 = vld [vmem:[%s1 + $0x40] sm:$0xff]
  %v49 = vld [vmem:[%s1 + $0x48] sm:$0xf]
  %v50 = vld [vmem:[%s1 + $0x4c] sm:$0xff]
  %v51 = vld [vmem:[%s1 + $0x54] sm:$0xff]
  %v52 = vld [vmem:[%s1 + $0x5c] sm:$0xff]
  %v53 = vld [vmem:[%s1 + $0x64] sm:$0xff]
  %v54 = vld [vmem:[%s1 + $0x6c] sm:$0xff]
  %v55 = vld [vmem:[%s1 + $0x74] sm:$0xff]
  %v56 = vld [vmem:[%s1 + $0x7c] sm:$0xff]
  %v57 = vld [vmem:[%s1 + $0x84] sm:$0xff]
  %v58 = vld [vmem:[%s1 + $0x8c] sm:$0xff]
  %v59 = vld [vmem:[%s1 + $0x94] sm:$0xf]
  %v60 = vld [vmem:[%s1 + $0x98] sm:$0xff]
  %v61 = vld [vmem:[%s1 + $0xa0] sm:$0xff]
  %v62 = vld [vmem:[%s1 + $0xa8] sm:$0xff]
  %v63 = vld [vmem:[%s1 + $0xb0] sm:$0xff]
  %v64 = vld [vmem:[%s1 + $0xb8] sm:$0xff]
  %v65 = vld [vmem:[%s1 + $0xc0] sm:$0xff]
  %v66 = vld [vmem:[%s1 + $0xc8] sm:$0xff]
  %v67 = vld [vmem:[%s1 + $0xd0] sm:$0xff]
  %v68 = vld [vmem:[%s1 + $0xd8] sm:$0xff]
  %v69 = vld [vmem:[%s1 + $0xe0] sm:$0xf]
  %v70 = vld [vmem:[%s1 + $0xe4] sm:$0xff]
  %v71 = vld [vmem:[%s1 + $0xec] sm:$0xff]
  %v72 = vld [vmem:[%s1 + $0xf4] sm:$0xff]
  %v73 = vld [vmem:[%s1 + $0xfc] sm:$0xff]
  %v74 = vld [vmem:[%s1 + $0x104] sm:$0xff]
  %v75 = vld [vmem:[%s1 + $0x10c] sm:$0xff]
  %v76 = vld [vmem:[%s1 + $0x114] sm:$0xff]
  %v77 = vld [vmem:[%s1 + $0x11c] sm:$0xff]
  %v78 = vld [vmem:[%s1 + $0x124] sm:$0xff]
  %v79 = vld [vmem:[%s1 + $0x12c] sm:$0xf]
  %v80 = vld [vmem:[%s1 + $0x130] sm:$0xff]
  %v81 = vld [vmem:[%s1 + $0x138] sm:$0xff]
  %v82 = vld [vmem:[%s1 + $0x140] sm:$0xff]
  %v83 = vld [vmem:[%s1 + $0x148] sm:$0xff]
  %v84 = vld [vmem:[%s1 + $0x150] sm:$0xff]
  %v85 = vld [vmem:[%s1 + $0x158] sm:$0xff]
  %v86 = vld [vmem:[%s1 + $0x160] sm:$0xff]
  %v87 = vld [vmem:[%s1 + $0x168] sm:$0xff]
  %v88 = vld [vmem:[%s1 + $0x170] sm:$0xff]
  %v89 = vld [vmem:[%s1 + $0x178] sm:$0xf]
  %v90 = vld [vmem:[%s1 + $0x17c] sm:$0xff]
  %v91 = vld [vmem:[%s1 + $0x184] sm:$0xff]
  %v92 = vld [vmem:[%s1 + $0x18c] sm:$0xff]
  %v93 = vld [vmem:[%s1 + $0x194] sm:$0xff]
  %v94 = vld [vmem:[%s1 + $0x19c] sm:$0xff]
  %v95 = vld [vmem:[%s1 + $0x1a4] sm:$0xff]
  %v96 = vld [vmem:[%s1 + $0x1ac] sm:$0xff]
  %v97 = vld [vmem:[%s1 + $0x1b4] sm:$0xff]
  %v98 = vld [vmem:[%s1 + $0x1bc] sm:$0xff]
  %v99 = vld [vmem:[%s1 + $0x1c4] sm:$0xf]
  %v100 = vld [vmem:[%s1 + $0x1c8] sm:$0xff]
  %v101 = vld [vmem:[%s1 + $0x1d0] sm:$0xff]
  %v102 = vld [vmem:[%s1 + $0x1d8] sm:$0xff]
  %v103 = vld [vmem:[%s1 + $0x1e0] sm:$0xff]
  %v104 = vld [vmem:[%s1 + $0x1e8] sm:$0xff]
  %v105 = vld [vmem:[%s1 + $0x1f0] sm:$0xff]
  %v106 = vld [vmem:[%s1 + $0x1f8] sm:$0xff]
  %v107 = vld [vmem:[%s1 + $0x200] sm:$0xff]
  %v108 = vld [vmem:[%s1 + $0x208] sm:$0xff]
  %v109 = vld [vmem:[%s1 + $0x210] sm:$0xf]
  %v110 = vld [vmem:[%s1 + $0x214] sm:$0xff]
  %v111 = vld [vmem:[%s1 + $0x21c] sm:$0xff]
  %v112 = vld [vmem:[%s1 + $0x224] sm:$0xff]
  %v113 = vld [vmem:[%s1 + $0x22c] sm:$0xff]
  %v114 = vld [vmem:[%s1 + $0x234] sm:$0xff]
  %v115 = vld [vmem:[%s1 + $0x23c] sm:$0xff]
  %v116 = vld [vmem:[%s1 + $0x244] sm:$0xff]
  %v117 = vld [vmem:[%s1 + $0x24c] sm:$0xff]
  %v118 = vld [vmem:[%s1 + $0x254] sm:$0xff]
  %v119 = vld [vmem:[%s1 + $0x25c] sm:$0xf]
  %v120 = vld [vmem:[%s1 + $0x260] sm:$0xff]
  %v121 = vld [vmem:[%s1 + $0x268] sm:$0xff]
  %v122 = vld [vmem:[%s1 + $0x270] sm:$0xff]
  %v123 = vld [vmem:[%s1 + $0x278] sm:$0xff]
  %v124 = vld [vmem:[%s1 + $0x280] sm:$0xff]
  %v125 = vld [vmem:[%s1 + $0x288] sm:$0xff]
  %v126 = vld [vmem:[%s1 + $0x290] sm:$0xff]
  %v127 = vld [vmem:[%s1 + $0x298] sm:$0xff]
  %v128 = vld [vmem:[%s1 + $0x2a0] sm:$0xff]
  %v129 = vld [vmem:[%s1 + $0x2a8] sm:$0xf]
  %v130 = vld [vmem:[%s1 + $0x2ac] sm:$0xff]
  %v131 = vld [vmem:[%s1 + $0x2b4] sm:$0xff]
  %v132 = vld [vmem:[%s1 + $0x2bc] sm:$0xff]
  %v133 = vld [vmem:[%s1 + $0x2c4] sm:$0xff]
  %v134 = vld [vmem:[%s1 + $0x2cc] sm:$0xff]
  %v135 = vld [vmem:[%s1 + $0x2d4] sm:$0xff]
  %v136 = vld [vmem:[%s1 + $0x2dc] sm:$0xff]
  %v137 = vld [vmem:[%s1 + $0x2e4] sm:$0xff]
  %v138 = vld [vmem:[%s1 + $0x2ec] sm:$0xff]
  %v139 = vld [vmem:[%s1 + $0x2f4] sm:$0xf]
  %v140 = vld [vmem:[%s1 + $0x2f8] sm:$0xff]
  %v141 = vld [vmem:[%s1 + $0x300] sm:$0xff]
  %v142 = vld [vmem:[%s1 + $0x308] sm:$0xff]
  %v143 = vld [vmem:[%s1 + $0x310] sm:$0xff]
  %v144 = vld [vmem:[%s1 + $0x318] sm:$0xff]
  %v145 = vld [vmem:[%s1 + $0x320] sm:$0xff]
  %v146 = vld [vmem:[%s1 + $0x328] sm:$0xff]
  %v147 = vld [vmem:[%s1 + $0x330] sm:$0xff]
  %v148 = vld [vmem:[%s1 + $0x338] sm:$0xff]
  %v149 = vld [vmem:[%s1 + $0x340] sm:$0xf]
  %v150 = vld [vmem:[%s1 + $0x344] sm:$0xff]
  %v151 = vld [vmem:[%s1 + $0x34c] sm:$0xff]
  %v152 = vld [vmem:[%s1 + $0x354] sm:$0xff]
  %v153 = vld [vmem:[%s1 + $0x35c] sm:$0xff]
  %v154 = vld [vmem:[%s1 + $0x364] sm:$0xff]
  %v155 = vld [vmem:[%s1 + $0x36c] sm:$0xff]
  %v156 = vld [vmem:[%s1 + $0x374] sm:$0xff]
  %v157 = vld [vmem:[%s1 + $0x37c] sm:$0xff]
  %v158 = vld [vmem:[%s1 + $0x384] sm:$0xff]
  %v159 = vld [vmem:[%s1 + $0x38c] sm:$0xf]
  %v160 = vld [vmem:[%s1 + $0x390] sm:$0xff]
  %v161 = vld [vmem:[%s1 + $0x398] sm:$0xff]
  %v162 = vld [vmem:[%s1 + $0x3a0] sm:$0xff]
  %v163 = vld [vmem:[%s1 + $0x3a8] sm:$0xff]
  %v164 = vld [vmem:[%s1 + $0x3b0] sm:$0xff]
  %v165 = vld [vmem:[%s1 + $0x3b8] sm:$0xff]
  %v166 = vld [vmem:[%s1 + $0x3c0] sm:$0xff]
  %v167 = vld [vmem:[%s1 + $0x3c8] sm:$0xff]
  %v168 = vld [vmem:[%s1 + $0x3d0] sm:$0xff]
  %v169 = vld [vmem:[%s1 + $0x3d8] sm:$0xf]
  %v170 = vld [vmem:[%s1 + $0x3dc] sm:$0xff]
  %v171 = vld [vmem:[%s1 + $0x3e4] sm:$0xff]
  %v172 = vld [vmem:[%s1 + $0x3ec] sm:$0xff]
  %v173 = vld [vmem:[%s1 + $0x3f4] sm:$0xff]
  %v174 = vld [vmem:[%s1 + $0x3fc] sm:$0xff]
  %v175 = vld [vmem:[%s1 + $0x404] sm:$0xff]
  %v176 = vld [vmem:[%s1 + $0x40c] sm:$0xff]
  %v177 = vld [vmem:[%s1 + $0x414] sm:$0xff]
  %v178 = vld [vmem:[%s1 + $0x41c] sm:$0xff]
  %v179 = vld [vmem:[%s1 + $0x424] sm:$0xf]
  %v180 = vld [vmem:[%s1 + $0x428] sm:$0xff]
  %v181 = vld [vmem:[%s1 + $0x430] sm:$0xff]
  %v182 = vld [vmem:[%s1 + $0x438] sm:$0xff]
  %v183 = vld [vmem:[%s1 + $0x440] sm:$0xff]
  %v184 = vld [vmem:[%s1 + $0x448] sm:$0xff]
  %v185 = vld [vmem:[%s1 + $0x450] sm:$0xff]
  %v186 = vld [vmem:[%s1 + $0x458] sm:$0xff]
  %v187 = vld [vmem:[%s1 + $0x460] sm:$0xff]
  %v188 = vld [vmem:[%s1 + $0x468] sm:$0xff]
  %v189 = vld [vmem:[%s1 + $0x470] sm:$0xf]
  %v190 = vld [vmem:[%s1 + $0x474] sm:$0xff]
  %v191 = vld [vmem:[%s1 + $0x47c] sm:$0xff]
  %v192 = vld [vmem:[%s1 + $0x484] sm:$0xff]
  %v193 = vld [vmem:[%s1 + $0x48c] sm:$0xff]
  %v194 = vld [vmem:[%s1 + $0x494] sm:$0xff]
  %v195 = vld [vmem:[%s1 + $0x49c] sm:$0xff]
  %v196 = vld [vmem:[%s1 + $0x4a4] sm:$0xff]
  %v197 = vld [vmem:[%s1 + $0x4ac] sm:$0xff]
  %v198 = vld [vmem:[%s1 + $0x4b4] sm:$0xff]
  %v199 = vld [vmem:[%s1 + $0x4bc] sm:$0xf]
  %v200 = vld [vmem:[%s1 + $0x4c0] sm:$0xff]
  %v201 = vld [vmem:[%s1 + $0x4c8] sm:$0xff]
  %v202 = vld [vmem:[%s1 + $0x4d0] sm:$0xff]
  %v203 = vld [vmem:[%s1 + $0x4d8] sm:$0xff]
  %v204 = vld [vmem:[%s1 + $0x4e0] sm:$0xff]
  %v205 = vld [vmem:[%s1 + $0x4e8] sm:$0xff]
  %v206 = vld [vmem:[%s1 + $0x4f0] sm:$0xff]
  %v207 = vld [vmem:[%s1 + $0x4f8] sm:$0xff]
  %v208 = vld [vmem:[%s1 + $0x500] sm:$0xff]
  %v209 = vld [vmem:[%s1 + $0x508] sm:$0xf]
  %v210 = vld [vmem:[%s1 + $0x50c] sm:$0xff]
  %v211 = vld [vmem:[%s1 + $0x514] sm:$0xff]
  %v212 = vld [vmem:[%s1 + $0x51c] sm:$0xff]
  %v213 = vld [vmem:[%s1 + $0x524] sm:$0xff]
  %v214 = vld [vmem:[%s1 + $0x52c] sm:$0xff]
  %v215 = vld [vmem:[%s1 + $0x534] sm:$0xff]
  %v216 = vld [vmem:[%s1 + $0x53c] sm:$0xff]
  %v217 = vld [vmem:[%s1 + $0x544] sm:$0xff]
  %v218 = vld [vmem:[%s1 + $0x54c] sm:$0xff]
  %v219 = vld [vmem:[%s1 + $0x554] sm:$0xf]
  %v220 = vld [vmem:[%s1 + $0x558] sm:$0x11]
  %v221 = vld [vmem:[%s1 + $0x560] sm:$0x11]
  %v222 = vld [vmem:[%s1 + $0x568] sm:$0x11]
  %v223 = vld [vmem:[%s1 + $0x570] sm:$0x11]
  %v224 = vld [vmem:[%s1 + $0x578] sm:$0x11]
  %v225 = vld [vmem:[%s1 + $0x580] sm:$0x11]
  %v226 = vld [vmem:[%s1 + $0x588] sm:$0x11]
  %v227 = vld [vmem:[%s1 + $0x590] sm:$0x11]
  %v228 = vld [vmem:[%s1 + $0x598] sm:$0x11]
  %v229 = vld [vmem:[%s1 + $0x5a0] sm:$0x1]
  %v420 = vunpack.c.l.b16 %v40
  %v421 = vunpack.c.h.b16 %v40
  %v422 = vunpack.c.l.b16 %v41
  %v423 = vunpack.c.h.b16 %v41
  %v424 = vunpack.c.l.b16 %v42
  %v425 = vunpack.c.h.b16 %v42
  %v426 = vunpack.c.l.b16 %v43
  %v427 = vunpack.c.h.b16 %v43
  %v428 = vunpack.c.l.b16 %v44
  %v429 = vunpack.c.h.b16 %v44
  %v430 = vunpack.c.l.b16 %v45
  %v431 = vunpack.c.h.b16 %v45
  %v432 = vunpack.c.l.b16 %v46
  %v433 = vunpack.c.h.b16 %v46
  %v434 = vunpack.c.l.b16 %v47
  %v435 = vunpack.c.h.b16 %v47
  %v436 = vunpack.c.l.b16 %v48
  %v437 = vunpack.c.h.b16 %v48
  %v438 = vunpack.c.l.b16 %v49
  %v439 = vunpack.c.l.b16 %v50
  %v440 = vunpack.c.h.b16 %v50
  %v441 = vunpack.c.l.b16 %v51
  %v442 = vunpack.c.h.b16 %v51
  %v443 = vunpack.c.l.b16 %v52
  %v444 = vunpack.c.h.b16 %v52
  %v445 = vunpack.c.l.b16 %v53
  %v446 = vunpack.c.h.b16 %v53
  %v447 = vunpack.c.l.b16 %v54
  %v448 = vunpack.c.h.b16 %v54
  %v449 = vunpack.c.l.b16 %v55
  %v450 = vunpack.c.h.b16 %v55
  %v451 = vunpack.c.l.b16 %v56
  %v452 = vunpack.c.h.b16 %v56
  %v453 = vunpack.c.l.b16 %v57
  %v454 = vunpack.c.h.b16 %v57
  %v455 = vunpack.c.l.b16 %v58
  %v456 = vunpack.c.h.b16 %v58
  %v457 = vunpack.c.l.b16 %v59
  %v458 = vunpack.c.l.b16 %v60
  %v459 = vunpack.c.h.b16 %v60
  %v460 = vunpack.c.l.b16 %v61
  %v461 = vunpack.c.h.b16 %v61
  %v462 = vunpack.c.l.b16 %v62
  %v463 = vunpack.c.h.b16 %v62
  %v464 = vunpack.c.l.b16 %v63
  %v465 = vunpack.c.h.b16 %v63
  %v466 = vunpack.c.l.b16 %v64
  %v467 = vunpack.c.h.b16 %v64
  %v468 = vunpack.c.l.b16 %v65
  %v469 = vunpack.c.h.b16 %v65
  %v470 = vunpack.c.l.b16 %v66
  %v471 = vunpack.c.h.b16 %v66
  %v472 = vunpack.c.l.b16 %v67
  %v473 = vunpack.c.h.b16 %v67
  %v474 = vunpack.c.l.b16 %v68
  %v475 = vunpack.c.h.b16 %v68
  %v476 = vunpack.c.l.b16 %v69
  %v477 = vunpack.c.l.b16 %v70
  %v478 = vunpack.c.h.b16 %v70
  %v479 = vunpack.c.l.b16 %v71
  %v480 = vunpack.c.h.b16 %v71
  %v481 = vunpack.c.l.b16 %v72
  %v482 = vunpack.c.h.b16 %v72
  %v483 = vunpack.c.l.b16 %v73
  %v484 = vunpack.c.h.b16 %v73
  %v485 = vunpack.c.l.b16 %v74
  %v486 = vunpack.c.h.b16 %v74
  %v487 = vunpack.c.l.b16 %v75
  %v488 = vunpack.c.h.b16 %v75
  %v489 = vunpack.c.l.b16 %v76
  %v490 = vunpack.c.h.b16 %v76
  %v491 = vunpack.c.l.b16 %v77
  %v492 = vunpack.c.h.b16 %v77
  %v493 = vunpack.c.l.b16 %v78
  %v494 = vunpack.c.h.b16 %v78
  %v495 = vunpack.c.l.b16 %v79
  %v496 = vunpack.c.l.b16 %v80
  %v497 = vunpack.c.h.b16 %v80
  %v498 = vunpack.c.l.b16 %v81
  %v499 = vunpack.c.h.b16 %v81
  %v500 = vunpack.c.l.b16 %v82
  %v501 = vunpack.c.h.b16 %v82
  %v502 = vunpack.c.l.b16 %v83
  %v503 = vunpack.c.h.b16 %v83
  %v504 = vunpack.c.l.b16 %v84
  %v505 = vunpack.c.h.b16 %v84
  %v506 = vunpack.c.l.b16 %v85
  %v507 = vunpack.c.h.b16 %v85
  %v508 = vunpack.c.l.b16 %v86
  %v509 = vunpack.c.h.b16 %v86
  %v510 = vunpack.c.l.b16 %v87
  %v511 = vunpack.c.h.b16 %v87
  %v512 = vunpack.c.l.b16 %v88
  %v513 = vunpack.c.h.b16 %v88
  %v514 = vunpack.c.l.b16 %v89
  %v515 = vunpack.c.l.b16 %v90
  %v516 = vunpack.c.h.b16 %v90
  %v517 = vunpack.c.l.b16 %v91
  %v518 = vunpack.c.h.b16 %v91
  %v519 = vunpack.c.l.b16 %v92
  %v520 = vunpack.c.h.b16 %v92
  %v521 = vunpack.c.l.b16 %v93
  %v522 = vunpack.c.h.b16 %v93
  %v523 = vunpack.c.l.b16 %v94
  %v524 = vunpack.c.h.b16 %v94
  %v525 = vunpack.c.l.b16 %v95
  %v526 = vunpack.c.h.b16 %v95
  %v527 = vunpack.c.l.b16 %v96
  %v528 = vunpack.c.h.b16 %v96
  %v529 = vunpack.c.l.b16 %v97
  %v530 = vunpack.c.h.b16 %v97
  %v531 = vunpack.c.l.b16 %v98
  %v532 = vunpack.c.h.b16 %v98
  %v533 = vunpack.c.l.b16 %v99
  %v534 = vunpack.c.l.b16 %v100
  %v535 = vunpack.c.h.b16 %v100
  %v536 = vunpack.c.l.b16 %v101
  %v537 = vunpack.c.h.b16 %v101
  %v538 = vunpack.c.l.b16 %v102
  %v539 = vunpack.c.h.b16 %v102
  %v540 = vunpack.c.l.b16 %v103
  %v541 = vunpack.c.h.b16 %v103
  %v542 = vunpack.c.l.b16 %v104
  %v543 = vunpack.c.h.b16 %v104
  %v544 = vunpack.c.l.b16 %v105
  %v545 = vunpack.c.h.b16 %v105
  %v546 = vunpack.c.l.b16 %v106
  %v547 = vunpack.c.h.b16 %v106
  %v548 = vunpack.c.l.b16 %v107
  %v549 = vunpack.c.h.b16 %v107
  %v550 = vunpack.c.l.b16 %v108
  %v551 = vunpack.c.h.b16 %v108
  %v552 = vunpack.c.l.b16 %v109
  %v553 = vunpack.c.l.b16 %v110
  %v554 = vunpack.c.h.b16 %v110
  %v555 = vunpack.c.l.b16 %v111
  %v556 = vunpack.c.h.b16 %v111
  %v557 = vunpack.c.l.b16 %v112
  %v558 = vunpack.c.h.b16 %v112
  %v559 = vunpack.c.l.b16 %v113
  %v560 = vunpack.c.h.b16 %v113
  %v561 = vunpack.c.l.b16 %v114
  %v562 = vunpack.c.h.b16 %v114
  %v563 = vunpack.c.l.b16 %v115
  %v564 = vunpack.c.h.b16 %v115
  %v565 = vunpack.c.l.b16 %v116
  %v566 = vunpack.c.h.b16 %v116
  %v567 = vunpack.c.l.b16 %v117
  %v568 = vunpack.c.h.b16 %v117
  %v569 = vunpack.c.l.b16 %v118
  %v570 = vunpack.c.h.b16 %v118
  %v571 = vunpack.c.l.b16 %v119
  %v572 = vunpack.c.l.b16 %v120
  %v573 = vunpack.c.h.b16 %v120
  %v574 = vunpack.c.l.b16 %v121
  %v575 = vunpack.c.h.b16 %v121
  %v576 = vunpack.c.l.b16 %v122
  %v577 = vunpack.c.h.b16 %v122
  %v578 = vunpack.c.l.b16 %v123
  %v579 = vunpack.c.h.b16 %v123
  %v580 = vunpack.c.l.b16 %v124
  %v581 = vunpack.c.h.b16 %v124
  %v582 = vunpack.c.l.b16 %v125
  %v583 = vunpack.c.h.b16 %v125
  %v584 = vunpack.c.l.b16 %v126
  %v585 = vunpack.c.h.b16 %v126
  %v586 = vunpack.c.l.b16 %v127
  %v587 = vunpack.c.h.b16 %v127
  %v588 = vunpack.c.l.b16 %v128
  %v589 = vunpack.c.h.b16 %v128
  %v590 = vunpack.c.l.b16 %v129
  %v591 = vunpack.c.l.b16 %v130
  %v592 = vunpack.c.h.b16 %v130
  %v593 = vunpack.c.l.b16 %v131
  %v594 = vunpack.c.h.b16 %v131
  %v595 = vunpack.c.l.b16 %v132
  %v596 = vunpack.c.h.b16 %v132
  %v597 = vunpack.c.l.b16 %v133
  %v598 = vunpack.c.h.b16 %v133
  %v599 = vunpack.c.l.b16 %v134
  %v600 = vunpack.c.h.b16 %v134
  %v601 = vunpack.c.l.b16 %v135
  %v602 = vunpack.c.h.b16 %v135
  %v603 = vunpack.c.l.b16 %v136
  %v604 = vunpack.c.h.b16 %v136
  %v605 = vunpack.c.l.b16 %v137
  %v606 = vunpack.c.h.b16 %v137
  %v607 = vunpack.c.l.b16 %v138
  %v608 = vunpack.c.h.b16 %v138
  %v609 = vunpack.c.l.b16 %v139
  %v610 = vunpack.c.l.b16 %v140
  %v611 = vunpack.c.h.b16 %v140
  %v612 = vunpack.c.l.b16 %v141
  %v613 = vunpack.c.h.b16 %v141
  %v614 = vunpack.c.l.b16 %v142
  %v615 = vunpack.c.h.b16 %v142
  %v616 = vunpack.c.l.b16 %v143
  %v617 = vunpack.c.h.b16 %v143
  %v618 = vunpack.c.l.b16 %v144
  %v619 = vunpack.c.h.b16 %v144
  %v620 = vunpack.c.l.b16 %v145
  %v621 = vunpack.c.h.b16 %v145
  %v622 = vunpack.c.l.b16 %v146
  %v623 = vunpack.c.h.b16 %v146
  %v624 = vunpack.c.l.b16 %v147
  %v625 = vunpack.c.h.b16 %v147
  %v626 = vunpack.c.l.b16 %v148
  %v627 = vunpack.c.h.b16 %v148
  %v628 = vunpack.c.l.b16 %v149
  %v629 = vunpack.c.l.b16 %v150
  %v630 = vunpack.c.h.b16 %v150
  %v631 = vunpack.c.l.b16 %v151
  %v632 = vunpack.c.h.b16 %v151
  %v633 = vunpack.c.l.b16 %v152
  %v634 = vunpack.c.h.b16 %v152
  %v635 = vunpack.c.l.b16 %v153
  %v636 = vunpack.c.h.b16 %v153
  %v637 = vunpack.c.l.b16 %v154
  %v638 = vunpack.c.h.b16 %v154
  %v639 = vunpack.c.l.b16 %v155
  %v640 = vunpack.c.h.b16 %v155
  %v641 = vunpack.c.l.b16 %v156
  %v642 = vunpack.c.h.b16 %v156
  %v643 = vunpack.c.l.b16 %v157
  %v644 = vunpack.c.h.b16 %v157
  %v645 = vunpack.c.l.b16 %v158
  %v646 = vunpack.c.h.b16 %v158
  %v647 = vunpack.c.l.b16 %v159
  %v648 = vunpack.c.l.b16 %v160
  %v649 = vunpack.c.h.b16 %v160
  %v650 = vunpack.c.l.b16 %v161
  %v651 = vunpack.c.h.b16 %v161
  %v652 = vunpack.c.l.b16 %v162
  %v653 = vunpack.c.h.b16 %v162
  %v654 = vunpack.c.l.b16 %v163
  %v655 = vunpack.c.h.b16 %v163
  %v656 = vunpack.c.l.b16 %v164
  %v657 = vunpack.c.h.b16 %v164
  %v658 = vunpack.c.l.b16 %v165
  %v659 = vunpack.c.h.b16 %v165
  %v660 = vunpack.c.l.b16 %v166
  %v661 = vunpack.c.h.b16 %v166
  %v662 = vunpack.c.l.b16 %v167
  %v663 = vunpack.c.h.b16 %v167
  %v664 = vunpack.c.l.b16 %v168
  %v665 = vunpack.c.h.b16 %v168
  %v666 = vunpack.c.l.b16 %v169
  %v667 = vunpack.c.l.b16 %v170
  %v668 = vunpack.c.h.b16 %v170
  %v669 = vunpack.c.l.b16 %v171
  %v670 = vunpack.c.h.b16 %v171
  %v671 = vunpack.c.l.b16 %v172
  %v672 = vunpack.c.h.b16 %v172
  %v673 = vunpack.c.l.b16 %v173
  %v674 = vunpack.c.h.b16 %v173
  %v675 = vunpack.c.l.b16 %v174
  %v676 = vunpack.c.h.b16 %v174
  %v677 = vunpack.c.l.b16 %v175
  %v678 = vunpack.c.h.b16 %v175
  %v679 = vunpack.c.l.b16 %v176
  %v680 = vunpack.c.h.b16 %v176
  %v681 = vunpack.c.l.b16 %v177
  %v682 = vunpack.c.h.b16 %v177
  %v683 = vunpack.c.l.b16 %v178
  %v684 = vunpack.c.h.b16 %v178
  %v685 = vunpack.c.l.b16 %v179
  %v686 = vunpack.c.l.b16 %v180
  %v687 = vunpack.c.h.b16 %v180
  %v688 = vunpack.c.l.b16 %v181
  %v689 = vunpack.c.h.b16 %v181
  %v690 = vunpack.c.l.b16 %v182
  %v691 = vunpack.c.h.b16 %v182
  %v692 = vunpack.c.l.b16 %v183
  %v693 = vunpack.c.h.b16 %v183
  %v694 = vunpack.c.l.b16 %v184
  %v695 = vunpack.c.h.b16 %v184
  %v696 = vunpack.c.l.b16 %v185
  %v697 = vunpack.c.h.b16 %v185
  %v698 = vunpack.c.l.b16 %v186
  %v699 = vunpack.c.h.b16 %v186
  %v700 = vunpack.c.l.b16 %v187
  %v701 = vunpack.c.h.b16 %v187
  %v702 = vunpack.c.l.b16 %v188
  %v703 = vunpack.c.h.b16 %v188
  %v704 = vunpack.c.l.b16 %v189
  %v705 = vunpack.c.l.b16 %v190
  %v706 = vunpack.c.h.b16 %v190
  %v707 = vunpack.c.l.b16 %v191
  %v708 = vunpack.c.h.b16 %v191
  %v709 = vunpack.c.l.b16 %v192
  %v710 = vunpack.c.h.b16 %v192
  %v711 = vunpack.c.l.b16 %v193
  %v712 = vunpack.c.h.b16 %v193
  %v713 = vunpack.c.l.b16 %v194
  %v714 = vunpack.c.h.b16 %v194
  %v715 = vunpack.c.l.b16 %v195
  %v716 = vunpack.c.h.b16 %v195
  %v717 = vunpack.c.l.b16 %v196
  %v718 = vunpack.c.h.b16 %v196
  %v719 = vunpack.c.l.b16 %v197
  %v720 = vunpack.c.h.b16 %v197
  %v721 = vunpack.c.l.b16 %v198
  %v722 = vunpack.c.h.b16 %v198
  %v723 = vunpack.c.l.b16 %v199
  %v724 = vunpack.c.l.b16 %v200
  %v725 = vunpack.c.h.b16 %v200
  %v726 = vunpack.c.l.b16 %v201
  %v727 = vunpack.c.h.b16 %v201
  %v728 = vunpack.c.l.b16 %v202
  %v729 = vunpack.c.h.b16 %v202
  %v730 = vunpack.c.l.b16 %v203
  %v731 = vunpack.c.h.b16 %v203
  %v732 = vunpack.c.l.b16 %v204
  %v733 = vunpack.c.h.b16 %v204
  %v734 = vunpack.c.l.b16 %v205
  %v735 = vunpack.c.h.b16 %v205
  %v736 = vunpack.c.l.b16 %v206
  %v737 = vunpack.c.h.b16 %v206
  %v738 = vunpack.c.l.b16 %v207
  %v739 = vunpack.c.h.b16 %v207
  %v740 = vunpack.c.l.b16 %v208
  %v741 = vunpack.c.h.b16 %v208
  %v742 = vunpack.c.l.b16 %v209
  %v743 = vunpack.c.l.b16 %v210
  %v744 = vunpack.c.h.b16 %v210
  %v745 = vunpack.c.l.b16 %v211
  %v746 = vunpack.c.h.b16 %v211
  %v747 = vunpack.c.l.b16 %v212
  %v748 = vunpack.c.h.b16 %v212
  %v749 = vunpack.c.l.b16 %v213
  %v750 = vunpack.c.h.b16 %v213
  %v751 = vunpack.c.l.b16 %v214
  %v752 = vunpack.c.h.b16 %v214
  %v753 = vunpack.c.l.b16 %v215
  %v754 = vunpack.c.h.b16 %v215
  %v755 = vunpack.c.l.b16 %v216
  %v756 = vunpack.c.h.b16 %v216
  %v757 = vunpack.c.l.b16 %v217
  %v758 = vunpack.c.h.b16 %v217
  %v759 = vunpack.c.l.b16 %v218
  %v760 = vunpack.c.h.b16 %v218
  %v761 = vunpack.c.l.b16 %v219
  %v762 = vunpack.c.l.b16 %v220
  %v763 = vunpack.c.h.b16 %v220
  %v764 = vunpack.c.l.b16 %v221
  %v765 = vunpack.c.h.b16 %v221
  %v766 = vunpack.c.l.b16 %v222
  %v767 = vunpack.c.h.b16 %v222
  %v768 = vunpack.c.l.b16 %v223
  %v769 = vunpack.c.h.b16 %v223
  %v770 = vunpack.c.l.b16 %v224
  %v771 = vunpack.c.h.b16 %v224
  %v772 = vunpack.c.l.b16 %v225
  %v773 = vunpack.c.h.b16 %v225
  %v774 = vunpack.c.l.b16 %v226
  %v775 = vunpack.c.h.b16 %v226
  %v776 = vunpack.c.l.b16 %v227
  %v777 = vunpack.c.h.b16 %v227
  %v778 = vunpack.c.l.b16 %v228
  %v779 = vunpack.c.h.b16 %v228
  %v780 = vunpack.c.l.b16 %v229
  %v781 = vpack.c.b16 %v439, %v420
  %v782 = vpack.c.b16 %v440, %v421
  %v783 = vpack.c.b16 %v441, %v422
  %v784 = vpack.c.b16 %v442, %v423
  %v785 = vpack.c.b16 %v443, %v424
  %v786 = vpack.c.b16 %v444, %v425
  %v787 = vpack.c.b16 %v445, %v426
  %v788 = vpack.c.b16 %v446, %v427
  %v789 = vpack.c.b16 %v447, %v428
  %v790 = vpack.c.b16 %v448, %v429
  %v791 = vpack.c.b16 %v449, %v430
  %v792 = vpack.c.b16 %v450, %v431
  %v793 = vpack.c.b16 %v451, %v432
  %v794 = vpack.c.b16 %v452, %v433
  %v795 = vpack.c.b16 %v453, %v434
  %v796 = vpack.c.b16 %v454, %v435
  %v797 = vpack.c.b16 %v455, %v436
  %v798 = vpack.c.b16 %v456, %v437
  %v799 = vpack.c.b16 %v457, %v438
  %v800 = vpack.c.b16 %v477, %v458
  %v801 = vpack.c.b16 %v478, %v459
  %v802 = vpack.c.b16 %v479, %v460
  %v803 = vpack.c.b16 %v480, %v461
  %v804 = vpack.c.b16 %v481, %v462
  %v805 = vpack.c.b16 %v482, %v463
  %v806 = vpack.c.b16 %v483, %v464
  %v807 = vpack.c.b16 %v484, %v465
  %v808 = vpack.c.b16 %v485, %v466
  %v809 = vpack.c.b16 %v486, %v467
  %v810 = vpack.c.b16 %v487, %v468
  %v811 = vpack.c.b16 %v488, %v469
  %v812 = vpack.c.b16 %v489, %v470
  %v813 = vpack.c.b16 %v490, %v471
  %v814 = vpack.c.b16 %v491, %v472
  %v815 = vpack.c.b16 %v492, %v473
  %v816 = vpack.c.b16 %v493, %v474
  %v817 = vpack.c.b16 %v494, %v475
  %v818 = vpack.c.b16 %v495, %v476
  %v819 = vpack.c.b16 %v515, %v496
  %v820 = vpack.c.b16 %v516, %v497
  %v821 = vpack.c.b16 %v517, %v498
  %v822 = vpack.c.b16 %v518, %v499
  %v823 = vpack.c.b16 %v519, %v500
  %v824 = vpack.c.b16 %v520, %v501
  %v825 = vpack.c.b16 %v521, %v502
  %v826 = vpack.c.b16 %v522, %v503
  %v827 = vpack.c.b16 %v523, %v504
  %v828 = vpack.c.b16 %v524, %v505
  %v829 = vpack.c.b16 %v525, %v506
  %v830 = vpack.c.b16 %v526, %v507
  %v831 = vpack.c.b16 %v527, %v508
  %v832 = vpack.c.b16 %v528, %v509
  %v833 = vpack.c.b16 %v529, %v510
  %v834 = vpack.c.b16 %v530, %v511
  %v835 = vpack.c.b16 %v531, %v512
  %v836 = vpack.c.b16 %v532, %v513
  %v837 = vpack.c.b16 %v533, %v514
  %v838 = vpack.c.b16 %v553, %v534
  %v839 = vpack.c.b16 %v554, %v535
  %v840 = vpack.c.b16 %v555, %v536
  %v841 = vpack.c.b16 %v556, %v537
  %v842 = vpack.c.b16 %v557, %v538
  %v843 = vpack.c.b16 %v558, %v539
  %v844 = vpack.c.b16 %v559, %v540
  %v845 = vpack.c.b16 %v560, %v541
  %v846 = vpack.c.b16 %v561, %v542
  %v847 = vpack.c.b16 %v562, %v543
  %v848 = vpack.c.b16 %v563, %v544
  %v849 = vpack.c.b16 %v564, %v545
  %v850 = vpack.c.b16 %v565, %v546
  %v851 = vpack.c.b16 %v566, %v547
  %v852 = vpack.c.b16 %v567, %v548
  %v853 = vpack.c.b16 %v568, %v549
  %v854 = vpack.c.b16 %v569, %v550
  %v855 = vpack.c.b16 %v570, %v551
  %v856 = vpack.c.b16 %v571, %v552
  %v857 = vpack.c.b16 %v591, %v572
  %v858 = vpack.c.b16 %v592, %v573
  %v859 = vpack.c.b16 %v593, %v574
  %v860 = vpack.c.b16 %v594, %v575
  %v861 = vpack.c.b16 %v595, %v576
  %v862 = vpack.c.b16 %v596, %v577
  %v863 = vpack.c.b16 %v597, %v578
  %v864 = vpack.c.b16 %v598, %v579
  %v865 = vpack.c.b16 %v599, %v580
  %v866 = vpack.c.b16 %v600, %v581
  %v867 = vpack.c.b16 %v601, %v582
  %v868 = vpack.c.b16 %v602, %v583
  %v869 = vpack.c.b16 %v603, %v584
  %v870 = vpack.c.b16 %v604, %v585
  %v871 = vpack.c.b16 %v605, %v586
  %v872 = vpack.c.b16 %v606, %v587
  %v873 = vpack.c.b16 %v607, %v588
  %v874 = vpack.c.b16 %v608, %v589
  %v875 = vpack.c.b16 %v609, %v590
  %v876 = vpack.c.b16 %v629, %v610
  %v877 = vpack.c.b16 %v630, %v611
  %v878 = vpack.c.b16 %v631, %v612
  %v879 = vpack.c.b16 %v632, %v613
  %v880 = vpack.c.b16 %v633, %v614
  %v881 = vpack.c.b16 %v634, %v615
  %v882 = vpack.c.b16 %v635, %v616
  %v883 = vpack.c.b16 %v636, %v617
  %v884 = vpack.c.b16 %v637, %v618
  %v885 = vpack.c.b16 %v638, %v619
  %v886 = vpack.c.b16 %v639, %v620
  %v887 = vpack.c.b16 %v640, %v621
  %v888 = vpack.c.b16 %v641, %v622
  %v889 = vpack.c.b16 %v642, %v623
  %v890 = vpack.c.b16 %v643, %v624
  %v891 = vpack.c.b16 %v644, %v625
  %v892 = vpack.c.b16 %v645, %v626
  %v893 = vpack.c.b16 %v646, %v627
  %v894 = vpack.c.b16 %v647, %v628
  %v895 = vpack.c.b16 %v667, %v648
  %v896 = vpack.c.b16 %v668, %v649
  %v897 = vpack.c.b16 %v669, %v650
  %v898 = vpack.c.b16 %v670, %v651
  %v899 = vpack.c.b16 %v671, %v652
  %v900 = vpack.c.b16 %v672, %v653
  %v901 = vpack.c.b16 %v673, %v654
  %v902 = vpack.c.b16 %v674, %v655
  %v903 = vpack.c.b16 %v675, %v656
  %v904 = vpack.c.b16 %v676, %v657
  %v905 = vpack.c.b16 %v677, %v658
  %v906 = vpack.c.b16 %v678, %v659
  %v907 = vpack.c.b16 %v679, %v660
  %v908 = vpack.c.b16 %v680, %v661
  %v909 = vpack.c.b16 %v681, %v662
  %v910 = vpack.c.b16 %v682, %v663
  %v911 = vpack.c.b16 %v683, %v664
  %v912 = vpack.c.b16 %v684, %v665
  %v913 = vpack.c.b16 %v685, %v666
  %v914 = vpack.c.b16 %v705, %v686
  %v915 = vpack.c.b16 %v706, %v687
  %v916 = vpack.c.b16 %v707, %v688
  %v917 = vpack.c.b16 %v708, %v689
  %v918 = vpack.c.b16 %v709, %v690
  %v919 = vpack.c.b16 %v710, %v691
  %v920 = vpack.c.b16 %v711, %v692
  %v921 = vpack.c.b16 %v712, %v693
  %v922 = vpack.c.b16 %v713, %v694
  %v923 = vpack.c.b16 %v714, %v695
  %v924 = vpack.c.b16 %v715, %v696
  %v925 = vpack.c.b16 %v716, %v697
  %v926 = vpack.c.b16 %v717, %v698
  %v927 = vpack.c.b16 %v718, %v699
  %v928 = vpack.c.b16 %v719, %v700
  %v929 = vpack.c.b16 %v720, %v701
  %v930 = vpack.c.b16 %v721, %v702
  %v931 = vpack.c.b16 %v722, %v703
  %v932 = vpack.c.b16 %v723, %v704
  %v933 = vpack.c.b16 %v743, %v724
  %v934 = vpack.c.b16 %v744, %v725
  %v935 = vpack.c.b16 %v745, %v726
  %v936 = vpack.c.b16 %v746, %v727
  %v937 = vpack.c.b16 %v747, %v728
  %v938 = vpack.c.b16 %v748, %v729
  %v939 = vpack.c.b16 %v749, %v730
  %v940 = vpack.c.b16 %v750, %v731
  %v941 = vpack.c.b16 %v751, %v732
  %v942 = vpack.c.b16 %v752, %v733
  %v943 = vpack.c.b16 %v753, %v734
  %v944 = vpack.c.b16 %v754, %v735
  %v945 = vpack.c.b16 %v755, %v736
  %v946 = vpack.c.b16 %v756, %v737
  %v947 = vpack.c.b16 %v757, %v738
  %v948 = vpack.c.b16 %v758, %v739
  %v949 = vpack.c.b16 %v759, %v740
  %v950 = vpack.c.b16 %v760, %v741
  %v951 = vpack.c.b16 %v761, %v742
  %v952 = vpack.c.b16 %v762, %v762
  %v953 = vpack.c.b16 %v763, %v763
  %v954 = vpack.c.b16 %v764, %v764
  %v955 = vpack.c.b16 %v765, %v765
  %v956 = vpack.c.b16 %v766, %v766
  %v957 = vpack.c.b16 %v767, %v767
  %v958 = vpack.c.b16 %v768, %v768
  %v959 = vpack.c.b16 %v769, %v769
  %v960 = vpack.c.b16 %v770, %v770
  %v961 = vpack.c.b16 %v771, %v771
  %v962 = vpack.c.b16 %v772, %v772
  %v963 = vpack.c.b16 %v773, %v773
  %v964 = vpack.c.b16 %v774, %v774
  %v965 = vpack.c.b16 %v775, %v775
  %v966 = vpack.c.b16 %v776, %v776
  %v967 = vpack.c.b16 %v777, %v777
  %v968 = vpack.c.b16 %v778, %v778
  %v969 = vpack.c.b16 %v779, %v779
  %v970 = vpack.c.b16 %v780, %v780
  %vm1142 = vcmask 138240
  %v1144 = vsel %vm1142, %v39, 0
  %vm1146 = vcmask 1040384
  %v1147 = vsel 0, 4294967295, 65535
  %v1148 = vsel %vm1146, %v1147, 0
  %v1150 = vand.u32 %v952, %v1148
  %v1153 = vand.u32 %v953, %v1148
  %v1156 = vand.u32 %v954, %v1148
  %v1159 = vand.u32 %v955, %v1148
  %v1162 = vand.u32 %v956, %v1148
  %v1165 = vand.u32 %v957, %v1148
  %v1168 = vand.u32 %v958, %v1148
  %v1171 = vand.u32 %v959, %v1148
  %v1174 = vand.u32 %v960, %v1148
  %v1177 = vand.u32 %v961, %v1148
  %v1180 = vand.u32 %v962, %v1148
  %v1183 = vand.u32 %v963, %v1148
  %v1186 = vand.u32 %v964, %v1148
  %v1189 = vand.u32 %v965, %v1148
  %v1192 = vand.u32 %v966, %v1148
  %v1195 = vand.u32 %v967, %v1148
  %v1198 = vand.u32 %v968, %v1148
  %v1201 = vand.u32 %v969, %v1148
  %v1204 = vand.u32 %v970, %v1148
  %1206 = vmatprep.subr.bf16.mxu0 %v782
  %1207 = vmatpush1.bf16.msra.mxu0 %v781
  %1208 = vmatprep.subr.bf16.mxu0 %v801
  %1209 = vmatpush1.bf16.msra.mxu0 %v800
  %1210 = vmatprep.subr.bf16.mxu0 %v820
  %1211 = vmatpush1.bf16.msra.mxu0 %v819
  %1212 = vmatprep.subr.bf16.mxu0 %v839
  %1213 = vmatpush1.bf16.msra.mxu0 %v838
  %1214 = vmatprep.subr.bf16.mxu0 %v858
  %1215 = vmatpush1.bf16.msra.mxu0 %v857
  %1216 = vmatprep.subr.bf16.mxu0 %v877
  %1217 = vmatpush1.bf16.msra.mxu0 %v876
  %1218 = vmatprep.subr.bf16.mxu0 %v896
  %1219 = vmatpush1.bf16.msra.mxu0 %v895
  %1220 = vmatprep.subr.bf16.mxu0 %v915
  %1221 = vmatpush1.bf16.msra.mxu0 %v914
  %1222 = vmatprep.subr.bf16.mxu0 %v934
  %1223 = vmatpush1.bf16.msra.mxu0 %v933
  %1224 = vmatprep.subr.bf16.mxu0 %v1153
  %1225 = vmatpush1.bf16.msra.mxu0 %v1150
  %1226 = vmatprep.subr.bf16.mxu0 0
  %1227 = vmatpush1.bf16.msra.mxu0 0
  %1228 = vmatprep.subr.bf16.mxu0 0
  %1229 = vmatpush1.bf16.msra.mxu0 0
  %1230 = vmatprep.subr.bf16.mxu0 0
  %1231 = vmatpush1.bf16.msra.mxu0 0
  %1232 = vmatprep.subr.bf16.mxu0 0
  %1233 = vmatpush1.bf16.msra.mxu0 0
  %1234 = vmatprep.subr.bf16.mxu0 0
  %1235 = vmatpush1.bf16.msra.mxu0 0
  %1236 = vmatprep.subr.bf16.mxu0 0
  %1237 = vmatpush1.bf16.msra.mxu0 0
  %1238 = vmatprep.mubr.bf16.mxu0 %v1144
  %1239 = vmatmul.mubr.bf16.gmra.mrb[0].mxu0 %v38
  %v1240 = vpop.f32.mrb[0].mxu0
  %v1241 = vadd.f32 0.0, %v1240
  %v1242 = vpop.f32.mrb[0].mxu0
  %v1243 = vadd.f32 0.0, %v1242
  %v1244 = vpop.f32.mrb[0].mxu0
  %v1245 = vpop.f32.mrb[0].mxu0
  %1246 = vdwg.mxu0
  %1247 = vmatprep.subr.bf16.mxu0 %v784
  %1248 = vmatpush1.bf16.msra.mxu0 %v783
  %1249 = vmatprep.subr.bf16.mxu0 %v803
  %1250 = vmatpush1.bf16.msra.mxu0 %v802
  %1251 = vmatprep.subr.bf16.mxu0 %v822
  %1252 = vmatpush1.bf16.msra.mxu0 %v821
  %1253 = vmatprep.subr.bf16.mxu0 %v841
  %1254 = vmatpush1.bf16.msra.mxu0 %v840
  %1255 = vmatprep.subr.bf16.mxu0 %v860
  %1256 = vmatpush1.bf16.msra.mxu0 %v859
  %1257 = vmatprep.subr.bf16.mxu0 %v879
  %1258 = vmatpush1.bf16.msra.mxu0 %v878
  %1259 = vmatprep.subr.bf16.mxu0 %v898
  %1260 = vmatpush1.bf16.msra.mxu0 %v897
  %1261 = vmatprep.subr.bf16.mxu0 %v917
  %1262 = vmatpush1.bf16.msra.mxu0 %v916
  %1263 = vmatprep.subr.bf16.mxu0 %v936
  %1264 = vmatpush1.bf16.msra.mxu0 %v935
  %1265 = vmatprep.subr.bf16.mxu0 %v1159
  %1266 = vmatpush1.bf16.msra.mxu0 %v1156
  %1267 = vmatprep.subr.bf16.mxu0 0
  %1268 = vmatpush1.bf16.msra.mxu0 0
  %1269 = vmatprep.subr.bf16.mxu0 0
  %1270 = vmatpush1.bf16.msra.mxu0 0
  %1271 = vmatprep.subr.bf16.mxu0 0
  %1272 = vmatpush1.bf16.msra.mxu0 0
  %1273 = vmatprep.subr.bf16.mxu0 0
  %1274 = vmatpush1.bf16.msra.mxu0 0
  %1275 = vmatprep.subr.bf16.mxu0 0
  %1276 = vmatpush1.bf16.msra.mxu0 0
  %1277 = vmatprep.subr.bf16.mxu0 0
  %1278 = vmatpush1.bf16.msra.mxu0 0
  %1279 = vmatprep.mubr.bf16.mxu0 %v1144
  %1280 = vmatmul.mubr.bf16.gmra.mrb[0].mxu0 %v38
  %v1281 = vpop.f32.mrb[0].mxu0
  %v1282 = vadd.f32 0.0, %v1281
  %v1283 = vpop.f32.mrb[0].mxu0
  %v1284 = vadd.f32 0.0, %v1283
  %v1285 = vpop.f32.mrb[0].mxu0
  %v1286 = vpop.f32.mrb[0].mxu0
  %1287 = vdwg.mxu0
  %1288 = vmatprep.subr.bf16.mxu0 %v786
  %1289 = vmatpush1.bf16.msra.mxu0 %v785
  %1290 = vmatprep.subr.bf16.mxu0 %v805
  %1291 = vmatpush1.bf16.msra.mxu0 %v804
  %1292 = vmatprep.subr.bf16.mxu0 %v824
  %1293 = vmatpush1.bf16.msra.mxu0 %v823
  %1294 = vmatprep.subr.bf16.mxu0 %v843
  %1295 = vmatpush1.bf16.msra.mxu0 %v842
  %1296 = vmatprep.subr.bf16.mxu0 %v862
  %1297 = vmatpush1.bf16.msra.mxu0 %v861
  %1298 = vmatprep.subr.bf16.mxu0 %v881
  %1299 = vmatpush1.bf16.msra.mxu0 %v880
  %1300 = vmatprep.subr.bf16.mxu0 %v900
  %1301 = vmatpush1.bf16.msra.mxu0 %v899
  %1302 = vmatprep.subr.bf16.mxu0 %v919
  %1303 = vmatpush1.bf16.msra.mxu0 %v918
  %1304 = vmatprep.subr.bf16.mxu0 %v938
  %1305 = vmatpush1.bf16.msra.mxu0 %v937
  %1306 = vmatprep.subr.bf16.mxu0 %v1165
  %1307 = vmatpush1.bf16.msra.mxu0 %v1162
  %1308 = vmatprep.subr.bf16.mxu0 0
  %1309 = vmatpush1.bf16.msra.mxu0 0
  %1310 = vmatprep.subr.bf16.mxu0 0
  %1311 = vmatpush1.bf16.msra.mxu0 0
  %1312 = vmatprep.subr.bf16.mxu0 0
  %1313 = vmatpush1.bf16.msra.mxu0 0
  %1314 = vmatprep.subr.bf16.mxu0 0
  %1315 = vmatpush1.bf16.msra.mxu0 0
  %1316 = vmatprep.subr.bf16.mxu0 0
  %1317 = vmatpush1.bf16.msra.mxu0 0
  %1318 = vmatprep.subr.bf16.mxu0 0
  %1319 = vmatpush1.bf16.msra.mxu0 0
  %1320 = vmatprep.mubr.bf16.mxu0 %v1144
  %1321 = vmatmul.mubr.bf16.gmra.mrb[0].mxu0 %v38
  %v1322 = vpop.f32.mrb[0].mxu0
  %v1323 = vadd.f32 0.0, %v1322
  %v1324 = vpop.f32.mrb[0].mxu0
  %v1325 = vadd.f32 0.0, %v1324
  %v1326 = vpop.f32.mrb[0].mxu0
  %v1327 = vpop.f32.mrb[0].mxu0
  %1328 = vdwg.mxu0
  %1329 = vmatprep.subr.bf16.mxu0 %v788
  %1330 = vmatpush1.bf16.msra.mxu0 %v787
  %1331 = vmatprep.subr.bf16.mxu0 %v807
  %1332 = vmatpush1.bf16.msra.mxu0 %v806
  %1333 = vmatprep.subr.bf16.mxu0 %v826
  %1334 = vmatpush1.bf16.msra.mxu0 %v825
  %1335 = vmatprep.subr.bf16.mxu0 %v845
  %1336 = vmatpush1.bf16.msra.mxu0 %v844
  %1337 = vmatprep.subr.bf16.mxu0 %v864
  %1338 = vmatpush1.bf16.msra.mxu0 %v863
  %1339 = vmatprep.subr.bf16.mxu0 %v883
  %1340 = vmatpush1.bf16.msra.mxu0 %v882
  %1341 = vmatprep.subr.bf16.mxu0 %v902
  %1342 = vmatpush1.bf16.msra.mxu0 %v901
  %1343 = vmatprep.subr.bf16.mxu0 %v921
  %1344 = vmatpush1.bf16.msra.mxu0 %v920
  %1345 = vmatprep.subr.bf16.mxu0 %v940
  %1346 = vmatpush1.bf16.msra.mxu0 %v939
  %1347 = vmatprep.subr.bf16.mxu0 %v1171
  %1348 = vmatpush1.bf16.msra.mxu0 %v1168
  %1349 = vmatprep.subr.bf16.mxu0 0
  %1350 = vmatpush1.bf16.msra.mxu0 0
  %1351 = vmatprep.subr.bf16.mxu0 0
  %1352 = vmatpush1.bf16.msra.mxu0 0
  %1353 = vmatprep.subr.bf16.mxu0 0
  %1354 = vmatpush1.bf16.msra.mxu0 0
  %1355 = vmatprep.subr.bf16.mxu0 0
  %1356 = vmatpush1.bf16.msra.mxu0 0
  %1357 = vmatprep.subr.bf16.mxu0 0
  %1358 = vmatpush1.bf16.msra.mxu0 0
  %1359 = vmatprep.subr.bf16.mxu0 0
  %1360 = vmatpush1.bf16.msra.mxu0 0
  %1361 = vmatprep.mubr.bf16.mxu0 %v1144
  %1362 = vmatmul.mubr.bf16.gmra.mrb[0].mxu0 %v38
  %v1363 = vpop.f32.mrb[0].mxu0
  %v1364 = vadd.f32 0.0, %v1363
  %v1365 = vpop.f32.mrb[0].mxu0
  %v1366 = vadd.f32 0.0, %v1365
  %v1367 = vpop.f32.mrb[0].mxu0
  %v1368 = vpop.f32.mrb[0].mxu0
  %1369 = vdwg.mxu0
  %1370 = vmatprep.subr.bf16.mxu0 %v790
  %1371 = vmatpush1.bf16.msra.mxu0 %v789
  %1372 = vmatprep.subr.bf16.mxu0 %v809
  %1373 = vmatpush1.bf16.msra.mxu0 %v808
  %1374 = vmatprep.subr.bf16.mxu0 %v828
  %1375 = vmatpush1.bf16.msra.mxu0 %v827
  %1376 = vmatprep.subr.bf16.mxu0 %v847
  %1377 = vmatpush1.bf16.msra.mxu0 %v846
  %1378 = vmatprep.subr.bf16.mxu0 %v866
  %1379 = vmatpush1.bf16.msra.mxu0 %v865
  %1380 = vmatprep.subr.bf16.mxu0 %v885
  %1381 = vmatpush1.bf16.msra.mxu0 %v884
  %1382 = vmatprep.subr.bf16.mxu0 %v904
  %1383 = vmatpush1.bf16.msra.mxu0 %v903
  %1384 = vmatprep.subr.bf16.mxu0 %v923
  %1385 = vmatpush1.bf16.msra.mxu0 %v922
  %1386 = vmatprep.subr.bf16.mxu0 %v942
  %1387 = vmatpush1.bf16.msra.mxu0 %v941
  %1388 = vmatprep.subr.bf16.mxu0 %v1177
  %1389 = vmatpush1.bf16.msra.mxu0 %v1174
  %1390 = vmatprep.subr.bf16.mxu0 0
  %1391 = vmatpush1.bf16.msra.mxu0 0
  %1392 = vmatprep.subr.bf16.mxu0 0
  %1393 = vmatpush1.bf16.msra.mxu0 0
  %1394 = vmatprep.subr.bf16.mxu0 0
  %1395 = vmatpush1.bf16.msra.mxu0 0
  %1396 = vmatprep.subr.bf16.mxu0 0
  %1397 = vmatpush1.bf16.msra.mxu0 0
  %1398 = vmatprep.subr.bf16.mxu0 0
  %1399 = vmatpush1.bf16.msra.mxu0 0
  %1400 = vmatprep.subr.bf16.mxu0 0
  %1401 = vmatpush1.bf16.msra.mxu0 0
  %1402 = vmatprep.mubr.bf16.mxu0 %v1144
  %1403 = vmatmul.mubr.bf16.gmra.mrb[0].mxu0 %v38
  %v1404 = vpop.f32.mrb[0].mxu0
  %v1405 = vadd.f32 0.0, %v1404
  %v1406 = vpop.f32.mrb[0].mxu0
  %v1407 = vadd.f32 0.0, %v1406
  %v1408 = vpop.f32.mrb[0].mxu0
  %v1409 = vpop.f32.mrb[0].mxu0
  %1410 = vdwg.mxu0
  %1411 = vmatprep.subr.bf16.mxu0 %v792
  %1412 = vmatpush1.bf16.msra.mxu0 %v791
  %1413 = vmatprep.subr.bf16.mxu0 %v811
  %1414 = vmatpush1.bf16.msra.mxu0 %v810
  %1415 = vmatprep.subr.bf16.mxu0 %v830
  %1416 = vmatpush1.bf16.msra.mxu0 %v829
  %1417 = vmatprep.subr.bf16.mxu0 %v849
  %1418 = vmatpush1.bf16.msra.mxu0 %v848
  %1419 = vmatprep.subr.bf16.mxu0 %v868
  %1420 = vmatpush1.bf16.msra.mxu0 %v867
  %1421 = vmatprep.subr.bf16.mxu0 %v887
  %1422 = vmatpush1.bf16.msra.mxu0 %v886
  %1423 = vmatprep.subr.bf16.mxu0 %v906
  %1424 = vmatpush1.bf16.msra.mxu0 %v905
  %1425 = vmatprep.subr.bf16.mxu0 %v925
  %1426 = vmatpush1.bf16.msra.mxu0 %v924
  %1427 = vmatprep.subr.bf16.mxu0 %v944
  %1428 = vmatpush1.bf16.msra.mxu0 %v943
  %1429 = vmatprep.subr.bf16.mxu0 %v1183
  %1430 = vmatpush1.bf16.msra.mxu0 %v1180
  %1431 = vmatprep.subr.bf16.mxu0 0
  %1432 = vmatpush1.bf16.msra.mxu0 0
  %1433 = vmatprep.subr.bf16.mxu0 0
  %1434 = vmatpush1.bf16.msra.mxu0 0
  %1435 = vmatprep.subr.bf16.mxu0 0
  %1436 = vmatpush1.bf16.msra.mxu0 0
  %1437 = vmatprep.subr.bf16.mxu0 0
  %1438 = vmatpush1.bf16.msra.mxu0 0
  %1439 = vmatprep.subr.bf16.mxu0 0
  %1440 = vmatpush1.bf16.msra.mxu0 0
  %1441 = vmatprep.subr.bf16.mxu0 0
  %1442 = vmatpush1.bf16.msra.mxu0 0
  %1443 = vmatprep.mubr.bf16.mxu0 %v1144
  %1444 = vmatmul.mubr.bf16.gmra.mrb[0].mxu0 %v38
  %v1445 = vpop.f32.mrb[0].mxu0
  %v1446 = vadd.f32 0.0, %v1445
  %v1447 = vpop.f32.mrb[0].mxu0
  %v1448 = vadd.f32 0.0, %v1447
  %v1449 = vpop.f32.mrb[0].mxu0
  %v1450 = vpop.f32.mrb[0].mxu0
  %1451 = vdwg.mxu0
  %1452 = vmatprep.subr.bf16.mxu0 %v794
  %1453 = vmatpush1.bf16.msra.mxu0 %v793
  %1454 = vmatprep.subr.bf16.mxu0 %v813
  %1455 = vmatpush1.bf16.msra.mxu0 %v812
  %1456 = vmatprep.subr.bf16.mxu0 %v832
  %1457 = vmatpush1.bf16.msra.mxu0 %v831
  %1458 = vmatprep.subr.bf16.mxu0 %v851
  %1459 = vmatpush1.bf16.msra.mxu0 %v850
  %1460 = vmatprep.subr.bf16.mxu0 %v870
  %1461 = vmatpush1.bf16.msra.mxu0 %v869
  %1462 = vmatprep.subr.bf16.mxu0 %v889
  %1463 = vmatpush1.bf16.msra.mxu0 %v888
  %1464 = vmatprep.subr.bf16.mxu0 %v908
  %1465 = vmatpush1.bf16.msra.mxu0 %v907
  %1466 = vmatprep.subr.bf16.mxu0 %v927
  %1467 = vmatpush1.bf16.msra.mxu0 %v926
  %1468 = vmatprep.subr.bf16.mxu0 %v946
  %1469 = vmatpush1.bf16.msra.mxu0 %v945
  %1470 = vmatprep.subr.bf16.mxu0 %v1189
  %1471 = vmatpush1.bf16.msra.mxu0 %v1186
  %1472 = vmatprep.subr.bf16.mxu0 0
  %1473 = vmatpush1.bf16.msra.mxu0 0
  %1474 = vmatprep.subr.bf16.mxu0 0
  %1475 = vmatpush1.bf16.msra.mxu0 0
  %1476 = vmatprep.subr.bf16.mxu0 0
  %1477 = vmatpush1.bf16.msra.mxu0 0
  %1478 = vmatprep.subr.bf16.mxu0 0
  %1479 = vmatpush1.bf16.msra.mxu0 0
  %1480 = vmatprep.subr.bf16.mxu0 0
  %1481 = vmatpush1.bf16.msra.mxu0 0
  %1482 = vmatprep.subr.bf16.mxu0 0
  %1483 = vmatpush1.bf16.msra.mxu0 0
  %1484 = vmatprep.mubr.bf16.mxu0 %v1144
  %1485 = vmatmul.mubr.bf16.gmra.mrb[0].mxu0 %v38
  %v1486 = vpop.f32.mrb[0].mxu0
  %v1487 = vadd.f32 0.0, %v1486
  %v1488 = vpop.f32.mrb[0].mxu0
  %v1489 = vadd.f32 0.0, %v1488
  %v1490 = vpop.f32.mrb[0].mxu0
  %v1491 = vpop.f32.mrb[0].mxu0
  %1492 = vdwg.mxu0
  %1493 = vmatprep.subr.bf16.mxu0 %v796
  %1494 = vmatpush1.bf16.msra.mxu0 %v795
  %1495 = vmatprep.subr.bf16.mxu0 %v815
  %1496 = vmatpush1.bf16.msra.mxu0 %v814
  %1497 = vmatprep.subr.bf16.mxu0 %v834
  %1498 = vmatpush1.bf16.msra.mxu0 %v833
  %1499 = vmatprep.subr.bf16.mxu0 %v853
  %1500 = vmatpush1.bf16.msra.mxu0 %v852
  %1501 = vmatprep.subr.bf16.mxu0 %v872
  %1502 = vmatpush1.bf16.msra.mxu0 %v871
  %1503 = vmatprep.subr.bf16.mxu0 %v891
  %1504 = vmatpush1.bf16.msra.mxu0 %v890
  %1505 = vmatprep.subr.bf16.mxu0 %v910
  %1506 = vmatpush1.bf16.msra.mxu0 %v909
  %1507 = vmatprep.subr.bf16.mxu0 %v929
  %1508 = vmatpush1.bf16.msra.mxu0 %v928
  %1509 = vmatprep.subr.bf16.mxu0 %v948
  %1510 = vmatpush1.bf16.msra.mxu0 %v947
  %1511 = vmatprep.subr.bf16.mxu0 %v1195
  %1512 = vmatpush1.bf16.msra.mxu0 %v1192
  %1513 = vmatprep.subr.bf16.mxu0 0
  %1514 = vmatpush1.bf16.msra.mxu0 0
  %1515 = vmatprep.subr.bf16.mxu0 0
  %1516 = vmatpush1.bf16.msra.mxu0 0
  %1517 = vmatprep.subr.bf16.mxu0 0
  %1518 = vmatpush1.bf16.msra.mxu0 0
  %1519 = vmatprep.subr.bf16.mxu0 0
  %1520 = vmatpush1.bf16.msra.mxu0 0
  %1521 = vmatprep.subr.bf16.mxu0 0
  %1522 = vmatpush1.bf16.msra.mxu0 0
  %1523 = vmatprep.subr.bf16.mxu0 0
  %1524 = vmatpush1.bf16.msra.mxu0 0
  %1525 = vmatprep.mubr.bf16.mxu0 %v1144
  %1526 = vmatmul.mubr.bf16.gmra.mrb[0].mxu0 %v38
  %v1527 = vpop.f32.mrb[0].mxu0
  %v1528 = vadd.f32 0.0, %v1527
  %v1529 = vpop.f32.mrb[0].mxu0
  %v1530 = vadd.f32 0.0, %v1529
  %v1531 = vpop.f32.mrb[0].mxu0
  %v1532 = vpop.f32.mrb[0].mxu0
  %1533 = vdwg.mxu0
  %1534 = vmatprep.subr.bf16.mxu0 %v798
  %1535 = vmatpush1.bf16.msra.mxu0 %v797
  %1536 = vmatprep.subr.bf16.mxu0 %v817
  %1537 = vmatpush1.bf16.msra.mxu0 %v816
  %1538 = vmatprep.subr.bf16.mxu0 %v836
  %1539 = vmatpush1.bf16.msra.mxu0 %v835
  %1540 = vmatprep.subr.bf16.mxu0 %v855
  %1541 = vmatpush1.bf16.msra.mxu0 %v854
  %1542 = vmatprep.subr.bf16.mxu0 %v874
  %1543 = vmatpush1.bf16.msra.mxu0 %v873
  %1544 = vmatprep.subr.bf16.mxu0 %v893
  %1545 = vmatpush1.bf16.msra.mxu0 %v892
  %1546 = vmatprep.subr.bf16.mxu0 %v912
  %1547 = vmatpush1.bf16.msra.mxu0 %v911
  %1548 = vmatprep.subr.bf16.mxu0 %v931
  %1549 = vmatpush1.bf16.msra.mxu0 %v930
  %1550 = vmatprep.subr.bf16.mxu0 %v950
  %1551 = vmatpush1.bf16.msra.mxu0 %v949
  %1552 = vmatprep.subr.bf16.mxu0 %v1201
  %1553 = vmatpush1.bf16.msra.mxu0 %v1198
  %1554 = vmatprep.subr.bf16.mxu0 0
  %1555 = vmatpush1.bf16.msra.mxu0 0
  %1556 = vmatprep.subr.bf16.mxu0 0
  %1557 = vmatpush1.bf16.msra.mxu0 0
  %1558 = vmatprep.subr.bf16.mxu0 0
  %1559 = vmatpush1.bf16.msra.mxu0 0
  %1560 = vmatprep.subr.bf16.mxu0 0
  %1561 = vmatpush1.bf16.msra.mxu0 0
  %1562 = vmatprep.subr.bf16.mxu0 0
  %1563 = vmatpush1.bf16.msra.mxu0 0
  %1564 = vmatprep.subr.bf16.mxu0 0
  %1565 = vmatpush1.bf16.msra.mxu0 0
  %1566 = vmatprep.mubr.bf16.mxu0 %v1144
  %1567 = vmatmul.mubr.bf16.gmra.mrb[0].mxu0 %v38
  %v1568 = vpop.f32.mrb[0].mxu0
  %v1569 = vadd.f32 0.0, %v1568
  %v1570 = vpop.f32.mrb[0].mxu0
  %v1571 = vadd.f32 0.0, %v1570
  %v1572 = vpop.f32.mrb[0].mxu0
  %v1573 = vpop.f32.mrb[0].mxu0
  %1574 = vdwg.mxu0
  %1575 = vmatprep.subr.bf16.mxu0 0
  %1576 = vmatpush1.bf16.msra.mxu0 %v799
  %1577 = vmatprep.subr.bf16.mxu0 0
  %1578 = vmatpush1.bf16.msra.mxu0 %v818
  %1579 = vmatprep.subr.bf16.mxu0 0
  %1580 = vmatpush1.bf16.msra.mxu0 %v837
  %1581 = vmatprep.subr.bf16.mxu0 0
  %1582 = vmatpush1.bf16.msra.mxu0 %v856
  %1583 = vmatprep.subr.bf16.mxu0 0
  %1584 = vmatpush1.bf16.msra.mxu0 %v875
  %1585 = vmatprep.subr.bf16.mxu0 0
  %1586 = vmatpush1.bf16.msra.mxu0 %v894
  %1587 = vmatprep.subr.bf16.mxu0 0
  %1588 = vmatpush1.bf16.msra.mxu0 %v913
  %1589 = vmatprep.subr.bf16.mxu0 0
  %1590 = vmatpush1.bf16.msra.mxu0 %v932
  %1591 = vmatprep.subr.bf16.mxu0 0
  %1592 = vmatpush1.bf16.msra.mxu0 %v951
  %1593 = vmatprep.subr.bf16.mxu0 0
  %1594 = vmatpush1.bf16.msra.mxu0 %v1204
  %1595 = vmatprep.subr.bf16.mxu0 0
  %1596 = vmatpush1.bf16.msra.mxu0 0
  %1597 = vmatprep.subr.bf16.mxu0 0
  %1598 = vmatpush1.bf16.msra.mxu0 0
  %1599 = vmatprep.subr.bf16.mxu0 0
  %1600 = vmatpush1.bf16.msra.mxu0 0
  %1601 = vmatprep.subr.bf16.mxu0 0
  %1602 = vmatpush1.bf16.msra.mxu0 0
  %1603 = vmatprep.subr.bf16.mxu0 0
  %1604 = vmatpush1.bf16.msra.mxu0 0
  %1605 = vmatprep.subr.bf16.mxu0 0
  %1606 = vmatpush1.bf16.msra.mxu0 0
  %1607 = vmatprep.mubr.bf16.mxu0 %v1144
  %1608 = vmatmul.mubr.bf16.gmra.mrb[0].mxu0 %v38
  %v1609 = vpop.f32.mrb[0].mxu0
  %v1610 = vadd.f32 0.0, %v1609
  %v1611 = vpop.f32.mrb[0].mxu0
  %v1612 = vpop.f32.mrb[0].mxu0
  %v1613 = vpop.f32.mrb[0].mxu0
  %1614 = vdwg.mxu0
  %v1618 = vlaneseq
  %v1619 = vshrl.u32 %v1618, 7
  %v1620 = vsub.s32 0, %v1619
  %v1621 = vrot.slane %v24, %v1620
  %v1622 = vlaneseq
  %v1623 = vshrl.u32 %v1622, 7
  %v1624 = vsub.s32 1, %v1623
  %v1625 = vrot.slane %v24, %v1624
  %v1626 = vlaneseq
  %v1627 = vshrl.u32 %v1626, 7
  %v1628 = vsub.s32 2, %v1627
  %v1629 = vrot.slane %v24, %v1628
  %v1630 = vlaneseq
  %v1631 = vshrl.u32 %v1630, 7
  %v1632 = vsub.s32 3, %v1631
  %v1633 = vrot.slane %v24, %v1632
  %v1634 = vlaneseq
  %v1635 = vshrl.u32 %v1634, 7
  %v1636 = vsub.s32 4, %v1635
  %v1637 = vrot.slane %v24, %v1636
  %v1638 = vlaneseq
  %v1639 = vshrl.u32 %v1638, 7
  %v1640 = vsub.s32 5, %v1639
  %v1641 = vrot.slane %v24, %v1640
  %v1642 = vlaneseq
  %v1643 = vshrl.u32 %v1642, 7
  %v1644 = vsub.s32 6, %v1643
  %v1645 = vrot.slane %v24, %v1644
  %v1646 = vlaneseq
  %v1647 = vshrl.u32 %v1646, 7
  %v1648 = vsub.s32 7, %v1647
  %v1649 = vrot.slane %v24, %v1648
  %v1650 = vlaneseq
  %v1651 = vshrl.u32 %v1650, 7
  %v1652 = vsub.s32 0, %v1651
  %v1653 = vrot.slane %v25, %v1652
  %v1654 = vlaneseq
  %v1655 = vshrl.u32 %v1654, 7
  %v1656 = vsub.s32 1, %v1655
  %v1657 = vrot.slane %v25, %v1656
  %v1658 = vlaneseq
  %v1659 = vshrl.u32 %v1658, 7
  %v1660 = vsub.s32 2, %v1659
  %v1661 = vrot.slane %v25, %v1660
  %v1662 = vlaneseq
  %v1663 = vshrl.u32 %v1662, 7
  %v1664 = vsub.s32 3, %v1663
  %v1665 = vrot.slane %v25, %v1664
  %v1666 = vlaneseq
  %v1667 = vshrl.u32 %v1666, 7
  %v1668 = vsub.s32 4, %v1667
  %v1669 = vrot.slane %v25, %v1668
  %v1670 = vlaneseq
  %v1671 = vshrl.u32 %v1670, 7
  %v1672 = vsub.s32 5, %v1671
  %v1673 = vrot.slane %v25, %v1672
  %v1674 = vlaneseq
  %v1675 = vshrl.u32 %v1674, 7
  %v1676 = vsub.s32 6, %v1675
  %v1677 = vrot.slane %v25, %v1676
  %v1678 = vlaneseq
  %v1679 = vshrl.u32 %v1678, 7
  %v1680 = vsub.s32 7, %v1679
  %v1681 = vrot.slane %v25, %v1680
  %v1682 = vlaneseq
  %v1683 = vshrl.u32 %v1682, 7
  %v1684 = vsub.s32 0, %v1683
  %v1685 = vrot.slane %v26, %v1684
  %v1686 = vlaneseq
  %v1687 = vshrl.u32 %v1686, 7
  %v1688 = vsub.s32 1, %v1687
  %v1689 = vrot.slane %v26, %v1688
  %v1690 = vlaneseq
  %v1691 = vshrl.u32 %v1690, 7
  %v1692 = vsub.s32 2, %v1691
  %v1693 = vrot.slane %v26, %v1692
  %v1713 = vadd.f32 %v1621, %v1241
  %v1714 = vadd.f32 %v1625, %v1243
  %v1715 = vadd.f32 %v1629, %v1282
  %v1716 = vadd.f32 %v1633, %v1284
  %v1717 = vadd.f32 %v1637, %v1323
  %v1718 = vadd.f32 %v1641, %v1325
  %v1719 = vadd.f32 %v1645, %v1364
  %v1720 = vadd.f32 %v1649, %v1366
  %v1721 = vadd.f32 %v1653, %v1405
  %v1722 = vadd.f32 %v1657, %v1407
  %v1723 = vadd.f32 %v1661, %v1446
  %v1724 = vadd.f32 %v1665, %v1448
  %v1725 = vadd.f32 %v1669, %v1487
  %v1726 = vadd.f32 %v1673, %v1489
  %v1727 = vadd.f32 %v1677, %v1528
  %v1728 = vadd.f32 %v1681, %v1530
  %v1729 = vadd.f32 %v1685, %v1569
  %v1730 = vadd.f32 %v1689, %v1571
  %v1731 = vadd.f32 %v1693, %v1610
  %v1751 = vcombine.low %v1713, %v1714
  %v1752 = vcombine.low %v1715, %v1716
  %v1754 = vunpack.c.l.s4 1983009808
  %v1755 = vunpack.c.0.s8 %v1754
  %v1756 = vlaneseq
  %v1757 = vshrl.u32 %v1756, 7
  %v1758 = vsub.s32 %v1755, %v1757
  %v1759 = vrot.slane %v1751, %v1758
  %v1761 = vunpack.c.l.s4 1983009808
  %v1762 = vunpack.c.0.s8 %v1761
  %v1763 = vlaneseq
  %v1764 = vshrl.u32 %v1763, 7
  %v1765 = vsub.s32 %v1762, %v1764
  %v1766 = vrot.slane %v1752, %v1765
  %v1767 = vcombine.low %v1759, %v1766
  %v1768 = vcombine.low %v1717, %v1718
  %v1769 = vcombine.low %v1719, %v1720
  %v1771 = vunpack.c.l.s4 1983009808
  %v1772 = vunpack.c.0.s8 %v1771
  %v1773 = vlaneseq
  %v1774 = vshrl.u32 %v1773, 7
  %v1775 = vsub.s32 %v1772, %v1774
  %v1776 = vrot.slane %v1768, %v1775
  %v1778 = vunpack.c.l.s4 1983009808
  %v1779 = vunpack.c.0.s8 %v1778
  %v1780 = vlaneseq
  %v1781 = vshrl.u32 %v1780, 7
  %v1782 = vsub.s32 %v1779, %v1781
  %v1783 = vrot.slane %v1769, %v1782
  %v1784 = vcombine.low %v1776, %v1783
  %v1785 = vcombine.low %v1721, %v1722
  %v1786 = vcombine.low %v1723, %v1724
  %v1788 = vunpack.c.l.s4 1983009808
  %v1789 = vunpack.c.0.s8 %v1788
  %v1790 = vlaneseq
  %v1791 = vshrl.u32 %v1790, 7
  %v1792 = vsub.s32 %v1789, %v1791
  %v1793 = vrot.slane %v1785, %v1792
  %v1795 = vunpack.c.l.s4 1983009808
  %v1796 = vunpack.c.0.s8 %v1795
  %v1797 = vlaneseq
  %v1798 = vshrl.u32 %v1797, 7
  %v1799 = vsub.s32 %v1796, %v1798
  %v1800 = vrot.slane %v1786, %v1799
  %v1801 = vcombine.low %v1793, %v1800
  %v1802 = vcombine.low %v1725, %v1726
  %v1803 = vcombine.low %v1727, %v1728
  %v1805 = vunpack.c.l.s4 1983009808
  %v1806 = vunpack.c.0.s8 %v1805
  %v1807 = vlaneseq
  %v1808 = vshrl.u32 %v1807, 7
  %v1809 = vsub.s32 %v1806, %v1808
  %v1810 = vrot.slane %v1802, %v1809
  %v1812 = vunpack.c.l.s4 1983009808
  %v1813 = vunpack.c.0.s8 %v1812
  %v1814 = vlaneseq
  %v1815 = vshrl.u32 %v1814, 7
  %v1816 = vsub.s32 %v1813, %v1815
  %v1817 = vrot.slane %v1803, %v1816
  %v1818 = vcombine.low %v1810, %v1817
  %v1819 = vcombine.low %v1729, %v1730
  %v1821 = vunpack.c.l.s4 1983009808
  %v1822 = vunpack.c.0.s8 %v1821
  %v1823 = vlaneseq
  %v1824 = vshrl.u32 %v1823, 7
  %v1825 = vsub.s32 %v1822, %v1824
  %v1826 = vrot.slane %v1819, %v1825
  %v1828 = vunpack.c.l.s4 1983009808
  %v1829 = vunpack.c.0.s8 %v1828
  %v1830 = vlaneseq
  %v1831 = vshrl.u32 %v1830, 7
  %v1832 = vsub.s32 %v1829, %v1831
  %v1833 = vrot.slane %v1731, %v1832
  %v1834 = vcombine.low %v1826, %v1833
  %1840 = vst [vmem:[%s5] sm:$0xff] %v1767
  %1841 = vst [vmem:[%s5 + $0x8] sm:$0xff] %v1784
  %1842 = vst [vmem:[%s5 + $0x10] sm:$0xff] %v1801
  %1843 = vst [vmem:[%s5 + $0x18] sm:$0xff] %v1818
  %vm1844 = vcmask 1041408
  %vm1845 = vcmask 1043458
  %vm1846 = vmor %vm1845, %vm1844
  %vm1847 = vcmask 242692
  %vm1848 = vmor %vm1847, %vm1846
  %1849 = vst.msk [vmem:[%s5 + $0x20] sm:$0x3f] %vm1848, %v1834
  %v1850 = vld [vmem:[%s4] sm:$0x1]
  %v1851 = vld [vmem:[%s3] sm:$0xff]
  %v1852 = vld [vmem:[%s3 + $0x8] sm:$0x3]
  %vm1853 = vcmask 80896
  %v1854 = vsel %vm1853, %v23, 0
  %v1857 = vsel %vm1844, %v1852, 0
  %1859 = vmatprep.subr.mxu0 0.0
  %v1860 = vand.u32 %v1851, 4294901760
  %1861 = vmatpush1.msra.mxu0 %v1860
  %1862 = vmatprep.subr.mxu0 0.0
  %v1863 = vand.u32 %v1857, 4294901760
  %1864 = vmatpush1.msra.mxu0 %v1863
  %1865 = vmatprep.subr.mxu0 0.0
  %1866 = vmatpush1.msra.mxu0 0.0
  %1867 = vmatprep.subr.mxu0 0.0
  %1868 = vmatpush1.msra.mxu0 0.0
  %1869 = vmatprep.subr.mxu0 0.0
  %1870 = vmatpush1.msra.mxu0 0.0
  %1871 = vmatprep.subr.mxu0 0.0
  %1872 = vmatpush1.msra.mxu0 0.0
  %1873 = vmatprep.subr.mxu0 0.0
  %1874 = vmatpush1.msra.mxu0 0.0
  %1875 = vmatprep.subr.mxu0 0.0
  %1876 = vmatpush1.msra.mxu0 0.0
  %1877 = vmatprep.subr.mxu0 0.0
  %1878 = vmatpush1.msra.mxu0 0.0
  %1879 = vmatprep.subr.mxu0 0.0
  %1880 = vmatpush1.msra.mxu0 0.0
  %1881 = vmatprep.subr.mxu0 0.0
  %1882 = vmatpush1.msra.mxu0 0.0
  %1883 = vmatprep.subr.mxu0 0.0
  %1884 = vmatpush1.msra.mxu0 0.0
  %1885 = vmatprep.subr.mxu0 0.0
  %1886 = vmatpush1.msra.mxu0 0.0
  %1887 = vmatprep.subr.mxu0 0.0
  %1888 = vmatpush1.msra.mxu0 0.0
  %1889 = vmatprep.subr.mxu0 0.0
  %1890 = vmatpush1.msra.mxu0 0.0
  %1891 = vmatprep.subr.mxu0 0.0
  %1892 = vmatpush1.msra.mxu0 0.0
  %1893 = vmatprep.subr.mxu0 0.0
  %1894 = vmatpush1.msra.mxu0 0.0
  %1895 = vmatprep.subr.mxu0 0.0
  %1896 = vmatpush1.msra.mxu0 0.0
  %1897 = vmatprep.subr.mxu0 0.0
  %1898 = vmatpush1.msra.mxu0 0.0
  %1899 = vmatprep.subr.mxu0 0.0
  %1900 = vmatpush1.msra.mxu0 0.0
  %1901 = vmatprep.subr.mxu0 0.0
  %1902 = vmatpush1.msra.mxu0 0.0
  %1903 = vmatprep.subr.mxu0 0.0
  %1904 = vmatpush1.msra.mxu0 0.0
  %1905 = vmatprep.subr.mxu0 0.0
  %1906 = vmatpush1.msra.mxu0 0.0
  %1907 = vmatprep.subr.mxu0 0.0
  %1908 = vmatpush1.msra.mxu0 0.0
  %1909 = vmatprep.subr.mxu0 0.0
  %1910 = vmatpush1.msra.mxu0 0.0
  %1911 = vmatprep.subr.mxu0 0.0
  %1912 = vmatpush1.msra.mxu0 0.0
  %1913 = vmatprep.subr.mxu0 0.0
  %1914 = vmatpush1.msra.mxu0 0.0
  %1915 = vmatprep.subr.mxu0 0.0
  %1916 = vmatpush1.msra.mxu0 0.0
  %1917 = vmatprep.subr.mxu0 0.0
  %1918 = vmatpush1.msra.mxu0 0.0
  %1919 = vmatprep.subr.mxu0 0.0
  %1920 = vmatpush1.msra.mxu0 0.0
  %1921 = vmatprep.subr.mxu0 0.0
  %1922 = vmatpush1.msra.mxu0 0.0
  %1923 = vmatprep.subr.mxu0 0.0
  %1924 = vmatpush1.msra.mxu0 0.0
  %1925 = vmatprep.mubr.f32.mxu0 0.0
  %v1926 = vand.u32 %v1854, 4294901760
  %v1927 = vsub.f32 %v1854, %v1926
  %v1928 = vand.u32 %v1927, 4294901760
  %v1929 = vsub.f32 %v1927, %v1928
  %v1930 = vand.u32 %v1929, 4294901760
  %1931 = vmatmul.mubr.f32.gmra.mrb[0].mxu0 %v1930
  %v1932 = vpop.f32.mrb[0].mxu0
  %v1933 = vadd.f32 0.0, %v1932
  %v1934 = vpop.f32.mrb[0].mxu0
  %1935 = vdwg.mxu0
  %1936 = vmatprep.subr.mxu0 0.0
  %v1937 = vand.u32 %v1851, 4294901760
  %v1938 = vsub.f32 %v1851, %v1937
  %v1939 = vand.u32 %v1938, 4294901760
  %v1940 = vsub.f32 %v1938, %v1939
  %v1941 = vand.u32 %v1940, 4294901760
  %1942 = vmatpush1.msra.mxu0 %v1941
  %1943 = vmatprep.subr.mxu0 0.0
  %v1944 = vand.u32 %v1857, 4294901760
  %v1945 = vsub.f32 %v1857, %v1944
  %v1946 = vand.u32 %v1945, 4294901760
  %v1947 = vsub.f32 %v1945, %v1946
  %v1948 = vand.u32 %v1947, 4294901760
  %1949 = vmatpush1.msra.mxu0 %v1948
  %1950 = vmatprep.subr.mxu0 0.0
  %1951 = vmatpush1.msra.mxu0 0.0
  %1952 = vmatprep.subr.mxu0 0.0
  %1953 = vmatpush1.msra.mxu0 0.0
  %1954 = vmatprep.subr.mxu0 0.0
  %1955 = vmatpush1.msra.mxu0 0.0
  %1956 = vmatprep.subr.mxu0 0.0
  %1957 = vmatpush1.msra.mxu0 0.0
  %1958 = vmatprep.subr.mxu0 0.0
  %1959 = vmatpush1.msra.mxu0 0.0
  %1960 = vmatprep.subr.mxu0 0.0
  %1961 = vmatpush1.msra.mxu0 0.0
  %1962 = vmatprep.subr.mxu0 0.0
  %1963 = vmatpush1.msra.mxu0 0.0
  %1964 = vmatprep.subr.mxu0 0.0
  %1965 = vmatpush1.msra.mxu0 0.0
  %1966 = vmatprep.subr.mxu0 0.0
  %1967 = vmatpush1.msra.mxu0 0.0
  %1968 = vmatprep.subr.mxu0 0.0
  %1969 = vmatpush1.msra.mxu0 0.0
  %1970 = vmatprep.subr.mxu0 0.0
  %1971 = vmatpush1.msra.mxu0 0.0
  %1972 = vmatprep.subr.mxu0 0.0
  %1973 = vmatpush1.msra.mxu0 0.0
  %1974 = vmatprep.subr.mxu0 0.0
  %1975 = vmatpush1.msra.mxu0 0.0
  %1976 = vmatprep.subr.mxu0 0.0
  %1977 = vmatpush1.msra.mxu0 0.0
  %1978 = vmatprep.subr.mxu0 0.0
  %1979 = vmatpush1.msra.mxu0 0.0
  %1980 = vmatprep.subr.mxu0 0.0
  %1981 = vmatpush1.msra.mxu0 0.0
  %1982 = vmatprep.subr.mxu0 0.0
  %1983 = vmatpush1.msra.mxu0 0.0
  %1984 = vmatprep.subr.mxu0 0.0
  %1985 = vmatpush1.msra.mxu0 0.0
  %1986 = vmatprep.subr.mxu0 0.0
  %1987 = vmatpush1.msra.mxu0 0.0
  %1988 = vmatprep.subr.mxu0 0.0
  %1989 = vmatpush1.msra.mxu0 0.0
  %1990 = vmatprep.subr.mxu0 0.0
  %1991 = vmatpush1.msra.mxu0 0.0
  %1992 = vmatprep.subr.mxu0 0.0
  %1993 = vmatpush1.msra.mxu0 0.0
  %1994 = vmatprep.subr.mxu0 0.0
  %1995 = vmatpush1.msra.mxu0 0.0
  %1996 = vmatprep.subr.mxu0 0.0
  %1997 = vmatpush1.msra.mxu0 0.0
  %1998 = vmatprep.subr.mxu0 0.0
  %1999 = vmatpush1.msra.mxu0 0.0
  %2000 = vmatprep.subr.mxu0 0.0
  %2001 = vmatpush1.msra.mxu0 0.0
  %2002 = vmatprep.subr.mxu0 0.0
  %2003 = vmatpush1.msra.mxu0 0.0
  %2004 = vmatprep.subr.mxu0 0.0
  %2005 = vmatpush1.msra.mxu0 0.0
  %2006 = vmatprep.subr.mxu0 0.0
  %2007 = vmatpush1.msra.mxu0 0.0
  %2008 = vmatprep.subr.mxu0 0.0
  %2009 = vmatpush1.msra.mxu0 0.0
  %2010 = vmatprep.mubr.f32.mxu0 0.0
  %v2011 = vand.u32 %v1854, 4294901760
  %2012 = vmatmul.mubr.f32.gmra.mrb[0].mxu0 %v2011
  %v2013 = vpop.f32.mrb[0].mxu0
  %v2014 = vadd.f32 %v1933, %v2013
  %v2015 = vpop.f32.mrb[0].mxu0
  %2016 = vdwg.mxu0
  %2017 = vmatprep.subr.mxu0 0.0
  %v2018 = vand.u32 %v1851, 4294901760
  %v2019 = vsub.f32 %v1851, %v2018
  %2020 = vmatpush1.msra.mxu0 %v2019
  %2021 = vmatprep.subr.mxu0 0.0
  %v2022 = vand.u32 %v1857, 4294901760
  %v2023 = vsub.f32 %v1857, %v2022
  %2024 = vmatpush1.msra.mxu0 %v2023
  %2025 = vmatprep.subr.mxu0 0.0
  %2026 = vmatpush1.msra.mxu0 0.0
  %2027 = vmatprep.subr.mxu0 0.0
  %2028 = vmatpush1.msra.mxu0 0.0
  %2029 = vmatprep.subr.mxu0 0.0
  %2030 = vmatpush1.msra.mxu0 0.0
  %2031 = vmatprep.subr.mxu0 0.0
  %2032 = vmatpush1.msra.mxu0 0.0
  %2033 = vmatprep.subr.mxu0 0.0
  %2034 = vmatpush1.msra.mxu0 0.0
  %2035 = vmatprep.subr.mxu0 0.0
  %2036 = vmatpush1.msra.mxu0 0.0
  %2037 = vmatprep.subr.mxu0 0.0
  %2038 = vmatpush1.msra.mxu0 0.0
  %2039 = vmatprep.subr.mxu0 0.0
  %2040 = vmatpush1.msra.mxu0 0.0
  %2041 = vmatprep.subr.mxu0 0.0
  %2042 = vmatpush1.msra.mxu0 0.0
  %2043 = vmatprep.subr.mxu0 0.0
  %2044 = vmatpush1.msra.mxu0 0.0
  %2045 = vmatprep.subr.mxu0 0.0
  %2046 = vmatpush1.msra.mxu0 0.0
  %2047 = vmatprep.subr.mxu0 0.0
  %2048 = vmatpush1.msra.mxu0 0.0
  %2049 = vmatprep.subr.mxu0 0.0
  %2050 = vmatpush1.msra.mxu0 0.0
  %2051 = vmatprep.subr.mxu0 0.0
  %2052 = vmatpush1.msra.mxu0 0.0
  %2053 = vmatprep.subr.mxu0 0.0
  %2054 = vmatpush1.msra.mxu0 0.0
  %2055 = vmatprep.subr.mxu0 0.0
  %2056 = vmatpush1.msra.mxu0 0.0
  %2057 = vmatprep.subr.mxu0 0.0
  %2058 = vmatpush1.msra.mxu0 0.0
  %2059 = vmatprep.subr.mxu0 0.0
  %2060 = vmatpush1.msra.mxu0 0.0
  %2061 = vmatprep.subr.mxu0 0.0
  %2062 = vmatpush1.msra.mxu0 0.0
  %2063 = vmatprep.subr.mxu0 0.0
  %2064 = vmatpush1.msra.mxu0 0.0
  %2065 = vmatprep.subr.mxu0 0.0
  %2066 = vmatpush1.msra.mxu0 0.0
  %2067 = vmatprep.subr.mxu0 0.0
  %2068 = vmatpush1.msra.mxu0 0.0
  %2069 = vmatprep.subr.mxu0 0.0
  %2070 = vmatpush1.msra.mxu0 0.0
  %2071 = vmatprep.subr.mxu0 0.0
  %2072 = vmatpush1.msra.mxu0 0.0
  %2073 = vmatprep.subr.mxu0 0.0
  %2074 = vmatpush1.msra.mxu0 0.0
  %2075 = vmatprep.subr.mxu0 0.0
  %2076 = vmatpush1.msra.mxu0 0.0
  %2077 = vmatprep.subr.mxu0 0.0
  %2078 = vmatpush1.msra.mxu0 0.0
  %2079 = vmatprep.subr.mxu0 0.0
  %2080 = vmatpush1.msra.mxu0 0.0
  %2081 = vmatprep.subr.mxu0 0.0
  %2082 = vmatpush1.msra.mxu0 0.0
  %2083 = vmatprep.subr.mxu0 0.0
  %2084 = vmatpush1.msra.mxu0 0.0
  %2085 = vmatprep.mubr.f32.mxu0 0.0
  %v2086 = vand.u32 %v1854, 4294901760
  %v2087 = vsub.f32 %v1854, %v2086
  %2088 = vmatmul.mubr.f32.gmra.mrb[0].mxu0 %v2087
  %v2089 = vpop.f32.mrb[0].mxu0
  %v2090 = vadd.f32 %v2014, %v2089
  %v2091 = vpop.f32.mrb[0].mxu0
  %2092 = vdwg.mxu0
  %2093 = vmatprep.subr.mxu0 0.0
  %v2094 = vand.u32 %v1851, 4294901760
  %2095 = vmatpush1.msra.mxu0 %v2094
  %2096 = vmatprep.subr.mxu0 0.0
  %v2097 = vand.u32 %v1857, 4294901760
  %2098 = vmatpush1.msra.mxu0 %v2097
  %2099 = vmatprep.subr.mxu0 0.0
  %2100 = vmatpush1.msra.mxu0 0.0
  %2101 = vmatprep.subr.mxu0 0.0
  %2102 = vmatpush1.msra.mxu0 0.0
  %2103 = vmatprep.subr.mxu0 0.0
  %2104 = vmatpush1.msra.mxu0 0.0
  %2105 = vmatprep.subr.mxu0 0.0
  %2106 = vmatpush1.msra.mxu0 0.0
  %2107 = vmatprep.subr.mxu0 0.0
  %2108 = vmatpush1.msra.mxu0 0.0
  %2109 = vmatprep.subr.mxu0 0.0
  %2110 = vmatpush1.msra.mxu0 0.0
  %2111 = vmatprep.subr.mxu0 0.0
  %2112 = vmatpush1.msra.mxu0 0.0
  %2113 = vmatprep.subr.mxu0 0.0
  %2114 = vmatpush1.msra.mxu0 0.0
  %2115 = vmatprep.subr.mxu0 0.0
  %2116 = vmatpush1.msra.mxu0 0.0
  %2117 = vmatprep.subr.mxu0 0.0
  %2118 = vmatpush1.msra.mxu0 0.0
  %2119 = vmatprep.subr.mxu0 0.0
  %2120 = vmatpush1.msra.mxu0 0.0
  %2121 = vmatprep.subr.mxu0 0.0
  %2122 = vmatpush1.msra.mxu0 0.0
  %2123 = vmatprep.subr.mxu0 0.0
  %2124 = vmatpush1.msra.mxu0 0.0
  %2125 = vmatprep.subr.mxu0 0.0
  %2126 = vmatpush1.msra.mxu0 0.0
  %2127 = vmatprep.subr.mxu0 0.0
  %2128 = vmatpush1.msra.mxu0 0.0
  %2129 = vmatprep.subr.mxu0 0.0
  %2130 = vmatpush1.msra.mxu0 0.0
  %2131 = vmatprep.subr.mxu0 0.0
  %2132 = vmatpush1.msra.mxu0 0.0
  %2133 = vmatprep.subr.mxu0 0.0
  %2134 = vmatpush1.msra.mxu0 0.0
  %2135 = vmatprep.subr.mxu0 0.0
  %2136 = vmatpush1.msra.mxu0 0.0
  %2137 = vmatprep.subr.mxu0 0.0
  %2138 = vmatpush1.msra.mxu0 0.0
  %2139 = vmatprep.subr.mxu0 0.0
  %2140 = vmatpush1.msra.mxu0 0.0
  %2141 = vmatprep.subr.mxu0 0.0
  %2142 = vmatpush1.msra.mxu0 0.0
  %2143 = vmatprep.subr.mxu0 0.0
  %2144 = vmatpush1.msra.mxu0 0.0
  %2145 = vmatprep.subr.mxu0 0.0
  %2146 = vmatpush1.msra.mxu0 0.0
  %2147 = vmatprep.subr.mxu0 0.0
  %2148 = vmatpush1.msra.mxu0 0.0
  %2149 = vmatprep.subr.mxu0 0.0
  %2150 = vmatpush1.msra.mxu0 0.0
  %2151 = vmatprep.subr.mxu0 0.0
  %2152 = vmatpush1.msra.mxu0 0.0
  %2153 = vmatprep.subr.mxu0 0.0
  %2154 = vmatpush1.msra.mxu0 0.0
  %2155 = vmatprep.subr.mxu0 0.0
  %2156 = vmatpush1.msra.mxu0 0.0
  %2157 = vmatprep.subr.mxu0 0.0
  %2158 = vmatpush1.msra.mxu0 0.0
  %2159 = vmatprep.mubr.f32.mxu0 0.0
  %v2160 = vand.u32 %v1854, 4294901760
  %v2161 = vsub.f32 %v1854, %v2160
  %v2162 = vand.u32 %v2161, 4294901760
  %2163 = vmatmul.mubr.f32.gmra.mrb[0].mxu0 %v2162
  %v2164 = vpop.f32.mrb[0].mxu0
  %v2165 = vadd.f32 %v2090, %v2164
  %v2166 = vpop.f32.mrb[0].mxu0
  %2167 = vdwg.mxu0
  %2168 = vmatprep.subr.mxu0 0.0
  %v2169 = vand.u32 %v1851, 4294901760
  %v2170 = vsub.f32 %v1851, %v2169
  %v2171 = vand.u32 %v2170, 4294901760
  %2172 = vmatpush1.msra.mxu0 %v2171
  %2173 = vmatprep.subr.mxu0 0.0
  %v2174 = vand.u32 %v1857, 4294901760
  %v2175 = vsub.f32 %v1857, %v2174
  %v2176 = vand.u32 %v2175, 4294901760
  %2177 = vmatpush1.msra.mxu0 %v2176
  %2178 = vmatprep.subr.mxu0 0.0
  %2179 = vmatpush1.msra.mxu0 0.0
  %2180 = vmatprep.subr.mxu0 0.0
  %2181 = vmatpush1.msra.mxu0 0.0
  %2182 = vmatprep.subr.mxu0 0.0
  %2183 = vmatpush1.msra.mxu0 0.0
  %2184 = vmatprep.subr.mxu0 0.0
  %2185 = vmatpush1.msra.mxu0 0.0
  %2186 = vmatprep.subr.mxu0 0.0
  %2187 = vmatpush1.msra.mxu0 0.0
  %2188 = vmatprep.subr.mxu0 0.0
  %2189 = vmatpush1.msra.mxu0 0.0
  %2190 = vmatprep.subr.mxu0 0.0
  %2191 = vmatpush1.msra.mxu0 0.0
  %2192 = vmatprep.subr.mxu0 0.0
  %2193 = vmatpush1.msra.mxu0 0.0
  %2194 = vmatprep.subr.mxu0 0.0
  %2195 = vmatpush1.msra.mxu0 0.0
  %2196 = vmatprep.subr.mxu0 0.0
  %2197 = vmatpush1.msra.mxu0 0.0
  %2198 = vmatprep.subr.mxu0 0.0
  %2199 = vmatpush1.msra.mxu0 0.0
  %2200 = vmatprep.subr.mxu0 0.0
  %2201 = vmatpush1.msra.mxu0 0.0
  %2202 = vmatprep.subr.mxu0 0.0
  %2203 = vmatpush1.msra.mxu0 0.0
  %2204 = vmatprep.subr.mxu0 0.0
  %2205 = vmatpush1.msra.mxu0 0.0
  %2206 = vmatprep.subr.mxu0 0.0
  %2207 = vmatpush1.msra.mxu0 0.0
  %2208 = vmatprep.subr.mxu0 0.0
  %2209 = vmatpush1.msra.mxu0 0.0
  %2210 = vmatprep.subr.mxu0 0.0
  %2211 = vmatpush1.msra.mxu0 0.0
  %2212 = vmatprep.subr.mxu0 0.0
  %2213 = vmatpush1.msra.mxu0 0.0
  %2214 = vmatprep.subr.mxu0 0.0
  %2215 = vmatpush1.msra.mxu0 0.0
  %2216 = vmatprep.subr.mxu0 0.0
  %2217 = vmatpush1.msra.mxu0 0.0
  %2218 = vmatprep.subr.mxu0 0.0
  %2219 = vmatpush1.msra.mxu0 0.0
  %2220 = vmatprep.subr.mxu0 0.0
  %2221 = vmatpush1.msra.mxu0 0.0
  %2222 = vmatprep.subr.mxu0 0.0
  %2223 = vmatpush1.msra.mxu0 0.0
  %2224 = vmatprep.subr.mxu0 0.0
  %2225 = vmatpush1.msra.mxu0 0.0
  %2226 = vmatprep.subr.mxu0 0.0
  %2227 = vmatpush1.msra.mxu0 0.0
  %2228 = vmatprep.subr.mxu0 0.0
  %2229 = vmatpush1.msra.mxu0 0.0
  %2230 = vmatprep.subr.mxu0 0.0
  %2231 = vmatpush1.msra.mxu0 0.0
  %2232 = vmatprep.subr.mxu0 0.0
  %2233 = vmatpush1.msra.mxu0 0.0
  %2234 = vmatprep.subr.mxu0 0.0
  %2235 = vmatpush1.msra.mxu0 0.0
  %2236 = vmatprep.subr.mxu0 0.0
  %2237 = vmatpush1.msra.mxu0 0.0
  %2238 = vmatprep.mubr.f32.mxu0 0.0
  %v2239 = vand.u32 %v1854, 4294901760
  %2240 = vmatmul.mubr.f32.gmra.mrb[0].mxu0 %v2239
  %v2241 = vpop.f32.mrb[0].mxu0
  %v2242 = vadd.f32 %v2165, %v2241
  %v2243 = vpop.f32.mrb[0].mxu0
  %2244 = vdwg.mxu0
  %2245 = vmatprep.subr.mxu0 0.0
  %v2246 = vand.u32 %v1851, 4294901760
  %2247 = vmatpush1.msra.mxu0 %v2246
  %2248 = vmatprep.subr.mxu0 0.0
  %v2249 = vand.u32 %v1857, 4294901760
  %2250 = vmatpush1.msra.mxu0 %v2249
  %2251 = vmatprep.subr.mxu0 0.0
  %2252 = vmatpush1.msra.mxu0 0.0
  %2253 = vmatprep.subr.mxu0 0.0
  %2254 = vmatpush1.msra.mxu0 0.0
  %2255 = vmatprep.subr.mxu0 0.0
  %2256 = vmatpush1.msra.mxu0 0.0
  %2257 = vmatprep.subr.mxu0 0.0
  %2258 = vmatpush1.msra.mxu0 0.0
  %2259 = vmatprep.subr.mxu0 0.0
  %2260 = vmatpush1.msra.mxu0 0.0
  %2261 = vmatprep.subr.mxu0 0.0
  %2262 = vmatpush1.msra.mxu0 0.0
  %2263 = vmatprep.subr.mxu0 0.0
  %2264 = vmatpush1.msra.mxu0 0.0
  %2265 = vmatprep.subr.mxu0 0.0
  %2266 = vmatpush1.msra.mxu0 0.0
  %2267 = vmatprep.subr.mxu0 0.0
  %2268 = vmatpush1.msra.mxu0 0.0
  %2269 = vmatprep.subr.mxu0 0.0
  %2270 = vmatpush1.msra.mxu0 0.0
  %2271 = vmatprep.subr.mxu0 0.0
  %2272 = vmatpush1.msra.mxu0 0.0
  %2273 = vmatprep.subr.mxu0 0.0
  %2274 = vmatpush1.msra.mxu0 0.0
  %2275 = vmatprep.subr.mxu0 0.0
  %2276 = vmatpush1.msra.mxu0 0.0
  %2277 = vmatprep.subr.mxu0 0.0
  %2278 = vmatpush1.msra.mxu0 0.0
  %2279 = vmatprep.subr.mxu0 0.0
  %2280 = vmatpush1.msra.mxu0 0.0
  %2281 = vmatprep.subr.mxu0 0.0
  %2282 = vmatpush1.msra.mxu0 0.0
  %2283 = vmatprep.subr.mxu0 0.0
  %2284 = vmatpush1.msra.mxu0 0.0
  %2285 = vmatprep.subr.mxu0 0.0
  %2286 = vmatpush1.msra.mxu0 0.0
  %2287 = vmatprep.subr.mxu0 0.0
  %2288 = vmatpush1.msra.mxu0 0.0
  %2289 = vmatprep.subr.mxu0 0.0
  %2290 = vmatpush1.msra.mxu0 0.0
  %2291 = vmatprep.subr.mxu0 0.0
  %2292 = vmatpush1.msra.mxu0 0.0
  %2293 = vmatprep.subr.mxu0 0.0
  %2294 = vmatpush1.msra.mxu0 0.0
  %2295 = vmatprep.subr.mxu0 0.0
  %2296 = vmatpush1.msra.mxu0 0.0
  %2297 = vmatprep.subr.mxu0 0.0
  %2298 = vmatpush1.msra.mxu0 0.0
  %2299 = vmatprep.subr.mxu0 0.0
  %2300 = vmatpush1.msra.mxu0 0.0
  %2301 = vmatprep.subr.mxu0 0.0
  %2302 = vmatpush1.msra.mxu0 0.0
  %2303 = vmatprep.subr.mxu0 0.0
  %2304 = vmatpush1.msra.mxu0 0.0
  %2305 = vmatprep.subr.mxu0 0.0
  %2306 = vmatpush1.msra.mxu0 0.0
  %2307 = vmatprep.subr.mxu0 0.0
  %2308 = vmatpush1.msra.mxu0 0.0
  %2309 = vmatprep.subr.mxu0 0.0
  %2310 = vmatpush1.msra.mxu0 0.0
  %2311 = vmatprep.mubr.f32.mxu0 0.0
  %v2312 = vand.u32 %v1854, 4294901760
  %2313 = vmatmul.mubr.f32.gmra.mrb[0].mxu0 %v2312
  %v2314 = vpop.f32.mrb[0].mxu0
  %v2315 = vadd.f32 %v2242, %v2314
  %v2316 = vpop.f32.mrb[0].mxu0
  %2317 = vdwg.mxu0
  %v2319 = vlaneseq
  %v2320 = vshrl.u32 %v2319, 7
  %v2321 = vsub.s32 0, %v2320
  %v2322 = vrot.slane %v1850, %v2321
  %v2324 = vadd.f32 %v2322, %v2315
  %vm2325 = vcmask 386048
  %2326 = vst.msk [vmem:[%s6] sm:$0x3] %vm2325, %v2324
  // Predicated region
  $region22: #{mano_forward_pallas.2} parent=0 // pred_check
    _
  $region23: #{mano_forward_pallas.2} parent=0 // pred_check_branch
    %2328 = sbr.rel (0) target = $region25
  $region24: #{mano_forward_pallas.2} parent=0 // pred_region
    _
  $region25: #{mano_forward_pallas.2} parent=0 // pred_fallthru
    _
  // Predicated region
  $region26: #{mano_forward_pallas.2} parent=0 // pred_check
    _
  $region27: #{mano_forward_pallas.2} parent=0 // pred_check_branch
    %2330 = sbr.rel (0) target = $region29
  $region28: #{mano_forward_pallas.2} parent=0 // pred_region
    _
  $region29: #{mano_forward_pallas.2} parent=0 // pred_fallthru
    _
  // Predicated region
  $region30: #{mano_forward_pallas.2} parent=0 // pred_check
    _
  $region31: #{mano_forward_pallas.2} parent=0 // pred_check_branch
    %2332 = sbr.rel (0) target = $region33
  $region32: #{mano_forward_pallas.2} parent=0 // pred_region
    _
  $region33: #{mano_forward_pallas.2} parent=0 // pred_fallthru
    _
  // Predicated region
  $region34: #{mano_forward_pallas.2} parent=0 // pred_check
    _
  $region35: #{mano_forward_pallas.2} parent=0 // pred_check_branch
    %2334 = sbr.rel (0) target = $region37
  $region36: #{mano_forward_pallas.2} parent=0 // pred_region
    _
  $region37: #{mano_forward_pallas.2} parent=0 // pred_fallthru
    _

// kernel: mano_forward_pallas.3
$region0: #{mano_forward_pallas.3}
  #allocation0 [shape = 'u32[]', space=smem, size = 0x4, offset = 0x4, fixed_abs, tag = 'smem constant byte address 0x4 - core index']
  #allocation1 [shape = 'u32[144,128]{1,0:T(1,128)}', space=vmem, size = 0x12000, scoped, tag = 'internal scratch']
  #allocation2 [shape = 'f32[64,778]{1,0:T(8,128)}', space=vmem, size = 0x38000, scoped, tag = 'scratch operand']
  %s0 = inlined_call_operand.vmem [shape: f32[16,778], index: 0, kind: input, shape index: {}]
  %s1 = inlined_call_operand.vmem [shape: f32[2,3,778], index: 1, kind: input, shape index: {}]
  %s2 = inlined_call_operand.vmem [shape: f32[2,3,64], index: 2, kind: input, shape index: {}]
  %s3 = inlined_call_operand.vmem [shape: f32[2,3,778], index: 3, kind: output, shape index: {}]
  %s4 = sld [smem:[#allocation0]]
  $region22: #{mano_forward_pallas.3} parent=0
    _
  %s6 = ssub.s32 1, %s4
  %s7 = scalar_select 0, %s6, %s4
  // Predicated region
  $region2: #{mano_forward_pallas.3} parent=0 // pred_check
    _
  $region3: #{mano_forward_pallas.3} parent=0 // pred_check_branch
    %9 = sbr.rel (0) target = $region5
  $region4: #{mano_forward_pallas.3} parent=0 // pred_region
    _
  $region5: #{mano_forward_pallas.3} parent=0 // pred_fallthru
    _
  // Predicated region
  $region6: #{mano_forward_pallas.3} parent=0 // pred_check
    _
  $region7: #{mano_forward_pallas.3} parent=0 // pred_check_branch
    %11 = sbr.rel (0) target = $region9
  $region8: #{mano_forward_pallas.3} parent=0 // pred_region
    _
  $region9: #{mano_forward_pallas.3} parent=0 // pred_fallthru
    _
  // Predicated region
  $region10: #{mano_forward_pallas.3} parent=0 // pred_check
    _
  $region11: #{mano_forward_pallas.3} parent=0 // pred_check_branch
    %13 = sbr.rel (0) target = $region13
  $region12: #{mano_forward_pallas.3} parent=0 // pred_region
    _
  $region13: #{mano_forward_pallas.3} parent=0 // pred_fallthru
    _
  %v14 = vld [vmem:[%s0] sm:$0xff]
  %v15 = vld [vmem:[%s0 + $0x8] sm:$0xff]
  %v16 = vld [vmem:[%s0 + $0x10] sm:$0xff]
  %v17 = vld [vmem:[%s0 + $0x18] sm:$0xff]
  %v18 = vld [vmem:[%s0 + $0x20] sm:$0xff]
  %v19 = vld [vmem:[%s0 + $0x28] sm:$0xff]
  %v20 = vld [vmem:[%s0 + $0x30] sm:$0xff]
  %v21 = vld [vmem:[%s0 + $0x38] sm:$0xff]
  %v22 = vld [vmem:[%s0 + $0x40] sm:$0xff]
  %v23 = vld [vmem:[%s0 + $0x48] sm:$0xff]
  %v24 = vld [vmem:[%s0 + $0x50] sm:$0xff]
  %v25 = vld [vmem:[%s0 + $0x58] sm:$0xff]
  %v26 = vld [vmem:[%s0 + $0x60] sm:$0xff]
  %v27 = vld [vmem:[%s0 + $0x68] sm:$0xff]
  %v28 = vld [vmem:[%s1] sm:$0x77]
  %v29 = vld [vmem:[%s1 + $0x8] sm:$0x77]
  %v30 = vld [vmem:[%s1 + $0x10] sm:$0x77]
  %v31 = vld [vmem:[%s1 + $0x18] sm:$0x7]
  %v36 = vlaneseq
  %v37 = vshrl.u32 %v36, 7
  %v38 = vsub.s32 0, %v37
  %v39 = vrot.slane %v28, %v38
  %v40 = vlaneseq
  %v41 = vshrl.u32 %v40, 7
  %v42 = vsub.s32 4, %v41
  %v43 = vrot.slane %v28, %v42
  %v44 = vlaneseq
  %v45 = vshrl.u32 %v44, 7
  %v46 = vsub.s32 0, %v45
  %v47 = vrot.slane %v29, %v46
  %v48 = vlaneseq
  %v49 = vshrl.u32 %v48, 7
  %v50 = vsub.s32 4, %v49
  %v51 = vrot.slane %v29, %v50
  %v52 = vlaneseq
  %v53 = vshrl.u32 %v52, 7
  %v54 = vsub.s32 0, %v53
  %v55 = vrot.slane %v30, %v54
  %v56 = vlaneseq
  %v57 = vshrl.u32 %v56, 7
  %v58 = vsub.s32 4, %v57
  %v59 = vrot.slane %v30, %v58
  %v60 = vlaneseq
  %v61 = vshrl.u32 %v60, 7
  %v62 = vsub.s32 0, %v61
  %v63 = vrot.slane %v31, %v62
  %v71 = vlaneseq
  %v72 = vshrl.u32 %v71, 7
  %v73 = vsub.s32 0, %v72
  %v74 = vrot.slane %v39, %v73
  %v75 = vlaneseq
  %v76 = vshrl.u32 %v75, 7
  %v77 = vsub.s32 0, %v76
  %v78 = vrot.slane %v43, %v77
  %v79 = vlaneseq
  %v80 = vshrl.u32 %v79, 7
  %v81 = vsub.s32 0, %v80
  %v82 = vrot.slane %v47, %v81
  %v83 = vlaneseq
  %v84 = vshrl.u32 %v83, 7
  %v85 = vsub.s32 0, %v84
  %v86 = vrot.slane %v51, %v85
  %v87 = vlaneseq
  %v88 = vshrl.u32 %v87, 7
  %v89 = vsub.s32 0, %v88
  %v90 = vrot.slane %v55, %v89
  %v91 = vlaneseq
  %v92 = vshrl.u32 %v91, 7
  %v93 = vsub.s32 0, %v92
  %v94 = vrot.slane %v59, %v93
  %v95 = vlaneseq
  %v96 = vshrl.u32 %v95, 7
  %v97 = vsub.s32 0, %v96
  %v98 = vrot.slane %v63, %v97
  %v99 = vmul.f32 %v74, %v14
  %v100 = vmul.f32 %v78, %v15
  %v101 = vmul.f32 %v82, %v16
  %v102 = vmul.f32 %v86, %v17
  %v103 = vmul.f32 %v90, %v18
  %v104 = vmul.f32 %v94, %v19
  %v105 = vmul.f32 %v98, %v20
  %v106 = vmul.f32 %v74, %v21
  %v107 = vmul.f32 %v78, %v22
  %v108 = vmul.f32 %v82, %v23
  %v109 = vmul.f32 %v86, %v24
  %v110 = vmul.f32 %v90, %v25
  %v111 = vmul.f32 %v94, %v26
  %v112 = vmul.f32 %v98, %v27
  %113 = vst [vmem:[#allocation2] sm:$0xff] %v99
  %114 = vst [vmem:[#allocation2 + $0x8] sm:$0xff] %v100
  %115 = vst [vmem:[#allocation2 + $0x10] sm:$0xff] %v101
  %116 = vst [vmem:[#allocation2 + $0x18] sm:$0xff] %v102
  %117 = vst [vmem:[#allocation2 + $0x20] sm:$0xff] %v103
  %118 = vst [vmem:[#allocation2 + $0x28] sm:$0xff] %v104
  %vm119 = vcmask 80896
  %120 = vst.msk [vmem:[#allocation2 + $0x30] sm:$0xff] %vm119, %v105
  %121 = vst [vmem:[#allocation2 + $0x38] sm:$0xff] %v106
  %122 = vst [vmem:[#allocation2 + $0x40] sm:$0xff] %v107
  %123 = vst [vmem:[#allocation2 + $0x48] sm:$0xff] %v108
  %124 = vst [vmem:[#allocation2 + $0x50] sm:$0xff] %v109
  %125 = vst [vmem:[#allocation2 + $0x58] sm:$0xff] %v110
  %126 = vst [vmem:[#allocation2 + $0x60] sm:$0xff] %v111
  %127 = vst.msk [vmem:[#allocation2 + $0x68] sm:$0xff] %vm119, %v112
  %v128 = vlaneseq
  %v129 = vshrl.u32 %v128, 7
  %v130 = vsub.s32 1, %v129
  %v131 = vrot.slane %v28, %v130
  %v132 = vlaneseq
  %v133 = vshrl.u32 %v132, 7
  %v134 = vsub.s32 5, %v133
  %v135 = vrot.slane %v28, %v134
  %v136 = vlaneseq
  %v137 = vshrl.u32 %v136, 7
  %v138 = vsub.s32 1, %v137
  %v139 = vrot.slane %v29, %v138
  %v140 = vlaneseq
  %v141 = vshrl.u32 %v140, 7
  %v142 = vsub.s32 5, %v141
  %v143 = vrot.slane %v29, %v142
  %v144 = vlaneseq
  %v145 = vshrl.u32 %v144, 7
  %v146 = vsub.s32 1, %v145
  %v147 = vrot.slane %v30, %v146
  %v148 = vlaneseq
  %v149 = vshrl.u32 %v148, 7
  %v150 = vsub.s32 5, %v149
  %v151 = vrot.slane %v30, %v150
  %v152 = vlaneseq
  %v153 = vshrl.u32 %v152, 7
  %v154 = vsub.s32 1, %v153
  %v155 = vrot.slane %v31, %v154
  %v163 = vlaneseq
  %v164 = vshrl.u32 %v163, 7
  %v165 = vsub.s32 1, %v164
  %v166 = vrot.slane %v131, %v165
  %v167 = vlaneseq
  %v168 = vshrl.u32 %v167, 7
  %v169 = vsub.s32 1, %v168
  %v170 = vrot.slane %v135, %v169
  %v171 = vlaneseq
  %v172 = vshrl.u32 %v171, 7
  %v173 = vsub.s32 1, %v172
  %v174 = vrot.slane %v139, %v173
  %v175 = vlaneseq
  %v176 = vshrl.u32 %v175, 7
  %v177 = vsub.s32 1, %v176
  %v178 = vrot.slane %v143, %v177
  %v179 = vlaneseq
  %v180 = vshrl.u32 %v179, 7
  %v181 = vsub.s32 1, %v180
  %v182 = vrot.slane %v147, %v181
  %v183 = vlaneseq
  %v184 = vshrl.u32 %v183, 7
  %v185 = vsub.s32 1, %v184
  %v186 = vrot.slane %v151, %v185
  %v187 = vlaneseq
  %v188 = vshrl.u32 %v187, 7
  %v189 = vsub.s32 1, %v188
  %v190 = vrot.slane %v155, %v189
  %v191 = vmul.f32 %v166, %v14
  %v192 = vmul.f32 %v170, %v15
  %v193 = vmul.f32 %v174, %v16
  %v194 = vmul.f32 %v178, %v17
  %v195 = vmul.f32 %v182, %v18
  %v196 = vmul.f32 %v186, %v19
  %v197 = vmul.f32 %v190, %v20
  %v198 = vmul.f32 %v166, %v21
  %v199 = vmul.f32 %v170, %v22
  %v200 = vmul.f32 %v174, %v23
  %v201 = vmul.f32 %v178, %v24
  %v202 = vmul.f32 %v182, %v25
  %v203 = vmul.f32 %v186, %v26
  %v204 = vmul.f32 %v190, %v27
  %205 = vst [vmem:[#allocation2 + $0x70] sm:$0xff] %v191
  %206 = vst [vmem:[#allocation2 + $0x78] sm:$0xff] %v192
  %207 = vst [vmem:[#allocation2 + $0x80] sm:$0xff] %v193
  %208 = vst [vmem:[#allocation2 + $0x88] sm:$0xff] %v194
  %209 = vst [vmem:[#allocation2 + $0x90] sm:$0xff] %v195
  %210 = vst [vmem:[#allocation2 + $0x98] sm:$0xff] %v196
  %211 = vst.msk [vmem:[#allocation2 + $0xa0] sm:$0xff] %vm119, %v197
  %212 = vst [vmem:[#allocation2 + $0xa8] sm:$0xff] %v198
  %213 = vst [vmem:[#allocation2 + $0xb0] sm:$0xff] %v199
  %214 = vst [vmem:[#allocation2 + $0xb8] sm:$0xff] %v200
  %215 = vst [vmem:[#allocation2 + $0xc0] sm:$0xff] %v201
  %216 = vst [vmem:[#allocation2 + $0xc8] sm:$0xff] %v202
  %217 = vst [vmem:[#allocation2 + $0xd0] sm:$0xff] %v203
  %218 = vst.msk [vmem:[#allocation2 + $0xd8] sm:$0xff] %vm119, %v204
  %v219 = vlaneseq
  %v220 = vshrl.u32 %v219, 7
  %v221 = vsub.s32 2, %v220
  %v222 = vrot.slane %v28, %v221
  %v223 = vlaneseq
  %v224 = vshrl.u32 %v223, 7
  %v225 = vsub.s32 6, %v224
  %v226 = vrot.slane %v28, %v225
  %v227 = vlaneseq
  %v228 = vshrl.u32 %v227, 7
  %v229 = vsub.s32 2, %v228
  %v230 = vrot.slane %v29, %v229
  %v231 = vlaneseq
  %v232 = vshrl.u32 %v231, 7
  %v233 = vsub.s32 6, %v232
  %v234 = vrot.slane %v29, %v233
  %v235 = vlaneseq
  %v236 = vshrl.u32 %v235, 7
  %v237 = vsub.s32 2, %v236
  %v238 = vrot.slane %v30, %v237
  %v239 = vlaneseq
  %v240 = vshrl.u32 %v239, 7
  %v241 = vsub.s32 6, %v240
  %v242 = vrot.slane %v30, %v241
  %v243 = vlaneseq
  %v244 = vshrl.u32 %v243, 7
  %v245 = vsub.s32 2, %v244
  %v246 = vrot.slane %v31, %v245
  %v254 = vlaneseq
  %v255 = vshrl.u32 %v254, 7
  %v256 = vsub.s32 2, %v255
  %v257 = vrot.slane %v222, %v256
  %v258 = vlaneseq
  %v259 = vshrl.u32 %v258, 7
  %v260 = vsub.s32 2, %v259
  %v261 = vrot.slane %v226, %v260
  %v262 = vlaneseq
  %v263 = vshrl.u32 %v262, 7
  %v264 = vsub.s32 2, %v263
  %v265 = vrot.slane %v230, %v264
  %v266 = vlaneseq
  %v267 = vshrl.u32 %v266, 7
  %v268 = vsub.s32 2, %v267
  %v269 = vrot.slane %v234, %v268
  %v270 = vlaneseq
  %v271 = vshrl.u32 %v270, 7
  %v272 = vsub.s32 2, %v271
  %v273 = vrot.slane %v238, %v272
  %v274 = vlaneseq
  %v275 = vshrl.u32 %v274, 7
  %v276 = vsub.s32 2, %v275
  %v277 = vrot.slane %v242, %v276
  %v278 = vlaneseq
  %v279 = vshrl.u32 %v278, 7
  %v280 = vsub.s32 2, %v279
  %v281 = vrot.slane %v246, %v280
  %v282 = vmul.f32 %v257, %v14
  %v283 = vmul.f32 %v261, %v15
  %v284 = vmul.f32 %v265, %v16
  %v285 = vmul.f32 %v269, %v17
  %v286 = vmul.f32 %v273, %v18
  %v287 = vmul.f32 %v277, %v19
  %v288 = vmul.f32 %v281, %v20
  %v289 = vmul.f32 %v257, %v21
  %v290 = vmul.f32 %v261, %v22
  %v291 = vmul.f32 %v265, %v23
  %v292 = vmul.f32 %v269, %v24
  %v293 = vmul.f32 %v273, %v25
  %v294 = vmul.f32 %v277, %v26
  %v295 = vmul.f32 %v281, %v27
  %296 = vst [vmem:[#allocation2 + $0xe0] sm:$0xff] %v282
  %297 = vst [vmem:[#allocation2 + $0xe8] sm:$0xff] %v283
  %298 = vst [vmem:[#allocation2 + $0xf0] sm:$0xff] %v284
  %299 = vst [vmem:[#allocation2 + $0xf8] sm:$0xff] %v285
  %300 = vst [vmem:[#allocation2 + $0x100] sm:$0xff] %v286
  %301 = vst [vmem:[#allocation2 + $0x108] sm:$0xff] %v287
  %302 = vst.msk [vmem:[#allocation2 + $0x110] sm:$0xff] %vm119, %v288
  %303 = vst [vmem:[#allocation2 + $0x118] sm:$0xff] %v289
  %304 = vst [vmem:[#allocation2 + $0x120] sm:$0xff] %v290
  %305 = vst [vmem:[#allocation2 + $0x128] sm:$0xff] %v291
  %306 = vst [vmem:[#allocation2 + $0x130] sm:$0xff] %v292
  %307 = vst [vmem:[#allocation2 + $0x138] sm:$0xff] %v293
  %308 = vst [vmem:[#allocation2 + $0x140] sm:$0xff] %v294
  %309 = vst.msk [vmem:[#allocation2 + $0x148] sm:$0xff] %vm119, %v295
  %310 = vst [vmem:[#allocation2 + $0x150] sm:$0xff] %v14
  %311 = vst [vmem:[#allocation2 + $0x158] sm:$0xff] %v15
  %312 = vst [vmem:[#allocation2 + $0x160] sm:$0xff] %v16
  %313 = vst [vmem:[#allocation2 + $0x168] sm:$0xff] %v17
  %314 = vst [vmem:[#allocation2 + $0x170] sm:$0xff] %v18
  %315 = vst [vmem:[#allocation2 + $0x178] sm:$0xff] %v19
  %316 = vst.msk [vmem:[#allocation2 + $0x180] sm:$0xff] %vm119, %v20
  %317 = vst [vmem:[#allocation2 + $0x188] sm:$0xff] %v21
  %318 = vst [vmem:[#allocation2 + $0x190] sm:$0xff] %v22
  %319 = vst [vmem:[#allocation2 + $0x198] sm:$0xff] %v23
  %320 = vst [vmem:[#allocation2 + $0x1a0] sm:$0xff] %v24
  %321 = vst [vmem:[#allocation2 + $0x1a8] sm:$0xff] %v25
  %322 = vst [vmem:[#allocation2 + $0x1b0] sm:$0xff] %v26
  %323 = vst.msk [vmem:[#allocation2 + $0x1b8] sm:$0xff] %vm119, %v27
  %v324 = vld [vmem:[%s2] sm:$0x7]
  %v325 = vld [vmem:[#allocation2] sm:$0xff]
  %v326 = vld [vmem:[#allocation2 + $0x8] sm:$0xff]
  %v327 = vld [vmem:[#allocation2 + $0x10] sm:$0xff]
  %v328 = vld [vmem:[#allocation2 + $0x18] sm:$0xff]
  %v329 = vld [vmem:[#allocation2 + $0x20] sm:$0xff]
  %v330 = vld [vmem:[#allocation2 + $0x28] sm:$0xff]
  %v331 = vld [vmem:[#allocation2 + $0x30] sm:$0xff]
  %v332 = vld [vmem:[#allocation2 + $0x38] sm:$0xff]
  %v333 = vld [vmem:[#allocation2 + $0x40] sm:$0xff]
  %v334 = vld [vmem:[#allocation2 + $0x48] sm:$0xff]
  %v335 = vld [vmem:[#allocation2 + $0x50] sm:$0xff]
  %v336 = vld [vmem:[#allocation2 + $0x58] sm:$0xff]
  %v337 = vld [vmem:[#allocation2 + $0x60] sm:$0xff]
  %v338 = vld [vmem:[#allocation2 + $0x68] sm:$0xff]
  %v339 = vld [vmem:[#allocation2 + $0x70] sm:$0xff]
  %v340 = vld [vmem:[#allocation2 + $0x78] sm:$0xff]
  %v341 = vld [vmem:[#allocation2 + $0x80] sm:$0xff]
  %v342 = vld [vmem:[#allocation2 + $0x88] sm:$0xff]
  %v343 = vld [vmem:[#allocation2 + $0x90] sm:$0xff]
  %v344 = vld [vmem:[#allocation2 + $0x98] sm:$0xff]
  %v345 = vld [vmem:[#allocation2 + $0xa0] sm:$0xff]
  %v346 = vld [vmem:[#allocation2 + $0xa8] sm:$0xff]
  %v347 = vld [vmem:[#allocation2 + $0xb0] sm:$0xff]
  %v348 = vld [vmem:[#allocation2 + $0xb8] sm:$0xff]
  %v349 = vld [vmem:[#allocation2 + $0xc0] sm:$0xff]
  %v350 = vld [vmem:[#allocation2 + $0xc8] sm:$0xff]
  %v351 = vld [vmem:[#allocation2 + $0xd0] sm:$0xff]
  %v352 = vld [vmem:[#allocation2 + $0xd8] sm:$0xff]
  %v353 = vld [vmem:[#allocation2 + $0xe0] sm:$0xff]
  %v354 = vld [vmem:[#allocation2 + $0xe8] sm:$0xff]
  %v355 = vld [vmem:[#allocation2 + $0xf0] sm:$0xff]
  %v356 = vld [vmem:[#allocation2 + $0xf8] sm:$0xff]
  %v357 = vld [vmem:[#allocation2 + $0x100] sm:$0xff]
  %v358 = vld [vmem:[#allocation2 + $0x108] sm:$0xff]
  %v359 = vld [vmem:[#allocation2 + $0x110] sm:$0xff]
  %v360 = vld [vmem:[#allocation2 + $0x118] sm:$0xff]
  %v361 = vld [vmem:[#allocation2 + $0x120] sm:$0xff]
  %v362 = vld [vmem:[#allocation2 + $0x128] sm:$0xff]
  %v363 = vld [vmem:[#allocation2 + $0x130] sm:$0xff]
  %v364 = vld [vmem:[#allocation2 + $0x138] sm:$0xff]
  %v365 = vld [vmem:[#allocation2 + $0x140] sm:$0xff]
  %v366 = vld [vmem:[#allocation2 + $0x148] sm:$0xff]
  %v367 = vld [vmem:[#allocation2 + $0x150] sm:$0xff]
  %v368 = vld [vmem:[#allocation2 + $0x158] sm:$0xff]
  %v369 = vld [vmem:[#allocation2 + $0x160] sm:$0xff]
  %v370 = vld [vmem:[#allocation2 + $0x168] sm:$0xff]
  %v371 = vld [vmem:[#allocation2 + $0x170] sm:$0xff]
  %v372 = vld [vmem:[#allocation2 + $0x178] sm:$0xff]
  %v373 = vld [vmem:[#allocation2 + $0x180] sm:$0xff]
  %v374 = vld [vmem:[#allocation2 + $0x188] sm:$0xff]
  %v375 = vld [vmem:[#allocation2 + $0x190] sm:$0xff]
  %v376 = vld [vmem:[#allocation2 + $0x198] sm:$0xff]
  %v377 = vld [vmem:[#allocation2 + $0x1a0] sm:$0xff]
  %v378 = vld [vmem:[#allocation2 + $0x1a8] sm:$0xff]
  %v379 = vld [vmem:[#allocation2 + $0x1b0] sm:$0xff]
  %v380 = vld [vmem:[#allocation2 + $0x1b8] sm:$0xff]
  %vm381 = vcmask 523264
  %v383 = vsel %vm381, %v324, 0
  %v385 = vand.u32 %v326, 4294901760
  %386 = vmatprep.subr.mxu0 %v385
  %v387 = vand.u32 %v325, 4294901760
  %388 = vmatpush1.msra.mxu0 %v387
  %v389 = vand.u32 %v333, 4294901760
  %390 = vmatprep.subr.mxu0 %v389
  %v391 = vand.u32 %v332, 4294901760
  %392 = vmatpush1.msra.mxu0 %v391
  %v393 = vand.u32 %v340, 4294901760
  %394 = vmatprep.subr.mxu0 %v393
  %v395 = vand.u32 %v339, 4294901760
  %396 = vmatpush1.msra.mxu0 %v395
  %v397 = vand.u32 %v347, 4294901760
  %398 = vmatprep.subr.mxu0 %v397
  %v399 = vand.u32 %v346, 4294901760
  %400 = vmatpush1.msra.mxu0 %v399
  %v401 = vand.u32 %v354, 4294901760
  %402 = vmatprep.subr.mxu0 %v401
  %v403 = vand.u32 %v353, 4294901760
  %404 = vmatpush1.msra.mxu0 %v403
  %v405 = vand.u32 %v361, 4294901760
  %406 = vmatprep.subr.mxu0 %v405
  %v407 = vand.u32 %v360, 4294901760
  %408 = vmatpush1.msra.mxu0 %v407
  %v409 = vand.u32 %v368, 4294901760
  %410 = vmatprep.subr.mxu0 %v409
  %v411 = vand.u32 %v367, 4294901760
  %412 = vmatpush1.msra.mxu0 %v411
  %v413 = vand.u32 %v375, 4294901760
  %414 = vmatprep.subr.mxu0 %v413
  %v415 = vand.u32 %v374, 4294901760
  %416 = vmatpush1.msra.mxu0 %v415
  %417 = vmatprep.subr.mxu0 0.0
  %418 = vmatpush1.msra.mxu0 0.0
  %419 = vmatprep.subr.mxu0 0.0
  %420 = vmatpush1.msra.mxu0 0.0
  %421 = vmatprep.subr.mxu0 0.0
  %422 = vmatpush1.msra.mxu0 0.0
  %423 = vmatprep.subr.mxu0 0.0
  %424 = vmatpush1.msra.mxu0 0.0
  %425 = vmatprep.subr.mxu0 0.0
  %426 = vmatpush1.msra.mxu0 0.0
  %427 = vmatprep.subr.mxu0 0.0
  %428 = vmatpush1.msra.mxu0 0.0
  %429 = vmatprep.subr.mxu0 0.0
  %430 = vmatpush1.msra.mxu0 0.0
  %431 = vmatprep.subr.mxu0 0.0
  %432 = vmatpush1.msra.mxu0 0.0
  %433 = vmatprep.subr.mxu0 0.0
  %434 = vmatpush1.msra.mxu0 0.0
  %435 = vmatprep.subr.mxu0 0.0
  %436 = vmatpush1.msra.mxu0 0.0
  %437 = vmatprep.subr.mxu0 0.0
  %438 = vmatpush1.msra.mxu0 0.0
  %439 = vmatprep.subr.mxu0 0.0
  %440 = vmatpush1.msra.mxu0 0.0
  %441 = vmatprep.subr.mxu0 0.0
  %442 = vmatpush1.msra.mxu0 0.0
  %443 = vmatprep.subr.mxu0 0.0
  %444 = vmatpush1.msra.mxu0 0.0
  %445 = vmatprep.subr.mxu0 0.0
  %446 = vmatpush1.msra.mxu0 0.0
  %447 = vmatprep.subr.mxu0 0.0
  %448 = vmatpush1.msra.mxu0 0.0
  %449 = vmatprep.subr.mxu0 0.0
  %450 = vmatpush1.msra.mxu0 0.0
  %451 = vmatprep.subr.mxu0 0.0
  %452 = vmatpush1.msra.mxu0 0.0
  %453 = vmatprep.subr.mxu0 0.0
  %454 = vmatpush1.msra.mxu0 0.0
  %455 = vmatprep.subr.mxu0 0.0
  %456 = vmatpush1.msra.mxu0 0.0
  %457 = vmatprep.subr.mxu0 0.0
  %458 = vmatpush1.msra.mxu0 0.0
  %459 = vmatprep.subr.mxu0 0.0
  %460 = vmatpush1.msra.mxu0 0.0
  %461 = vmatprep.subr.mxu0 0.0
  %462 = vmatpush1.msra.mxu0 0.0
  %463 = vmatprep.subr.mxu0 0.0
  %464 = vmatpush1.msra.mxu0 0.0
  %465 = vmatprep.mubr.f32.mxu0 0.0
  %v466 = vand.u32 %v383, 4294901760
  %v467 = vsub.f32 %v383, %v466
  %v468 = vand.u32 %v467, 4294901760
  %v469 = vsub.f32 %v467, %v468
  %v470 = vand.u32 %v469, 4294901760
  %471 = vmatmul.mubr.f32.gmra.mrb[0].mxu0 %v470
  %v472 = vpop.f32.mrb[0].mxu0
  %v473 = vadd.f32 0.0, %v472
  %v474 = vpop.f32.mrb[0].mxu0
  %v475 = vadd.f32 0.0, %v474
  %476 = vdwg.mxu0
  %v477 = vand.u32 %v326, 4294901760
  %v478 = vsub.f32 %v326, %v477
  %v479 = vand.u32 %v478, 4294901760
  %v480 = vsub.f32 %v478, %v479
  %v481 = vand.u32 %v480, 4294901760
  %482 = vmatprep.subr.mxu0 %v481
  %v483 = vand.u32 %v325, 4294901760
  %v484 = vsub.f32 %v325, %v483
  %v485 = vand.u32 %v484, 4294901760
  %v486 = vsub.f32 %v484, %v485
  %v487 = vand.u32 %v486, 4294901760
  %488 = vmatpush1.msra.mxu0 %v487
  %v489 = vand.u32 %v333, 4294901760
  %v490 = vsub.f32 %v333, %v489
  %v491 = vand.u32 %v490, 4294901760
  %v492 = vsub.f32 %v490, %v491
  %v493 = vand.u32 %v492, 4294901760
  %494 = vmatprep.subr.mxu0 %v493
  %v495 = vand.u32 %v332, 4294901760
  %v496 = vsub.f32 %v332, %v495
  %v497 = vand.u32 %v496, 4294901760
  %v498 = vsub.f32 %v496, %v497
  %v499 = vand.u32 %v498, 4294901760
  %500 = vmatpush1.msra.mxu0 %v499
  %v501 = vand.u32 %v340, 4294901760
  %v502 = vsub.f32 %v340, %v501
  %v503 = vand.u32 %v502, 4294901760
  %v504 = vsub.f32 %v502, %v503
  %v505 = vand.u32 %v504, 4294901760
  %506 = vmatprep.subr.mxu0 %v505
  %v507 = vand.u32 %v339, 4294901760
  %v508 = vsub.f32 %v339, %v507
  %v509 = vand.u32 %v508, 4294901760
  %v510 = vsub.f32 %v508, %v509
  %v511 = vand.u32 %v510, 4294901760
  %512 = vmatpush1.msra.mxu0 %v511
  %v513 = vand.u32 %v347, 4294901760
  %v514 = vsub.f32 %v347, %v513
  %v515 = vand.u32 %v514, 4294901760
  %v516 = vsub.f32 %v514, %v515
  %v517 = vand.u32 %v516, 4294901760
  %518 = vmatprep.subr.mxu0 %v517
  %v519 = vand.u32 %v346, 4294901760
  %v520 = vsub.f32 %v346, %v519
  %v521 = vand.u32 %v520, 4294901760
  %v522 = vsub.f32 %v520, %v521
  %v523 = vand.u32 %v522, 4294901760
  %524 = vmatpush1.msra.mxu0 %v523
  %v525 = vand.u32 %v354, 4294901760
  %v526 = vsub.f32 %v354, %v525
  %v527 = vand.u32 %v526, 4294901760
  %v528 = vsub.f32 %v526, %v527
  %v529 = vand.u32 %v528, 4294901760
  %530 = vmatprep.subr.mxu0 %v529
  %v531 = vand.u32 %v353, 4294901760
  %v532 = vsub.f32 %v353, %v531
  %v533 = vand.u32 %v532, 4294901760
  %v534 = vsub.f32 %v532, %v533
  %v535 = vand.u32 %v534, 4294901760
  %536 = vmatpush1.msra.mxu0 %v535
  %v537 = vand.u32 %v361, 4294901760
  %v538 = vsub.f32 %v361, %v537
  %v539 = vand.u32 %v538, 4294901760
  %v540 = vsub.f32 %v538, %v539
  %v541 = vand.u32 %v540, 4294901760
  %542 = vmatprep.subr.mxu0 %v541
  %v543 = vand.u32 %v360, 4294901760
  %v544 = vsub.f32 %v360, %v543
  %v545 = vand.u32 %v544, 4294901760
  %v546 = vsub.f32 %v544, %v545
  %v547 = vand.u32 %v546, 4294901760
  %548 = vmatpush1.msra.mxu0 %v547
  %v549 = vand.u32 %v368, 4294901760
  %v550 = vsub.f32 %v368, %v549
  %v551 = vand.u32 %v550, 4294901760
  %v552 = vsub.f32 %v550, %v551
  %v553 = vand.u32 %v552, 4294901760
  %554 = vmatprep.subr.mxu0 %v553
  %v555 = vand.u32 %v367, 4294901760
  %v556 = vsub.f32 %v367, %v555
  %v557 = vand.u32 %v556, 4294901760
  %v558 = vsub.f32 %v556, %v557
  %v559 = vand.u32 %v558, 4294901760
  %560 = vmatpush1.msra.mxu0 %v559
  %v561 = vand.u32 %v375, 4294901760
  %v562 = vsub.f32 %v375, %v561
  %v563 = vand.u32 %v562, 4294901760
  %v564 = vsub.f32 %v562, %v563
  %v565 = vand.u32 %v564, 4294901760
  %566 = vmatprep.subr.mxu0 %v565
  %v567 = vand.u32 %v374, 4294901760
  %v568 = vsub.f32 %v374, %v567
  %v569 = vand.u32 %v568, 4294901760
  %v570 = vsub.f32 %v568, %v569
  %v571 = vand.u32 %v570, 4294901760
  %572 = vmatpush1.msra.mxu0 %v571
  %573 = vmatprep.subr.mxu0 0.0
  %574 = vmatpush1.msra.mxu0 0.0
  %575 = vmatprep.subr.mxu0 0.0
  %576 = vmatpush1.msra.mxu0 0.0
  %577 = vmatprep.subr.mxu0 0.0
  %578 = vmatpush1.msra.mxu0 0.0
  %579 = vmatprep.subr.mxu0 0.0
  %580 = vmatpush1.msra.mxu0 0.0
  %581 = vmatprep.subr.mxu0 0.0
  %582 = vmatpush1.msra.mxu0 0.0
  %583 = vmatprep.subr.mxu0 0.0
  %584 = vmatpush1.msra.mxu0 0.0
  %585 = vmatprep.subr.mxu0 0.0
  %586 = vmatpush1.msra.mxu0 0.0
  %587 = vmatprep.subr.mxu0 0.0
  %588 = vmatpush1.msra.mxu0 0.0
  %589 = vmatprep.subr.mxu0 0.0
  %590 = vmatpush1.msra.mxu0 0.0
  %591 = vmatprep.subr.mxu0 0.0
  %592 = vmatpush1.msra.mxu0 0.0
  %593 = vmatprep.subr.mxu0 0.0
  %594 = vmatpush1.msra.mxu0 0.0
  %595 = vmatprep.subr.mxu0 0.0
  %596 = vmatpush1.msra.mxu0 0.0
  %597 = vmatprep.subr.mxu0 0.0
  %598 = vmatpush1.msra.mxu0 0.0
  %599 = vmatprep.subr.mxu0 0.0
  %600 = vmatpush1.msra.mxu0 0.0
  %601 = vmatprep.subr.mxu0 0.0
  %602 = vmatpush1.msra.mxu0 0.0
  %603 = vmatprep.subr.mxu0 0.0
  %604 = vmatpush1.msra.mxu0 0.0
  %605 = vmatprep.subr.mxu0 0.0
  %606 = vmatpush1.msra.mxu0 0.0
  %607 = vmatprep.subr.mxu0 0.0
  %608 = vmatpush1.msra.mxu0 0.0
  %609 = vmatprep.subr.mxu0 0.0
  %610 = vmatpush1.msra.mxu0 0.0
  %611 = vmatprep.subr.mxu0 0.0
  %612 = vmatpush1.msra.mxu0 0.0
  %613 = vmatprep.subr.mxu0 0.0
  %614 = vmatpush1.msra.mxu0 0.0
  %615 = vmatprep.subr.mxu0 0.0
  %616 = vmatpush1.msra.mxu0 0.0
  %617 = vmatprep.subr.mxu0 0.0
  %618 = vmatpush1.msra.mxu0 0.0
  %619 = vmatprep.subr.mxu0 0.0
  %620 = vmatpush1.msra.mxu0 0.0
  %621 = vmatprep.mubr.f32.mxu0 0.0
  %v622 = vand.u32 %v383, 4294901760
  %623 = vmatmul.mubr.f32.gmra.mrb[0].mxu0 %v622
  %v624 = vpop.f32.mrb[0].mxu0
  %v625 = vadd.f32 %v473, %v624
  %v626 = vpop.f32.mrb[0].mxu0
  %v627 = vadd.f32 %v475, %v626
  %628 = vdwg.mxu0
  %v629 = vand.u32 %v326, 4294901760
  %v630 = vsub.f32 %v326, %v629
  %631 = vmatprep.subr.mxu0 %v630
  %v632 = vand.u32 %v325, 4294901760
  %v633 = vsub.f32 %v325, %v632
  %634 = vmatpush1.msra.mxu0 %v633
  %v635 = vand.u32 %v333, 4294901760
  %v636 = vsub.f32 %v333, %v635
  %637 = vmatprep.subr.mxu0 %v636
  %v638 = vand.u32 %v332, 4294901760
  %v639 = vsub.f32 %v332, %v638
  %640 = vmatpush1.msra.mxu0 %v639
  %v641 = vand.u32 %v340, 4294901760
  %v642 = vsub.f32 %v340, %v641
  %643 = vmatprep.subr.mxu0 %v642
  %v644 = vand.u32 %v339, 4294901760
  %v645 = vsub.f32 %v339, %v644
  %646 = vmatpush1.msra.mxu0 %v645
  %v647 = vand.u32 %v347, 4294901760
  %v648 = vsub.f32 %v347, %v647
  %649 = vmatprep.subr.mxu0 %v648
  %v650 = vand.u32 %v346, 4294901760
  %v651 = vsub.f32 %v346, %v650
  %652 = vmatpush1.msra.mxu0 %v651
  %v653 = vand.u32 %v354, 4294901760
  %v654 = vsub.f32 %v354, %v653
  %655 = vmatprep.subr.mxu0 %v654
  %v656 = vand.u32 %v353, 4294901760
  %v657 = vsub.f32 %v353, %v656
  %658 = vmatpush1.msra.mxu0 %v657
  %v659 = vand.u32 %v361, 4294901760
  %v660 = vsub.f32 %v361, %v659
  %661 = vmatprep.subr.mxu0 %v660
  %v662 = vand.u32 %v360, 4294901760
  %v663 = vsub.f32 %v360, %v662
  %664 = vmatpush1.msra.mxu0 %v663
  %v665 = vand.u32 %v368, 4294901760
  %v666 = vsub.f32 %v368, %v665
  %667 = vmatprep.subr.mxu0 %v666
  %v668 = vand.u32 %v367, 4294901760
  %v669 = vsub.f32 %v367, %v668
  %670 = vmatpush1.msra.mxu0 %v669
  %v671 = vand.u32 %v375, 4294901760
  %v672 = vsub.f32 %v375, %v671
  %673 = vmatprep.subr.mxu0 %v672
  %v674 = vand.u32 %v374, 4294901760
  %v675 = vsub.f32 %v374, %v674
  %676 = vmatpush1.msra.mxu0 %v675
  %677 = vmatprep.subr.mxu0 0.0
  %678 = vmatpush1.msra.mxu0 0.0
  %679 = vmatprep.subr.mxu0 0.0
  %680 = vmatpush1.msra.mxu0 0.0
  %681 = vmatprep.subr.mxu0 0.0
  %682 = vmatpush1.msra.mxu0 0.0
  %683 = vmatprep.subr.mxu0 0.0
  %684 = vmatpush1.msra.mxu0 0.0
  %685 = vmatprep.subr.mxu0 0.0
  %686 = vmatpush1.msra.mxu0 0.0
  %687 = vmatprep.subr.mxu0 0.0
  %688 = vmatpush1.msra.mxu0 0.0
  %689 = vmatprep.subr.mxu0 0.0
  %690 = vmatpush1.msra.mxu0 0.0
  %691 = vmatprep.subr.mxu0 0.0
  %692 = vmatpush1.msra.mxu0 0.0
  %693 = vmatprep.subr.mxu0 0.0
  %694 = vmatpush1.msra.mxu0 0.0
  %695 = vmatprep.subr.mxu0 0.0
  %696 = vmatpush1.msra.mxu0 0.0
  %697 = vmatprep.subr.mxu0 0.0
  %698 = vmatpush1.msra.mxu0 0.0
  %699 = vmatprep.subr.mxu0 0.0
  %700 = vmatpush1.msra.mxu0 0.0
  %701 = vmatprep.subr.mxu0 0.0
  %702 = vmatpush1.msra.mxu0 0.0
  %703 = vmatprep.subr.mxu0 0.0
  %704 = vmatpush1.msra.mxu0 0.0
  %705 = vmatprep.subr.mxu0 0.0
  %706 = vmatpush1.msra.mxu0 0.0
  %707 = vmatprep.subr.mxu0 0.0
  %708 = vmatpush1.msra.mxu0 0.0
  %709 = vmatprep.subr.mxu0 0.0
  %710 = vmatpush1.msra.mxu0 0.0
  %711 = vmatprep.subr.mxu0 0.0
  %712 = vmatpush1.msra.mxu0 0.0
  %713 = vmatprep.subr.mxu0 0.0
  %714 = vmatpush1.msra.mxu0 0.0
  %715 = vmatprep.subr.mxu0 0.0
  %716 = vmatpush1.msra.mxu0 0.0
  %717 = vmatprep.subr.mxu0 0.0
  %718 = vmatpush1.msra.mxu0 0.0
  %719 = vmatprep.subr.mxu0 0.0
  %720 = vmatpush1.msra.mxu0 0.0
  %721 = vmatprep.subr.mxu0 0.0
  %722 = vmatpush1.msra.mxu0 0.0
  %723 = vmatprep.subr.mxu0 0.0
  %724 = vmatpush1.msra.mxu0 0.0
  %725 = vmatprep.mubr.f32.mxu0 0.0
  %v726 = vand.u32 %v383, 4294901760
  %v727 = vsub.f32 %v383, %v726
  %728 = vmatmul.mubr.f32.gmra.mrb[0].mxu0 %v727
  %v729 = vpop.f32.mrb[0].mxu0
  %v730 = vadd.f32 %v625, %v729
  %v731 = vpop.f32.mrb[0].mxu0
  %v732 = vadd.f32 %v627, %v731
  %733 = vdwg.mxu0
  %v734 = vand.u32 %v326, 4294901760
  %735 = vmatprep.subr.mxu0 %v734
  %v736 = vand.u32 %v325, 4294901760
  %737 = vmatpush1.msra.mxu0 %v736
  %v738 = vand.u32 %v333, 4294901760
  %739 = vmatprep.subr.mxu0 %v738
  %v740 = vand.u32 %v332, 4294901760
  %741 = vmatpush1.msra.mxu0 %v740
  %v742 = vand.u32 %v340, 4294901760
  %743 = vmatprep.subr.mxu0 %v742
  %v744 = vand.u32 %v339, 4294901760
  %745 = vmatpush1.msra.mxu0 %v744
  %v746 = vand.u32 %v347, 4294901760
  %747 = vmatprep.subr.mxu0 %v746
  %v748 = vand.u32 %v346, 4294901760
  %749 = vmatpush1.msra.mxu0 %v748
  %v750 = vand.u32 %v354, 4294901760
  %751 = vmatprep.subr.mxu0 %v750
  %v752 = vand.u32 %v353, 4294901760
  %753 = vmatpush1.msra.mxu0 %v752
  %v754 = vand.u32 %v361, 4294901760
  %755 = vmatprep.subr.mxu0 %v754
  %v756 = vand.u32 %v360, 4294901760
  %757 = vmatpush1.msra.mxu0 %v756
  %v758 = vand.u32 %v368, 4294901760
  %759 = vmatprep.subr.mxu0 %v758
  %v760 = vand.u32 %v367, 4294901760
  %761 = vmatpush1.msra.mxu0 %v760
  %v762 = vand.u32 %v375, 4294901760
  %763 = vmatprep.subr.mxu0 %v762
  %v764 = vand.u32 %v374, 4294901760
  %765 = vmatpush1.msra.mxu0 %v764
  %766 = vmatprep.subr.mxu0 0.0
  %767 = vmatpush1.msra.mxu0 0.0
  %768 = vmatprep.subr.mxu0 0.0
  %769 = vmatpush1.msra.mxu0 0.0
  %770 = vmatprep.subr.mxu0 0.0
  %771 = vmatpush1.msra.mxu0 0.0
  %772 = vmatprep.subr.mxu0 0.0
  %773 = vmatpush1.msra.mxu0 0.0
  %774 = vmatprep.subr.mxu0 0.0
  %775 = vmatpush1.msra.mxu0 0.0
  %776 = vmatprep.subr.mxu0 0.0
  %777 = vmatpush1.msra.mxu0 0.0
  %778 = vmatprep.subr.mxu0 0.0
  %779 = vmatpush1.msra.mxu0 0.0
  %780 = vmatprep.subr.mxu0 0.0
  %781 = vmatpush1.msra.mxu0 0.0
  %782 = vmatprep.subr.mxu0 0.0
  %783 = vmatpush1.msra.mxu0 0.0
  %784 = vmatprep.subr.mxu0 0.0
  %785 = vmatpush1.msra.mxu0 0.0
  %786 = vmatprep.subr.mxu0 0.0
  %787 = vmatpush1.msra.mxu0 0.0
  %788 = vmatprep.subr.mxu0 0.0
  %789 = vmatpush1.msra.mxu0 0.0
  %790 = vmatprep.subr.mxu0 0.0
  %791 = vmatpush1.msra.mxu0 0.0
  %792 = vmatprep.subr.mxu0 0.0
  %793 = vmatpush1.msra.mxu0 0.0
  %794 = vmatprep.subr.mxu0 0.0
  %795 = vmatpush1.msra.mxu0 0.0
  %796 = vmatprep.subr.mxu0 0.0
  %797 = vmatpush1.msra.mxu0 0.0
  %798 = vmatprep.subr.mxu0 0.0
  %799 = vmatpush1.msra.mxu0 0.0
  %800 = vmatprep.subr.mxu0 0.0
  %801 = vmatpush1.msra.mxu0 0.0
  %802 = vmatprep.subr.mxu0 0.0
  %803 = vmatpush1.msra.mxu0 0.0
  %804 = vmatprep.subr.mxu0 0.0
  %805 = vmatpush1.msra.mxu0 0.0
  %806 = vmatprep.subr.mxu0 0.0
  %807 = vmatpush1.msra.mxu0 0.0
  %808 = vmatprep.subr.mxu0 0.0
  %809 = vmatpush1.msra.mxu0 0.0
  %810 = vmatprep.subr.mxu0 0.0
  %811 = vmatpush1.msra.mxu0 0.0
  %812 = vmatprep.subr.mxu0 0.0
  %813 = vmatpush1.msra.mxu0 0.0
  %814 = vmatprep.mubr.f32.mxu0 0.0
  %v815 = vand.u32 %v383, 4294901760
  %v816 = vsub.f32 %v383, %v815
  %v817 = vand.u32 %v816, 4294901760
  %818 = vmatmul.mubr.f32.gmra.mrb[0].mxu0 %v817
  %v819 = vpop.f32.mrb[0].mxu0
  %v820 = vadd.f32 %v730, %v819
  %v821 = vpop.f32.mrb[0].mxu0
  %v822 = vadd.f32 %v732, %v821
  %823 = vdwg.mxu0
  %v824 = vand.u32 %v326, 4294901760
  %v825 = vsub.f32 %v326, %v824
  %v826 = vand.u32 %v825, 4294901760
  %827 = vmatprep.subr.mxu0 %v826
  %v828 = vand.u32 %v325, 4294901760
  %v829 = vsub.f32 %v325, %v828
  %v830 = vand.u32 %v829, 4294901760
  %831 = vmatpush1.msra.mxu0 %v830
  %v832 = vand.u32 %v333, 4294901760
  %v833 = vsub.f32 %v333, %v832
  %v834 = vand.u32 %v833, 4294901760
  %835 = vmatprep.subr.mxu0 %v834
  %v836 = vand.u32 %v332, 4294901760
  %v837 = vsub.f32 %v332, %v836
  %v838 = vand.u32 %v837, 4294901760
  %839 = vmatpush1.msra.mxu0 %v838
  %v840 = vand.u32 %v340, 4294901760
  %v841 = vsub.f32 %v340, %v840
  %v842 = vand.u32 %v841, 4294901760
  %843 = vmatprep.subr.mxu0 %v842
  %v844 = vand.u32 %v339, 4294901760
  %v845 = vsub.f32 %v339, %v844
  %v846 = vand.u32 %v845, 4294901760
  %847 = vmatpush1.msra.mxu0 %v846
  %v848 = vand.u32 %v347, 4294901760
  %v849 = vsub.f32 %v347, %v848
  %v850 = vand.u32 %v849, 4294901760
  %851 = vmatprep.subr.mxu0 %v850
  %v852 = vand.u32 %v346, 4294901760
  %v853 = vsub.f32 %v346, %v852
  %v854 = vand.u32 %v853, 4294901760
  %855 = vmatpush1.msra.mxu0 %v854
  %v856 = vand.u32 %v354, 4294901760
  %v857 = vsub.f32 %v354, %v856
  %v858 = vand.u32 %v857, 4294901760
  %859 = vmatprep.subr.mxu0 %v858
  %v860 = vand.u32 %v353, 4294901760
  %v861 = vsub.f32 %v353, %v860
  %v862 = vand.u32 %v861, 4294901760
  %863 = vmatpush1.msra.mxu0 %v862
  %v864 = vand.u32 %v361, 4294901760
  %v865 = vsub.f32 %v361, %v864
  %v866 = vand.u32 %v865, 4294901760
  %867 = vmatprep.subr.mxu0 %v866
  %v868 = vand.u32 %v360, 4294901760
  %v869 = vsub.f32 %v360, %v868
  %v870 = vand.u32 %v869, 4294901760
  %871 = vmatpush1.msra.mxu0 %v870
  %v872 = vand.u32 %v368, 4294901760
  %v873 = vsub.f32 %v368, %v872
  %v874 = vand.u32 %v873, 4294901760
  %875 = vmatprep.subr.mxu0 %v874
  %v876 = vand.u32 %v367, 4294901760
  %v877 = vsub.f32 %v367, %v876
  %v878 = vand.u32 %v877, 4294901760
  %879 = vmatpush1.msra.mxu0 %v878
  %v880 = vand.u32 %v375, 4294901760
  %v881 = vsub.f32 %v375, %v880
  %v882 = vand.u32 %v881, 4294901760
  %883 = vmatprep.subr.mxu0 %v882
  %v884 = vand.u32 %v374, 4294901760
  %v885 = vsub.f32 %v374, %v884
  %v886 = vand.u32 %v885, 4294901760
  %887 = vmatpush1.msra.mxu0 %v886
  %888 = vmatprep.subr.mxu0 0.0
  %889 = vmatpush1.msra.mxu0 0.0
  %890 = vmatprep.subr.mxu0 0.0
  %891 = vmatpush1.msra.mxu0 0.0
  %892 = vmatprep.subr.mxu0 0.0
  %893 = vmatpush1.msra.mxu0 0.0
  %894 = vmatprep.subr.mxu0 0.0
  %895 = vmatpush1.msra.mxu0 0.0
  %896 = vmatprep.subr.mxu0 0.0
  %897 = vmatpush1.msra.mxu0 0.0
  %898 = vmatprep.subr.mxu0 0.0
  %899 = vmatpush1.msra.mxu0 0.0
  %900 = vmatprep.subr.mxu0 0.0
  %901 = vmatpush1.msra.mxu0 0.0
  %902 = vmatprep.subr.mxu0 0.0
  %903 = vmatpush1.msra.mxu0 0.0
  %904 = vmatprep.subr.mxu0 0.0
  %905 = vmatpush1.msra.mxu0 0.0
  %906 = vmatprep.subr.mxu0 0.0
  %907 = vmatpush1.msra.mxu0 0.0
  %908 = vmatprep.subr.mxu0 0.0
  %909 = vmatpush1.msra.mxu0 0.0
  %910 = vmatprep.subr.mxu0 0.0
  %911 = vmatpush1.msra.mxu0 0.0
  %912 = vmatprep.subr.mxu0 0.0
  %913 = vmatpush1.msra.mxu0 0.0
  %914 = vmatprep.subr.mxu0 0.0
  %915 = vmatpush1.msra.mxu0 0.0
  %916 = vmatprep.subr.mxu0 0.0
  %917 = vmatpush1.msra.mxu0 0.0
  %918 = vmatprep.subr.mxu0 0.0
  %919 = vmatpush1.msra.mxu0 0.0
  %920 = vmatprep.subr.mxu0 0.0
  %921 = vmatpush1.msra.mxu0 0.0
  %922 = vmatprep.subr.mxu0 0.0
  %923 = vmatpush1.msra.mxu0 0.0
  %924 = vmatprep.subr.mxu0 0.0
  %925 = vmatpush1.msra.mxu0 0.0
  %926 = vmatprep.subr.mxu0 0.0
  %927 = vmatpush1.msra.mxu0 0.0
  %928 = vmatprep.subr.mxu0 0.0
  %929 = vmatpush1.msra.mxu0 0.0
  %930 = vmatprep.subr.mxu0 0.0
  %931 = vmatpush1.msra.mxu0 0.0
  %932 = vmatprep.subr.mxu0 0.0
  %933 = vmatpush1.msra.mxu0 0.0
  %934 = vmatprep.subr.mxu0 0.0
  %935 = vmatpush1.msra.mxu0 0.0
  %936 = vmatprep.mubr.f32.mxu0 0.0
  %v937 = vand.u32 %v383, 4294901760
  %938 = vmatmul.mubr.f32.gmra.mrb[0].mxu0 %v937
  %v939 = vpop.f32.mrb[0].mxu0
  %v940 = vadd.f32 %v820, %v939
  %v941 = vpop.f32.mrb[0].mxu0
  %v942 = vadd.f32 %v822, %v941
  %943 = vdwg.mxu0
  %v944 = vand.u32 %v326, 4294901760
  %945 = vmatprep.subr.mxu0 %v944
  %v946 = vand.u32 %v325, 4294901760
  %947 = vmatpush1.msra.mxu0 %v946
  %v948 = vand.u32 %v333, 4294901760
  %949 = vmatprep.subr.mxu0 %v948
  %v950 = vand.u32 %v332, 4294901760
  %951 = vmatpush1.msra.mxu0 %v950
  %v952 = vand.u32 %v340, 4294901760
  %953 = vmatprep.subr.mxu0 %v952
  %v954 = vand.u32 %v339, 4294901760
  %955 = vmatpush1.msra.mxu0 %v954
  %v956 = vand.u32 %v347, 4294901760
  %957 = vmatprep.subr.mxu0 %v956
  %v958 = vand.u32 %v346, 4294901760
  %959 = vmatpush1.msra.mxu0 %v958
  %v960 = vand.u32 %v354, 4294901760
  %961 = vmatprep.subr.mxu0 %v960
  %v962 = vand.u32 %v353, 4294901760
  %963 = vmatpush1.msra.mxu0 %v962
  %v964 = vand.u32 %v361, 4294901760
  %965 = vmatprep.subr.mxu0 %v964
  %v966 = vand.u32 %v360, 4294901760
  %967 = vmatpush1.msra.mxu0 %v966
  %v968 = vand.u32 %v368, 4294901760
  %969 = vmatprep.subr.mxu0 %v968
  %v970 = vand.u32 %v367, 4294901760
  %971 = vmatpush1.msra.mxu0 %v970
  %v972 = vand.u32 %v375, 4294901760
  %973 = vmatprep.subr.mxu0 %v972
  %v974 = vand.u32 %v374, 4294901760
  %975 = vmatpush1.msra.mxu0 %v974
  %976 = vmatprep.subr.mxu0 0.0
  %977 = vmatpush1.msra.mxu0 0.0
  %978 = vmatprep.subr.mxu0 0.0
  %979 = vmatpush1.msra.mxu0 0.0
  %980 = vmatprep.subr.mxu0 0.0
  %981 = vmatpush1.msra.mxu0 0.0
  %982 = vmatprep.subr.mxu0 0.0
  %983 = vmatpush1.msra.mxu0 0.0
  %984 = vmatprep.subr.mxu0 0.0
  %985 = vmatpush1.msra.mxu0 0.0
  %986 = vmatprep.subr.mxu0 0.0
  %987 = vmatpush1.msra.mxu0 0.0
  %988 = vmatprep.subr.mxu0 0.0
  %989 = vmatpush1.msra.mxu0 0.0
  %990 = vmatprep.subr.mxu0 0.0
  %991 = vmatpush1.msra.mxu0 0.0
  %992 = vmatprep.subr.mxu0 0.0
  %993 = vmatpush1.msra.mxu0 0.0
  %994 = vmatprep.subr.mxu0 0.0
  %995 = vmatpush1.msra.mxu0 0.0
  %996 = vmatprep.subr.mxu0 0.0
  %997 = vmatpush1.msra.mxu0 0.0
  %998 = vmatprep.subr.mxu0 0.0
  %999 = vmatpush1.msra.mxu0 0.0
  %1000 = vmatprep.subr.mxu0 0.0
  %1001 = vmatpush1.msra.mxu0 0.0
  %1002 = vmatprep.subr.mxu0 0.0
  %1003 = vmatpush1.msra.mxu0 0.0
  %1004 = vmatprep.subr.mxu0 0.0
  %1005 = vmatpush1.msra.mxu0 0.0
  %1006 = vmatprep.subr.mxu0 0.0
  %1007 = vmatpush1.msra.mxu0 0.0
  %1008 = vmatprep.subr.mxu0 0.0
  %1009 = vmatpush1.msra.mxu0 0.0
  %1010 = vmatprep.subr.mxu0 0.0
  %1011 = vmatpush1.msra.mxu0 0.0
  %1012 = vmatprep.subr.mxu0 0.0
  %1013 = vmatpush1.msra.mxu0 0.0
  %1014 = vmatprep.subr.mxu0 0.0
  %1015 = vmatpush1.msra.mxu0 0.0
  %1016 = vmatprep.subr.mxu0 0.0
  %1017 = vmatpush1.msra.mxu0 0.0
  %1018 = vmatprep.subr.mxu0 0.0
  %1019 = vmatpush1.msra.mxu0 0.0
  %1020 = vmatprep.subr.mxu0 0.0
  %1021 = vmatpush1.msra.mxu0 0.0
  %1022 = vmatprep.subr.mxu0 0.0
  %1023 = vmatpush1.msra.mxu0 0.0
  %1024 = vmatprep.mubr.f32.mxu0 0.0
  %v1025 = vand.u32 %v383, 4294901760
  %1026 = vmatmul.mubr.f32.gmra.mrb[0].mxu0 %v1025
  %v1027 = vpop.f32.mrb[0].mxu0
  %v1028 = vadd.f32 %v940, %v1027
  %v1029 = vpop.f32.mrb[0].mxu0
  %v1030 = vadd.f32 %v942, %v1029
  %1031 = vdwg.mxu0
  %v1032 = vand.u32 %v328, 4294901760
  %1033 = vmatprep.subr.mxu0 %v1032
  %v1034 = vand.u32 %v327, 4294901760
  %1035 = vmatpush1.msra.mxu0 %v1034
  %v1036 = vand.u32 %v335, 4294901760
  %1037 = vmatprep.subr.mxu0 %v1036
  %v1038 = vand.u32 %v334, 4294901760
  %1039 = vmatpush1.msra.mxu0 %v1038
  %v1040 = vand.u32 %v342, 4294901760
  %1041 = vmatprep.subr.mxu0 %v1040
  %v1042 = vand.u32 %v341, 4294901760
  %1043 = vmatpush1.msra.mxu0 %v1042
  %v1044 = vand.u32 %v349, 4294901760
  %1045 = vmatprep.subr.mxu0 %v1044
  %v1046 = vand.u32 %v348, 4294901760
  %1047 = vmatpush1.msra.mxu0 %v1046
  %v1048 = vand.u32 %v356, 4294901760
  %1049 = vmatprep.subr.mxu0 %v1048
  %v1050 = vand.u32 %v355, 4294901760
  %1051 = vmatpush1.msra.mxu0 %v1050
  %v1052 = vand.u32 %v363, 4294901760
  %1053 = vmatprep.subr.mxu0 %v1052
  %v1054 = vand.u32 %v362, 4294901760
  %1055 = vmatpush1.msra.mxu0 %v1054
  %v1056 = vand.u32 %v370, 4294901760
  %1057 = vmatprep.subr.mxu0 %v1056
  %v1058 = vand.u32 %v369, 4294901760
  %1059 = vmatpush1.msra.mxu0 %v1058
  %v1060 = vand.u32 %v377, 4294901760
  %1061 = vmatprep.subr.mxu0 %v1060
  %v1062 = vand.u32 %v376, 4294901760
  %1063 = vmatpush1.msra.mxu0 %v1062
  %1064 = vmatprep.subr.mxu0 0.0
  %1065 = vmatpush1.msra.mxu0 0.0
  %1066 = vmatprep.subr.mxu0 0.0
  %1067 = vmatpush1.msra.mxu0 0.0
  %1068 = vmatprep.subr.mxu0 0.0
  %1069 = vmatpush1.msra.mxu0 0.0
  %1070 = vmatprep.subr.mxu0 0.0
  %1071 = vmatpush1.msra.mxu0 0.0
  %1072 = vmatprep.subr.mxu0 0.0
  %1073 = vmatpush1.msra.mxu0 0.0
  %1074 = vmatprep.subr.mxu0 0.0
  %1075 = vmatpush1.msra.mxu0 0.0
  %1076 = vmatprep.subr.mxu0 0.0
  %1077 = vmatpush1.msra.mxu0 0.0
  %1078 = vmatprep.subr.mxu0 0.0
  %1079 = vmatpush1.msra.mxu0 0.0
  %1080 = vmatprep.subr.mxu0 0.0
  %1081 = vmatpush1.msra.mxu0 0.0
  %1082 = vmatprep.subr.mxu0 0.0
  %1083 = vmatpush1.msra.mxu0 0.0
  %1084 = vmatprep.subr.mxu0 0.0
  %1085 = vmatpush1.msra.mxu0 0.0
  %1086 = vmatprep.subr.mxu0 0.0
  %1087 = vmatpush1.msra.mxu0 0.0
  %1088 = vmatprep.subr.mxu0 0.0
  %1089 = vmatpush1.msra.mxu0 0.0
  %1090 = vmatprep.subr.mxu0 0.0
  %1091 = vmatpush1.msra.mxu0 0.0
  %1092 = vmatprep.subr.mxu0 0.0
  %1093 = vmatpush1.msra.mxu0 0.0
  %1094 = vmatprep.subr.mxu0 0.0
  %1095 = vmatpush1.msra.mxu0 0.0
  %1096 = vmatprep.subr.mxu0 0.0
  %1097 = vmatpush1.msra.mxu0 0.0
  %1098 = vmatprep.subr.mxu0 0.0
  %1099 = vmatpush1.msra.mxu0 0.0
  %1100 = vmatprep.subr.mxu0 0.0
  %1101 = vmatpush1.msra.mxu0 0.0
  %1102 = vmatprep.subr.mxu0 0.0
  %1103 = vmatpush1.msra.mxu0 0.0
  %1104 = vmatprep.subr.mxu0 0.0
  %1105 = vmatpush1.msra.mxu0 0.0
  %1106 = vmatprep.subr.mxu0 0.0
  %1107 = vmatpush1.msra.mxu0 0.0
  %1108 = vmatprep.subr.mxu0 0.0
  %1109 = vmatpush1.msra.mxu0 0.0
  %1110 = vmatprep.subr.mxu0 0.0
  %1111 = vmatpush1.msra.mxu0 0.0
  %1112 = vmatprep.mubr.f32.mxu0 0.0
  %v1113 = vand.u32 %v383, 4294901760
  %v1114 = vsub.f32 %v383, %v1113
  %v1115 = vand.u32 %v1114, 4294901760
  %v1116 = vsub.f32 %v1114, %v1115
  %v1117 = vand.u32 %v1116, 4294901760
  %1118 = vmatmul.mubr.f32.gmra.mrb[0].mxu0 %v1117
  %v1119 = vpop.f32.mrb[0].mxu0
  %v1120 = vadd.f32 0.0, %v1119
  %v1121 = vpop.f32.mrb[0].mxu0
  %v1122 = vadd.f32 0.0, %v1121
  %1123 = vdwg.mxu0
  %v1124 = vand.u32 %v328, 4294901760
  %v1125 = vsub.f32 %v328, %v1124
  %v1126 = vand.u32 %v1125, 4294901760
  %v1127 = vsub.f32 %v1125, %v1126
  %v1128 = vand.u32 %v1127, 4294901760
  %1129 = vmatprep.subr.mxu0 %v1128
  %v1130 = vand.u32 %v327, 4294901760
  %v1131 = vsub.f32 %v327, %v1130
  %v1132 = vand.u32 %v1131, 4294901760
  %v1133 = vsub.f32 %v1131, %v1132
  %v1134 = vand.u32 %v1133, 4294901760
  %1135 = vmatpush1.msra.mxu0 %v1134
  %v1136 = vand.u32 %v335, 4294901760
  %v1137 = vsub.f32 %v335, %v1136
  %v1138 = vand.u32 %v1137, 4294901760
  %v1139 = vsub.f32 %v1137, %v1138
  %v1140 = vand.u32 %v1139, 4294901760
  %1141 = vmatprep.subr.mxu0 %v1140
  %v1142 = vand.u32 %v334, 4294901760
  %v1143 = vsub.f32 %v334, %v1142
  %v1144 = vand.u32 %v1143, 4294901760
  %v1145 = vsub.f32 %v1143, %v1144
  %v1146 = vand.u32 %v1145, 4294901760
  %1147 = vmatpush1.msra.mxu0 %v1146
  %v1148 = vand.u32 %v342, 4294901760
  %v1149 = vsub.f32 %v342, %v1148
  %v1150 = vand.u32 %v1149, 4294901760
  %v1151 = vsub.f32 %v1149, %v1150
  %v1152 = vand.u32 %v1151, 4294901760
  %1153 = vmatprep.subr.mxu0 %v1152
  %v1154 = vand.u32 %v341, 4294901760
  %v1155 = vsub.f32 %v341, %v1154
  %v1156 = vand.u32 %v1155, 4294901760
  %v1157 = vsub.f32 %v1155, %v1156
  %v1158 = vand.u32 %v1157, 4294901760
  %1159 = vmatpush1.msra.mxu0 %v1158
  %v1160 = vand.u32 %v349, 4294901760
  %v1161 = vsub.f32 %v349, %v1160
  %v1162 = vand.u32 %v1161, 4294901760
  %v1163 = vsub.f32 %v1161, %v1162
  %v1164 = vand.u32 %v1163, 4294901760
  %1165 = vmatprep.subr.mxu0 %v1164
  %v1166 = vand.u32 %v348, 4294901760
  %v1167 = vsub.f32 %v348, %v1166
  %v1168 = vand.u32 %v1167, 4294901760
  %v1169 = vsub.f32 %v1167, %v1168
  %v1170 = vand.u32 %v1169, 4294901760
  %1171 = vmatpush1.msra.mxu0 %v1170
  %v1172 = vand.u32 %v356, 4294901760
  %v1173 = vsub.f32 %v356, %v1172
  %v1174 = vand.u32 %v1173, 4294901760
  %v1175 = vsub.f32 %v1173, %v1174
  %v1176 = vand.u32 %v1175, 4294901760
  %1177 = vmatprep.subr.mxu0 %v1176
  %v1178 = vand.u32 %v355, 4294901760
  %v1179 = vsub.f32 %v355, %v1178
  %v1180 = vand.u32 %v1179, 4294901760
  %v1181 = vsub.f32 %v1179, %v1180
  %v1182 = vand.u32 %v1181, 4294901760
  %1183 = vmatpush1.msra.mxu0 %v1182
  %v1184 = vand.u32 %v363, 4294901760
  %v1185 = vsub.f32 %v363, %v1184
  %v1186 = vand.u32 %v1185, 4294901760
  %v1187 = vsub.f32 %v1185, %v1186
  %v1188 = vand.u32 %v1187, 4294901760
  %1189 = vmatprep.subr.mxu0 %v1188
  %v1190 = vand.u32 %v362, 4294901760
  %v1191 = vsub.f32 %v362, %v1190
  %v1192 = vand.u32 %v1191, 4294901760
  %v1193 = vsub.f32 %v1191, %v1192
  %v1194 = vand.u32 %v1193, 4294901760
  %1195 = vmatpush1.msra.mxu0 %v1194
  %v1196 = vand.u32 %v370, 4294901760
  %v1197 = vsub.f32 %v370, %v1196
  %v1198 = vand.u32 %v1197, 4294901760
  %v1199 = vsub.f32 %v1197, %v1198
  %v1200 = vand.u32 %v1199, 4294901760
  %1201 = vmatprep.subr.mxu0 %v1200
  %v1202 = vand.u32 %v369, 4294901760
  %v1203 = vsub.f32 %v369, %v1202
  %v1204 = vand.u32 %v1203, 4294901760
  %v1205 = vsub.f32 %v1203, %v1204
  %v1206 = vand.u32 %v1205, 4294901760
  %1207 = vmatpush1.msra.mxu0 %v1206
  %v1208 = vand.u32 %v377, 4294901760
  %v1209 = vsub.f32 %v377, %v1208
  %v1210 = vand.u32 %v1209, 4294901760
  %v1211 = vsub.f32 %v1209, %v1210
  %v1212 = vand.u32 %v1211, 4294901760
  %1213 = vmatprep.subr.mxu0 %v1212
  %v1214 = vand.u32 %v376, 4294901760
  %v1215 = vsub.f32 %v376, %v1214
  %v1216 = vand.u32 %v1215, 4294901760
  %v1217 = vsub.f32 %v1215, %v1216
  %v1218 = vand.u32 %v1217, 4294901760
  %1219 = vmatpush1.msra.mxu0 %v1218
  %1220 = vmatprep.subr.mxu0 0.0
  %1221 = vmatpush1.msra.mxu0 0.0
  %1222 = vmatprep.subr.mxu0 0.0
  %1223 = vmatpush1.msra.mxu0 0.0
  %1224 = vmatprep.subr.mxu0 0.0
  %1225 = vmatpush1.msra.mxu0 0.0
  %1226 = vmatprep.subr.mxu0 0.0
  %1227 = vmatpush1.msra.mxu0 0.0
  %1228 = vmatprep.subr.mxu0 0.0
  %1229 = vmatpush1.msra.mxu0 0.0
  %1230 = vmatprep.subr.mxu0 0.0
  %1231 = vmatpush1.msra.mxu0 0.0
  %1232 = vmatprep.subr.mxu0 0.0
  %1233 = vmatpush1.msra.mxu0 0.0
  %1234 = vmatprep.subr.mxu0 0.0
  %1235 = vmatpush1.msra.mxu0 0.0
  %1236 = vmatprep.subr.mxu0 0.0
  %1237 = vmatpush1.msra.mxu0 0.0
  %1238 = vmatprep.subr.mxu0 0.0
  %1239 = vmatpush1.msra.mxu0 0.0
  %1240 = vmatprep.subr.mxu0 0.0
  %1241 = vmatpush1.msra.mxu0 0.0
  %1242 = vmatprep.subr.mxu0 0.0
  %1243 = vmatpush1.msra.mxu0 0.0
  %1244 = vmatprep.subr.mxu0 0.0
  %1245 = vmatpush1.msra.mxu0 0.0
  %1246 = vmatprep.subr.mxu0 0.0
  %1247 = vmatpush1.msra.mxu0 0.0
  %1248 = vmatprep.subr.mxu0 0.0
  %1249 = vmatpush1.msra.mxu0 0.0
  %1250 = vmatprep.subr.mxu0 0.0
  %1251 = vmatpush1.msra.mxu0 0.0
  %1252 = vmatprep.subr.mxu0 0.0
  %1253 = vmatpush1.msra.mxu0 0.0
  %1254 = vmatprep.subr.mxu0 0.0
  %1255 = vmatpush1.msra.mxu0 0.0
  %1256 = vmatprep.subr.mxu0 0.0
  %1257 = vmatpush1.msra.mxu0 0.0
  %1258 = vmatprep.subr.mxu0 0.0
  %1259 = vmatpush1.msra.mxu0 0.0
  %1260 = vmatprep.subr.mxu0 0.0
  %1261 = vmatpush1.msra.mxu0 0.0
  %1262 = vmatprep.subr.mxu0 0.0
  %1263 = vmatpush1.msra.mxu0 0.0
  %1264 = vmatprep.subr.mxu0 0.0
  %1265 = vmatpush1.msra.mxu0 0.0
  %1266 = vmatprep.subr.mxu0 0.0
  %1267 = vmatpush1.msra.mxu0 0.0
  %1268 = vmatprep.mubr.f32.mxu0 0.0
  %v1269 = vand.u32 %v383, 4294901760
  %1270 = vmatmul.mubr.f32.gmra.mrb[0].mxu0 %v1269
  %v1271 = vpop.f32.mrb[0].mxu0
  %v1272 = vadd.f32 %v1120, %v1271
  %v1273 = vpop.f32.mrb[0].mxu0
  %v1274 = vadd.f32 %v1122, %v1273
  %1275 = vdwg.mxu0
  %v1276 = vand.u32 %v328, 4294901760
  %v1277 = vsub.f32 %v328, %v1276
  %1278 = vmatprep.subr.mxu0 %v1277
  %v1279 = vand.u32 %v327, 4294901760
  %v1280 = vsub.f32 %v327, %v1279
  %1281 = vmatpush1.msra.mxu0 %v1280
  %v1282 = vand.u32 %v335, 4294901760
  %v1283 = vsub.f32 %v335, %v1282
  %1284 = vmatprep.subr.mxu0 %v1283
  %v1285 = vand.u32 %v334, 4294901760
  %v1286 = vsub.f32 %v334, %v1285
  %1287 = vmatpush1.msra.mxu0 %v1286
  %v1288 = vand.u32 %v342, 4294901760
  %v1289 = vsub.f32 %v342, %v1288
  %1290 = vmatprep.subr.mxu0 %v1289
  %v1291 = vand.u32 %v341, 4294901760
  %v1292 = vsub.f32 %v341, %v1291
  %1293 = vmatpush1.msra.mxu0 %v1292
  %v1294 = vand.u32 %v349, 4294901760
  %v1295 = vsub.f32 %v349, %v1294
  %1296 = vmatprep.subr.mxu0 %v1295
  %v1297 = vand.u32 %v348, 4294901760
  %v1298 = vsub.f32 %v348, %v1297
  %1299 = vmatpush1.msra.mxu0 %v1298
  %v1300 = vand.u32 %v356, 4294901760
  %v1301 = vsub.f32 %v356, %v1300
  %1302 = vmatprep.subr.mxu0 %v1301
  %v1303 = vand.u32 %v355, 4294901760
  %v1304 = vsub.f32 %v355, %v1303
  %1305 = vmatpush1.msra.mxu0 %v1304
  %v1306 = vand.u32 %v363, 4294901760
  %v1307 = vsub.f32 %v363, %v1306
  %1308 = vmatprep.subr.mxu0 %v1307
  %v1309 = vand.u32 %v362, 4294901760
  %v1310 = vsub.f32 %v362, %v1309
  %1311 = vmatpush1.msra.mxu0 %v1310
  %v1312 = vand.u32 %v370, 4294901760
  %v1313 = vsub.f32 %v370, %v1312
  %1314 = vmatprep.subr.mxu0 %v1313
  %v1315 = vand.u32 %v369, 4294901760
  %v1316 = vsub.f32 %v369, %v1315
  %1317 = vmatpush1.msra.mxu0 %v1316
  %v1318 = vand.u32 %v377, 4294901760
  %v1319 = vsub.f32 %v377, %v1318
  %1320 = vmatprep.subr.mxu0 %v1319
  %v1321 = vand.u32 %v376, 4294901760
  %v1322 = vsub.f32 %v376, %v1321
  %1323 = vmatpush1.msra.mxu0 %v1322
  %1324 = vmatprep.subr.mxu0 0.0
  %1325 = vmatpush1.msra.mxu0 0.0
  %1326 = vmatprep.subr.mxu0 0.0
  %1327 = vmatpush1.msra.mxu0 0.0
  %1328 = vmatprep.subr.mxu0 0.0
  %1329 = vmatpush1.msra.mxu0 0.0
  %1330 = vmatprep.subr.mxu0 0.0
  %1331 = vmatpush1.msra.mxu0 0.0
  %1332 = vmatprep.subr.mxu0 0.0
  %1333 = vmatpush1.msra.mxu0 0.0
  %1334 = vmatprep.subr.mxu0 0.0
  %1335 = vmatpush1.msra.mxu0 0.0
  %1336 = vmatprep.subr.mxu0 0.0
  %1337 = vmatpush1.msra.mxu0 0.0
  %1338 = vmatprep.subr.mxu0 0.0
  %1339 = vmatpush1.msra.mxu0 0.0
  %1340 = vmatprep.subr.mxu0 0.0
  %1341 = vmatpush1.msra.mxu0 0.0
  %1342 = vmatprep.subr.mxu0 0.0
  %1343 = vmatpush1.msra.mxu0 0.0
  %1344 = vmatprep.subr.mxu0 0.0
  %1345 = vmatpush1.msra.mxu0 0.0
  %1346 = vmatprep.subr.mxu0 0.0
  %1347 = vmatpush1.msra.mxu0 0.0
  %1348 = vmatprep.subr.mxu0 0.0
  %1349 = vmatpush1.msra.mxu0 0.0
  %1350 = vmatprep.subr.mxu0 0.0
  %1351 = vmatpush1.msra.mxu0 0.0
  %1352 = vmatprep.subr.mxu0 0.0
  %1353 = vmatpush1.msra.mxu0 0.0
  %1354 = vmatprep.subr.mxu0 0.0
  %1355 = vmatpush1.msra.mxu0 0.0
  %1356 = vmatprep.subr.mxu0 0.0
  %1357 = vmatpush1.msra.mxu0 0.0
  %1358 = vmatprep.subr.mxu0 0.0
  %1359 = vmatpush1.msra.mxu0 0.0
  %1360 = vmatprep.subr.mxu0 0.0
  %1361 = vmatpush1.msra.mxu0 0.0
  %1362 = vmatprep.subr.mxu0 0.0
  %1363 = vmatpush1.msra.mxu0 0.0
  %1364 = vmatprep.subr.mxu0 0.0
  %1365 = vmatpush1.msra.mxu0 0.0
  %1366 = vmatprep.subr.mxu0 0.0
  %1367 = vmatpush1.msra.mxu0 0.0
  %1368 = vmatprep.subr.mxu0 0.0
  %1369 = vmatpush1.msra.mxu0 0.0
  %1370 = vmatprep.subr.mxu0 0.0
  %1371 = vmatpush1.msra.mxu0 0.0
  %1372 = vmatprep.mubr.f32.mxu0 0.0
  %v1373 = vand.u32 %v383, 4294901760
  %v1374 = vsub.f32 %v383, %v1373
  %1375 = vmatmul.mubr.f32.gmra.mrb[0].mxu0 %v1374
  %v1376 = vpop.f32.mrb[0].mxu0
  %v1377 = vadd.f32 %v1272, %v1376
  %v1378 = vpop.f32.mrb[0].mxu0
  %v1379 = vadd.f32 %v1274, %v1378
  %1380 = vdwg.mxu0
  %v1381 = vand.u32 %v328, 4294901760
  %1382 = vmatprep.subr.mxu0 %v1381
  %v1383 = vand.u32 %v327, 4294901760
  %1384 = vmatpush1.msra.mxu0 %v1383
  %v1385 = vand.u32 %v335, 4294901760
  %1386 = vmatprep.subr.mxu0 %v1385
  %v1387 = vand.u32 %v334, 4294901760
  %1388 = vmatpush1.msra.mxu0 %v1387
  %v1389 = vand.u32 %v342, 4294901760
  %1390 = vmatprep.subr.mxu0 %v1389
  %v1391 = vand.u32 %v341, 4294901760
  %1392 = vmatpush1.msra.mxu0 %v1391
  %v1393 = vand.u32 %v349, 4294901760
  %1394 = vmatprep.subr.mxu0 %v1393
  %v1395 = vand.u32 %v348, 4294901760
  %1396 = vmatpush1.msra.mxu0 %v1395
  %v1397 = vand.u32 %v356, 4294901760
  %1398 = vmatprep.subr.mxu0 %v1397
  %v1399 = vand.u32 %v355, 4294901760
  %1400 = vmatpush1.msra.mxu0 %v1399
  %v1401 = vand.u32 %v363, 4294901760
  %1402 = vmatprep.subr.mxu0 %v1401
  %v1403 = vand.u32 %v362, 4294901760
  %1404 = vmatpush1.msra.mxu0 %v1403
  %v1405 = vand.u32 %v370, 4294901760
  %1406 = vmatprep.subr.mxu0 %v1405
  %v1407 = vand.u32 %v369, 4294901760
  %1408 = vmatpush1.msra.mxu0 %v1407
  %v1409 = vand.u32 %v377, 4294901760
  %1410 = vmatprep.subr.mxu0 %v1409
  %v1411 = vand.u32 %v376, 4294901760
  %1412 = vmatpush1.msra.mxu0 %v1411
  %1413 = vmatprep.subr.mxu0 0.0
  %1414 = vmatpush1.msra.mxu0 0.0
  %1415 = vmatprep.subr.mxu0 0.0
  %1416 = vmatpush1.msra.mxu0 0.0
  %1417 = vmatprep.subr.mxu0 0.0
  %1418 = vmatpush1.msra.mxu0 0.0
  %1419 = vmatprep.subr.mxu0 0.0
  %1420 = vmatpush1.msra.mxu0 0.0
  %1421 = vmatprep.subr.mxu0 0.0
  %1422 = vmatpush1.msra.mxu0 0.0
  %1423 = vmatprep.subr.mxu0 0.0
  %1424 = vmatpush1.msra.mxu0 0.0
  %1425 = vmatprep.subr.mxu0 0.0
  %1426 = vmatpush1.msra.mxu0 0.0
  %1427 = vmatprep.subr.mxu0 0.0
  %1428 = vmatpush1.msra.mxu0 0.0
  %1429 = vmatprep.subr.mxu0 0.0
  %1430 = vmatpush1.msra.mxu0 0.0
  %1431 = vmatprep.subr.mxu0 0.0
  %1432 = vmatpush1.msra.mxu0 0.0
  %1433 = vmatprep.subr.mxu0 0.0
  %1434 = vmatpush1.msra.mxu0 0.0
  %1435 = vmatprep.subr.mxu0 0.0
  %1436 = vmatpush1.msra.mxu0 0.0
  %1437 = vmatprep.subr.mxu0 0.0
  %1438 = vmatpush1.msra.mxu0 0.0
  %1439 = vmatprep.subr.mxu0 0.0
  %1440 = vmatpush1.msra.mxu0 0.0
  %1441 = vmatprep.subr.mxu0 0.0
  %1442 = vmatpush1.msra.mxu0 0.0
  %1443 = vmatprep.subr.mxu0 0.0
  %1444 = vmatpush1.msra.mxu0 0.0
  %1445 = vmatprep.subr.mxu0 0.0
  %1446 = vmatpush1.msra.mxu0 0.0
  %1447 = vmatprep.subr.mxu0 0.0
  %1448 = vmatpush1.msra.mxu0 0.0
  %1449 = vmatprep.subr.mxu0 0.0
  %1450 = vmatpush1.msra.mxu0 0.0
  %1451 = vmatprep.subr.mxu0 0.0
  %1452 = vmatpush1.msra.mxu0 0.0
  %1453 = vmatprep.subr.mxu0 0.0
  %1454 = vmatpush1.msra.mxu0 0.0
  %1455 = vmatprep.subr.mxu0 0.0
  %1456 = vmatpush1.msra.mxu0 0.0
  %1457 = vmatprep.subr.mxu0 0.0
  %1458 = vmatpush1.msra.mxu0 0.0
  %1459 = vmatprep.subr.mxu0 0.0
  %1460 = vmatpush1.msra.mxu0 0.0
  %1461 = vmatprep.mubr.f32.mxu0 0.0
  %v1462 = vand.u32 %v383, 4294901760
  %v1463 = vsub.f32 %v383, %v1462
  %v1464 = vand.u32 %v1463, 4294901760
  %1465 = vmatmul.mubr.f32.gmra.mrb[0].mxu0 %v1464
  %v1466 = vpop.f32.mrb[0].mxu0
  %v1467 = vadd.f32 %v1377, %v1466
  %v1468 = vpop.f32.mrb[0].mxu0
  %v1469 = vadd.f32 %v1379, %v1468
  %1470 = vdwg.mxu0
  %v1471 = vand.u32 %v328, 4294901760
  %v1472 = vsub.f32 %v328, %v1471
  %v1473 = vand.u32 %v1472, 4294901760
  %1474 = vmatprep.subr.mxu0 %v1473
  %v1475 = vand.u32 %v327, 4294901760
  %v1476 = vsub.f32 %v327, %v1475
  %v1477 = vand.u32 %v1476, 4294901760
  %1478 = vmatpush1.msra.mxu0 %v1477
  %v1479 = vand.u32 %v335, 4294901760
  %v1480 = vsub.f32 %v335, %v1479
  %v1481 = vand.u32 %v1480, 4294901760
  %1482 = vmatprep.subr.mxu0 %v1481
  %v1483 = vand.u32 %v334, 4294901760
  %v1484 = vsub.f32 %v334, %v1483
  %v1485 = vand.u32 %v1484, 4294901760
  %1486 = vmatpush1.msra.mxu0 %v1485
  %v1487 = vand.u32 %v342, 4294901760
  %v1488 = vsub.f32 %v342, %v1487
  %v1489 = vand.u32 %v1488, 4294901760
  %1490 = vmatprep.subr.mxu0 %v1489
  %v1491 = vand.u32 %v341, 4294901760
  %v1492 = vsub.f32 %v341, %v1491
  %v1493 = vand.u32 %v1492, 4294901760
  %1494 = vmatpush1.msra.mxu0 %v1493
  %v1495 = vand.u32 %v349, 4294901760
  %v1496 = vsub.f32 %v349, %v1495
  %v1497 = vand.u32 %v1496, 4294901760
  %1498 = vmatprep.subr.mxu0 %v1497
  %v1499 = vand.u32 %v348, 4294901760
  %v1500 = vsub.f32 %v348, %v1499
  %v1501 = vand.u32 %v1500, 4294901760
  %1502 = vmatpush1.msra.mxu0 %v1501
  %v1503 = vand.u32 %v356, 4294901760
  %v1504 = vsub.f32 %v356, %v1503
  %v1505 = vand.u32 %v1504, 4294901760
  %1506 = vmatprep.subr.mxu0 %v1505
  %v1507 = vand.u32 %v355, 4294901760
  %v1508 = vsub.f32 %v355, %v1507
  %v1509 = vand.u32 %v1508, 4294901760
  %1510 = vmatpush1.msra.mxu0 %v1509
  %v1511 = vand.u32 %v363, 4294901760
  %v1512 = vsub.f32 %v363, %v1511
  %v1513 = vand.u32 %v1512, 4294901760
  %1514 = vmatprep.subr.mxu0 %v1513
  %v1515 = vand.u32 %v362, 4294901760
  %v1516 = vsub.f32 %v362, %v1515
  %v1517 = vand.u32 %v1516, 4294901760
  %1518 = vmatpush1.msra.mxu0 %v1517
  %v1519 = vand.u32 %v370, 4294901760
  %v1520 = vsub.f32 %v370, %v1519
  %v1521 = vand.u32 %v1520, 4294901760
  %1522 = vmatprep.subr.mxu0 %v1521
  %v1523 = vand.u32 %v369, 4294901760
  %v1524 = vsub.f32 %v369, %v1523
  %v1525 = vand.u32 %v1524, 4294901760
  %1526 = vmatpush1.msra.mxu0 %v1525
  %v1527 = vand.u32 %v377, 4294901760
  %v1528 = vsub.f32 %v377, %v1527
  %v1529 = vand.u32 %v1528, 4294901760
  %1530 = vmatprep.subr.mxu0 %v1529
  %v1531 = vand.u32 %v376, 4294901760
  %v1532 = vsub.f32 %v376, %v1531
  %v1533 = vand.u32 %v1532, 4294901760
  %1534 = vmatpush1.msra.mxu0 %v1533
  %1535 = vmatprep.subr.mxu0 0.0
  %1536 = vmatpush1.msra.mxu0 0.0
  %1537 = vmatprep.subr.mxu0 0.0
  %1538 = vmatpush1.msra.mxu0 0.0
  %1539 = vmatprep.subr.mxu0 0.0
  %1540 = vmatpush1.msra.mxu0 0.0
  %1541 = vmatprep.subr.mxu0 0.0
  %1542 = vmatpush1.msra.mxu0 0.0
  %1543 = vmatprep.subr.mxu0 0.0
  %1544 = vmatpush1.msra.mxu0 0.0
  %1545 = vmatprep.subr.mxu0 0.0
  %1546 = vmatpush1.msra.mxu0 0.0
  %1547 = vmatprep.subr.mxu0 0.0
  %1548 = vmatpush1.msra.mxu0 0.0
  %1549 = vmatprep.subr.mxu0 0.0
  %1550 = vmatpush1.msra.mxu0 0.0
  %1551 = vmatprep.subr.mxu0 0.0
  %1552 = vmatpush1.msra.mxu0 0.0
  %1553 = vmatprep.subr.mxu0 0.0
  %1554 = vmatpush1.msra.mxu0 0.0
  %1555 = vmatprep.subr.mxu0 0.0
  %1556 = vmatpush1.msra.mxu0 0.0
  %1557 = vmatprep.subr.mxu0 0.0
  %1558 = vmatpush1.msra.mxu0 0.0
  %1559 = vmatprep.subr.mxu0 0.0
  %1560 = vmatpush1.msra.mxu0 0.0
  %1561 = vmatprep.subr.mxu0 0.0
  %1562 = vmatpush1.msra.mxu0 0.0
  %1563 = vmatprep.subr.mxu0 0.0
  %1564 = vmatpush1.msra.mxu0 0.0
  %1565 = vmatprep.subr.mxu0 0.0
  %1566 = vmatpush1.msra.mxu0 0.0
  %1567 = vmatprep.subr.mxu0 0.0
  %1568 = vmatpush1.msra.mxu0 0.0
  %1569 = vmatprep.subr.mxu0 0.0
  %1570 = vmatpush1.msra.mxu0 0.0
  %1571 = vmatprep.subr.mxu0 0.0
  %1572 = vmatpush1.msra.mxu0 0.0
  %1573 = vmatprep.subr.mxu0 0.0
  %1574 = vmatpush1.msra.mxu0 0.0
  %1575 = vmatprep.subr.mxu0 0.0
  %1576 = vmatpush1.msra.mxu0 0.0
  %1577 = vmatprep.subr.mxu0 0.0
  %1578 = vmatpush1.msra.mxu0 0.0
  %1579 = vmatprep.subr.mxu0 0.0
  %1580 = vmatpush1.msra.mxu0 0.0
  %1581 = vmatprep.subr.mxu0 0.0
  %1582 = vmatpush1.msra.mxu0 0.0
  %1583 = vmatprep.mubr.f32.mxu0 0.0
  %v1584 = vand.u32 %v383, 4294901760
  %1585 = vmatmul.mubr.f32.gmra.mrb[0].mxu0 %v1584
  %v1586 = vpop.f32.mrb[0].mxu0
  %v1587 = vadd.f32 %v1467, %v1586
  %v1588 = vpop.f32.mrb[0].mxu0
  %v1589 = vadd.f32 %v1469, %v1588
  %1590 = vdwg.mxu0
  %v1591 = vand.u32 %v328, 4294901760
  %1592 = vmatprep.subr.mxu0 %v1591
  %v1593 = vand.u32 %v327, 4294901760
  %1594 = vmatpush1.msra.mxu0 %v1593
  %v1595 = vand.u32 %v335, 4294901760
  %1596 = vmatprep.subr.mxu0 %v1595
  %v1597 = vand.u32 %v334, 4294901760
  %1598 = vmatpush1.msra.mxu0 %v1597
  %v1599 = vand.u32 %v342, 4294901760
  %1600 = vmatprep.subr.mxu0 %v1599
  %v1601 = vand.u32 %v341, 4294901760
  %1602 = vmatpush1.msra.mxu0 %v1601
  %v1603 = vand.u32 %v349, 4294901760
  %1604 = vmatprep.subr.mxu0 %v1603
  %v1605 = vand.u32 %v348, 4294901760
  %1606 = vmatpush1.msra.mxu0 %v1605
  %v1607 = vand.u32 %v356, 4294901760
  %1608 = vmatprep.subr.mxu0 %v1607
  %v1609 = vand.u32 %v355, 4294901760
  %1610 = vmatpush1.msra.mxu0 %v1609
  %v1611 = vand.u32 %v363, 4294901760
  %1612 = vmatprep.subr.mxu0 %v1611
  %v1613 = vand.u32 %v362, 4294901760
  %1614 = vmatpush1.msra.mxu0 %v1613
  %v1615 = vand.u32 %v370, 4294901760
  %1616 = vmatprep.subr.mxu0 %v1615
  %v1617 = vand.u32 %v369, 4294901760
  %1618 = vmatpush1.msra.mxu0 %v1617
  %v1619 = vand.u32 %v377, 4294901760
  %1620 = vmatprep.subr.mxu0 %v1619
  %v1621 = vand.u32 %v376, 4294901760
  %1622 = vmatpush1.msra.mxu0 %v1621
  %1623 = vmatprep.subr.mxu0 0.0
  %1624 = vmatpush1.msra.mxu0 0.0
  %1625 = vmatprep.subr.mxu0 0.0
  %1626 = vmatpush1.msra.mxu0 0.0
  %1627 = vmatprep.subr.mxu0 0.0
  %1628 = vmatpush1.msra.mxu0 0.0
  %1629 = vmatprep.subr.mxu0 0.0
  %1630 = vmatpush1.msra.mxu0 0.0
  %1631 = vmatprep.subr.mxu0 0.0
  %1632 = vmatpush1.msra.mxu0 0.0
  %1633 = vmatprep.subr.mxu0 0.0
  %1634 = vmatpush1.msra.mxu0 0.0
  %1635 = vmatprep.subr.mxu0 0.0
  %1636 = vmatpush1.msra.mxu0 0.0
  %1637 = vmatprep.subr.mxu0 0.0
  %1638 = vmatpush1.msra.mxu0 0.0
  %1639 = vmatprep.subr.mxu0 0.0
  %1640 = vmatpush1.msra.mxu0 0.0
  %1641 = vmatprep.subr.mxu0 0.0
  %1642 = vmatpush1.msra.mxu0 0.0
  %1643 = vmatprep.subr.mxu0 0.0
  %1644 = vmatpush1.msra.mxu0 0.0
  %1645 = vmatprep.subr.mxu0 0.0
  %1646 = vmatpush1.msra.mxu0 0.0
  %1647 = vmatprep.subr.mxu0 0.0
  %1648 = vmatpush1.msra.mxu0 0.0
  %1649 = vmatprep.subr.mxu0 0.0
  %1650 = vmatpush1.msra.mxu0 0.0
  %1651 = vmatprep.subr.mxu0 0.0
  %1652 = vmatpush1.msra.mxu0 0.0
  %1653 = vmatprep.subr.mxu0 0.0
  %1654 = vmatpush1.msra.mxu0 0.0
  %1655 = vmatprep.subr.mxu0 0.0
  %1656 = vmatpush1.msra.mxu0 0.0
  %1657 = vmatprep.subr.mxu0 0.0
  %1658 = vmatpush1.msra.mxu0 0.0
  %1659 = vmatprep.subr.mxu0 0.0
  %1660 = vmatpush1.msra.mxu0 0.0
  %1661 = vmatprep.subr.mxu0 0.0
  %1662 = vmatpush1.msra.mxu0 0.0
  %1663 = vmatprep.subr.mxu0 0.0
  %1664 = vmatpush1.msra.mxu0 0.0
  %1665 = vmatprep.subr.mxu0 0.0
  %1666 = vmatpush1.msra.mxu0 0.0
  %1667 = vmatprep.subr.mxu0 0.0
  %1668 = vmatpush1.msra.mxu0 0.0
  %1669 = vmatprep.subr.mxu0 0.0
  %1670 = vmatpush1.msra.mxu0 0.0
  %1671 = vmatprep.mubr.f32.mxu0 0.0
  %v1672 = vand.u32 %v383, 4294901760
  %1673 = vmatmul.mubr.f32.gmra.mrb[0].mxu0 %v1672
  %v1674 = vpop.f32.mrb[0].mxu0
  %v1675 = vadd.f32 %v1587, %v1674
  %v1676 = vpop.f32.mrb[0].mxu0
  %v1677 = vadd.f32 %v1589, %v1676
  %1678 = vdwg.mxu0
  %v1679 = vand.u32 %v330, 4294901760
  %1680 = vmatprep.subr.mxu0 %v1679
  %v1681 = vand.u32 %v329, 4294901760
  %1682 = vmatpush1.msra.mxu0 %v1681
  %v1683 = vand.u32 %v337, 4294901760
  %1684 = vmatprep.subr.mxu0 %v1683
  %v1685 = vand.u32 %v336, 4294901760
  %1686 = vmatpush1.msra.mxu0 %v1685
  %v1687 = vand.u32 %v344, 4294901760
  %1688 = vmatprep.subr.mxu0 %v1687
  %v1689 = vand.u32 %v343, 4294901760
  %1690 = vmatpush1.msra.mxu0 %v1689
  %v1691 = vand.u32 %v351, 4294901760
  %1692 = vmatprep.subr.mxu0 %v1691
  %v1693 = vand.u32 %v350, 4294901760
  %1694 = vmatpush1.msra.mxu0 %v1693
  %v1695 = vand.u32 %v358, 4294901760
  %1696 = vmatprep.subr.mxu0 %v1695
  %v1697 = vand.u32 %v357, 4294901760
  %1698 = vmatpush1.msra.mxu0 %v1697
  %v1699 = vand.u32 %v365, 4294901760
  %1700 = vmatprep.subr.mxu0 %v1699
  %v1701 = vand.u32 %v364, 4294901760
  %1702 = vmatpush1.msra.mxu0 %v1701
  %v1703 = vand.u32 %v372, 4294901760
  %1704 = vmatprep.subr.mxu0 %v1703
  %v1705 = vand.u32 %v371, 4294901760
  %1706 = vmatpush1.msra.mxu0 %v1705
  %v1707 = vand.u32 %v379, 4294901760
  %1708 = vmatprep.subr.mxu0 %v1707
  %v1709 = vand.u32 %v378, 4294901760
  %1710 = vmatpush1.msra.mxu0 %v1709
  %1711 = vmatprep.subr.mxu0 0.0
  %1712 = vmatpush1.msra.mxu0 0.0
  %1713 = vmatprep.subr.mxu0 0.0
  %1714 = vmatpush1.msra.mxu0 0.0
  %1715 = vmatprep.subr.mxu0 0.0
  %1716 = vmatpush1.msra.mxu0 0.0
  %1717 = vmatprep.subr.mxu0 0.0
  %1718 = vmatpush1.msra.mxu0 0.0
  %1719 = vmatprep.subr.mxu0 0.0
  %1720 = vmatpush1.msra.mxu0 0.0
  %1721 = vmatprep.subr.mxu0 0.0
  %1722 = vmatpush1.msra.mxu0 0.0
  %1723 = vmatprep.subr.mxu0 0.0
  %1724 = vmatpush1.msra.mxu0 0.0
  %1725 = vmatprep.subr.mxu0 0.0
  %1726 = vmatpush1.msra.mxu0 0.0
  %1727 = vmatprep.subr.mxu0 0.0
  %1728 = vmatpush1.msra.mxu0 0.0
  %1729 = vmatprep.subr.mxu0 0.0
  %1730 = vmatpush1.msra.mxu0 0.0
  %1731 = vmatprep.subr.mxu0 0.0
  %1732 = vmatpush1.msra.mxu0 0.0
  %1733 = vmatprep.subr.mxu0 0.0
  %1734 = vmatpush1.msra.mxu0 0.0
  %1735 = vmatprep.subr.mxu0 0.0
  %1736 = vmatpush1.msra.mxu0 0.0
  %1737 = vmatprep.subr.mxu0 0.0
  %1738 = vmatpush1.msra.mxu0 0.0
  %1739 = vmatprep.subr.mxu0 0.0
  %1740 = vmatpush1.msra.mxu0 0.0
  %1741 = vmatprep.subr.mxu0 0.0
  %1742 = vmatpush1.msra.mxu0 0.0
  %1743 = vmatprep.subr.mxu0 0.0
  %1744 = vmatpush1.msra.mxu0 0.0
  %1745 = vmatprep.subr.mxu0 0.0
  %1746 = vmatpush1.msra.mxu0 0.0
  %1747 = vmatprep.subr.mxu0 0.0
  %1748 = vmatpush1.msra.mxu0 0.0
  %1749 = vmatprep.subr.mxu0 0.0
  %1750 = vmatpush1.msra.mxu0 0.0
  %1751 = vmatprep.subr.mxu0 0.0
  %1752 = vmatpush1.msra.mxu0 0.0
  %1753 = vmatprep.subr.mxu0 0.0
  %1754 = vmatpush1.msra.mxu0 0.0
  %1755 = vmatprep.subr.mxu0 0.0
  %1756 = vmatpush1.msra.mxu0 0.0
  %1757 = vmatprep.subr.mxu0 0.0
  %1758 = vmatpush1.msra.mxu0 0.0
  %1759 = vmatprep.mubr.f32.mxu0 0.0
  %v1760 = vand.u32 %v383, 4294901760
  %v1761 = vsub.f32 %v383, %v1760
  %v1762 = vand.u32 %v1761, 4294901760
  %v1763 = vsub.f32 %v1761, %v1762
  %v1764 = vand.u32 %v1763, 4294901760
  %1765 = vmatmul.mubr.f32.gmra.mrb[0].mxu0 %v1764
  %v1766 = vpop.f32.mrb[0].mxu0
  %v1767 = vadd.f32 0.0, %v1766
  %v1768 = vpop.f32.mrb[0].mxu0
  %v1769 = vadd.f32 0.0, %v1768
  %1770 = vdwg.mxu0
  %v1771 = vand.u32 %v330, 4294901760
  %v1772 = vsub.f32 %v330, %v1771
  %v1773 = vand.u32 %v1772, 4294901760
  %v1774 = vsub.f32 %v1772, %v1773
  %v1775 = vand.u32 %v1774, 4294901760
  %1776 = vmatprep.subr.mxu0 %v1775
  %v1777 = vand.u32 %v329, 4294901760
  %v1778 = vsub.f32 %v329, %v1777
  %v1779 = vand.u32 %v1778, 4294901760
  %v1780 = vsub.f32 %v1778, %v1779
  %v1781 = vand.u32 %v1780, 4294901760
  %1782 = vmatpush1.msra.mxu0 %v1781
  %v1783 = vand.u32 %v337, 4294901760
  %v1784 = vsub.f32 %v337, %v1783
  %v1785 = vand.u32 %v1784, 4294901760
  %v1786 = vsub.f32 %v1784, %v1785
  %v1787 = vand.u32 %v1786, 4294901760
  %1788 = vmatprep.subr.mxu0 %v1787
  %v1789 = vand.u32 %v336, 4294901760
  %v1790 = vsub.f32 %v336, %v1789
  %v1791 = vand.u32 %v1790, 4294901760
  %v1792 = vsub.f32 %v1790, %v1791
  %v1793 = vand.u32 %v1792, 4294901760
  %1794 = vmatpush1.msra.mxu0 %v1793
  %v1795 = vand.u32 %v344, 4294901760
  %v1796 = vsub.f32 %v344, %v1795
  %v1797 = vand.u32 %v1796, 4294901760
  %v1798 = vsub.f32 %v1796, %v1797
  %v1799 = vand.u32 %v1798, 4294901760
  %1800 = vmatprep.subr.mxu0 %v1799
  %v1801 = vand.u32 %v343, 4294901760
  %v1802 = vsub.f32 %v343, %v1801
  %v1803 = vand.u32 %v1802, 4294901760
  %v1804 = vsub.f32 %v1802, %v1803
  %v1805 = vand.u32 %v1804, 4294901760
  %1806 = vmatpush1.msra.mxu0 %v1805
  %v1807 = vand.u32 %v351, 4294901760
  %v1808 = vsub.f32 %v351, %v1807
  %v1809 = vand.u32 %v1808, 4294901760
  %v1810 = vsub.f32 %v1808, %v1809
  %v1811 = vand.u32 %v1810, 4294901760
  %1812 = vmatprep.subr.mxu0 %v1811
  %v1813 = vand.u32 %v350, 4294901760
  %v1814 = vsub.f32 %v350, %v1813
  %v1815 = vand.u32 %v1814, 4294901760
  %v1816 = vsub.f32 %v1814, %v1815
  %v1817 = vand.u32 %v1816, 4294901760
  %1818 = vmatpush1.msra.mxu0 %v1817
  %v1819 = vand.u32 %v358, 4294901760
  %v1820 = vsub.f32 %v358, %v1819
  %v1821 = vand.u32 %v1820, 4294901760
  %v1822 = vsub.f32 %v1820, %v1821
  %v1823 = vand.u32 %v1822, 4294901760
  %1824 = vmatprep.subr.mxu0 %v1823
  %v1825 = vand.u32 %v357, 4294901760
  %v1826 = vsub.f32 %v357, %v1825
  %v1827 = vand.u32 %v1826, 4294901760
  %v1828 = vsub.f32 %v1826, %v1827
  %v1829 = vand.u32 %v1828, 4294901760
  %1830 = vmatpush1.msra.mxu0 %v1829
  %v1831 = vand.u32 %v365, 4294901760
  %v1832 = vsub.f32 %v365, %v1831
  %v1833 = vand.u32 %v1832, 4294901760
  %v1834 = vsub.f32 %v1832, %v1833
  %v1835 = vand.u32 %v1834, 4294901760
  %1836 = vmatprep.subr.mxu0 %v1835
  %v1837 = vand.u32 %v364, 4294901760
  %v1838 = vsub.f32 %v364, %v1837
  %v1839 = vand.u32 %v1838, 4294901760
  %v1840 = vsub.f32 %v1838, %v1839
  %v1841 = vand.u32 %v1840, 4294901760
  %1842 = vmatpush1.msra.mxu0 %v1841
  %v1843 = vand.u32 %v372, 4294901760
  %v1844 = vsub.f32 %v372, %v1843
  %v1845 = vand.u32 %v1844, 4294901760
  %v1846 = vsub.f32 %v1844, %v1845
  %v1847 = vand.u32 %v1846, 4294901760
  %1848 = vmatprep.subr.mxu0 %v1847
  %v1849 = vand.u32 %v371, 4294901760
  %v1850 = vsub.f32 %v371, %v1849
  %v1851 = vand.u32 %v1850, 4294901760
  %v1852 = vsub.f32 %v1850, %v1851
  %v1853 = vand.u32 %v1852, 4294901760
  %1854 = vmatpush1.msra.mxu0 %v1853
  %v1855 = vand.u32 %v379, 4294901760
  %v1856 = vsub.f32 %v379, %v1855
  %v1857 = vand.u32 %v1856, 4294901760
  %v1858 = vsub.f32 %v1856, %v1857
  %v1859 = vand.u32 %v1858, 4294901760
  %1860 = vmatprep.subr.mxu0 %v1859
  %v1861 = vand.u32 %v378, 4294901760
  %v1862 = vsub.f32 %v378, %v1861
  %v1863 = vand.u32 %v1862, 4294901760
  %v1864 = vsub.f32 %v1862, %v1863
  %v1865 = vand.u32 %v1864, 4294901760
  %1866 = vmatpush1.msra.mxu0 %v1865
  %1867 = vmatprep.subr.mxu0 0.0
  %1868 = vmatpush1.msra.mxu0 0.0
  %1869 = vmatprep.subr.mxu0 0.0
  %1870 = vmatpush1.msra.mxu0 0.0
  %1871 = vmatprep.subr.mxu0 0.0
  %1872 = vmatpush1.msra.mxu0 0.0
  %1873 = vmatprep.subr.mxu0 0.0
  %1874 = vmatpush1.msra.mxu0 0.0
  %1875 = vmatprep.subr.mxu0 0.0
  %1876 = vmatpush1.msra.mxu0 0.0
  %1877 = vmatprep.subr.mxu0 0.0
  %1878 = vmatpush1.msra.mxu0 0.0
  %1879 = vmatprep.subr.mxu0 0.0
  %1880 = vmatpush1.msra.mxu0 0.0
  %1881 = vmatprep.subr.mxu0 0.0
  %1882 = vmatpush1.msra.mxu0 0.0
  %1883 = vmatprep.subr.mxu0 0.0
  %1884 = vmatpush1.msra.mxu0 0.0
  %1885 = vmatprep.subr.mxu0 0.0
  %1886 = vmatpush1.msra.mxu0 0.0
  %1887 = vmatprep.subr.mxu0 0.0
  %1888 = vmatpush1.msra.mxu0 0.0
  %1889 = vmatprep.subr.mxu0 0.0
  %1890 = vmatpush1.msra.mxu0 0.0
  %1891 = vmatprep.subr.mxu0 0.0
  %1892 = vmatpush1.msra.mxu0 0.0
  %1893 = vmatprep.subr.mxu0 0.0
  %1894 = vmatpush1.msra.mxu0 0.0
  %1895 = vmatprep.subr.mxu0 0.0
  %1896 = vmatpush1.msra.mxu0 0.0
  %1897 = vmatprep.subr.mxu0 0.0
  %1898 = vmatpush1.msra.mxu0 0.0
  %1899 = vmatprep.subr.mxu0 0.0
  %1900 = vmatpush1.msra.mxu0 0.0
  %1901 = vmatprep.subr.mxu0 0.0
  %1902 = vmatpush1.msra.mxu0 0.0
  %1903 = vmatprep.subr.mxu0 0.0
  %1904 = vmatpush1.msra.mxu0 0.0
  %1905 = vmatprep.subr.mxu0 0.0
  %1906 = vmatpush1.msra.mxu0 0.0
  %1907 = vmatprep.subr.mxu0 0.0
  %1908 = vmatpush1.msra.mxu0 0.0
  %1909 = vmatprep.subr.mxu0 0.0
  %1910 = vmatpush1.msra.mxu0 0.0
  %1911 = vmatprep.subr.mxu0 0.0
  %1912 = vmatpush1.msra.mxu0 0.0
  %1913 = vmatprep.subr.mxu0 0.0
  %1914 = vmatpush1.msra.mxu0 0.0
  %1915 = vmatprep.mubr.f32.mxu0 0.0
  %v1916 = vand.u32 %v383, 4294901760
  %1917 = vmatmul.mubr.f32.gmra.mrb[0].mxu0 %v1916
  %v1918 = vpop.f32.mrb[0].mxu0
  %v1919 = vadd.f32 %v1767, %v1918
  %v1920 = vpop.f32.mrb[0].mxu0
  %v1921 = vadd.f32 %v1769, %v1920
  %1922 = vdwg.mxu0
  %v1923 = vand.u32 %v330, 4294901760
  %v1924 = vsub.f32 %v330, %v1923
  %1925 = vmatprep.subr.mxu0 %v1924
  %v1926 = vand.u32 %v329, 4294901760
  %v1927 = vsub.f32 %v329, %v1926
  %1928 = vmatpush1.msra.mxu0 %v1927
  %v1929 = vand.u32 %v337, 4294901760
  %v1930 = vsub.f32 %v337, %v1929
  %1931 = vmatprep.subr.mxu0 %v1930
  %v1932 = vand.u32 %v336, 4294901760
  %v1933 = vsub.f32 %v336, %v1932
  %1934 = vmatpush1.msra.mxu0 %v1933
  %v1935 = vand.u32 %v344, 4294901760
  %v1936 = vsub.f32 %v344, %v1935
  %1937 = vmatprep.subr.mxu0 %v1936
  %v1938 = vand.u32 %v343, 4294901760
  %v1939 = vsub.f32 %v343, %v1938
  %1940 = vmatpush1.msra.mxu0 %v1939
  %v1941 = vand.u32 %v351, 4294901760
  %v1942 = vsub.f32 %v351, %v1941
  %1943 = vmatprep.subr.mxu0 %v1942
  %v1944 = vand.u32 %v350, 4294901760
  %v1945 = vsub.f32 %v350, %v1944
  %1946 = vmatpush1.msra.mxu0 %v1945
  %v1947 = vand.u32 %v358, 4294901760
  %v1948 = vsub.f32 %v358, %v1947
  %1949 = vmatprep.subr.mxu0 %v1948
  %v1950 = vand.u32 %v357, 4294901760
  %v1951 = vsub.f32 %v357, %v1950
  %1952 = vmatpush1.msra.mxu0 %v1951
  %v1953 = vand.u32 %v365, 4294901760
  %v1954 = vsub.f32 %v365, %v1953
  %1955 = vmatprep.subr.mxu0 %v1954
  %v1956 = vand.u32 %v364, 4294901760
  %v1957 = vsub.f32 %v364, %v1956
  %1958 = vmatpush1.msra.mxu0 %v1957
  %v1959 = vand.u32 %v372, 4294901760
  %v1960 = vsub.f32 %v372, %v1959
  %1961 = vmatprep.subr.mxu0 %v1960
  %v1962 = vand.u32 %v371, 4294901760
  %v1963 = vsub.f32 %v371, %v1962
  %1964 = vmatpush1.msra.mxu0 %v1963
  %v1965 = vand.u32 %v379, 4294901760
  %v1966 = vsub.f32 %v379, %v1965
  %1967 = vmatprep.subr.mxu0 %v1966
  %v1968 = vand.u32 %v378, 4294901760
  %v1969 = vsub.f32 %v378, %v1968
  %1970 = vmatpush1.msra.mxu0 %v1969
  %1971 = vmatprep.subr.mxu0 0.0
  %1972 = vmatpush1.msra.mxu0 0.0
  %1973 = vmatprep.subr.mxu0 0.0
  %1974 = vmatpush1.msra.mxu0 0.0
  %1975 = vmatprep.subr.mxu0 0.0
  %1976 = vmatpush1.msra.mxu0 0.0
  %1977 = vmatprep.subr.mxu0 0.0
  %1978 = vmatpush1.msra.mxu0 0.0
  %1979 = vmatprep.subr.mxu0 0.0
  %1980 = vmatpush1.msra.mxu0 0.0
  %1981 = vmatprep.subr.mxu0 0.0
  %1982 = vmatpush1.msra.mxu0 0.0
  %1983 = vmatprep.subr.mxu0 0.0
  %1984 = vmatpush1.msra.mxu0 0.0
  %1985 = vmatprep.subr.mxu0 0.0
  %1986 = vmatpush1.msra.mxu0 0.0
  %1987 = vmatprep.subr.mxu0 0.0
  %1988 = vmatpush1.msra.mxu0 0.0
  %1989 = vmatprep.subr.mxu0 0.0
  %1990 = vmatpush1.msra.mxu0 0.0
  %1991 = vmatprep.subr.mxu0 0.0
  %1992 = vmatpush1.msra.mxu0 0.0
  %1993 = vmatprep.subr.mxu0 0.0
  %1994 = vmatpush1.msra.mxu0 0.0
  %1995 = vmatprep.subr.mxu0 0.0
  %1996 = vmatpush1.msra.mxu0 0.0
  %1997 = vmatprep.subr.mxu0 0.0
  %1998 = vmatpush1.msra.mxu0 0.0
  %1999 = vmatprep.subr.mxu0 0.0
  %2000 = vmatpush1.msra.mxu0 0.0
  %2001 = vmatprep.subr.mxu0 0.0
  %2002 = vmatpush1.msra.mxu0 0.0
  %2003 = vmatprep.subr.mxu0 0.0
  %2004 = vmatpush1.msra.mxu0 0.0
  %2005 = vmatprep.subr.mxu0 0.0
  %2006 = vmatpush1.msra.mxu0 0.0
  %2007 = vmatprep.subr.mxu0 0.0
  %2008 = vmatpush1.msra.mxu0 0.0
  %2009 = vmatprep.subr.mxu0 0.0
  %2010 = vmatpush1.msra.mxu0 0.0
  %2011 = vmatprep.subr.mxu0 0.0
  %2012 = vmatpush1.msra.mxu0 0.0
  %2013 = vmatprep.subr.mxu0 0.0
  %2014 = vmatpush1.msra.mxu0 0.0
  %2015 = vmatprep.subr.mxu0 0.0
  %2016 = vmatpush1.msra.mxu0 0.0
  %2017 = vmatprep.subr.mxu0 0.0
  %2018 = vmatpush1.msra.mxu0 0.0
  %2019 = vmatprep.mubr.f32.mxu0 0.0
  %v2020 = vand.u32 %v383, 4294901760
  %v2021 = vsub.f32 %v383, %v2020
  %2022 = vmatmul.mubr.f32.gmra.mrb[0].mxu0 %v2021
  %v2023 = vpop.f32.mrb[0].mxu0
  %v2024 = vadd.f32 %v1919, %v2023
  %v2025 = vpop.f32.mrb[0].mxu0
  %v2026 = vadd.f32 %v1921, %v2025
  %2027 = vdwg.mxu0
  %v2028 = vand.u32 %v330, 4294901760
  %2029 = vmatprep.subr.mxu0 %v2028
  %v2030 = vand.u32 %v329, 4294901760
  %2031 = vmatpush1.msra.mxu0 %v2030
  %v2032 = vand.u32 %v337, 4294901760
  %2033 = vmatprep.subr.mxu0 %v2032
  %v2034 = vand.u32 %v336, 4294901760
  %2035 = vmatpush1.msra.mxu0 %v2034
  %v2036 = vand.u32 %v344, 4294901760
  %2037 = vmatprep.subr.mxu0 %v2036
  %v2038 = vand.u32 %v343, 4294901760
  %2039 = vmatpush1.msra.mxu0 %v2038
  %v2040 = vand.u32 %v351, 4294901760
  %2041 = vmatprep.subr.mxu0 %v2040
  %v2042 = vand.u32 %v350, 4294901760
  %2043 = vmatpush1.msra.mxu0 %v2042
  %v2044 = vand.u32 %v358, 4294901760
  %2045 = vmatprep.subr.mxu0 %v2044
  %v2046 = vand.u32 %v357, 4294901760
  %2047 = vmatpush1.msra.mxu0 %v2046
  %v2048 = vand.u32 %v365, 4294901760
  %2049 = vmatprep.subr.mxu0 %v2048
  %v2050 = vand.u32 %v364, 4294901760
  %2051 = vmatpush1.msra.mxu0 %v2050
  %v2052 = vand.u32 %v372, 4294901760
  %2053 = vmatprep.subr.mxu0 %v2052
  %v2054 = vand.u32 %v371, 4294901760
  %2055 = vmatpush1.msra.mxu0 %v2054
  %v2056 = vand.u32 %v379, 4294901760
  %2057 = vmatprep.subr.mxu0 %v2056
  %v2058 = vand.u32 %v378, 4294901760
  %2059 = vmatpush1.msra.mxu0 %v2058
  %2060 = vmatprep.subr.mxu0 0.0
  %2061 = vmatpush1.msra.mxu0 0.0
  %2062 = vmatprep.subr.mxu0 0.0
  %2063 = vmatpush1.msra.mxu0 0.0
  %2064 = vmatprep.subr.mxu0 0.0
  %2065 = vmatpush1.msra.mxu0 0.0
  %2066 = vmatprep.subr.mxu0 0.0
  %2067 = vmatpush1.msra.mxu0 0.0
  %2068 = vmatprep.subr.mxu0 0.0
  %2069 = vmatpush1.msra.mxu0 0.0
  %2070 = vmatprep.subr.mxu0 0.0
  %2071 = vmatpush1.msra.mxu0 0.0
  %2072 = vmatprep.subr.mxu0 0.0
  %2073 = vmatpush1.msra.mxu0 0.0
  %2074 = vmatprep.subr.mxu0 0.0
  %2075 = vmatpush1.msra.mxu0 0.0
  %2076 = vmatprep.subr.mxu0 0.0
  %2077 = vmatpush1.msra.mxu0 0.0
  %2078 = vmatprep.subr.mxu0 0.0
  %2079 = vmatpush1.msra.mxu0 0.0
  %2080 = vmatprep.subr.mxu0 0.0
  %2081 = vmatpush1.msra.mxu0 0.0
  %2082 = vmatprep.subr.mxu0 0.0
  %2083 = vmatpush1.msra.mxu0 0.0
  %2084 = vmatprep.subr.mxu0 0.0
  %2085 = vmatpush1.msra.mxu0 0.0
  %2086 = vmatprep.subr.mxu0 0.0
  %2087 = vmatpush1.msra.mxu0 0.0
  %2088 = vmatprep.subr.mxu0 0.0
  %2089 = vmatpush1.msra.mxu0 0.0
  %2090 = vmatprep.subr.mxu0 0.0
  %2091 = vmatpush1.msra.mxu0 0.0
  %2092 = vmatprep.subr.mxu0 0.0
  %2093 = vmatpush1.msra.mxu0 0.0
  %2094 = vmatprep.subr.mxu0 0.0
  %2095 = vmatpush1.msra.mxu0 0.0
  %2096 = vmatprep.subr.mxu0 0.0
  %2097 = vmatpush1.msra.mxu0 0.0
  %2098 = vmatprep.subr.mxu0 0.0
  %2099 = vmatpush1.msra.mxu0 0.0
  %2100 = vmatprep.subr.mxu0 0.0
  %2101 = vmatpush1.msra.mxu0 0.0
  %2102 = vmatprep.subr.mxu0 0.0
  %2103 = vmatpush1.msra.mxu0 0.0
  %2104 = vmatprep.subr.mxu0 0.0
  %2105 = vmatpush1.msra.mxu0 0.0
  %2106 = vmatprep.subr.mxu0 0.0
  %2107 = vmatpush1.msra.mxu0 0.0
  %2108 = vmatprep.mubr.f32.mxu0 0.0
  %v2109 = vand.u32 %v383, 4294901760
  %v2110 = vsub.f32 %v383, %v2109
  %v2111 = vand.u32 %v2110, 4294901760
  %2112 = vmatmul.mubr.f32.gmra.mrb[0].mxu0 %v2111
  %v2113 = vpop.f32.mrb[0].mxu0
  %v2114 = vadd.f32 %v2024, %v2113
  %v2115 = vpop.f32.mrb[0].mxu0
  %v2116 = vadd.f32 %v2026, %v2115
  %2117 = vdwg.mxu0
  %v2118 = vand.u32 %v330, 4294901760
  %v2119 = vsub.f32 %v330, %v2118
  %v2120 = vand.u32 %v2119, 4294901760
  %2121 = vmatprep.subr.mxu0 %v2120
  %v2122 = vand.u32 %v329, 4294901760
  %v2123 = vsub.f32 %v329, %v2122
  %v2124 = vand.u32 %v2123, 4294901760
  %2125 = vmatpush1.msra.mxu0 %v2124
  %v2126 = vand.u32 %v337, 4294901760
  %v2127 = vsub.f32 %v337, %v2126
  %v2128 = vand.u32 %v2127, 4294901760
  %2129 = vmatprep.subr.mxu0 %v2128
  %v2130 = vand.u32 %v336, 4294901760
  %v2131 = vsub.f32 %v336, %v2130
  %v2132 = vand.u32 %v2131, 4294901760
  %2133 = vmatpush1.msra.mxu0 %v2132
  %v2134 = vand.u32 %v344, 4294901760
  %v2135 = vsub.f32 %v344, %v2134
  %v2136 = vand.u32 %v2135, 4294901760
  %2137 = vmatprep.subr.mxu0 %v2136
  %v2138 = vand.u32 %v343, 4294901760
  %v2139 = vsub.f32 %v343, %v2138
  %v2140 = vand.u32 %v2139, 4294901760
  %2141 = vmatpush1.msra.mxu0 %v2140
  %v2142 = vand.u32 %v351, 4294901760
  %v2143 = vsub.f32 %v351, %v2142
  %v2144 = vand.u32 %v2143, 4294901760
  %2145 = vmatprep.subr.mxu0 %v2144
  %v2146 = vand.u32 %v350, 4294901760
  %v2147 = vsub.f32 %v350, %v2146
  %v2148 = vand.u32 %v2147, 4294901760
  %2149 = vmatpush1.msra.mxu0 %v2148
  %v2150 = vand.u32 %v358, 4294901760
  %v2151 = vsub.f32 %v358, %v2150
  %v2152 = vand.u32 %v2151, 4294901760
  %2153 = vmatprep.subr.mxu0 %v2152
  %v2154 = vand.u32 %v357, 4294901760
  %v2155 = vsub.f32 %v357, %v2154
  %v2156 = vand.u32 %v2155, 4294901760
  %2157 = vmatpush1.msra.mxu0 %v2156
  %v2158 = vand.u32 %v365, 4294901760
  %v2159 = vsub.f32 %v365, %v2158
  %v2160 = vand.u32 %v2159, 4294901760
  %2161 = vmatprep.subr.mxu0 %v2160
  %v2162 = vand.u32 %v364, 4294901760
  %v2163 = vsub.f32 %v364, %v2162
  %v2164 = vand.u32 %v2163, 4294901760
  %2165 = vmatpush1.msra.mxu0 %v2164
  %v2166 = vand.u32 %v372, 4294901760
  %v2167 = vsub.f32 %v372, %v2166
  %v2168 = vand.u32 %v2167, 4294901760
  %2169 = vmatprep.subr.mxu0 %v2168
  %v2170 = vand.u32 %v371, 4294901760
  %v2171 = vsub.f32 %v371, %v2170
  %v2172 = vand.u32 %v2171, 4294901760
  %2173 = vmatpush1.msra.mxu0 %v2172
  %v2174 = vand.u32 %v379, 4294901760
  %v2175 = vsub.f32 %v379, %v2174
  %v2176 = vand.u32 %v2175, 4294901760
  %2177 = vmatprep.subr.mxu0 %v2176
  %v2178 = vand.u32 %v378, 4294901760
  %v2179 = vsub.f32 %v378, %v2178
  %v2180 = vand.u32 %v2179, 4294901760
  %2181 = vmatpush1.msra.mxu0 %v2180
  %2182 = vmatprep.subr.mxu0 0.0
  %2183 = vmatpush1.msra.mxu0 0.0
  %2184 = vmatprep.subr.mxu0 0.0
  %2185 = vmatpush1.msra.mxu0 0.0
  %2186 = vmatprep.subr.mxu0 0.0
  %2187 = vmatpush1.msra.mxu0 0.0
  %2188 = vmatprep.subr.mxu0 0.0
  %2189 = vmatpush1.msra.mxu0 0.0
  %2190 = vmatprep.subr.mxu0 0.0
  %2191 = vmatpush1.msra.mxu0 0.0
  %2192 = vmatprep.subr.mxu0 0.0
  %2193 = vmatpush1.msra.mxu0 0.0
  %2194 = vmatprep.subr.mxu0 0.0
  %2195 = vmatpush1.msra.mxu0 0.0
  %2196 = vmatprep.subr.mxu0 0.0
  %2197 = vmatpush1.msra.mxu0 0.0
  %2198 = vmatprep.subr.mxu0 0.0
  %2199 = vmatpush1.msra.mxu0 0.0
  %2200 = vmatprep.subr.mxu0 0.0
  %2201 = vmatpush1.msra.mxu0 0.0
  %2202 = vmatprep.subr.mxu0 0.0
  %2203 = vmatpush1.msra.mxu0 0.0
  %2204 = vmatprep.subr.mxu0 0.0
  %2205 = vmatpush1.msra.mxu0 0.0
  %2206 = vmatprep.subr.mxu0 0.0
  %2207 = vmatpush1.msra.mxu0 0.0
  %2208 = vmatprep.subr.mxu0 0.0
  %2209 = vmatpush1.msra.mxu0 0.0
  %2210 = vmatprep.subr.mxu0 0.0
  %2211 = vmatpush1.msra.mxu0 0.0
  %2212 = vmatprep.subr.mxu0 0.0
  %2213 = vmatpush1.msra.mxu0 0.0
  %2214 = vmatprep.subr.mxu0 0.0
  %2215 = vmatpush1.msra.mxu0 0.0
  %2216 = vmatprep.subr.mxu0 0.0
  %2217 = vmatpush1.msra.mxu0 0.0
  %2218 = vmatprep.subr.mxu0 0.0
  %2219 = vmatpush1.msra.mxu0 0.0
  %2220 = vmatprep.subr.mxu0 0.0
  %2221 = vmatpush1.msra.mxu0 0.0
  %2222 = vmatprep.subr.mxu0 0.0
  %2223 = vmatpush1.msra.mxu0 0.0
  %2224 = vmatprep.subr.mxu0 0.0
  %2225 = vmatpush1.msra.mxu0 0.0
  %2226 = vmatprep.subr.mxu0 0.0
  %2227 = vmatpush1.msra.mxu0 0.0
  %2228 = vmatprep.subr.mxu0 0.0
  %2229 = vmatpush1.msra.mxu0 0.0
  %2230 = vmatprep.mubr.f32.mxu0 0.0
  %v2231 = vand.u32 %v383, 4294901760
  %2232 = vmatmul.mubr.f32.gmra.mrb[0].mxu0 %v2231
  %v2233 = vpop.f32.mrb[0].mxu0
  %v2234 = vadd.f32 %v2114, %v2233
  %v2235 = vpop.f32.mrb[0].mxu0
  %v2236 = vadd.f32 %v2116, %v2235
  %2237 = vdwg.mxu0
  %v2238 = vand.u32 %v330, 4294901760
  %2239 = vmatprep.subr.mxu0 %v2238
  %v2240 = vand.u32 %v329, 4294901760
  %2241 = vmatpush1.msra.mxu0 %v2240
  %v2242 = vand.u32 %v337, 4294901760
  %2243 = vmatprep.subr.mxu0 %v2242
  %v2244 = vand.u32 %v336, 4294901760
  %2245 = vmatpush1.msra.mxu0 %v2244
  %v2246 = vand.u32 %v344, 4294901760
  %2247 = vmatprep.subr.mxu0 %v2246
  %v2248 = vand.u32 %v343, 4294901760
  %2249 = vmatpush1.msra.mxu0 %v2248
  %v2250 = vand.u32 %v351, 4294901760
  %2251 = vmatprep.subr.mxu0 %v2250
  %v2252 = vand.u32 %v350, 4294901760
  %2253 = vmatpush1.msra.mxu0 %v2252
  %v2254 = vand.u32 %v358, 4294901760
  %2255 = vmatprep.subr.mxu0 %v2254
  %v2256 = vand.u32 %v357, 4294901760
  %2257 = vmatpush1.msra.mxu0 %v2256
  %v2258 = vand.u32 %v365, 4294901760
  %2259 = vmatprep.subr.mxu0 %v2258
  %v2260 = vand.u32 %v364, 4294901760
  %2261 = vmatpush1.msra.mxu0 %v2260
  %v2262 = vand.u32 %v372, 4294901760
  %2263 = vmatprep.subr.mxu0 %v2262
  %v2264 = vand.u32 %v371, 4294901760
  %2265 = vmatpush1.msra.mxu0 %v2264
  %v2266 = vand.u32 %v379, 4294901760
  %2267 = vmatprep.subr.mxu0 %v2266
  %v2268 = vand.u32 %v378, 4294901760
  %2269 = vmatpush1.msra.mxu0 %v2268
  %2270 = vmatprep.subr.mxu0 0.0
  %2271 = vmatpush1.msra.mxu0 0.0
  %2272 = vmatprep.subr.mxu0 0.0
  %2273 = vmatpush1.msra.mxu0 0.0
  %2274 = vmatprep.subr.mxu0 0.0
  %2275 = vmatpush1.msra.mxu0 0.0
  %2276 = vmatprep.subr.mxu0 0.0
  %2277 = vmatpush1.msra.mxu0 0.0
  %2278 = vmatprep.subr.mxu0 0.0
  %2279 = vmatpush1.msra.mxu0 0.0
  %2280 = vmatprep.subr.mxu0 0.0
  %2281 = vmatpush1.msra.mxu0 0.0
  %2282 = vmatprep.subr.mxu0 0.0
  %2283 = vmatpush1.msra.mxu0 0.0
  %2284 = vmatprep.subr.mxu0 0.0
  %2285 = vmatpush1.msra.mxu0 0.0
  %2286 = vmatprep.subr.mxu0 0.0
  %2287 = vmatpush1.msra.mxu0 0.0
  %2288 = vmatprep.subr.mxu0 0.0
  %2289 = vmatpush1.msra.mxu0 0.0
  %2290 = vmatprep.subr.mxu0 0.0
  %2291 = vmatpush1.msra.mxu0 0.0
  %2292 = vmatprep.subr.mxu0 0.0
  %2293 = vmatpush1.msra.mxu0 0.0
  %2294 = vmatprep.subr.mxu0 0.0
  %2295 = vmatpush1.msra.mxu0 0.0
  %2296 = vmatprep.subr.mxu0 0.0
  %2297 = vmatpush1.msra.mxu0 0.0
  %2298 = vmatprep.subr.mxu0 0.0
  %2299 = vmatpush1.msra.mxu0 0.0
  %2300 = vmatprep.subr.mxu0 0.0
  %2301 = vmatpush1.msra.mxu0 0.0
  %2302 = vmatprep.subr.mxu0 0.0
  %2303 = vmatpush1.msra.mxu0 0.0
  %2304 = vmatprep.subr.mxu0 0.0
  %2305 = vmatpush1.msra.mxu0 0.0
  %2306 = vmatprep.subr.mxu0 0.0
  %2307 = vmatpush1.msra.mxu0 0.0
  %2308 = vmatprep.subr.mxu0 0.0
  %2309 = vmatpush1.msra.mxu0 0.0
  %2310 = vmatprep.subr.mxu0 0.0
  %2311 = vmatpush1.msra.mxu0 0.0
  %2312 = vmatprep.subr.mxu0 0.0
  %2313 = vmatpush1.msra.mxu0 0.0
  %2314 = vmatprep.subr.mxu0 0.0
  %2315 = vmatpush1.msra.mxu0 0.0
  %2316 = vmatprep.subr.mxu0 0.0
  %2317 = vmatpush1.msra.mxu0 0.0
  %2318 = vmatprep.mubr.f32.mxu0 0.0
  %v2319 = vand.u32 %v383, 4294901760
  %2320 = vmatmul.mubr.f32.gmra.mrb[0].mxu0 %v2319
  %v2321 = vpop.f32.mrb[0].mxu0
  %v2322 = vadd.f32 %v2234, %v2321
  %v2323 = vpop.f32.mrb[0].mxu0
  %v2324 = vadd.f32 %v2236, %v2323
  %2325 = vdwg.mxu0
  %2326 = vmatprep.subr.mxu0 0.0
  %v2327 = vand.u32 %v331, 4294901760
  %2328 = vmatpush1.msra.mxu0 %v2327
  %2329 = vmatprep.subr.mxu0 0.0
  %v2330 = vand.u32 %v338, 4294901760
  %2331 = vmatpush1.msra.mxu0 %v2330
  %2332 = vmatprep.subr.mxu0 0.0
  %v2333 = vand.u32 %v345, 4294901760
  %2334 = vmatpush1.msra.mxu0 %v2333
  %2335 = vmatprep.subr.mxu0 0.0
  %v2336 = vand.u32 %v352, 4294901760
  %2337 = vmatpush1.msra.mxu0 %v2336
  %2338 = vmatprep.subr.mxu0 0.0
  %v2339 = vand.u32 %v359, 4294901760
  %2340 = vmatpush1.msra.mxu0 %v2339
  %2341 = vmatprep.subr.mxu0 0.0
  %v2342 = vand.u32 %v366, 4294901760
  %2343 = vmatpush1.msra.mxu0 %v2342
  %2344 = vmatprep.subr.mxu0 0.0
  %v2345 = vand.u32 %v373, 4294901760
  %2346 = vmatpush1.msra.mxu0 %v2345
  %2347 = vmatprep.subr.mxu0 0.0
  %v2348 = vand.u32 %v380, 4294901760
  %2349 = vmatpush1.msra.mxu0 %v2348
  %2350 = vmatprep.subr.mxu0 0.0
  %2351 = vmatpush1.msra.mxu0 0.0
  %2352 = vmatprep.subr.mxu0 0.0
  %2353 = vmatpush1.msra.mxu0 0.0
  %2354 = vmatprep.subr.mxu0 0.0
  %2355 = vmatpush1.msra.mxu0 0.0
  %2356 = vmatprep.subr.mxu0 0.0
  %2357 = vmatpush1.msra.mxu0 0.0
  %2358 = vmatprep.subr.mxu0 0.0
  %2359 = vmatpush1.msra.mxu0 0.0
  %2360 = vmatprep.subr.mxu0 0.0
  %2361 = vmatpush1.msra.mxu0 0.0
  %2362 = vmatprep.subr.mxu0 0.0
  %2363 = vmatpush1.msra.mxu0 0.0
  %2364 = vmatprep.subr.mxu0 0.0
  %2365 = vmatpush1.msra.mxu0 0.0
  %2366 = vmatprep.subr.mxu0 0.0
  %2367 = vmatpush1.msra.mxu0 0.0
  %2368 = vmatprep.subr.mxu0 0.0
  %2369 = vmatpush1.msra.mxu0 0.0
  %2370 = vmatprep.subr.mxu0 0.0
  %2371 = vmatpush1.msra.mxu0 0.0
  %2372 = vmatprep.subr.mxu0 0.0
  %2373 = vmatpush1.msra.mxu0 0.0
  %2374 = vmatprep.subr.mxu0 0.0
  %2375 = vmatpush1.msra.mxu0 0.0
  %2376 = vmatprep.subr.mxu0 0.0
  %2377 = vmatpush1.msra.mxu0 0.0
  %2378 = vmatprep.subr.mxu0 0.0
  %2379 = vmatpush1.msra.mxu0 0.0
  %2380 = vmatprep.subr.mxu0 0.0
  %2381 = vmatpush1.msra.mxu0 0.0
  %2382 = vmatprep.subr.mxu0 0.0
  %2383 = vmatpush1.msra.mxu0 0.0
  %2384 = vmatprep.subr.mxu0 0.0
  %2385 = vmatpush1.msra.mxu0 0.0
  %2386 = vmatprep.subr.mxu0 0.0
  %2387 = vmatpush1.msra.mxu0 0.0
  %2388 = vmatprep.subr.mxu0 0.0
  %2389 = vmatpush1.msra.mxu0 0.0
  %2390 = vmatprep.subr.mxu0 0.0
  %2391 = vmatpush1.msra.mxu0 0.0
  %2392 = vmatprep.subr.mxu0 0.0
  %2393 = vmatpush1.msra.mxu0 0.0
  %2394 = vmatprep.subr.mxu0 0.0
  %2395 = vmatpush1.msra.mxu0 0.0
  %2396 = vmatprep.subr.mxu0 0.0
  %2397 = vmatpush1.msra.mxu0 0.0
  %2398 = vmatprep.mubr.f32.mxu0 0.0
  %v2399 = vand.u32 %v383, 4294901760
  %v2400 = vsub.f32 %v383, %v2399
  %v2401 = vand.u32 %v2400, 4294901760
  %v2402 = vsub.f32 %v2400, %v2401
  %v2403 = vand.u32 %v2402, 4294901760
  %2404 = vmatmul.mubr.f32.gmra.mrb[0].mxu0 %v2403
  %v2405 = vpop.f32.mrb[0].mxu0
  %v2406 = vadd.f32 0.0, %v2405
  %v2407 = vpop.f32.mrb[0].mxu0
  %2408 = vdwg.mxu0
  %2409 = vmatprep.subr.mxu0 0.0
  %v2410 = vand.u32 %v331, 4294901760
  %v2411 = vsub.f32 %v331, %v2410
  %v2412 = vand.u32 %v2411, 4294901760
  %v2413 = vsub.f32 %v2411, %v2412
  %v2414 = vand.u32 %v2413, 4294901760
  %2415 = vmatpush1.msra.mxu0 %v2414
  %2416 = vmatprep.subr.mxu0 0.0
  %v2417 = vand.u32 %v338, 4294901760
  %v2418 = vsub.f32 %v338, %v2417
  %v2419 = vand.u32 %v2418, 4294901760
  %v2420 = vsub.f32 %v2418, %v2419
  %v2421 = vand.u32 %v2420, 4294901760
  %2422 = vmatpush1.msra.mxu0 %v2421
  %2423 = vmatprep.subr.mxu0 0.0
  %v2424 = vand.u32 %v345, 4294901760
  %v2425 = vsub.f32 %v345, %v2424
  %v2426 = vand.u32 %v2425, 4294901760
  %v2427 = vsub.f32 %v2425, %v2426
  %v2428 = vand.u32 %v2427, 4294901760
  %2429 = vmatpush1.msra.mxu0 %v2428
  %2430 = vmatprep.subr.mxu0 0.0
  %v2431 = vand.u32 %v352, 4294901760
  %v2432 = vsub.f32 %v352, %v2431
  %v2433 = vand.u32 %v2432, 4294901760
  %v2434 = vsub.f32 %v2432, %v2433
  %v2435 = vand.u32 %v2434, 4294901760
  %2436 = vmatpush1.msra.mxu0 %v2435
  %2437 = vmatprep.subr.mxu0 0.0
  %v2438 = vand.u32 %v359, 4294901760
  %v2439 = vsub.f32 %v359, %v2438
  %v2440 = vand.u32 %v2439, 4294901760
  %v2441 = vsub.f32 %v2439, %v2440
  %v2442 = vand.u32 %v2441, 4294901760
  %2443 = vmatpush1.msra.mxu0 %v2442
  %2444 = vmatprep.subr.mxu0 0.0
  %v2445 = vand.u32 %v366, 4294901760
  %v2446 = vsub.f32 %v366, %v2445
  %v2447 = vand.u32 %v2446, 4294901760
  %v2448 = vsub.f32 %v2446, %v2447
  %v2449 = vand.u32 %v2448, 4294901760
  %2450 = vmatpush1.msra.mxu0 %v2449
  %2451 = vmatprep.subr.mxu0 0.0
  %v2452 = vand.u32 %v373, 4294901760
  %v2453 = vsub.f32 %v373, %v2452
  %v2454 = vand.u32 %v2453, 4294901760
  %v2455 = vsub.f32 %v2453, %v2454
  %v2456 = vand.u32 %v2455, 4294901760
  %2457 = vmatpush1.msra.mxu0 %v2456
  %2458 = vmatprep.subr.mxu0 0.0
  %v2459 = vand.u32 %v380, 4294901760
  %v2460 = vsub.f32 %v380, %v2459
  %v2461 = vand.u32 %v2460, 4294901760
  %v2462 = vsub.f32 %v2460, %v2461
  %v2463 = vand.u32 %v2462, 4294901760
  %2464 = vmatpush1.msra.mxu0 %v2463
  %2465 = vmatprep.subr.mxu0 0.0
  %2466 = vmatpush1.msra.mxu0 0.0
  %2467 = vmatprep.subr.mxu0 0.0
  %2468 = vmatpush1.msra.mxu0 0.0
  %2469 = vmatprep.subr.mxu0 0.0
  %2470 = vmatpush1.msra.mxu0 0.0
  %2471 = vmatprep.subr.mxu0 0.0
  %2472 = vmatpush1.msra.mxu0 0.0
  %2473 = vmatprep.subr.mxu0 0.0
  %2474 = vmatpush1.msra.mxu0 0.0
  %2475 = vmatprep.subr.mxu0 0.0
  %2476 = vmatpush1.msra.mxu0 0.0
  %2477 = vmatprep.subr.mxu0 0.0
  %2478 = vmatpush1.msra.mxu0 0.0
  %2479 = vmatprep.subr.mxu0 0.0
  %2480 = vmatpush1.msra.mxu0 0.0
  %2481 = vmatprep.subr.mxu0 0.0
  %2482 = vmatpush1.msra.mxu0 0.0
  %2483 = vmatprep.subr.mxu0 0.0
  %2484 = vmatpush1.msra.mxu0 0.0
  %2485 = vmatprep.subr.mxu0 0.0
  %2486 = vmatpush1.msra.mxu0 0.0
  %2487 = vmatprep.subr.mxu0 0.0
  %2488 = vmatpush1.msra.mxu0 0.0
  %2489 = vmatprep.subr.mxu0 0.0
  %2490 = vmatpush1.msra.mxu0 0.0
  %2491 = vmatprep.subr.mxu0 0.0
  %2492 = vmatpush1.msra.mxu0 0.0
  %2493 = vmatprep.subr.mxu0 0.0
  %2494 = vmatpush1.msra.mxu0 0.0
  %2495 = vmatprep.subr.mxu0 0.0
  %2496 = vmatpush1.msra.mxu0 0.0
  %2497 = vmatprep.subr.mxu0 0.0
  %2498 = vmatpush1.msra.mxu0 0.0
  %2499 = vmatprep.subr.mxu0 0.0
  %2500 = vmatpush1.msra.mxu0 0.0
  %2501 = vmatprep.subr.mxu0 0.0
  %2502 = vmatpush1.msra.mxu0 0.0
  %2503 = vmatprep.subr.mxu0 0.0
  %2504 = vmatpush1.msra.mxu0 0.0
  %2505 = vmatprep.subr.mxu0 0.0
  %2506 = vmatpush1.msra.mxu0 0.0
  %2507 = vmatprep.subr.mxu0 0.0
  %2508 = vmatpush1.msra.mxu0 0.0
  %2509 = vmatprep.subr.mxu0 0.0
  %2510 = vmatpush1.msra.mxu0 0.0
  %2511 = vmatprep.subr.mxu0 0.0
  %2512 = vmatpush1.msra.mxu0 0.0
  %2513 = vmatprep.mubr.f32.mxu0 0.0
  %v2514 = vand.u32 %v383, 4294901760
  %2515 = vmatmul.mubr.f32.gmra.mrb[0].mxu0 %v2514
  %v2516 = vpop.f32.mrb[0].mxu0
  %v2517 = vadd.f32 %v2406, %v2516
  %v2518 = vpop.f32.mrb[0].mxu0
  %2519 = vdwg.mxu0
  %2520 = vmatprep.subr.mxu0 0.0
  %v2521 = vand.u32 %v331, 4294901760
  %v2522 = vsub.f32 %v331, %v2521
  %2523 = vmatpush1.msra.mxu0 %v2522
  %2524 = vmatprep.subr.mxu0 0.0
  %v2525 = vand.u32 %v338, 4294901760
  %v2526 = vsub.f32 %v338, %v2525
  %2527 = vmatpush1.msra.mxu0 %v2526
  %2528 = vmatprep.subr.mxu0 0.0
  %v2529 = vand.u32 %v345, 4294901760
  %v2530 = vsub.f32 %v345, %v2529
  %2531 = vmatpush1.msra.mxu0 %v2530
  %2532 = vmatprep.subr.mxu0 0.0
  %v2533 = vand.u32 %v352, 4294901760
  %v2534 = vsub.f32 %v352, %v2533
  %2535 = vmatpush1.msra.mxu0 %v2534
  %2536 = vmatprep.subr.mxu0 0.0
  %v2537 = vand.u32 %v359, 4294901760
  %v2538 = vsub.f32 %v359, %v2537
  %2539 = vmatpush1.msra.mxu0 %v2538
  %2540 = vmatprep.subr.mxu0 0.0
  %v2541 = vand.u32 %v366, 4294901760
  %v2542 = vsub.f32 %v366, %v2541
  %2543 = vmatpush1.msra.mxu0 %v2542
  %2544 = vmatprep.subr.mxu0 0.0
  %v2545 = vand.u32 %v373, 4294901760
  %v2546 = vsub.f32 %v373, %v2545
  %2547 = vmatpush1.msra.mxu0 %v2546
  %2548 = vmatprep.subr.mxu0 0.0
  %v2549 = vand.u32 %v380, 4294901760
  %v2550 = vsub.f32 %v380, %v2549
  %2551 = vmatpush1.msra.mxu0 %v2550
  %2552 = vmatprep.subr.mxu0 0.0
  %2553 = vmatpush1.msra.mxu0 0.0
  %2554 = vmatprep.subr.mxu0 0.0
  %2555 = vmatpush1.msra.mxu0 0.0
  %2556 = vmatprep.subr.mxu0 0.0
  %2557 = vmatpush1.msra.mxu0 0.0
  %2558 = vmatprep.subr.mxu0 0.0
  %2559 = vmatpush1.msra.mxu0 0.0
  %2560 = vmatprep.subr.mxu0 0.0
  %2561 = vmatpush1.msra.mxu0 0.0
  %2562 = vmatprep.subr.mxu0 0.0
  %2563 = vmatpush1.msra.mxu0 0.0
  %2564 = vmatprep.subr.mxu0 0.0
  %2565 = vmatpush1.msra.mxu0 0.0
  %2566 = vmatprep.subr.mxu0 0.0
  %2567 = vmatpush1.msra.mxu0 0.0
  %2568 = vmatprep.subr.mxu0 0.0
  %2569 = vmatpush1.msra.mxu0 0.0
  %2570 = vmatprep.subr.mxu0 0.0
  %2571 = vmatpush1.msra.mxu0 0.0
  %2572 = vmatprep.subr.mxu0 0.0
  %2573 = vmatpush1.msra.mxu0 0.0
  %2574 = vmatprep.subr.mxu0 0.0
  %2575 = vmatpush1.msra.mxu0 0.0
  %2576 = vmatprep.subr.mxu0 0.0
  %2577 = vmatpush1.msra.mxu0 0.0
  %2578 = vmatprep.subr.mxu0 0.0
  %2579 = vmatpush1.msra.mxu0 0.0
  %2580 = vmatprep.subr.mxu0 0.0
  %2581 = vmatpush1.msra.mxu0 0.0
  %2582 = vmatprep.subr.mxu0 0.0
  %2583 = vmatpush1.msra.mxu0 0.0
  %2584 = vmatprep.subr.mxu0 0.0
  %2585 = vmatpush1.msra.mxu0 0.0
  %2586 = vmatprep.subr.mxu0 0.0
  %2587 = vmatpush1.msra.mxu0 0.0
  %2588 = vmatprep.subr.mxu0 0.0
  %2589 = vmatpush1.msra.mxu0 0.0
  %2590 = vmatprep.subr.mxu0 0.0
  %2591 = vmatpush1.msra.mxu0 0.0
  %2592 = vmatprep.subr.mxu0 0.0
  %2593 = vmatpush1.msra.mxu0 0.0
  %2594 = vmatprep.subr.mxu0 0.0
  %2595 = vmatpush1.msra.mxu0 0.0
  %2596 = vmatprep.subr.mxu0 0.0
  %2597 = vmatpush1.msra.mxu0 0.0
  %2598 = vmatprep.subr.mxu0 0.0
  %2599 = vmatpush1.msra.mxu0 0.0
  %2600 = vmatprep.mubr.f32.mxu0 0.0
  %v2601 = vand.u32 %v383, 4294901760
  %v2602 = vsub.f32 %v383, %v2601
  %2603 = vmatmul.mubr.f32.gmra.mrb[0].mxu0 %v2602
  %v2604 = vpop.f32.mrb[0].mxu0
  %v2605 = vadd.f32 %v2517, %v2604
  %v2606 = vpop.f32.mrb[0].mxu0
  %2607 = vdwg.mxu0
  %2608 = vmatprep.subr.mxu0 0.0
  %v2609 = vand.u32 %v331, 4294901760
  %2610 = vmatpush1.msra.mxu0 %v2609
  %2611 = vmatprep.subr.mxu0 0.0
  %v2612 = vand.u32 %v338, 4294901760
  %2613 = vmatpush1.msra.mxu0 %v2612
  %2614 = vmatprep.subr.mxu0 0.0
  %v2615 = vand.u32 %v345, 4294901760
  %2616 = vmatpush1.msra.mxu0 %v2615
  %2617 = vmatprep.subr.mxu0 0.0
  %v2618 = vand.u32 %v352, 4294901760
  %2619 = vmatpush1.msra.mxu0 %v2618
  %2620 = vmatprep.subr.mxu0 0.0
  %v2621 = vand.u32 %v359, 4294901760
  %2622 = vmatpush1.msra.mxu0 %v2621
  %2623 = vmatprep.subr.mxu0 0.0
  %v2624 = vand.u32 %v366, 4294901760
  %2625 = vmatpush1.msra.mxu0 %v2624
  %2626 = vmatprep.subr.mxu0 0.0
  %v2627 = vand.u32 %v373, 4294901760
  %2628 = vmatpush1.msra.mxu0 %v2627
  %2629 = vmatprep.subr.mxu0 0.0
  %v2630 = vand.u32 %v380, 4294901760
  %2631 = vmatpush1.msra.mxu0 %v2630
  %2632 = vmatprep.subr.mxu0 0.0
  %2633 = vmatpush1.msra.mxu0 0.0
  %2634 = vmatprep.subr.mxu0 0.0
  %2635 = vmatpush1.msra.mxu0 0.0
  %2636 = vmatprep.subr.mxu0 0.0
  %2637 = vmatpush1.msra.mxu0 0.0
  %2638 = vmatprep.subr.mxu0 0.0
  %2639 = vmatpush1.msra.mxu0 0.0
  %2640 = vmatprep.subr.mxu0 0.0
  %2641 = vmatpush1.msra.mxu0 0.0
  %2642 = vmatprep.subr.mxu0 0.0
  %2643 = vmatpush1.msra.mxu0 0.0
  %2644 = vmatprep.subr.mxu0 0.0
  %2645 = vmatpush1.msra.mxu0 0.0
  %2646 = vmatprep.subr.mxu0 0.0
  %2647 = vmatpush1.msra.mxu0 0.0
  %2648 = vmatprep.subr.mxu0 0.0
  %2649 = vmatpush1.msra.mxu0 0.0
  %2650 = vmatprep.subr.mxu0 0.0
  %2651 = vmatpush1.msra.mxu0 0.0
  %2652 = vmatprep.subr.mxu0 0.0
  %2653 = vmatpush1.msra.mxu0 0.0
  %2654 = vmatprep.subr.mxu0 0.0
  %2655 = vmatpush1.msra.mxu0 0.0
  %2656 = vmatprep.subr.mxu0 0.0
  %2657 = vmatpush1.msra.mxu0 0.0
  %2658 = vmatprep.subr.mxu0 0.0
  %2659 = vmatpush1.msra.mxu0 0.0
  %2660 = vmatprep.subr.mxu0 0.0
  %2661 = vmatpush1.msra.mxu0 0.0
  %2662 = vmatprep.subr.mxu0 0.0
  %2663 = vmatpush1.msra.mxu0 0.0
  %2664 = vmatprep.subr.mxu0 0.0
  %2665 = vmatpush1.msra.mxu0 0.0
  %2666 = vmatprep.subr.mxu0 0.0
  %2667 = vmatpush1.msra.mxu0 0.0
  %2668 = vmatprep.subr.mxu0 0.0
  %2669 = vmatpush1.msra.mxu0 0.0
  %2670 = vmatprep.subr.mxu0 0.0
  %2671 = vmatpush1.msra.mxu0 0.0
  %2672 = vmatprep.subr.mxu0 0.0
  %2673 = vmatpush1.msra.mxu0 0.0
  %2674 = vmatprep.subr.mxu0 0.0
  %2675 = vmatpush1.msra.mxu0 0.0
  %2676 = vmatprep.subr.mxu0 0.0
  %2677 = vmatpush1.msra.mxu0 0.0
  %2678 = vmatprep.subr.mxu0 0.0
  %2679 = vmatpush1.msra.mxu0 0.0
  %2680 = vmatprep.mubr.f32.mxu0 0.0
  %v2681 = vand.u32 %v383, 4294901760
  %v2682 = vsub.f32 %v383, %v2681
  %v2683 = vand.u32 %v2682, 4294901760
  %2684 = vmatmul.mubr.f32.gmra.mrb[0].mxu0 %v2683
  %v2685 = vpop.f32.mrb[0].mxu0
  %v2686 = vadd.f32 %v2605, %v2685
  %v2687 = vpop.f32.mrb[0].mxu0
  %2688 = vdwg.mxu0
  %2689 = vmatprep.subr.mxu0 0.0
  %v2690 = vand.u32 %v331, 4294901760
  %v2691 = vsub.f32 %v331, %v2690
  %v2692 = vand.u32 %v2691, 4294901760
  %2693 = vmatpush1.msra.mxu0 %v2692
  %2694 = vmatprep.subr.mxu0 0.0
  %v2695 = vand.u32 %v338, 4294901760
  %v2696 = vsub.f32 %v338, %v2695
  %v2697 = vand.u32 %v2696, 4294901760
  %2698 = vmatpush1.msra.mxu0 %v2697
  %2699 = vmatprep.subr.mxu0 0.0
  %v2700 = vand.u32 %v345, 4294901760
  %v2701 = vsub.f32 %v345, %v2700
  %v2702 = vand.u32 %v2701, 4294901760
  %2703 = vmatpush1.msra.mxu0 %v2702
  %2704 = vmatprep.subr.mxu0 0.0
  %v2705 = vand.u32 %v352, 4294901760
  %v2706 = vsub.f32 %v352, %v2705
  %v2707 = vand.u32 %v2706, 4294901760
  %2708 = vmatpush1.msra.mxu0 %v2707
  %2709 = vmatprep.subr.mxu0 0.0
  %v2710 = vand.u32 %v359, 4294901760
  %v2711 = vsub.f32 %v359, %v2710
  %v2712 = vand.u32 %v2711, 4294901760
  %2713 = vmatpush1.msra.mxu0 %v2712
  %2714 = vmatprep.subr.mxu0 0.0
  %v2715 = vand.u32 %v366, 4294901760
  %v2716 = vsub.f32 %v366, %v2715
  %v2717 = vand.u32 %v2716, 4294901760
  %2718 = vmatpush1.msra.mxu0 %v2717
  %2719 = vmatprep.subr.mxu0 0.0
  %v2720 = vand.u32 %v373, 4294901760
  %v2721 = vsub.f32 %v373, %v2720
  %v2722 = vand.u32 %v2721, 4294901760
  %2723 = vmatpush1.msra.mxu0 %v2722
  %2724 = vmatprep.subr.mxu0 0.0
  %v2725 = vand.u32 %v380, 4294901760
  %v2726 = vsub.f32 %v380, %v2725
  %v2727 = vand.u32 %v2726, 4294901760
  %2728 = vmatpush1.msra.mxu0 %v2727
  %2729 = vmatprep.subr.mxu0 0.0
  %2730 = vmatpush1.msra.mxu0 0.0
  %2731 = vmatprep.subr.mxu0 0.0
  %2732 = vmatpush1.msra.mxu0 0.0
  %2733 = vmatprep.subr.mxu0 0.0
  %2734 = vmatpush1.msra.mxu0 0.0
  %2735 = vmatprep.subr.mxu0 0.0
  %2736 = vmatpush1.msra.mxu0 0.0
  %2737 = vmatprep.subr.mxu0 0.0
  %2738 = vmatpush1.msra.mxu0 0.0
  %2739 = vmatprep.subr.mxu0 0.0
  %2740 = vmatpush1.msra.mxu0 0.0
  %2741 = vmatprep.subr.mxu0 0.0
  %2742 = vmatpush1.msra.mxu0 0.0
  %2743 = vmatprep.subr.mxu0 0.0
  %2744 = vmatpush1.msra.mxu0 0.0
  %2745 = vmatprep.subr.mxu0 0.0
  %2746 = vmatpush1.msra.mxu0 0.0
  %2747 = vmatprep.subr.mxu0 0.0
  %2748 = vmatpush1.msra.mxu0 0.0
  %2749 = vmatprep.subr.mxu0 0.0
  %2750 = vmatpush1.msra.mxu0 0.0
  %2751 = vmatprep.subr.mxu0 0.0
  %2752 = vmatpush1.msra.mxu0 0.0
  %2753 = vmatprep.subr.mxu0 0.0
  %2754 = vmatpush1.msra.mxu0 0.0
  %2755 = vmatprep.subr.mxu0 0.0
  %2756 = vmatpush1.msra.mxu0 0.0
  %2757 = vmatprep.subr.mxu0 0.0
  %2758 = vmatpush1.msra.mxu0 0.0
  %2759 = vmatprep.subr.mxu0 0.0
  %2760 = vmatpush1.msra.mxu0 0.0
  %2761 = vmatprep.subr.mxu0 0.0
  %2762 = vmatpush1.msra.mxu0 0.0
  %2763 = vmatprep.subr.mxu0 0.0
  %2764 = vmatpush1.msra.mxu0 0.0
  %2765 = vmatprep.subr.mxu0 0.0
  %2766 = vmatpush1.msra.mxu0 0.0
  %2767 = vmatprep.subr.mxu0 0.0
  %2768 = vmatpush1.msra.mxu0 0.0
  %2769 = vmatprep.subr.mxu0 0.0
  %2770 = vmatpush1.msra.mxu0 0.0
  %2771 = vmatprep.subr.mxu0 0.0
  %2772 = vmatpush1.msra.mxu0 0.0
  %2773 = vmatprep.subr.mxu0 0.0
  %2774 = vmatpush1.msra.mxu0 0.0
  %2775 = vmatprep.subr.mxu0 0.0
  %2776 = vmatpush1.msra.mxu0 0.0
  %2777 = vmatprep.mubr.f32.mxu0 0.0
  %v2778 = vand.u32 %v383, 4294901760
  %2779 = vmatmul.mubr.f32.gmra.mrb[0].mxu0 %v2778
  %v2780 = vpop.f32.mrb[0].mxu0
  %v2781 = vadd.f32 %v2686, %v2780
  %v2782 = vpop.f32.mrb[0].mxu0
  %2783 = vdwg.mxu0
  %2784 = vmatprep.subr.mxu0 0.0
  %v2785 = vand.u32 %v331, 4294901760
  %2786 = vmatpush1.msra.mxu0 %v2785
  %2787 = vmatprep.subr.mxu0 0.0
  %v2788 = vand.u32 %v338, 4294901760
  %2789 = vmatpush1.msra.mxu0 %v2788
  %2790 = vmatprep.subr.mxu0 0.0
  %v2791 = vand.u32 %v345, 4294901760
  %2792 = vmatpush1.msra.mxu0 %v2791
  %2793 = vmatprep.subr.mxu0 0.0
  %v2794 = vand.u32 %v352, 4294901760
  %2795 = vmatpush1.msra.mxu0 %v2794
  %2796 = vmatprep.subr.mxu0 0.0
  %v2797 = vand.u32 %v359, 4294901760
  %2798 = vmatpush1.msra.mxu0 %v2797
  %2799 = vmatprep.subr.mxu0 0.0
  %v2800 = vand.u32 %v366, 4294901760
  %2801 = vmatpush1.msra.mxu0 %v2800
  %2802 = vmatprep.subr.mxu0 0.0
  %v2803 = vand.u32 %v373, 4294901760
  %2804 = vmatpush1.msra.mxu0 %v2803
  %2805 = vmatprep.subr.mxu0 0.0
  %v2806 = vand.u32 %v380, 4294901760
  %2807 = vmatpush1.msra.mxu0 %v2806
  %2808 = vmatprep.subr.mxu0 0.0
  %2809 = vmatpush1.msra.mxu0 0.0
  %2810 = vmatprep.subr.mxu0 0.0
  %2811 = vmatpush1.msra.mxu0 0.0
  %2812 = vmatprep.subr.mxu0 0.0
  %2813 = vmatpush1.msra.mxu0 0.0
  %2814 = vmatprep.subr.mxu0 0.0
  %2815 = vmatpush1.msra.mxu0 0.0
  %2816 = vmatprep.subr.mxu0 0.0
  %2817 = vmatpush1.msra.mxu0 0.0
  %2818 = vmatprep.subr.mxu0 0.0
  %2819 = vmatpush1.msra.mxu0 0.0
  %2820 = vmatprep.subr.mxu0 0.0
  %2821 = vmatpush1.msra.mxu0 0.0
  %2822 = vmatprep.subr.mxu0 0.0
  %2823 = vmatpush1.msra.mxu0 0.0
  %2824 = vmatprep.subr.mxu0 0.0
  %2825 = vmatpush1.msra.mxu0 0.0
  %2826 = vmatprep.subr.mxu0 0.0
  %2827 = vmatpush1.msra.mxu0 0.0
  %2828 = vmatprep.subr.mxu0 0.0
  %2829 = vmatpush1.msra.mxu0 0.0
  %2830 = vmatprep.subr.mxu0 0.0
  %2831 = vmatpush1.msra.mxu0 0.0
  %2832 = vmatprep.subr.mxu0 0.0
  %2833 = vmatpush1.msra.mxu0 0.0
  %2834 = vmatprep.subr.mxu0 0.0
  %2835 = vmatpush1.msra.mxu0 0.0
  %2836 = vmatprep.subr.mxu0 0.0
  %2837 = vmatpush1.msra.mxu0 0.0
  %2838 = vmatprep.subr.mxu0 0.0
  %2839 = vmatpush1.msra.mxu0 0.0
  %2840 = vmatprep.subr.mxu0 0.0
  %2841 = vmatpush1.msra.mxu0 0.0
  %2842 = vmatprep.subr.mxu0 0.0
  %2843 = vmatpush1.msra.mxu0 0.0
  %2844 = vmatprep.subr.mxu0 0.0
  %2845 = vmatpush1.msra.mxu0 0.0
  %2846 = vmatprep.subr.mxu0 0.0
  %2847 = vmatpush1.msra.mxu0 0.0
  %2848 = vmatprep.subr.mxu0 0.0
  %2849 = vmatpush1.msra.mxu0 0.0
  %2850 = vmatprep.subr.mxu0 0.0
  %2851 = vmatpush1.msra.mxu0 0.0
  %2852 = vmatprep.subr.mxu0 0.0
  %2853 = vmatpush1.msra.mxu0 0.0
  %2854 = vmatprep.subr.mxu0 0.0
  %2855 = vmatpush1.msra.mxu0 0.0
  %2856 = vmatprep.mubr.f32.mxu0 0.0
  %v2857 = vand.u32 %v383, 4294901760
  %2858 = vmatmul.mubr.f32.gmra.mrb[0].mxu0 %v2857
  %v2859 = vpop.f32.mrb[0].mxu0
  %v2860 = vadd.f32 %v2781, %v2859
  %v2861 = vpop.f32.mrb[0].mxu0
  %2862 = vdwg.mxu0
  %v2869 = vcombine.low %v1028, %v1030
  %v2870 = vcombine.low %v1675, %v1677
  %v2871 = vcombine.low %v2322, %v2324
  %2875 = vst [vmem:[%s3] sm:$0x77] %v2869
  %2876 = vst [vmem:[%s3 + $0x8] sm:$0x77] %v2870
  %2877 = vst [vmem:[%s3 + $0x10] sm:$0x77] %v2871
  %vm2878 = vcmask 75776
  %2879 = vst.msk [vmem:[%s3 + $0x18] sm:$0x7] %vm2878, %v2860
  %s2880 = scalar_lea.vmem %s1, 28
  %v2881 = vld [vmem:[%s2880] sm:$0x77]
  %v2882 = vld [vmem:[%s2880 + $0x8] sm:$0x77]
  %v2883 = vld [vmem:[%s2880 + $0x10] sm:$0x77]
  %v2884 = vld [vmem:[%s2880 + $0x18] sm:$0x7]
  %v2889 = vlaneseq
  %v2890 = vshrl.u32 %v2889, 7
  %v2891 = vsub.s32 0, %v2890
  %v2892 = vrot.slane %v2881, %v2891
  %v2893 = vlaneseq
  %v2894 = vshrl.u32 %v2893, 7
  %v2895 = vsub.s32 4, %v2894
  %v2896 = vrot.slane %v2881, %v2895
  %v2897 = vlaneseq
  %v2898 = vshrl.u32 %v2897, 7
  %v2899 = vsub.s32 0, %v2898
  %v2900 = vrot.slane %v2882, %v2899
  %v2901 = vlaneseq
  %v2902 = vshrl.u32 %v2901, 7
  %v2903 = vsub.s32 4, %v2902
  %v2904 = vrot.slane %v2882, %v2903
  %v2905 = vlaneseq
  %v2906 = vshrl.u32 %v2905, 7
  %v2907 = vsub.s32 0, %v2906
  %v2908 = vrot.slane %v2883, %v2907
  %v2909 = vlaneseq
  %v2910 = vshrl.u32 %v2909, 7
  %v2911 = vsub.s32 4, %v2910
  %v2912 = vrot.slane %v2883, %v2911
  %v2913 = vlaneseq
  %v2914 = vshrl.u32 %v2913, 7
  %v2915 = vsub.s32 0, %v2914
  %v2916 = vrot.slane %v2884, %v2915
  %v2924 = vlaneseq
  %v2925 = vshrl.u32 %v2924, 7
  %v2926 = vsub.s32 0, %v2925
  %v2927 = vrot.slane %v2892, %v2926
  %v2928 = vlaneseq
  %v2929 = vshrl.u32 %v2928, 7
  %v2930 = vsub.s32 0, %v2929
  %v2931 = vrot.slane %v2896, %v2930
  %v2932 = vlaneseq
  %v2933 = vshrl.u32 %v2932, 7
  %v2934 = vsub.s32 0, %v2933
  %v2935 = vrot.slane %v2900, %v2934
  %v2936 = vlaneseq
  %v2937 = vshrl.u32 %v2936, 7
  %v2938 = vsub.s32 0, %v2937
  %v2939 = vrot.slane %v2904, %v2938
  %v2940 = vlaneseq
  %v2941 = vshrl.u32 %v2940, 7
  %v2942 = vsub.s32 0, %v2941
  %v2943 = vrot.slane %v2908, %v2942
  %v2944 = vlaneseq
  %v2945 = vshrl.u32 %v2944, 7
  %v2946 = vsub.s32 0, %v2945
  %v2947 = vrot.slane %v2912, %v2946
  %v2948 = vlaneseq
  %v2949 = vshrl.u32 %v2948, 7
  %v2950 = vsub.s32 0, %v2949
  %v2951 = vrot.slane %v2916, %v2950
  %v2952 = vmul.f32 %v2927, %v14
  %v2953 = vmul.f32 %v2931, %v15
  %v2954 = vmul.f32 %v2935, %v16
  %v2955 = vmul.f32 %v2939, %v17
  %v2956 = vmul.f32 %v2943, %v18
  %v2957 = vmul.f32 %v2947, %v19
  %v2958 = vmul.f32 %v2951, %v20
  %v2959 = vmul.f32 %v2927, %v21
  %v2960 = vmul.f32 %v2931, %v22
  %v2961 = vmul.f32 %v2935, %v23
  %v2962 = vmul.f32 %v2939, %v24
  %v2963 = vmul.f32 %v2943, %v25
  %v2964 = vmul.f32 %v2947, %v26
  %v2965 = vmul.f32 %v2951, %v27
  %2966 = vst [vmem:[#allocation2] sm:$0xff] %v2952
  %2967 = vst [vmem:[#allocation2 + $0x8] sm:$0xff] %v2953
  %2968 = vst [vmem:[#allocation2 + $0x10] sm:$0xff] %v2954
  %2969 = vst [vmem:[#allocation2 + $0x18] sm:$0xff] %v2955
  %2970 = vst [vmem:[#allocation2 + $0x20] sm:$0xff] %v2956
  %2971 = vst [vmem:[#allocation2 + $0x28] sm:$0xff] %v2957
  %2972 = vst.msk [vmem:[#allocation2 + $0x30] sm:$0xff] %vm119, %v2958
  %2973 = vst [vmem:[#allocation2 + $0x38] sm:$0xff] %v2959
  %2974 = vst [vmem:[#allocation2 + $0x40] sm:$0xff] %v2960
  %2975 = vst [vmem:[#allocation2 + $0x48] sm:$0xff] %v2961
  %2976 = vst [vmem:[#allocation2 + $0x50] sm:$0xff] %v2962
  %2977 = vst [vmem:[#allocation2 + $0x58] sm:$0xff] %v2963
  %2978 = vst [vmem:[#allocation2 + $0x60] sm:$0xff] %v2964
  %2979 = vst.msk [vmem:[#allocation2 + $0x68] sm:$0xff] %vm119, %v2965
  %v2980 = vlaneseq
  %v2981 = vshrl.u32 %v2980, 7
  %v2982 = vsub.s32 1, %v2981
  %v2983 = vrot.slane %v2881, %v2982
  %v2984 = vlaneseq
  %v2985 = vshrl.u32 %v2984, 7
  %v2986 = vsub.s32 5, %v2985
  %v2987 = vrot.slane %v2881, %v2986
  %v2988 = vlaneseq
  %v2989 = vshrl.u32 %v2988, 7
  %v2990 = vsub.s32 1, %v2989
  %v2991 = vrot.slane %v2882, %v2990
  %v2992 = vlaneseq
  %v2993 = vshrl.u32 %v2992, 7
  %v2994 = vsub.s32 5, %v2993
  %v2995 = vrot.slane %v2882, %v2994
  %v2996 = vlaneseq
  %v2997 = vshrl.u32 %v2996, 7
  %v2998 = vsub.s32 1, %v2997
  %v2999 = vrot.slane %v2883, %v2998
  %v3000 = vlaneseq
  %v3001 = vshrl.u32 %v3000, 7
  %v3002 = vsub.s32 5, %v3001
  %v3003 = vrot.slane %v2883, %v3002
  %v3004 = vlaneseq
  %v3005 = vshrl.u32 %v3004, 7
  %v3006 = vsub.s32 1, %v3005
  %v3007 = vrot.slane %v2884, %v3006
  %v3015 = vlaneseq
  %v3016 = vshrl.u32 %v3015, 7
  %v3017 = vsub.s32 1, %v3016
  %v3018 = vrot.slane %v2983, %v3017
  %v3019 = vlaneseq
  %v3020 = vshrl.u32 %v3019, 7
  %v3021 = vsub.s32 1, %v3020
  %v3022 = vrot.slane %v2987, %v3021
  %v3023 = vlaneseq
  %v3024 = vshrl.u32 %v3023, 7
  %v3025 = vsub.s32 1, %v3024
  %v3026 = vrot.slane %v2991, %v3025
  %v3027 = vlaneseq
  %v3028 = vshrl.u32 %v3027, 7
  %v3029 = vsub.s32 1, %v3028
  %v3030 = vrot.slane %v2995, %v3029
  %v3031 = vlaneseq
  %v3032 = vshrl.u32 %v3031, 7
  %v3033 = vsub.s32 1, %v3032
  %v3034 = vrot.slane %v2999, %v3033
  %v3035 = vlaneseq
  %v3036 = vshrl.u32 %v3035, 7
  %v3037 = vsub.s32 1, %v3036
  %v3038 = vrot.slane %v3003, %v3037
  %v3039 = vlaneseq
  %v3040 = vshrl.u32 %v3039, 7
  %v3041 = vsub.s32 1, %v3040
  %v3042 = vrot.slane %v3007, %v3041
  %v3043 = vmul.f32 %v3018, %v14
  %v3044 = vmul.f32 %v3022, %v15
  %v3045 = vmul.f32 %v3026, %v16
  %v3046 = vmul.f32 %v3030, %v17
  %v3047 = vmul.f32 %v3034, %v18
  %v3048 = vmul.f32 %v3038, %v19
  %v3049 = vmul.f32 %v3042, %v20
  %v3050 = vmul.f32 %v3018, %v21
  %v3051 = vmul.f32 %v3022, %v22
  %v3052 = vmul.f32 %v3026, %v23
  %v3053 = vmul.f32 %v3030, %v24
  %v3054 = vmul.f32 %v3034, %v25
  %v3055 = vmul.f32 %v3038, %v26
  %v3056 = vmul.f32 %v3042, %v27
  %3057 = vst [vmem:[#allocation2 + $0x70] sm:$0xff] %v3043
  %3058 = vst [vmem:[#allocation2 + $0x78] sm:$0xff] %v3044
  %3059 = vst [vmem:[#allocation2 + $0x80] sm:$0xff] %v3045
  %3060 = vst [vmem:[#allocation2 + $0x88] sm:$0xff] %v3046
  %3061 = vst [vmem:[#allocation2 + $0x90] sm:$0xff] %v3047
  %3062 = vst [vmem:[#allocation2 + $0x98] sm:$0xff] %v3048
  %3063 = vst.msk [vmem:[#allocation2 + $0xa0] sm:$0xff] %vm119, %v3049
  %3064 = vst [vmem:[#allocation2 + $0xa8] sm:$0xff] %v3050
  %3065 = vst [vmem:[#allocation2 + $0xb0] sm:$0xff] %v3051
  %3066 = vst [vmem:[#allocation2 + $0xb8] sm:$0xff] %v3052
  %3067 = vst [vmem:[#allocation2 + $0xc0] sm:$0xff] %v3053
  %3068 = vst [vmem:[#allocation2 + $0xc8] sm:$0xff] %v3054
  %3069 = vst [vmem:[#allocation2 + $0xd0] sm:$0xff] %v3055
  %3070 = vst.msk [vmem:[#allocation2 + $0xd8] sm:$0xff] %vm119, %v3056
  %v3071 = vlaneseq
  %v3072 = vshrl.u32 %v3071, 7
  %v3073 = vsub.s32 2, %v3072
  %v3074 = vrot.slane %v2881, %v3073
  %v3075 = vlaneseq
  %v3076 = vshrl.u32 %v3075, 7
  %v3077 = vsub.s32 6, %v3076
  %v3078 = vrot.slane %v2881, %v3077
  %v3079 = vlaneseq
  %v3080 = vshrl.u32 %v3079, 7
  %v3081 = vsub.s32 2, %v3080
  %v3082 = vrot.slane %v2882, %v3081
  %v3083 = vlaneseq
  %v3084 = vshrl.u32 %v3083, 7
  %v3085 = vsub.s32 6, %v3084
  %v3086 = vrot.slane %v2882, %v3085
  %v3087 = vlaneseq
  %v3088 = vshrl.u32 %v3087, 7
  %v3089 = vsub.s32 2, %v3088
  %v3090 = vrot.slane %v2883, %v3089
  %v3091 = vlaneseq
  %v3092 = vshrl.u32 %v3091, 7
  %v3093 = vsub.s32 6, %v3092
  %v3094 = vrot.slane %v2883, %v3093
  %v3095 = vlaneseq
  %v3096 = vshrl.u32 %v3095, 7
  %v3097 = vsub.s32 2, %v3096
  %v3098 = vrot.slane %v2884, %v3097
  %v3106 = vlaneseq
  %v3107 = vshrl.u32 %v3106, 7
  %v3108 = vsub.s32 2, %v3107
  %v3109 = vrot.slane %v3074, %v3108
  %v3110 = vlaneseq
  %v3111 = vshrl.u32 %v3110, 7
  %v3112 = vsub.s32 2, %v3111
  %v3113 = vrot.slane %v3078, %v3112
  %v3114 = vlaneseq
  %v3115 = vshrl.u32 %v3114, 7
  %v3116 = vsub.s32 2, %v3115
  %v3117 = vrot.slane %v3082, %v3116
  %v3118 = vlaneseq
  %v3119 = vshrl.u32 %v3118, 7
  %v3120 = vsub.s32 2, %v3119
  %v3121 = vrot.slane %v3086, %v3120
  %v3122 = vlaneseq
  %v3123 = vshrl.u32 %v3122, 7
  %v3124 = vsub.s32 2, %v3123
  %v3125 = vrot.slane %v3090, %v3124
  %v3126 = vlaneseq
  %v3127 = vshrl.u32 %v3126, 7
  %v3128 = vsub.s32 2, %v3127
  %v3129 = vrot.slane %v3094, %v3128
  %v3130 = vlaneseq
  %v3131 = vshrl.u32 %v3130, 7
  %v3132 = vsub.s32 2, %v3131
  %v3133 = vrot.slane %v3098, %v3132
  %v3134 = vmul.f32 %v3109, %v14
  %v3135 = vmul.f32 %v3113, %v15
  %v3136 = vmul.f32 %v3117, %v16
  %v3137 = vmul.f32 %v3121, %v17
  %v3138 = vmul.f32 %v3125, %v18
  %v3139 = vmul.f32 %v3129, %v19
  %v3140 = vmul.f32 %v3133, %v20
  %v3141 = vmul.f32 %v3109, %v21
  %v3142 = vmul.f32 %v3113, %v22
  %v3143 = vmul.f32 %v3117, %v23
  %v3144 = vmul.f32 %v3121, %v24
  %v3145 = vmul.f32 %v3125, %v25
  %v3146 = vmul.f32 %v3129, %v26
  %v3147 = vmul.f32 %v3133, %v27
  %3148 = vst [vmem:[#allocation2 + $0xe0] sm:$0xff] %v3134
  %3149 = vst [vmem:[#allocation2 + $0xe8] sm:$0xff] %v3135
  %3150 = vst [vmem:[#allocation2 + $0xf0] sm:$0xff] %v3136
  %3151 = vst [vmem:[#allocation2 + $0xf8] sm:$0xff] %v3137
  %3152 = vst [vmem:[#allocation2 + $0x100] sm:$0xff] %v3138
  %3153 = vst [vmem:[#allocation2 + $0x108] sm:$0xff] %v3139
  %3154 = vst.msk [vmem:[#allocation2 + $0x110] sm:$0xff] %vm119, %v3140
  %3155 = vst [vmem:[#allocation2 + $0x118] sm:$0xff] %v3141
  %3156 = vst [vmem:[#allocation2 + $0x120] sm:$0xff] %v3142
  %3157 = vst [vmem:[#allocation2 + $0x128] sm:$0xff] %v3143
  %3158 = vst [vmem:[#allocation2 + $0x130] sm:$0xff] %v3144
  %3159 = vst [vmem:[#allocation2 + $0x138] sm:$0xff] %v3145
  %3160 = vst [vmem:[#allocation2 + $0x140] sm:$0xff] %v3146
  %3161 = vst.msk [vmem:[#allocation2 + $0x148] sm:$0xff] %vm119, %v3147
  %3162 = vst [vmem:[#allocation2 + $0x150] sm:$0xff] %v14
  %3163 = vst [vmem:[#allocation2 + $0x158] sm:$0xff] %v15
  %3164 = vst [vmem:[#allocation2 + $0x160] sm:$0xff] %v16
  %3165 = vst [vmem:[#allocation2 + $0x168] sm:$0xff] %v17
  %3166 = vst [vmem:[#allocation2 + $0x170] sm:$0xff] %v18
  %3167 = vst [vmem:[#allocation2 + $0x178] sm:$0xff] %v19
  %3168 = vst.msk [vmem:[#allocation2 + $0x180] sm:$0xff] %vm119, %v20
  %3169 = vst [vmem:[#allocation2 + $0x188] sm:$0xff] %v21
  %3170 = vst [vmem:[#allocation2 + $0x190] sm:$0xff] %v22
  %3171 = vst [vmem:[#allocation2 + $0x198] sm:$0xff] %v23
  %3172 = vst [vmem:[#allocation2 + $0x1a0] sm:$0xff] %v24
  %3173 = vst [vmem:[#allocation2 + $0x1a8] sm:$0xff] %v25
  %3174 = vst [vmem:[#allocation2 + $0x1b0] sm:$0xff] %v26
  %3175 = vst.msk [vmem:[#allocation2 + $0x1b8] sm:$0xff] %vm119, %v27
  %s3176 = scalar_lea.vmem %s2, 4
  %v3177 = vld [vmem:[%s3176] sm:$0x7]
  %v3178 = vld [vmem:[#allocation2] sm:$0xff]
  %v3179 = vld [vmem:[#allocation2 + $0x8] sm:$0xff]
  %v3180 = vld [vmem:[#allocation2 + $0x10] sm:$0xff]
  %v3181 = vld [vmem:[#allocation2 + $0x18] sm:$0xff]
  %v3182 = vld [vmem:[#allocation2 + $0x20] sm:$0xff]
  %v3183 = vld [vmem:[#allocation2 + $0x28] sm:$0xff]
  %v3184 = vld [vmem:[#allocation2 + $0x30] sm:$0xff]
  %v3185 = vld [vmem:[#allocation2 + $0x38] sm:$0xff]
  %v3186 = vld [vmem:[#allocation2 + $0x40] sm:$0xff]
  %v3187 = vld [vmem:[#allocation2 + $0x48] sm:$0xff]
  %v3188 = vld [vmem:[#allocation2 + $0x50] sm:$0xff]
  %v3189 = vld [vmem:[#allocation2 + $0x58] sm:$0xff]
  %v3190 = vld [vmem:[#allocation2 + $0x60] sm:$0xff]
  %v3191 = vld [vmem:[#allocation2 + $0x68] sm:$0xff]
  %v3192 = vld [vmem:[#allocation2 + $0x70] sm:$0xff]
  %v3193 = vld [vmem:[#allocation2 + $0x78] sm:$0xff]
  %v3194 = vld [vmem:[#allocation2 + $0x80] sm:$0xff]
  %v3195 = vld [vmem:[#allocation2 + $0x88] sm:$0xff]
  %v3196 = vld [vmem:[#allocation2 + $0x90] sm:$0xff]
  %v3197 = vld [vmem:[#allocation2 + $0x98] sm:$0xff]
  %v3198 = vld [vmem:[#allocation2 + $0xa0] sm:$0xff]
  %v3199 = vld [vmem:[#allocation2 + $0xa8] sm:$0xff]
  %v3200 = vld [vmem:[#allocation2 + $0xb0] sm:$0xff]
  %v3201 = vld [vmem:[#allocation2 + $0xb8] sm:$0xff]
  %v3202 = vld [vmem:[#allocation2 + $0xc0] sm:$0xff]
  %v3203 = vld [vmem:[#allocation2 + $0xc8] sm:$0xff]
  %v3204 = vld [vmem:[#allocation2 + $0xd0] sm:$0xff]
  %v3205 = vld [vmem:[#allocation2 + $0xd8] sm:$0xff]
  %v3206 = vld [vmem:[#allocation2 + $0xe0] sm:$0xff]
  %v3207 = vld [vmem:[#allocation2 + $0xe8] sm:$0xff]
  %v3208 = vld [vmem:[#allocation2 + $0xf0] sm:$0xff]
  %v3209 = vld [vmem:[#allocation2 + $0xf8] sm:$0xff]
  %v3210 = vld [vmem:[#allocation2 + $0x100] sm:$0xff]
  %v3211 = vld [vmem:[#allocation2 + $0x108] sm:$0xff]
  %v3212 = vld [vmem:[#allocation2 + $0x110] sm:$0xff]
  %v3213 = vld [vmem:[#allocation2 + $0x118] sm:$0xff]
  %v3214 = vld [vmem:[#allocation2 + $0x120] sm:$0xff]
  %v3215 = vld [vmem:[#allocation2 + $0x128] sm:$0xff]
  %v3216 = vld [vmem:[#allocation2 + $0x130] sm:$0xff]
  %v3217 = vld [vmem:[#allocation2 + $0x138] sm:$0xff]
  %v3218 = vld [vmem:[#allocation2 + $0x140] sm:$0xff]
  %v3219 = vld [vmem:[#allocation2 + $0x148] sm:$0xff]
  %v3220 = vld [vmem:[#allocation2 + $0x150] sm:$0xff]
  %v3221 = vld [vmem:[#allocation2 + $0x158] sm:$0xff]
  %v3222 = vld [vmem:[#allocation2 + $0x160] sm:$0xff]
  %v3223 = vld [vmem:[#allocation2 + $0x168] sm:$0xff]
  %v3224 = vld [vmem:[#allocation2 + $0x170] sm:$0xff]
  %v3225 = vld [vmem:[#allocation2 + $0x178] sm:$0xff]
  %v3226 = vld [vmem:[#allocation2 + $0x180] sm:$0xff]
  %v3227 = vld [vmem:[#allocation2 + $0x188] sm:$0xff]
  %v3228 = vld [vmem:[#allocation2 + $0x190] sm:$0xff]
  %v3229 = vld [vmem:[#allocation2 + $0x198] sm:$0xff]
  %v3230 = vld [vmem:[#allocation2 + $0x1a0] sm:$0xff]
  %v3231 = vld [vmem:[#allocation2 + $0x1a8] sm:$0xff]
  %v3232 = vld [vmem:[#allocation2 + $0x1b0] sm:$0xff]
  %v3233 = vld [vmem:[#allocation2 + $0x1b8] sm:$0xff]
  %v3235 = vsel %vm381, %v3177, 0
  %v3237 = vand.u32 %v3179, 4294901760
  %3238 = vmatprep.subr.mxu0 %v3237
  %v3239 = vand.u32 %v3178, 4294901760
  %3240 = vmatpush1.msra.mxu0 %v3239
  %v3241 = vand.u32 %v3186, 4294901760
  %3242 = vmatprep.subr.mxu0 %v3241
  %v3243 = vand.u32 %v3185, 4294901760
  %3244 = vmatpush1.msra.mxu0 %v3243
  %v3245 = vand.u32 %v3193, 4294901760
  %3246 = vmatprep.subr.mxu0 %v3245
  %v3247 = vand.u32 %v3192, 4294901760
  %3248 = vmatpush1.msra.mxu0 %v3247
  %v3249 = vand.u32 %v3200, 4294901760
  %3250 = vmatprep.subr.mxu0 %v3249
  %v3251 = vand.u32 %v3199, 4294901760
  %3252 = vmatpush1.msra.mxu0 %v3251
  %v3253 = vand.u32 %v3207, 4294901760
  %3254 = vmatprep.subr.mxu0 %v3253
  %v3255 = vand.u32 %v3206, 4294901760
  %3256 = vmatpush1.msra.mxu0 %v3255
  %v3257 = vand.u32 %v3214, 4294901760
  %3258 = vmatprep.subr.mxu0 %v3257
  %v3259 = vand.u32 %v3213, 4294901760
  %3260 = vmatpush1.msra.mxu0 %v3259
  %v3261 = vand.u32 %v3221, 4294901760
  %3262 = vmatprep.subr.mxu0 %v3261
  %v3263 = vand.u32 %v3220, 4294901760
  %3264 = vmatpush1.msra.mxu0 %v3263
  %v3265 = vand.u32 %v3228, 4294901760
  %3266 = vmatprep.subr.mxu0 %v3265
  %v3267 = vand.u32 %v3227, 4294901760
  %3268 = vmatpush1.msra.mxu0 %v3267
  %3269 = vmatprep.subr.mxu0 0.0
  %3270 = vmatpush1.msra.mxu0 0.0
  %3271 = vmatprep.subr.mxu0 0.0
  %3272 = vmatpush1.msra.mxu0 0.0
  %3273 = vmatprep.subr.mxu0 0.0
  %3274 = vmatpush1.msra.mxu0 0.0
  %3275 = vmatprep.subr.mxu0 0.0
  %3276 = vmatpush1.msra.mxu0 0.0
  %3277 = vmatprep.subr.mxu0 0.0
  %3278 = vmatpush1.msra.mxu0 0.0
  %3279 = vmatprep.subr.mxu0 0.0
  %3280 = vmatpush1.msra.mxu0 0.0
  %3281 = vmatprep.subr.mxu0 0.0
  %3282 = vmatpush1.msra.mxu0 0.0
  %3283 = vmatprep.subr.mxu0 0.0
  %3284 = vmatpush1.msra.mxu0 0.0
  %3285 = vmatprep.subr.mxu0 0.0
  %3286 = vmatpush1.msra.mxu0 0.0
  %3287 = vmatprep.subr.mxu0 0.0
  %3288 = vmatpush1.msra.mxu0 0.0
  %3289 = vmatprep.subr.mxu0 0.0
  %3290 = vmatpush1.msra.mxu0 0.0
  %3291 = vmatprep.subr.mxu0 0.0
  %3292 = vmatpush1.msra.mxu0 0.0
  %3293 = vmatprep.subr.mxu0 0.0
  %3294 = vmatpush1.msra.mxu0 0.0
  %3295 = vmatprep.subr.mxu0 0.0
  %3296 = vmatpush1.msra.mxu0 0.0
  %3297 = vmatprep.subr.mxu0 0.0
  %3298 = vmatpush1.msra.mxu0 0.0
  %3299 = vmatprep.subr.mxu0 0.0
  %3300 = vmatpush1.msra.mxu0 0.0
  %3301 = vmatprep.subr.mxu0 0.0
  %3302 = vmatpush1.msra.mxu0 0.0
  %3303 = vmatprep.subr.mxu0 0.0
  %3304 = vmatpush1.msra.mxu0 0.0
  %3305 = vmatprep.subr.mxu0 0.0
  %3306 = vmatpush1.msra.mxu0 0.0
  %3307 = vmatprep.subr.mxu0 0.0
  %3308 = vmatpush1.msra.mxu0 0.0
  %3309 = vmatprep.subr.mxu0 0.0
  %3310 = vmatpush1.msra.mxu0 0.0
  %3311 = vmatprep.subr.mxu0 0.0
  %3312 = vmatpush1.msra.mxu0 0.0
  %3313 = vmatprep.subr.mxu0 0.0
  %3314 = vmatpush1.msra.mxu0 0.0
  %3315 = vmatprep.subr.mxu0 0.0
  %3316 = vmatpush1.msra.mxu0 0.0
  %3317 = vmatprep.mubr.f32.mxu0 0.0
  %v3318 = vand.u32 %v3235, 4294901760
  %v3319 = vsub.f32 %v3235, %v3318
  %v3320 = vand.u32 %v3319, 4294901760
  %v3321 = vsub.f32 %v3319, %v3320
  %v3322 = vand.u32 %v3321, 4294901760
  %3323 = vmatmul.mubr.f32.gmra.mrb[0].mxu0 %v3322
  %v3324 = vpop.f32.mrb[0].mxu0
  %v3325 = vadd.f32 0.0, %v3324
  %v3326 = vpop.f32.mrb[0].mxu0
  %v3327 = vadd.f32 0.0, %v3326
  %3328 = vdwg.mxu0
  %v3329 = vand.u32 %v3179, 4294901760
  %v3330 = vsub.f32 %v3179, %v3329
  %v3331 = vand.u32 %v3330, 4294901760
  %v3332 = vsub.f32 %v3330, %v3331
  %v3333 = vand.u32 %v3332, 4294901760
  %3334 = vmatprep.subr.mxu0 %v3333
  %v3335 = vand.u32 %v3178, 4294901760
  %v3336 = vsub.f32 %v3178, %v3335
  %v3337 = vand.u32 %v3336, 4294901760
  %v3338 = vsub.f32 %v3336, %v3337
  %v3339 = vand.u32 %v3338, 4294901760
  %3340 = vmatpush1.msra.mxu0 %v3339
  %v3341 = vand.u32 %v3186, 4294901760
  %v3342 = vsub.f32 %v3186, %v3341
  %v3343 = vand.u32 %v3342, 4294901760
  %v3344 = vsub.f32 %v3342, %v3343
  %v3345 = vand.u32 %v3344, 4294901760
  %3346 = vmatprep.subr.mxu0 %v3345
  %v3347 = vand.u32 %v3185, 4294901760
  %v3348 = vsub.f32 %v3185, %v3347
  %v3349 = vand.u32 %v3348, 4294901760
  %v3350 = vsub.f32 %v3348, %v3349
  %v3351 = vand.u32 %v3350, 4294901760
  %3352 = vmatpush1.msra.mxu0 %v3351
  %v3353 = vand.u32 %v3193, 4294901760
  %v3354 = vsub.f32 %v3193, %v3353
  %v3355 = vand.u32 %v3354, 4294901760
  %v3356 = vsub.f32 %v3354, %v3355
  %v3357 = vand.u32 %v3356, 4294901760
  %3358 = vmatprep.subr.mxu0 %v3357
  %v3359 = vand.u32 %v3192, 4294901760
  %v3360 = vsub.f32 %v3192, %v3359
  %v3361 = vand.u32 %v3360, 4294901760
  %v3362 = vsub.f32 %v3360, %v3361
  %v3363 = vand.u32 %v3362, 4294901760
  %3364 = vmatpush1.msra.mxu0 %v3363
  %v3365 = vand.u32 %v3200, 4294901760
  %v3366 = vsub.f32 %v3200, %v3365
  %v3367 = vand.u32 %v3366, 4294901760
  %v3368 = vsub.f32 %v3366, %v3367
  %v3369 = vand.u32 %v3368, 4294901760
  %3370 = vmatprep.subr.mxu0 %v3369
  %v3371 = vand.u32 %v3199, 4294901760
  %v3372 = vsub.f32 %v3199, %v3371
  %v3373 = vand.u32 %v3372, 4294901760
  %v3374 = vsub.f32 %v3372, %v3373
  %v3375 = vand.u32 %v3374, 4294901760
  %3376 = vmatpush1.msra.mxu0 %v3375
  %v3377 = vand.u32 %v3207, 4294901760
  %v3378 = vsub.f32 %v3207, %v3377
  %v3379 = vand.u32 %v3378, 4294901760
  %v3380 = vsub.f32 %v3378, %v3379
  %v3381 = vand.u32 %v3380, 4294901760
  %3382 = vmatprep.subr.mxu0 %v3381
  %v3383 = vand.u32 %v3206, 4294901760
  %v3384 = vsub.f32 %v3206, %v3383
  %v3385 = vand.u32 %v3384, 4294901760
  %v3386 = vsub.f32 %v3384, %v3385
  %v3387 = vand.u32 %v3386, 4294901760
  %3388 = vmatpush1.msra.mxu0 %v3387
  %v3389 = vand.u32 %v3214, 4294901760
  %v3390 = vsub.f32 %v3214, %v3389
  %v3391 = vand.u32 %v3390, 4294901760
  %v3392 = vsub.f32 %v3390, %v3391
  %v3393 = vand.u32 %v3392, 4294901760
  %3394 = vmatprep.subr.mxu0 %v3393
  %v3395 = vand.u32 %v3213, 4294901760
  %v3396 = vsub.f32 %v3213, %v3395
  %v3397 = vand.u32 %v3396, 4294901760
  %v3398 = vsub.f32 %v3396, %v3397
  %v3399 = vand.u32 %v3398, 4294901760
  %3400 = vmatpush1.msra.mxu0 %v3399
  %v3401 = vand.u32 %v3221, 4294901760
  %v3402 = vsub.f32 %v3221, %v3401
  %v3403 = vand.u32 %v3402, 4294901760
  %v3404 = vsub.f32 %v3402, %v3403
  %v3405 = vand.u32 %v3404, 4294901760
  %3406 = vmatprep.subr.mxu0 %v3405
  %v3407 = vand.u32 %v3220, 4294901760
  %v3408 = vsub.f32 %v3220, %v3407
  %v3409 = vand.u32 %v3408, 4294901760
  %v3410 = vsub.f32 %v3408, %v3409
  %v3411 = vand.u32 %v3410, 4294901760
  %3412 = vmatpush1.msra.mxu0 %v3411
  %v3413 = vand.u32 %v3228, 4294901760
  %v3414 = vsub.f32 %v3228, %v3413
  %v3415 = vand.u32 %v3414, 4294901760
  %v3416 = vsub.f32 %v3414, %v3415
  %v3417 = vand.u32 %v3416, 4294901760
  %3418 = vmatprep.subr.mxu0 %v3417
  %v3419 = vand.u32 %v3227, 4294901760
  %v3420 = vsub.f32 %v3227, %v3419
  %v3421 = vand.u32 %v3420, 4294901760
  %v3422 = vsub.f32 %v3420, %v3421
  %v3423 = vand.u32 %v3422, 4294901760
  %3424 = vmatpush1.msra.mxu0 %v3423
  %3425 = vmatprep.subr.mxu0 0.0
  %3426 = vmatpush1.msra.mxu0 0.0
  %3427 = vmatprep.subr.mxu0 0.0
  %3428 = vmatpush1.msra.mxu0 0.0
  %3429 = vmatprep.subr.mxu0 0.0
  %3430 = vmatpush1.msra.mxu0 0.0
  %3431 = vmatprep.subr.mxu0 0.0
  %3432 = vmatpush1.msra.mxu0 0.0
  %3433 = vmatprep.subr.mxu0 0.0
  %3434 = vmatpush1.msra.mxu0 0.0
  %3435 = vmatprep.subr.mxu0 0.0
  %3436 = vmatpush1.msra.mxu0 0.0
  %3437 = vmatprep.subr.mxu0 0.0
  %3438 = vmatpush1.msra.mxu0 0.0
  %3439 = vmatprep.subr.mxu0 0.0
  %3440 = vmatpush1.msra.mxu0 0.0
  %3441 = vmatprep.subr.mxu0 0.0
  %3442 = vmatpush1.msra.mxu0 0.0
  %3443 = vmatprep.subr.mxu0 0.0
  %3444 = vmatpush1.msra.mxu0 0.0
  %3445 = vmatprep.subr.mxu0 0.0
  %3446 = vmatpush1.msra.mxu0 0.0
  %3447 = vmatprep.subr.mxu0 0.0
  %3448 = vmatpush1.msra.mxu0 0.0
  %3449 = vmatprep.subr.mxu0 0.0
  %3450 = vmatpush1.msra.mxu0 0.0
  %3451 = vmatprep.subr.mxu0 0.0
  %3452 = vmatpush1.msra.mxu0 0.0
  %3453 = vmatprep.subr.mxu0 0.0
  %3454 = vmatpush1.msra.mxu0 0.0
  %3455 = vmatprep.subr.mxu0 0.0
  %3456 = vmatpush1.msra.mxu0 0.0
  %3457 = vmatprep.subr.mxu0 0.0
  %3458 = vmatpush1.msra.mxu0 0.0
  %3459 = vmatprep.subr.mxu0 0.0
  %3460 = vmatpush1.msra.mxu0 0.0
  %3461 = vmatprep.subr.mxu0 0.0
  %3462 = vmatpush1.msra.mxu0 0.0
  %3463 = vmatprep.subr.mxu0 0.0
  %3464 = vmatpush1.msra.mxu0 0.0
  %3465 = vmatprep.subr.mxu0 0.0
  %3466 = vmatpush1.msra.mxu0 0.0
  %3467 = vmatprep.subr.mxu0 0.0
  %3468 = vmatpush1.msra.mxu0 0.0
  %3469 = vmatprep.subr.mxu0 0.0
  %3470 = vmatpush1.msra.mxu0 0.0
  %3471 = vmatprep.subr.mxu0 0.0
  %3472 = vmatpush1.msra.mxu0 0.0
  %3473 = vmatprep.mubr.f32.mxu0 0.0
  %v3474 = vand.u32 %v3235, 4294901760
  %3475 = vmatmul.mubr.f32.gmra.mrb[0].mxu0 %v3474
  %v3476 = vpop.f32.mrb[0].mxu0
  %v3477 = vadd.f32 %v3325, %v3476
  %v3478 = vpop.f32.mrb[0].mxu0
  %v3479 = vadd.f32 %v3327, %v3478
  %3480 = vdwg.mxu0
  %v3481 = vand.u32 %v3179, 4294901760
  %v3482 = vsub.f32 %v3179, %v3481
  %3483 = vmatprep.subr.mxu0 %v3482
  %v3484 = vand.u32 %v3178, 4294901760
  %v3485 = vsub.f32 %v3178, %v3484
  %3486 = vmatpush1.msra.mxu0 %v3485
  %v3487 = vand.u32 %v3186, 4294901760
  %v3488 = vsub.f32 %v3186, %v3487
  %3489 = vmatprep.subr.mxu0 %v3488
  %v3490 = vand.u32 %v3185, 4294901760
  %v3491 = vsub.f32 %v3185, %v3490
  %3492 = vmatpush1.msra.mxu0 %v3491
  %v3493 = vand.u32 %v3193, 4294901760
  %v3494 = vsub.f32 %v3193, %v3493
  %3495 = vmatprep.subr.mxu0 %v3494
  %v3496 = vand.u32 %v3192, 4294901760
  %v3497 = vsub.f32 %v3192, %v3496
  %3498 = vmatpush1.msra.mxu0 %v3497
  %v3499 = vand.u32 %v3200, 4294901760
  %v3500 = vsub.f32 %v3200, %v3499
  %3501 = vmatprep.subr.mxu0 %v3500
  %v3502 = vand.u32 %v3199, 4294901760
  %v3503 = vsub.f32 %v3199, %v3502
  %3504 = vmatpush1.msra.mxu0 %v3503
  %v3505 = vand.u32 %v3207, 4294901760
  %v3506 = vsub.f32 %v3207, %v3505
  %3507 = vmatprep.subr.mxu0 %v3506
  %v3508 = vand.u32 %v3206, 4294901760
  %v3509 = vsub.f32 %v3206, %v3508
  %3510 = vmatpush1.msra.mxu0 %v3509
  %v3511 = vand.u32 %v3214, 4294901760
  %v3512 = vsub.f32 %v3214, %v3511
  %3513 = vmatprep.subr.mxu0 %v3512
  %v3514 = vand.u32 %v3213, 4294901760
  %v3515 = vsub.f32 %v3213, %v3514
  %3516 = vmatpush1.msra.mxu0 %v3515
  %v3517 = vand.u32 %v3221, 4294901760
  %v3518 = vsub.f32 %v3221, %v3517
  %3519 = vmatprep.subr.mxu0 %v3518
  %v3520 = vand.u32 %v3220, 4294901760
  %v3521 = vsub.f32 %v3220, %v3520
  %3522 = vmatpush1.msra.mxu0 %v3521
  %v3523 = vand.u32 %v3228, 4294901760
  %v3524 = vsub.f32 %v3228, %v3523
  %3525 = vmatprep.subr.mxu0 %v3524
  %v3526 = vand.u32 %v3227, 4294901760
  %v3527 = vsub.f32 %v3227, %v3526
  %3528 = vmatpush1.msra.mxu0 %v3527
  %3529 = vmatprep.subr.mxu0 0.0
  %3530 = vmatpush1.msra.mxu0 0.0
  %3531 = vmatprep.subr.mxu0 0.0
  %3532 = vmatpush1.msra.mxu0 0.0
  %3533 = vmatprep.subr.mxu0 0.0
  %3534 = vmatpush1.msra.mxu0 0.0
  %3535 = vmatprep.subr.mxu0 0.0
  %3536 = vmatpush1.msra.mxu0 0.0
  %3537 = vmatprep.subr.mxu0 0.0
  %3538 = vmatpush1.msra.mxu0 0.0
  %3539 = vmatprep.subr.mxu0 0.0
  %3540 = vmatpush1.msra.mxu0 0.0
  %3541 = vmatprep.subr.mxu0 0.0
  %3542 = vmatpush1.msra.mxu0 0.0
  %3543 = vmatprep.subr.mxu0 0.0
  %3544 = vmatpush1.msra.mxu0 0.0
  %3545 = vmatprep.subr.mxu0 0.0
  %3546 = vmatpush1.msra.mxu0 0.0
  %3547 = vmatprep.subr.mxu0 0.0
  %3548 = vmatpush1.msra.mxu0 0.0
  %3549 = vmatprep.subr.mxu0 0.0
  %3550 = vmatpush1.msra.mxu0 0.0
  %3551 = vmatprep.subr.mxu0 0.0
  %3552 = vmatpush1.msra.mxu0 0.0
  %3553 = vmatprep.subr.mxu0 0.0
  %3554 = vmatpush1.msra.mxu0 0.0
  %3555 = vmatprep.subr.mxu0 0.0
  %3556 = vmatpush1.msra.mxu0 0.0
  %3557 = vmatprep.subr.mxu0 0.0
  %3558 = vmatpush1.msra.mxu0 0.0
  %3559 = vmatprep.subr.mxu0 0.0
  %3560 = vmatpush1.msra.mxu0 0.0
  %3561 = vmatprep.subr.mxu0 0.0
  %3562 = vmatpush1.msra.mxu0 0.0
  %3563 = vmatprep.subr.mxu0 0.0
  %3564 = vmatpush1.msra.mxu0 0.0
  %3565 = vmatprep.subr.mxu0 0.0
  %3566 = vmatpush1.msra.mxu0 0.0
  %3567 = vmatprep.subr.mxu0 0.0
  %3568 = vmatpush1.msra.mxu0 0.0
  %3569 = vmatprep.subr.mxu0 0.0
  %3570 = vmatpush1.msra.mxu0 0.0
  %3571 = vmatprep.subr.mxu0 0.0
  %3572 = vmatpush1.msra.mxu0 0.0
  %3573 = vmatprep.subr.mxu0 0.0
  %3574 = vmatpush1.msra.mxu0 0.0
  %3575 = vmatprep.subr.mxu0 0.0
  %3576 = vmatpush1.msra.mxu0 0.0
  %3577 = vmatprep.mubr.f32.mxu0 0.0
  %v3578 = vand.u32 %v3235, 4294901760
  %v3579 = vsub.f32 %v3235, %v3578
  %3580 = vmatmul.mubr.f32.gmra.mrb[0].mxu0 %v3579
  %v3581 = vpop.f32.mrb[0].mxu0
  %v3582 = vadd.f32 %v3477, %v3581
  %v3583 = vpop.f32.mrb[0].mxu0
  %v3584 = vadd.f32 %v3479, %v3583
  %3585 = vdwg.mxu0
  %v3586 = vand.u32 %v3179, 4294901760
  %3587 = vmatprep.subr.mxu0 %v3586
  %v3588 = vand.u32 %v3178, 4294901760
  %3589 = vmatpush1.msra.mxu0 %v3588
  %v3590 = vand.u32 %v3186, 4294901760
  %3591 = vmatprep.subr.mxu0 %v3590
  %v3592 = vand.u32 %v3185, 4294901760
  %3593 = vmatpush1.msra.mxu0 %v3592
  %v3594 = vand.u32 %v3193, 4294901760
  %3595 = vmatprep.subr.mxu0 %v3594
  %v3596 = vand.u32 %v3192, 4294901760
  %3597 = vmatpush1.msra.mxu0 %v3596
  %v3598 = vand.u32 %v3200, 4294901760
  %3599 = vmatprep.subr.mxu0 %v3598
  %v3600 = vand.u32 %v3199, 4294901760
  %3601 = vmatpush1.msra.mxu0 %v3600
  %v3602 = vand.u32 %v3207, 4294901760
  %3603 = vmatprep.subr.mxu0 %v3602
  %v3604 = vand.u32 %v3206, 4294901760
  %3605 = vmatpush1.msra.mxu0 %v3604
  %v3606 = vand.u32 %v3214, 4294901760
  %3607 = vmatprep.subr.mxu0 %v3606
  %v3608 = vand.u32 %v3213, 4294901760
  %3609 = vmatpush1.msra.mxu0 %v3608
  %v3610 = vand.u32 %v3221, 4294901760
  %3611 = vmatprep.subr.mxu0 %v3610
  %v3612 = vand.u32 %v3220, 4294901760
  %3613 = vmatpush1.msra.mxu0 %v3612
  %v3614 = vand.u32 %v3228, 4294901760
  %3615 = vmatprep.subr.mxu0 %v3614
  %v3616 = vand.u32 %v3227, 4294901760
  %3617 = vmatpush1.msra.mxu0 %v3616
  %3618 = vmatprep.subr.mxu0 0.0
  %3619 = vmatpush1.msra.mxu0 0.0
  %3620 = vmatprep.subr.mxu0 0.0
  %3621 = vmatpush1.msra.mxu0 0.0
  %3622 = vmatprep.subr.mxu0 0.0
  %3623 = vmatpush1.msra.mxu0 0.0
  %3624 = vmatprep.subr.mxu0 0.0
  %3625 = vmatpush1.msra.mxu0 0.0
  %3626 = vmatprep.subr.mxu0 0.0
  %3627 = vmatpush1.msra.mxu0 0.0
  %3628 = vmatprep.subr.mxu0 0.0
  %3629 = vmatpush1.msra.mxu0 0.0
  %3630 = vmatprep.subr.mxu0 0.0
  %3631 = vmatpush1.msra.mxu0 0.0
  %3632 = vmatprep.subr.mxu0 0.0
  %3633 = vmatpush1.msra.mxu0 0.0
  %3634 = vmatprep.subr.mxu0 0.0
  %3635 = vmatpush1.msra.mxu0 0.0
  %3636 = vmatprep.subr.mxu0 0.0
  %3637 = vmatpush1.msra.mxu0 0.0
  %3638 = vmatprep.subr.mxu0 0.0
  %3639 = vmatpush1.msra.mxu0 0.0
  %3640 = vmatprep.subr.mxu0 0.0
  %3641 = vmatpush1.msra.mxu0 0.0
  %3642 = vmatprep.subr.mxu0 0.0
  %3643 = vmatpush1.msra.mxu0 0.0
  %3644 = vmatprep.subr.mxu0 0.0
  %3645 = vmatpush1.msra.mxu0 0.0
  %3646 = vmatprep.subr.mxu0 0.0
  %3647 = vmatpush1.msra.mxu0 0.0
  %3648 = vmatprep.subr.mxu0 0.0
  %3649 = vmatpush1.msra.mxu0 0.0
  %3650 = vmatprep.subr.mxu0 0.0
  %3651 = vmatpush1.msra.mxu0 0.0
  %3652 = vmatprep.subr.mxu0 0.0
  %3653 = vmatpush1.msra.mxu0 0.0
  %3654 = vmatprep.subr.mxu0 0.0
  %3655 = vmatpush1.msra.mxu0 0.0
  %3656 = vmatprep.subr.mxu0 0.0
  %3657 = vmatpush1.msra.mxu0 0.0
  %3658 = vmatprep.subr.mxu0 0.0
  %3659 = vmatpush1.msra.mxu0 0.0
  %3660 = vmatprep.subr.mxu0 0.0
  %3661 = vmatpush1.msra.mxu0 0.0
  %3662 = vmatprep.subr.mxu0 0.0
  %3663 = vmatpush1.msra.mxu0 0.0
  %3664 = vmatprep.subr.mxu0 0.0
  %3665 = vmatpush1.msra.mxu0 0.0
  %3666 = vmatprep.mubr.f32.mxu0 0.0
  %v3667 = vand.u32 %v3235, 4294901760
  %v3668 = vsub.f32 %v3235, %v3667
  %v3669 = vand.u32 %v3668, 4294901760
  %3670 = vmatmul.mubr.f32.gmra.mrb[0].mxu0 %v3669
  %v3671 = vpop.f32.mrb[0].mxu0
  %v3672 = vadd.f32 %v3582, %v3671
  %v3673 = vpop.f32.mrb[0].mxu0
  %v3674 = vadd.f32 %v3584, %v3673
  %3675 = vdwg.mxu0
  %v3676 = vand.u32 %v3179, 4294901760
  %v3677 = vsub.f32 %v3179, %v3676
  %v3678 = vand.u32 %v3677, 4294901760
  %3679 = vmatprep.subr.mxu0 %v3678
  %v3680 = vand.u32 %v3178, 4294901760
  %v3681 = vsub.f32 %v3178, %v3680
  %v3682 = vand.u32 %v3681, 4294901760
  %3683 = vmatpush1.msra.mxu0 %v3682
  %v3684 = vand.u32 %v3186, 4294901760
  %v3685 = vsub.f32 %v3186, %v3684
  %v3686 = vand.u32 %v3685, 4294901760
  %3687 = vmatprep.subr.mxu0 %v3686
  %v3688 = vand.u32 %v3185, 4294901760
  %v3689 = vsub.f32 %v3185, %v3688
  %v3690 = vand.u32 %v3689, 4294901760
  %3691 = vmatpush1.msra.mxu0 %v3690
  %v3692 = vand.u32 %v3193, 4294901760
  %v3693 = vsub.f32 %v3193, %v3692
  %v3694 = vand.u32 %v3693, 4294901760
  %3695 = vmatprep.subr.mxu0 %v3694
  %v3696 = vand.u32 %v3192, 4294901760
  %v3697 = vsub.f32 %v3192, %v3696
  %v3698 = vand.u32 %v3697, 4294901760
  %3699 = vmatpush1.msra.mxu0 %v3698
  %v3700 = vand.u32 %v3200, 4294901760
  %v3701 = vsub.f32 %v3200, %v3700
  %v3702 = vand.u32 %v3701, 4294901760
  %3703 = vmatprep.subr.mxu0 %v3702
  %v3704 = vand.u32 %v3199, 4294901760
  %v3705 = vsub.f32 %v3199, %v3704
  %v3706 = vand.u32 %v3705, 4294901760
  %3707 = vmatpush1.msra.mxu0 %v3706
  %v3708 = vand.u32 %v3207, 4294901760
  %v3709 = vsub.f32 %v3207, %v3708
  %v3710 = vand.u32 %v3709, 4294901760
  %3711 = vmatprep.subr.mxu0 %v3710
  %v3712 = vand.u32 %v3206, 4294901760
  %v3713 = vsub.f32 %v3206, %v3712
  %v3714 = vand.u32 %v3713, 4294901760
  %3715 = vmatpush1.msra.mxu0 %v3714
  %v3716 = vand.u32 %v3214, 4294901760
  %v3717 = vsub.f32 %v3214, %v3716
  %v3718 = vand.u32 %v3717, 4294901760
  %3719 = vmatprep.subr.mxu0 %v3718
  %v3720 = vand.u32 %v3213, 4294901760
  %v3721 = vsub.f32 %v3213, %v3720
  %v3722 = vand.u32 %v3721, 4294901760
  %3723 = vmatpush1.msra.mxu0 %v3722
  %v3724 = vand.u32 %v3221, 4294901760
  %v3725 = vsub.f32 %v3221, %v3724
  %v3726 = vand.u32 %v3725, 4294901760
  %3727 = vmatprep.subr.mxu0 %v3726
  %v3728 = vand.u32 %v3220, 4294901760
  %v3729 = vsub.f32 %v3220, %v3728
  %v3730 = vand.u32 %v3729, 4294901760
  %3731 = vmatpush1.msra.mxu0 %v3730
  %v3732 = vand.u32 %v3228, 4294901760
  %v3733 = vsub.f32 %v3228, %v3732
  %v3734 = vand.u32 %v3733, 4294901760
  %3735 = vmatprep.subr.mxu0 %v3734
  %v3736 = vand.u32 %v3227, 4294901760
  %v3737 = vsub.f32 %v3227, %v3736
  %v3738 = vand.u32 %v3737, 4294901760
  %3739 = vmatpush1.msra.mxu0 %v3738
  %3740 = vmatprep.subr.mxu0 0.0
  %3741 = vmatpush1.msra.mxu0 0.0
  %3742 = vmatprep.subr.mxu0 0.0
  %3743 = vmatpush1.msra.mxu0 0.0
  %3744 = vmatprep.subr.mxu0 0.0
  %3745 = vmatpush1.msra.mxu0 0.0
  %3746 = vmatprep.subr.mxu0 0.0
  %3747 = vmatpush1.msra.mxu0 0.0
  %3748 = vmatprep.subr.mxu0 0.0
  %3749 = vmatpush1.msra.mxu0 0.0
  %3750 = vmatprep.subr.mxu0 0.0
  %3751 = vmatpush1.msra.mxu0 0.0
  %3752 = vmatprep.subr.mxu0 0.0
  %3753 = vmatpush1.msra.mxu0 0.0
  %3754 = vmatprep.subr.mxu0 0.0
  %3755 = vmatpush1.msra.mxu0 0.0
  %3756 = vmatprep.subr.mxu0 0.0
  %3757 = vmatpush1.msra.mxu0 0.0
  %3758 = vmatprep.subr.mxu0 0.0
  %3759 = vmatpush1.msra.mxu0 0.0
  %3760 = vmatprep.subr.mxu0 0.0
  %3761 = vmatpush1.msra.mxu0 0.0
  %3762 = vmatprep.subr.mxu0 0.0
  %3763 = vmatpush1.msra.mxu0 0.0
  %3764 = vmatprep.subr.mxu0 0.0
  %3765 = vmatpush1.msra.mxu0 0.0
  %3766 = vmatprep.subr.mxu0 0.0
  %3767 = vmatpush1.msra.mxu0 0.0
  %3768 = vmatprep.subr.mxu0 0.0
  %3769 = vmatpush1.msra.mxu0 0.0
  %3770 = vmatprep.subr.mxu0 0.0
  %3771 = vmatpush1.msra.mxu0 0.0
  %3772 = vmatprep.subr.mxu0 0.0
  %3773 = vmatpush1.msra.mxu0 0.0
  %3774 = vmatprep.subr.mxu0 0.0
  %3775 = vmatpush1.msra.mxu0 0.0
  %3776 = vmatprep.subr.mxu0 0.0
  %3777 = vmatpush1.msra.mxu0 0.0
  %3778 = vmatprep.subr.mxu0 0.0
  %3779 = vmatpush1.msra.mxu0 0.0
  %3780 = vmatprep.subr.mxu0 0.0
  %3781 = vmatpush1.msra.mxu0 0.0
  %3782 = vmatprep.subr.mxu0 0.0
  %3783 = vmatpush1.msra.mxu0 0.0
  %3784 = vmatprep.subr.mxu0 0.0
  %3785 = vmatpush1.msra.mxu0 0.0
  %3786 = vmatprep.subr.mxu0 0.0
  %3787 = vmatpush1.msra.mxu0 0.0
  %3788 = vmatprep.mubr.f32.mxu0 0.0
  %v3789 = vand.u32 %v3235, 4294901760
  %3790 = vmatmul.mubr.f32.gmra.mrb[0].mxu0 %v3789
  %v3791 = vpop.f32.mrb[0].mxu0
  %v3792 = vadd.f32 %v3672, %v3791
  %v3793 = vpop.f32.mrb[0].mxu0
  %v3794 = vadd.f32 %v3674, %v3793
  %3795 = vdwg.mxu0
  %v3796 = vand.u32 %v3179, 4294901760
  %3797 = vmatprep.subr.mxu0 %v3796
  %v3798 = vand.u32 %v3178, 4294901760
  %3799 = vmatpush1.msra.mxu0 %v3798
  %v3800 = vand.u32 %v3186, 4294901760
  %3801 = vmatprep.subr.mxu0 %v3800
  %v3802 = vand.u32 %v3185, 4294901760
  %3803 = vmatpush1.msra.mxu0 %v3802
  %v3804 = vand.u32 %v3193, 4294901760
  %3805 = vmatprep.subr.mxu0 %v3804
  %v3806 = vand.u32 %v3192, 4294901760
  %3807 = vmatpush1.msra.mxu0 %v3806
  %v3808 = vand.u32 %v3200, 4294901760
  %3809 = vmatprep.subr.mxu0 %v3808
  %v3810 = vand.u32 %v3199, 4294901760
  %3811 = vmatpush1.msra.mxu0 %v3810
  %v3812 = vand.u32 %v3207, 4294901760
  %3813 = vmatprep.subr.mxu0 %v3812
  %v3814 = vand.u32 %v3206, 4294901760
  %3815 = vmatpush1.msra.mxu0 %v3814
  %v3816 = vand.u32 %v3214, 4294901760
  %3817 = vmatprep.subr.mxu0 %v3816
  %v3818 = vand.u32 %v3213, 4294901760
  %3819 = vmatpush1.msra.mxu0 %v3818
  %v3820 = vand.u32 %v3221, 4294901760
  %3821 = vmatprep.subr.mxu0 %v3820
  %v3822 = vand.u32 %v3220, 4294901760
  %3823 = vmatpush1.msra.mxu0 %v3822
  %v3824 = vand.u32 %v3228, 4294901760
  %3825 = vmatprep.subr.mxu0 %v3824
  %v3826 = vand.u32 %v3227, 4294901760
  %3827 = vmatpush1.msra.mxu0 %v3826
  %3828 = vmatprep.subr.mxu0 0.0
  %3829 = vmatpush1.msra.mxu0 0.0
  %3830 = vmatprep.subr.mxu0 0.0
  %3831 = vmatpush1.msra.mxu0 0.0
  %3832 = vmatprep.subr.mxu0 0.0
  %3833 = vmatpush1.msra.mxu0 0.0
  %3834 = vmatprep.subr.mxu0 0.0
  %3835 = vmatpush1.msra.mxu0 0.0
  %3836 = vmatprep.subr.mxu0 0.0
  %3837 = vmatpush1.msra.mxu0 0.0
  %3838 = vmatprep.subr.mxu0 0.0
  %3839 = vmatpush1.msra.mxu0 0.0
  %3840 = vmatprep.subr.mxu0 0.0
  %3841 = vmatpush1.msra.mxu0 0.0
  %3842 = vmatprep.subr.mxu0 0.0
  %3843 = vmatpush1.msra.mxu0 0.0
  %3844 = vmatprep.subr.mxu0 0.0
  %3845 = vmatpush1.msra.mxu0 0.0
  %3846 = vmatprep.subr.mxu0 0.0
  %3847 = vmatpush1.msra.mxu0 0.0
  %3848 = vmatprep.subr.mxu0 0.0
  %3849 = vmatpush1.msra.mxu0 0.0
  %3850 = vmatprep.subr.mxu0 0.0
  %3851 = vmatpush1.msra.mxu0 0.0
  %3852 = vmatprep.subr.mxu0 0.0
  %3853 = vmatpush1.msra.mxu0 0.0
  %3854 = vmatprep.subr.mxu0 0.0
  %3855 = vmatpush1.msra.mxu0 0.0
  %3856 = vmatprep.subr.mxu0 0.0
  %3857 = vmatpush1.msra.mxu0 0.0
  %3858 = vmatprep.subr.mxu0 0.0
  %3859 = vmatpush1.msra.mxu0 0.0
  %3860 = vmatprep.subr.mxu0 0.0
  %3861 = vmatpush1.msra.mxu0 0.0
  %3862 = vmatprep.subr.mxu0 0.0
  %3863 = vmatpush1.msra.mxu0 0.0
  %3864 = vmatprep.subr.mxu0 0.0
  %3865 = vmatpush1.msra.mxu0 0.0
  %3866 = vmatprep.subr.mxu0 0.0
  %3867 = vmatpush1.msra.mxu0 0.0
  %3868 = vmatprep.subr.mxu0 0.0
  %3869 = vmatpush1.msra.mxu0 0.0
  %3870 = vmatprep.subr.mxu0 0.0
  %3871 = vmatpush1.msra.mxu0 0.0
  %3872 = vmatprep.subr.mxu0 0.0
  %3873 = vmatpush1.msra.mxu0 0.0
  %3874 = vmatprep.subr.mxu0 0.0
  %3875 = vmatpush1.msra.mxu0 0.0
  %3876 = vmatprep.mubr.f32.mxu0 0.0
  %v3877 = vand.u32 %v3235, 4294901760
  %3878 = vmatmul.mubr.f32.gmra.mrb[0].mxu0 %v3877
  %v3879 = vpop.f32.mrb[0].mxu0
  %v3880 = vadd.f32 %v3792, %v3879
  %v3881 = vpop.f32.mrb[0].mxu0
  %v3882 = vadd.f32 %v3794, %v3881
  %3883 = vdwg.mxu0
  %v3884 = vand.u32 %v3181, 4294901760
  %3885 = vmatprep.subr.mxu0 %v3884
  %v3886 = vand.u32 %v3180, 4294901760
  %3887 = vmatpush1.msra.mxu0 %v3886
  %v3888 = vand.u32 %v3188, 4294901760
  %3889 = vmatprep.subr.mxu0 %v3888
  %v3890 = vand.u32 %v3187, 4294901760
  %3891 = vmatpush1.msra.mxu0 %v3890
  %v3892 = vand.u32 %v3195, 4294901760
  %3893 = vmatprep.subr.mxu0 %v3892
  %v3894 = vand.u32 %v3194, 4294901760
  %3895 = vmatpush1.msra.mxu0 %v3894
  %v3896 = vand.u32 %v3202, 4294901760
  %3897 = vmatprep.subr.mxu0 %v3896
  %v3898 = vand.u32 %v3201, 4294901760
  %3899 = vmatpush1.msra.mxu0 %v3898
  %v3900 = vand.u32 %v3209, 4294901760
  %3901 = vmatprep.subr.mxu0 %v3900
  %v3902 = vand.u32 %v3208, 4294901760
  %3903 = vmatpush1.msra.mxu0 %v3902
  %v3904 = vand.u32 %v3216, 4294901760
  %3905 = vmatprep.subr.mxu0 %v3904
  %v3906 = vand.u32 %v3215, 4294901760
  %3907 = vmatpush1.msra.mxu0 %v3906
  %v3908 = vand.u32 %v3223, 4294901760
  %3909 = vmatprep.subr.mxu0 %v3908
  %v3910 = vand.u32 %v3222, 4294901760
  %3911 = vmatpush1.msra.mxu0 %v3910
  %v3912 = vand.u32 %v3230, 4294901760
  %3913 = vmatprep.subr.mxu0 %v3912
  %v3914 = vand.u32 %v3229, 4294901760
  %3915 = vmatpush1.msra.mxu0 %v3914
  %3916 = vmatprep.subr.mxu0 0.0
  %3917 = vmatpush1.msra.mxu0 0.0
  %3918 = vmatprep.subr.mxu0 0.0
  %3919 = vmatpush1.msra.mxu0 0.0
  %3920 = vmatprep.subr.mxu0 0.0
  %3921 = vmatpush1.msra.mxu0 0.0
  %3922 = vmatprep.subr.mxu0 0.0
  %3923 = vmatpush1.msra.mxu0 0.0
  %3924 = vmatprep.subr.mxu0 0.0
  %3925 = vmatpush1.msra.mxu0 0.0
  %3926 = vmatprep.subr.mxu0 0.0
  %3927 = vmatpush1.msra.mxu0 0.0
  %3928 = vmatprep.subr.mxu0 0.0
  %3929 = vmatpush1.msra.mxu0 0.0
  %3930 = vmatprep.subr.mxu0 0.0
  %3931 = vmatpush1.msra.mxu0 0.0
  %3932 = vmatprep.subr.mxu0 0.0
  %3933 = vmatpush1.msra.mxu0 0.0
  %3934 = vmatprep.subr.mxu0 0.0
  %3935 = vmatpush1.msra.mxu0 0.0
  %3936 = vmatprep.subr.mxu0 0.0
  %3937 = vmatpush1.msra.mxu0 0.0
  %3938 = vmatprep.subr.mxu0 0.0
  %3939 = vmatpush1.msra.mxu0 0.0
  %3940 = vmatprep.subr.mxu0 0.0
  %3941 = vmatpush1.msra.mxu0 0.0
  %3942 = vmatprep.subr.mxu0 0.0
  %3943 = vmatpush1.msra.mxu0 0.0
  %3944 = vmatprep.subr.mxu0 0.0
  %3945 = vmatpush1.msra.mxu0 0.0
  %3946 = vmatprep.subr.mxu0 0.0
  %3947 = vmatpush1.msra.mxu0 0.0
  %3948 = vmatprep.subr.mxu0 0.0
  %3949 = vmatpush1.msra.mxu0 0.0
  %3950 = vmatprep.subr.mxu0 0.0
  %3951 = vmatpush1.msra.mxu0 0.0
  %3952 = vmatprep.subr.mxu0 0.0
  %3953 = vmatpush1.msra.mxu0 0.0
  %3954 = vmatprep.subr.mxu0 0.0
  %3955 = vmatpush1.msra.mxu0 0.0
  %3956 = vmatprep.subr.mxu0 0.0
  %3957 = vmatpush1.msra.mxu0 0.0
  %3958 = vmatprep.subr.mxu0 0.0
  %3959 = vmatpush1.msra.mxu0 0.0
  %3960 = vmatprep.subr.mxu0 0.0
  %3961 = vmatpush1.msra.mxu0 0.0
  %3962 = vmatprep.subr.mxu0 0.0
  %3963 = vmatpush1.msra.mxu0 0.0
  %3964 = vmatprep.mubr.f32.mxu0 0.0
  %v3965 = vand.u32 %v3235, 4294901760
  %v3966 = vsub.f32 %v3235, %v3965
  %v3967 = vand.u32 %v3966, 4294901760
  %v3968 = vsub.f32 %v3966, %v3967
  %v3969 = vand.u32 %v3968, 4294901760
  %3970 = vmatmul.mubr.f32.gmra.mrb[0].mxu0 %v3969
  %v3971 = vpop.f32.mrb[0].mxu0
  %v3972 = vadd.f32 0.0, %v3971
  %v3973 = vpop.f32.mrb[0].mxu0
  %v3974 = vadd.f32 0.0, %v3973
  %3975 = vdwg.mxu0
  %v3976 = vand.u32 %v3181, 4294901760
  %v3977 = vsub.f32 %v3181, %v3976
  %v3978 = vand.u32 %v3977, 4294901760
  %v3979 = vsub.f32 %v3977, %v3978
  %v3980 = vand.u32 %v3979, 4294901760
  %3981 = vmatprep.subr.mxu0 %v3980
  %v3982 = vand.u32 %v3180, 4294901760
  %v3983 = vsub.f32 %v3180, %v3982
  %v3984 = vand.u32 %v3983, 4294901760
  %v3985 = vsub.f32 %v3983, %v3984
  %v3986 = vand.u32 %v3985, 4294901760
  %3987 = vmatpush1.msra.mxu0 %v3986
  %v3988 = vand.u32 %v3188, 4294901760
  %v3989 = vsub.f32 %v3188, %v3988
  %v3990 = vand.u32 %v3989, 4294901760
  %v3991 = vsub.f32 %v3989, %v3990
  %v3992 = vand.u32 %v3991, 4294901760
  %3993 = vmatprep.subr.mxu0 %v3992
  %v3994 = vand.u32 %v3187, 4294901760
  %v3995 = vsub.f32 %v3187, %v3994
  %v3996 = vand.u32 %v3995, 4294901760
  %v3997 = vsub.f32 %v3995, %v3996
  %v3998 = vand.u32 %v3997, 4294901760
  %3999 = vmatpush1.msra.mxu0 %v3998
  %v4000 = vand.u32 %v3195, 4294901760
  %v4001 = vsub.f32 %v3195, %v4000
  %v4002 = vand.u32 %v4001, 4294901760
  %v4003 = vsub.f32 %v4001, %v4002
  %v4004 = vand.u32 %v4003, 4294901760
  %4005 = vmatprep.subr.mxu0 %v4004
  %v4006 = vand.u32 %v3194, 4294901760
  %v4007 = vsub.f32 %v3194, %v4006
  %v4008 = vand.u32 %v4007, 4294901760
  %v4009 = vsub.f32 %v4007, %v4008
  %v4010 = vand.u32 %v4009, 4294901760
  %4011 = vmatpush1.msra.mxu0 %v4010
  %v4012 = vand.u32 %v3202, 4294901760
  %v4013 = vsub.f32 %v3202, %v4012
  %v4014 = vand.u32 %v4013, 4294901760
  %v4015 = vsub.f32 %v4013, %v4014
  %v4016 = vand.u32 %v4015, 4294901760
  %4017 = vmatprep.subr.mxu0 %v4016
  %v4018 = vand.u32 %v3201, 4294901760
  %v4019 = vsub.f32 %v3201, %v4018
  %v4020 = vand.u32 %v4019, 4294901760
  %v4021 = vsub.f32 %v4019, %v4020
  %v4022 = vand.u32 %v4021, 4294901760
  %4023 = vmatpush1.msra.mxu0 %v4022
  %v4024 = vand.u32 %v3209, 4294901760
  %v4025 = vsub.f32 %v3209, %v4024
  %v4026 = vand.u32 %v4025, 4294901760
  %v4027 = vsub.f32 %v4025, %v4026
  %v4028 = vand.u32 %v4027, 4294901760
  %4029 = vmatprep.subr.mxu0 %v4028
  %v4030 = vand.u32 %v3208, 4294901760
  %v4031 = vsub.f32 %v3208, %v4030
  %v4032 = vand.u32 %v4031, 4294901760
  %v4033 = vsub.f32 %v4031, %v4032
  %v4034 = vand.u32 %v4033, 4294901760
  %4035 = vmatpush1.msra.mxu0 %v4034
  %v4036 = vand.u32 %v3216, 4294901760
  %v4037 = vsub.f32 %v3216, %v4036
  %v4038 = vand.u32 %v4037, 4294901760
  %v4039 = vsub.f32 %v4037, %v4038
  %v4040 = vand.u32 %v4039, 4294901760
  %4041 = vmatprep.subr.mxu0 %v4040
  %v4042 = vand.u32 %v3215, 4294901760
  %v4043 = vsub.f32 %v3215, %v4042
  %v4044 = vand.u32 %v4043, 4294901760
  %v4045 = vsub.f32 %v4043, %v4044
  %v4046 = vand.u32 %v4045, 4294901760
  %4047 = vmatpush1.msra.mxu0 %v4046
  %v4048 = vand.u32 %v3223, 4294901760
  %v4049 = vsub.f32 %v3223, %v4048
  %v4050 = vand.u32 %v4049, 4294901760
  %v4051 = vsub.f32 %v4049, %v4050
  %v4052 = vand.u32 %v4051, 4294901760
  %4053 = vmatprep.subr.mxu0 %v4052
  %v4054 = vand.u32 %v3222, 4294901760
  %v4055 = vsub.f32 %v3222, %v4054
  %v4056 = vand.u32 %v4055, 4294901760
  %v4057 = vsub.f32 %v4055, %v4056
  %v4058 = vand.u32 %v4057, 4294901760
  %4059 = vmatpush1.msra.mxu0 %v4058
  %v4060 = vand.u32 %v3230, 4294901760
  %v4061 = vsub.f32 %v3230, %v4060
  %v4062 = vand.u32 %v4061, 4294901760
  %v4063 = vsub.f32 %v4061, %v4062
  %v4064 = vand.u32 %v4063, 4294901760
  %4065 = vmatprep.subr.mxu0 %v4064
  %v4066 = vand.u32 %v3229, 4294901760
  %v4067 = vsub.f32 %v3229, %v4066
  %v4068 = vand.u32 %v4067, 4294901760
  %v4069 = vsub.f32 %v4067, %v4068
  %v4070 = vand.u32 %v4069, 4294901760
  %4071 = vmatpush1.msra.mxu0 %v4070
  %4072 = vmatprep.subr.mxu0 0.0
  %4073 = vmatpush1.msra.mxu0 0.0
  %4074 = vmatprep.subr.mxu0 0.0
  %4075 = vmatpush1.msra.mxu0 0.0
  %4076 = vmatprep.subr.mxu0 0.0
  %4077 = vmatpush1.msra.mxu0 0.0
  %4078 = vmatprep.subr.mxu0 0.0
  %4079 = vmatpush1.msra.mxu0 0.0
  %4080 = vmatprep.subr.mxu0 0.0
  %4081 = vmatpush1.msra.mxu0 0.0
  %4082 = vmatprep.subr.mxu0 0.0
  %4083 = vmatpush1.msra.mxu0 0.0
  %4084 = vmatprep.subr.mxu0 0.0
  %4085 = vmatpush1.msra.mxu0 0.0
  %4086 = vmatprep.subr.mxu0 0.0
  %4087 = vmatpush1.msra.mxu0 0.0
  %4088 = vmatprep.subr.mxu0 0.0
  %4089 = vmatpush1.msra.mxu0 0.0
  %4090 = vmatprep.subr.mxu0 0.0
  %4091 = vmatpush1.msra.mxu0 0.0
  %4092 = vmatprep.subr.mxu0 0.0
  %4093 = vmatpush1.msra.mxu0 0.0
  %4094 = vmatprep.subr.mxu0 0.0
  %4095 = vmatpush1.msra.mxu0 0.0
  %4096 = vmatprep.subr.mxu0 0.0
  %4097 = vmatpush1.msra.mxu0 0.0
  %4098 = vmatprep.subr.mxu0 0.0
  %4099 = vmatpush1.msra.mxu0 0.0
  %4100 = vmatprep.subr.mxu0 0.0
  %4101 = vmatpush1.msra.mxu0 0.0
  %4102 = vmatprep.subr.mxu0 0.0
  %4103 = vmatpush1.msra.mxu0 0.0
  %4104 = vmatprep.subr.mxu0 0.0
  %4105 = vmatpush1.msra.mxu0 0.0
  %4106 = vmatprep.subr.mxu0 0.0
  %4107 = vmatpush1.msra.mxu0 0.0
  %4108 = vmatprep.subr.mxu0 0.0
  %4109 = vmatpush1.msra.mxu0 0.0
  %4110 = vmatprep.subr.mxu0 0.0
  %4111 = vmatpush1.msra.mxu0 0.0
  %4112 = vmatprep.subr.mxu0 0.0
  %4113 = vmatpush1.msra.mxu0 0.0
  %4114 = vmatprep.subr.mxu0 0.0
  %4115 = vmatpush1.msra.mxu0 0.0
  %4116 = vmatprep.subr.mxu0 0.0
  %4117 = vmatpush1.msra.mxu0 0.0
  %4118 = vmatprep.subr.mxu0 0.0
  %4119 = vmatpush1.msra.mxu0 0.0
  %4120 = vmatprep.mubr.f32.mxu0 0.0
  %v4121 = vand.u32 %v3235, 4294901760
  %4122 = vmatmul.mubr.f32.gmra.mrb[0].mxu0 %v4121
  %v4123 = vpop.f32.mrb[0].mxu0
  %v4124 = vadd.f32 %v3972, %v4123
  %v4125 = vpop.f32.mrb[0].mxu0
  %v4126 = vadd.f32 %v3974, %v4125
  %4127 = vdwg.mxu0
  %v4128 = vand.u32 %v3181, 4294901760
  %v4129 = vsub.f32 %v3181, %v4128
  %4130 = vmatprep.subr.mxu0 %v4129
  %v4131 = vand.u32 %v3180, 4294901760
  %v4132 = vsub.f32 %v3180, %v4131
  %4133 = vmatpush1.msra.mxu0 %v4132
  %v4134 = vand.u32 %v3188, 4294901760
  %v4135 = vsub.f32 %v3188, %v4134
  %4136 = vmatprep.subr.mxu0 %v4135
  %v4137 = vand.u32 %v3187, 4294901760
  %v4138 = vsub.f32 %v3187, %v4137
  %4139 = vmatpush1.msra.mxu0 %v4138
  %v4140 = vand.u32 %v3195, 4294901760
  %v4141 = vsub.f32 %v3195, %v4140
  %4142 = vmatprep.subr.mxu0 %v4141
  %v4143 = vand.u32 %v3194, 4294901760
  %v4144 = vsub.f32 %v3194, %v4143
  %4145 = vmatpush1.msra.mxu0 %v4144
  %v4146 = vand.u32 %v3202, 4294901760
  %v4147 = vsub.f32 %v3202, %v4146
  %4148 = vmatprep.subr.mxu0 %v4147
  %v4149 = vand.u32 %v3201, 4294901760
  %v4150 = vsub.f32 %v3201, %v4149
  %4151 = vmatpush1.msra.mxu0 %v4150
  %v4152 = vand.u32 %v3209, 4294901760
  %v4153 = vsub.f32 %v3209, %v4152
  %4154 = vmatprep.subr.mxu0 %v4153
  %v4155 = vand.u32 %v3208, 4294901760
  %v4156 = vsub.f32 %v3208, %v4155
  %4157 = vmatpush1.msra.mxu0 %v4156
  %v4158 = vand.u32 %v3216, 4294901760
  %v4159 = vsub.f32 %v3216, %v4158
  %4160 = vmatprep.subr.mxu0 %v4159
  %v4161 = vand.u32 %v3215, 4294901760
  %v4162 = vsub.f32 %v3215, %v4161
  %4163 = vmatpush1.msra.mxu0 %v4162
  %v4164 = vand.u32 %v3223, 4294901760
  %v4165 = vsub.f32 %v3223, %v4164
  %4166 = vmatprep.subr.mxu0 %v4165
  %v4167 = vand.u32 %v3222, 4294901760
  %v4168 = vsub.f32 %v3222, %v4167
  %4169 = vmatpush1.msra.mxu0 %v4168
  %v4170 = vand.u32 %v3230, 4294901760
  %v4171 = vsub.f32 %v3230, %v4170
  %4172 = vmatprep.subr.mxu0 %v4171
  %v4173 = vand.u32 %v3229, 4294901760
  %v4174 = vsub.f32 %v3229, %v4173
  %4175 = vmatpush1.msra.mxu0 %v4174
  %4176 = vmatprep.subr.mxu0 0.0
  %4177 = vmatpush1.msra.mxu0 0.0
  %4178 = vmatprep.subr.mxu0 0.0
  %4179 = vmatpush1.msra.mxu0 0.0
  %4180 = vmatprep.subr.mxu0 0.0
  %4181 = vmatpush1.msra.mxu0 0.0
  %4182 = vmatprep.subr.mxu0 0.0
  %4183 = vmatpush1.msra.mxu0 0.0
  %4184 = vmatprep.subr.mxu0 0.0
  %4185 = vmatpush1.msra.mxu0 0.0
  %4186 = vmatprep.subr.mxu0 0.0
  %4187 = vmatpush1.msra.mxu0 0.0
  %4188 = vmatprep.subr.mxu0 0.0
  %4189 = vmatpush1.msra.mxu0 0.0
  %4190 = vmatprep.subr.mxu0 0.0
  %4191 = vmatpush1.msra.mxu0 0.0
  %4192 = vmatprep.subr.mxu0 0.0
  %4193 = vmatpush1.msra.mxu0 0.0
  %4194 = vmatprep.subr.mxu0 0.0
  %4195 = vmatpush1.msra.mxu0 0.0
  %4196 = vmatprep.subr.mxu0 0.0
  %4197 = vmatpush1.msra.mxu0 0.0
  %4198 = vmatprep.subr.mxu0 0.0
  %4199 = vmatpush1.msra.mxu0 0.0
  %4200 = vmatprep.subr.mxu0 0.0
  %4201 = vmatpush1.msra.mxu0 0.0
  %4202 = vmatprep.subr.mxu0 0.0
  %4203 = vmatpush1.msra.mxu0 0.0
  %4204 = vmatprep.subr.mxu0 0.0
  %4205 = vmatpush1.msra.mxu0 0.0
  %4206 = vmatprep.subr.mxu0 0.0
  %4207 = vmatpush1.msra.mxu0 0.0
  %4208 = vmatprep.subr.mxu0 0.0
  %4209 = vmatpush1.msra.mxu0 0.0
  %4210 = vmatprep.subr.mxu0 0.0
  %4211 = vmatpush1.msra.mxu0 0.0
  %4212 = vmatprep.subr.mxu0 0.0
  %4213 = vmatpush1.msra.mxu0 0.0
  %4214 = vmatprep.subr.mxu0 0.0
  %4215 = vmatpush1.msra.mxu0 0.0
  %4216 = vmatprep.subr.mxu0 0.0
  %4217 = vmatpush1.msra.mxu0 0.0
  %4218 = vmatprep.subr.mxu0 0.0
  %4219 = vmatpush1.msra.mxu0 0.0
  %4220 = vmatprep.subr.mxu0 0.0
  %4221 = vmatpush1.msra.mxu0 0.0
  %4222 = vmatprep.subr.mxu0 0.0
  %4223 = vmatpush1.msra.mxu0 0.0
  %4224 = vmatprep.mubr.f32.mxu0 0.0
  %v4225 = vand.u32 %v3235, 4294901760
  %v4226 = vsub.f32 %v3235, %v4225
  %4227 = vmatmul.mubr.f32.gmra.mrb[0].mxu0 %v4226
  %v4228 = vpop.f32.mrb[0].mxu0
  %v4229 = vadd.f32 %v4124, %v4228
  %v4230 = vpop.f32.mrb[0].mxu0
  %v4231 = vadd.f32 %v4126, %v4230
  %4232 = vdwg.mxu0
  %v4233 = vand.u32 %v3181, 4294901760
  %4234 = vmatprep.subr.mxu0 %v4233
  %v4235 = vand.u32 %v3180, 4294901760
  %4236 = vmatpush1.msra.mxu0 %v4235
  %v4237 = vand.u32 %v3188, 4294901760
  %4238 = vmatprep.subr.mxu0 %v4237
  %v4239 = vand.u32 %v3187, 4294901760
  %4240 = vmatpush1.msra.mxu0 %v4239
  %v4241 = vand.u32 %v3195, 4294901760
  %4242 = vmatprep.subr.mxu0 %v4241
  %v4243 = vand.u32 %v3194, 4294901760
  %4244 = vmatpush1.msra.mxu0 %v4243
  %v4245 = vand.u32 %v3202, 4294901760
  %4246 = vmatprep.subr.mxu0 %v4245
  %v4247 = vand.u32 %v3201, 4294901760
  %4248 = vmatpush1.msra.mxu0 %v4247
  %v4249 = vand.u32 %v3209, 4294901760
  %4250 = vmatprep.subr.mxu0 %v4249
  %v4251 = vand.u32 %v3208, 4294901760
  %4252 = vmatpush1.msra.mxu0 %v4251
  %v4253 = vand.u32 %v3216, 4294901760
  %4254 = vmatprep.subr.mxu0 %v4253
  %v4255 = vand.u32 %v3215, 4294901760
  %4256 = vmatpush1.msra.mxu0 %v4255
  %v4257 = vand.u32 %v3223, 4294901760
  %4258 = vmatprep.subr.mxu0 %v4257
  %v4259 = vand.u32 %v3222, 4294901760
  %4260 = vmatpush1.msra.mxu0 %v4259
  %v4261 = vand.u32 %v3230, 4294901760
  %4262 = vmatprep.subr.mxu0 %v4261
  %v4263 = vand.u32 %v3229, 4294901760
  %4264 = vmatpush1.msra.mxu0 %v4263
  %4265 = vmatprep.subr.mxu0 0.0
  %4266 = vmatpush1.msra.mxu0 0.0
  %4267 = vmatprep.subr.mxu0 0.0
  %4268 = vmatpush1.msra.mxu0 0.0
  %4269 = vmatprep.subr.mxu0 0.0
  %4270 = vmatpush1.msra.mxu0 0.0
  %4271 = vmatprep.subr.mxu0 0.0
  %4272 = vmatpush1.msra.mxu0 0.0
  %4273 = vmatprep.subr.mxu0 0.0
  %4274 = vmatpush1.msra.mxu0 0.0
  %4275 = vmatprep.subr.mxu0 0.0
  %4276 = vmatpush1.msra.mxu0 0.0
  %4277 = vmatprep.subr.mxu0 0.0
  %4278 = vmatpush1.msra.mxu0 0.0
  %4279 = vmatprep.subr.mxu0 0.0
  %4280 = vmatpush1.msra.mxu0 0.0
  %4281 = vmatprep.subr.mxu0 0.0
  %4282 = vmatpush1.msra.mxu0 0.0
  %4283 = vmatprep.subr.mxu0 0.0
  %4284 = vmatpush1.msra.mxu0 0.0
  %4285 = vmatprep.subr.mxu0 0.0
  %4286 = vmatpush1.msra.mxu0 0.0
  %4287 = vmatprep.subr.mxu0 0.0
  %4288 = vmatpush1.msra.mxu0 0.0
  %4289 = vmatprep.subr.mxu0 0.0
  %4290 = vmatpush1.msra.mxu0 0.0
  %4291 = vmatprep.subr.mxu0 0.0
  %4292 = vmatpush1.msra.mxu0 0.0
  %4293 = vmatprep.subr.mxu0 0.0
  %4294 = vmatpush1.msra.mxu0 0.0
  %4295 = vmatprep.subr.mxu0 0.0
  %4296 = vmatpush1.msra.mxu0 0.0
  %4297 = vmatprep.subr.mxu0 0.0
  %4298 = vmatpush1.msra.mxu0 0.0
  %4299 = vmatprep.subr.mxu0 0.0
  %4300 = vmatpush1.msra.mxu0 0.0
  %4301 = vmatprep.subr.mxu0 0.0
  %4302 = vmatpush1.msra.mxu0 0.0
  %4303 = vmatprep.subr.mxu0 0.0
  %4304 = vmatpush1.msra.mxu0 0.0
  %4305 = vmatprep.subr.mxu0 0.0
  %4306 = vmatpush1.msra.mxu0 0.0
  %4307 = vmatprep.subr.mxu0 0.0
  %4308 = vmatpush1.msra.mxu0 0.0
  %4309 = vmatprep.subr.mxu0 0.0
  %4310 = vmatpush1.msra.mxu0 0.0
  %4311 = vmatprep.subr.mxu0 0.0
  %4312 = vmatpush1.msra.mxu0 0.0
  %4313 = vmatprep.mubr.f32.mxu0 0.0
  %v4314 = vand.u32 %v3235, 4294901760
  %v4315 = vsub.f32 %v3235, %v4314
  %v4316 = vand.u32 %v4315, 4294901760
  %4317 = vmatmul.mubr.f32.gmra.mrb[0].mxu0 %v4316
  %v4318 = vpop.f32.mrb[0].mxu0
  %v4319 = vadd.f32 %v4229, %v4318
  %v4320 = vpop.f32.mrb[0].mxu0
  %v4321 = vadd.f32 %v4231, %v4320
  %4322 = vdwg.mxu0
  %v4323 = vand.u32 %v3181, 4294901760
  %v4324 = vsub.f32 %v3181, %v4323
  %v4325 = vand.u32 %v4324, 4294901760
  %4326 = vmatprep.subr.mxu0 %v4325
  %v4327 = vand.u32 %v3180, 4294901760
  %v4328 = vsub.f32 %v3180, %v4327
  %v4329 = vand.u32 %v4328, 4294901760
  %4330 = vmatpush1.msra.mxu0 %v4329
  %v4331 = vand.u32 %v3188, 4294901760
  %v4332 = vsub.f32 %v3188, %v4331
  %v4333 = vand.u32 %v4332, 4294901760
  %4334 = vmatprep.subr.mxu0 %v4333
  %v4335 = vand.u32 %v3187, 4294901760
  %v4336 = vsub.f32 %v3187, %v4335
  %v4337 = vand.u32 %v4336, 4294901760
  %4338 = vmatpush1.msra.mxu0 %v4337
  %v4339 = vand.u32 %v3195, 4294901760
  %v4340 = vsub.f32 %v3195, %v4339
  %v4341 = vand.u32 %v4340, 4294901760
  %4342 = vmatprep.subr.mxu0 %v4341
  %v4343 = vand.u32 %v3194, 4294901760
  %v4344 = vsub.f32 %v3194, %v4343
  %v4345 = vand.u32 %v4344, 4294901760
  %4346 = vmatpush1.msra.mxu0 %v4345
  %v4347 = vand.u32 %v3202, 4294901760
  %v4348 = vsub.f32 %v3202, %v4347
  %v4349 = vand.u32 %v4348, 4294901760
  %4350 = vmatprep.subr.mxu0 %v4349
  %v4351 = vand.u32 %v3201, 4294901760
  %v4352 = vsub.f32 %v3201, %v4351
  %v4353 = vand.u32 %v4352, 4294901760
  %4354 = vmatpush1.msra.mxu0 %v4353
  %v4355 = vand.u32 %v3209, 4294901760
  %v4356 = vsub.f32 %v3209, %v4355
  %v4357 = vand.u32 %v4356, 4294901760
  %4358 = vmatprep.subr.mxu0 %v4357
  %v4359 = vand.u32 %v3208, 4294901760
  %v4360 = vsub.f32 %v3208, %v4359
  %v4361 = vand.u32 %v4360, 4294901760
  %4362 = vmatpush1.msra.mxu0 %v4361
  %v4363 = vand.u32 %v3216, 4294901760
  %v4364 = vsub.f32 %v3216, %v4363
  %v4365 = vand.u32 %v4364, 4294901760
  %4366 = vmatprep.subr.mxu0 %v4365
  %v4367 = vand.u32 %v3215, 4294901760
  %v4368 = vsub.f32 %v3215, %v4367
  %v4369 = vand.u32 %v4368, 4294901760
  %4370 = vmatpush1.msra.mxu0 %v4369
  %v4371 = vand.u32 %v3223, 4294901760
  %v4372 = vsub.f32 %v3223, %v4371
  %v4373 = vand.u32 %v4372, 4294901760
  %4374 = vmatprep.subr.mxu0 %v4373
  %v4375 = vand.u32 %v3222, 4294901760
  %v4376 = vsub.f32 %v3222, %v4375
  %v4377 = vand.u32 %v4376, 4294901760
  %4378 = vmatpush1.msra.mxu0 %v4377
  %v4379 = vand.u32 %v3230, 4294901760
  %v4380 = vsub.f32 %v3230, %v4379
  %v4381 = vand.u32 %v4380, 4294901760
  %4382 = vmatprep.subr.mxu0 %v4381
  %v4383 = vand.u32 %v3229, 4294901760
  %v4384 = vsub.f32 %v3229, %v4383
  %v4385 = vand.u32 %v4384, 4294901760
  %4386 = vmatpush1.msra.mxu0 %v4385
  %4387 = vmatprep.subr.mxu0 0.0
  %4388 = vmatpush1.msra.mxu0 0.0
  %4389 = vmatprep.subr.mxu0 0.0
  %4390 = vmatpush1.msra.mxu0 0.0
  %4391 = vmatprep.subr.mxu0 0.0
  %4392 = vmatpush1.msra.mxu0 0.0
  %4393 = vmatprep.subr.mxu0 0.0
  %4394 = vmatpush1.msra.mxu0 0.0
  %4395 = vmatprep.subr.mxu0 0.0
  %4396 = vmatpush1.msra.mxu0 0.0
  %4397 = vmatprep.subr.mxu0 0.0
  %4398 = vmatpush1.msra.mxu0 0.0
  %4399 = vmatprep.subr.mxu0 0.0
  %4400 = vmatpush1.msra.mxu0 0.0
  %4401 = vmatprep.subr.mxu0 0.0
  %4402 = vmatpush1.msra.mxu0 0.0
  %4403 = vmatprep.subr.mxu0 0.0
  %4404 = vmatpush1.msra.mxu0 0.0
  %4405 = vmatprep.subr.mxu0 0.0
  %4406 = vmatpush1.msra.mxu0 0.0
  %4407 = vmatprep.subr.mxu0 0.0
  %4408 = vmatpush1.msra.mxu0 0.0
  %4409 = vmatprep.subr.mxu0 0.0
  %4410 = vmatpush1.msra.mxu0 0.0
  %4411 = vmatprep.subr.mxu0 0.0
  %4412 = vmatpush1.msra.mxu0 0.0
  %4413 = vmatprep.subr.mxu0 0.0
  %4414 = vmatpush1.msra.mxu0 0.0
  %4415 = vmatprep.subr.mxu0 0.0
  %4416 = vmatpush1.msra.mxu0 0.0
  %4417 = vmatprep.subr.mxu0 0.0
  %4418 = vmatpush1.msra.mxu0 0.0
  %4419 = vmatprep.subr.mxu0 0.0
  %4420 = vmatpush1.msra.mxu0 0.0
  %4421 = vmatprep.subr.mxu0 0.0
  %4422 = vmatpush1.msra.mxu0 0.0
  %4423 = vmatprep.subr.mxu0 0.0
  %4424 = vmatpush1.msra.mxu0 0.0
  %4425 = vmatprep.subr.mxu0 0.0
  %4426 = vmatpush1.msra.mxu0 0.0
  %4427 = vmatprep.subr.mxu0 0.0
  %4428 = vmatpush1.msra.mxu0 0.0
  %4429 = vmatprep.subr.mxu0 0.0
  %4430 = vmatpush1.msra.mxu0 0.0
  %4431 = vmatprep.subr.mxu0 0.0
  %4432 = vmatpush1.msra.mxu0 0.0
  %4433 = vmatprep.subr.mxu0 0.0
  %4434 = vmatpush1.msra.mxu0 0.0
  %4435 = vmatprep.mubr.f32.mxu0 0.0
  %v4436 = vand.u32 %v3235, 4294901760
  %4437 = vmatmul.mubr.f32.gmra.mrb[0].mxu0 %v4436
  %v4438 = vpop.f32.mrb[0].mxu0
  %v4439 = vadd.f32 %v4319, %v4438
  %v4440 = vpop.f32.mrb[0].mxu0
  %v4441 = vadd.f32 %v4321, %v4440
  %4442 = vdwg.mxu0
  %v4443 = vand.u32 %v3181, 4294901760
  %4444 = vmatprep.subr.mxu0 %v4443
  %v4445 = vand.u32 %v3180, 4294901760
  %4446 = vmatpush1.msra.mxu0 %v4445
  %v4447 = vand.u32 %v3188, 4294901760
  %4448 = vmatprep.subr.mxu0 %v4447
  %v4449 = vand.u32 %v3187, 4294901760
  %4450 = vmatpush1.msra.mxu0 %v4449
  %v4451 = vand.u32 %v3195, 4294901760
  %4452 = vmatprep.subr.mxu0 %v4451
  %v4453 = vand.u32 %v3194, 4294901760
  %4454 = vmatpush1.msra.mxu0 %v4453
  %v4455 = vand.u32 %v3202, 4294901760
  %4456 = vmatprep.subr.mxu0 %v4455
  %v4457 = vand.u32 %v3201, 4294901760
  %4458 = vmatpush1.msra.mxu0 %v4457
  %v4459 = vand.u32 %v3209, 4294901760
  %4460 = vmatprep.subr.mxu0 %v4459
  %v4461 = vand.u32 %v3208, 4294901760
  %4462 = vmatpush1.msra.mxu0 %v4461
  %v4463 = vand.u32 %v3216, 4294901760
  %4464 = vmatprep.subr.mxu0 %v4463
  %v4465 = vand.u32 %v3215, 4294901760
  %4466 = vmatpush1.msra.mxu0 %v4465
  %v4467 = vand.u32 %v3223, 4294901760
  %4468 = vmatprep.subr.mxu0 %v4467
  %v4469 = vand.u32 %v3222, 4294901760
  %4470 = vmatpush1.msra.mxu0 %v4469
  %v4471 = vand.u32 %v3230, 4294901760
  %4472 = vmatprep.subr.mxu0 %v4471
  %v4473 = vand.u32 %v3229, 4294901760
  %4474 = vmatpush1.msra.mxu0 %v4473
  %4475 = vmatprep.subr.mxu0 0.0
  %4476 = vmatpush1.msra.mxu0 0.0
  %4477 = vmatprep.subr.mxu0 0.0
  %4478 = vmatpush1.msra.mxu0 0.0
  %4479 = vmatprep.subr.mxu0 0.0
  %4480 = vmatpush1.msra.mxu0 0.0
  %4481 = vmatprep.subr.mxu0 0.0
  %4482 = vmatpush1.msra.mxu0 0.0
  %4483 = vmatprep.subr.mxu0 0.0
  %4484 = vmatpush1.msra.mxu0 0.0
  %4485 = vmatprep.subr.mxu0 0.0
  %4486 = vmatpush1.msra.mxu0 0.0
  %4487 = vmatprep.subr.mxu0 0.0
  %4488 = vmatpush1.msra.mxu0 0.0
  %4489 = vmatprep.subr.mxu0 0.0
  %4490 = vmatpush1.msra.mxu0 0.0
  %4491 = vmatprep.subr.mxu0 0.0
  %4492 = vmatpush1.msra.mxu0 0.0
  %4493 = vmatprep.subr.mxu0 0.0
  %4494 = vmatpush1.msra.mxu0 0.0
  %4495 = vmatprep.subr.mxu0 0.0
  %4496 = vmatpush1.msra.mxu0 0.0
  %4497 = vmatprep.subr.mxu0 0.0
  %4498 = vmatpush1.msra.mxu0 0.0
  %4499 = vmatprep.subr.mxu0 0.0
  %4500 = vmatpush1.msra.mxu0 0.0
  %4501 = vmatprep.subr.mxu0 0.0
  %4502 = vmatpush1.msra.mxu0 0.0
  %4503 = vmatprep.subr.mxu0 0.0
  %4504 = vmatpush1.msra.mxu0 0.0
  %4505 = vmatprep.subr.mxu0 0.0
  %4506 = vmatpush1.msra.mxu0 0.0
  %4507 = vmatprep.subr.mxu0 0.0
  %4508 = vmatpush1.msra.mxu0 0.0
  %4509 = vmatprep.subr.mxu0 0.0
  %4510 = vmatpush1.msra.mxu0 0.0
  %4511 = vmatprep.subr.mxu0 0.0
  %4512 = vmatpush1.msra.mxu0 0.0
  %4513 = vmatprep.subr.mxu0 0.0
  %4514 = vmatpush1.msra.mxu0 0.0
  %4515 = vmatprep.subr.mxu0 0.0
  %4516 = vmatpush1.msra.mxu0 0.0
  %4517 = vmatprep.subr.mxu0 0.0
  %4518 = vmatpush1.msra.mxu0 0.0
  %4519 = vmatprep.subr.mxu0 0.0
  %4520 = vmatpush1.msra.mxu0 0.0
  %4521 = vmatprep.subr.mxu0 0.0
  %4522 = vmatpush1.msra.mxu0 0.0
  %4523 = vmatprep.mubr.f32.mxu0 0.0
  %v4524 = vand.u32 %v3235, 4294901760
  %4525 = vmatmul.mubr.f32.gmra.mrb[0].mxu0 %v4524
  %v4526 = vpop.f32.mrb[0].mxu0
  %v4527 = vadd.f32 %v4439, %v4526
  %v4528 = vpop.f32.mrb[0].mxu0
  %v4529 = vadd.f32 %v4441, %v4528
  %4530 = vdwg.mxu0
  %v4531 = vand.u32 %v3183, 4294901760
  %4532 = vmatprep.subr.mxu0 %v4531
  %v4533 = vand.u32 %v3182, 4294901760
  %4534 = vmatpush1.msra.mxu0 %v4533
  %v4535 = vand.u32 %v3190, 4294901760
  %4536 = vmatprep.subr.mxu0 %v4535
  %v4537 = vand.u32 %v3189, 4294901760
  %4538 = vmatpush1.msra.mxu0 %v4537
  %v4539 = vand.u32 %v3197, 4294901760
  %4540 = vmatprep.subr.mxu0 %v4539
  %v4541 = vand.u32 %v3196, 4294901760
  %4542 = vmatpush1.msra.mxu0 %v4541
  %v4543 = vand.u32 %v3204, 4294901760
  %4544 = vmatprep.subr.mxu0 %v4543
  %v4545 = vand.u32 %v3203, 4294901760
  %4546 = vmatpush1.msra.mxu0 %v4545
  %v4547 = vand.u32 %v3211, 4294901760
  %4548 = vmatprep.subr.mxu0 %v4547
  %v4549 = vand.u32 %v3210, 4294901760
  %4550 = vmatpush1.msra.mxu0 %v4549
  %v4551 = vand.u32 %v3218, 4294901760
  %4552 = vmatprep.subr.mxu0 %v4551
  %v4553 = vand.u32 %v3217, 4294901760
  %4554 = vmatpush1.msra.mxu0 %v4553
  %v4555 = vand.u32 %v3225, 4294901760
  %4556 = vmatprep.subr.mxu0 %v4555
  %v4557 = vand.u32 %v3224, 4294901760
  %4558 = vmatpush1.msra.mxu0 %v4557
  %v4559 = vand.u32 %v3232, 4294901760
  %4560 = vmatprep.subr.mxu0 %v4559
  %v4561 = vand.u32 %v3231, 4294901760
  %4562 = vmatpush1.msra.mxu0 %v4561
  %4563 = vmatprep.subr.mxu0 0.0
  %4564 = vmatpush1.msra.mxu0 0.0
  %4565 = vmatprep.subr.mxu0 0.0
  %4566 = vmatpush1.msra.mxu0 0.0
  %4567 = vmatprep.subr.mxu0 0.0
  %4568 = vmatpush1.msra.mxu0 0.0
  %4569 = vmatprep.subr.mxu0 0.0
  %4570 = vmatpush1.msra.mxu0 0.0
  %4571 = vmatprep.subr.mxu0 0.0
  %4572 = vmatpush1.msra.mxu0 0.0
  %4573 = vmatprep.subr.mxu0 0.0
  %4574 = vmatpush1.msra.mxu0 0.0
  %4575 = vmatprep.subr.mxu0 0.0
  %4576 = vmatpush1.msra.mxu0 0.0
  %4577 = vmatprep.subr.mxu0 0.0
  %4578 = vmatpush1.msra.mxu0 0.0
  %4579 = vmatprep.subr.mxu0 0.0
  %4580 = vmatpush1.msra.mxu0 0.0
  %4581 = vmatprep.subr.mxu0 0.0
  %4582 = vmatpush1.msra.mxu0 0.0
  %4583 = vmatprep.subr.mxu0 0.0
  %4584 = vmatpush1.msra.mxu0 0.0
  %4585 = vmatprep.subr.mxu0 0.0
  %4586 = vmatpush1.msra.mxu0 0.0
  %4587 = vmatprep.subr.mxu0 0.0
  %4588 = vmatpush1.msra.mxu0 0.0
  %4589 = vmatprep.subr.mxu0 0.0
  %4590 = vmatpush1.msra.mxu0 0.0
  %4591 = vmatprep.subr.mxu0 0.0
  %4592 = vmatpush1.msra.mxu0 0.0
  %4593 = vmatprep.subr.mxu0 0.0
  %4594 = vmatpush1.msra.mxu0 0.0
  %4595 = vmatprep.subr.mxu0 0.0
  %4596 = vmatpush1.msra.mxu0 0.0
  %4597 = vmatprep.subr.mxu0 0.0
  %4598 = vmatpush1.msra.mxu0 0.0
  %4599 = vmatprep.subr.mxu0 0.0
  %4600 = vmatpush1.msra.mxu0 0.0
  %4601 = vmatprep.subr.mxu0 0.0
  %4602 = vmatpush1.msra.mxu0 0.0
  %4603 = vmatprep.subr.mxu0 0.0
  %4604 = vmatpush1.msra.mxu0 0.0
  %4605 = vmatprep.subr.mxu0 0.0
  %4606 = vmatpush1.msra.mxu0 0.0
  %4607 = vmatprep.subr.mxu0 0.0
  %4608 = vmatpush1.msra.mxu0 0.0
  %4609 = vmatprep.subr.mxu0 0.0
  %4610 = vmatpush1.msra.mxu0 0.0
  %4611 = vmatprep.mubr.f32.mxu0 0.0
  %v4612 = vand.u32 %v3235, 4294901760
  %v4613 = vsub.f32 %v3235, %v4612
  %v4614 = vand.u32 %v4613, 4294901760
  %v4615 = vsub.f32 %v4613, %v4614
  %v4616 = vand.u32 %v4615, 4294901760
  %4617 = vmatmul.mubr.f32.gmra.mrb[0].mxu0 %v4616
  %v4618 = vpop.f32.mrb[0].mxu0
  %v4619 = vadd.f32 0.0, %v4618
  %v4620 = vpop.f32.mrb[0].mxu0
  %v4621 = vadd.f32 0.0, %v4620
  %4622 = vdwg.mxu0
  %v4623 = vand.u32 %v3183, 4294901760
  %v4624 = vsub.f32 %v3183, %v4623
  %v4625 = vand.u32 %v4624, 4294901760
  %v4626 = vsub.f32 %v4624, %v4625
  %v4627 = vand.u32 %v4626, 4294901760
  %4628 = vmatprep.subr.mxu0 %v4627
  %v4629 = vand.u32 %v3182, 4294901760
  %v4630 = vsub.f32 %v3182, %v4629
  %v4631 = vand.u32 %v4630, 4294901760
  %v4632 = vsub.f32 %v4630, %v4631
  %v4633 = vand.u32 %v4632, 4294901760
  %4634 = vmatpush1.msra.mxu0 %v4633
  %v4635 = vand.u32 %v3190, 4294901760
  %v4636 = vsub.f32 %v3190, %v4635
  %v4637 = vand.u32 %v4636, 4294901760
  %v4638 = vsub.f32 %v4636, %v4637
  %v4639 = vand.u32 %v4638, 4294901760
  %4640 = vmatprep.subr.mxu0 %v4639
  %v4641 = vand.u32 %v3189, 4294901760
  %v4642 = vsub.f32 %v3189, %v4641
  %v4643 = vand.u32 %v4642, 4294901760
  %v4644 = vsub.f32 %v4642, %v4643
  %v4645 = vand.u32 %v4644, 4294901760
  %4646 = vmatpush1.msra.mxu0 %v4645
  %v4647 = vand.u32 %v3197, 4294901760
  %v4648 = vsub.f32 %v3197, %v4647
  %v4649 = vand.u32 %v4648, 4294901760
  %v4650 = vsub.f32 %v4648, %v4649
  %v4651 = vand.u32 %v4650, 4294901760
  %4652 = vmatprep.subr.mxu0 %v4651
  %v4653 = vand.u32 %v3196, 4294901760
  %v4654 = vsub.f32 %v3196, %v4653
  %v4655 = vand.u32 %v4654, 4294901760
  %v4656 = vsub.f32 %v4654, %v4655
  %v4657 = vand.u32 %v4656, 4294901760
  %4658 = vmatpush1.msra.mxu0 %v4657
  %v4659 = vand.u32 %v3204, 4294901760
  %v4660 = vsub.f32 %v3204, %v4659
  %v4661 = vand.u32 %v4660, 4294901760
  %v4662 = vsub.f32 %v4660, %v4661
  %v4663 = vand.u32 %v4662, 4294901760
  %4664 = vmatprep.subr.mxu0 %v4663
  %v4665 = vand.u32 %v3203, 4294901760
  %v4666 = vsub.f32 %v3203, %v4665
  %v4667 = vand.u32 %v4666, 4294901760
  %v4668 = vsub.f32 %v4666, %v4667
  %v4669 = vand.u32 %v4668, 4294901760
  %4670 = vmatpush1.msra.mxu0 %v4669
  %v4671 = vand.u32 %v3211, 4294901760
  %v4672 = vsub.f32 %v3211, %v4671
  %v4673 = vand.u32 %v4672, 4294901760
  %v4674 = vsub.f32 %v4672, %v4673
  %v4675 = vand.u32 %v4674, 4294901760
  %4676 = vmatprep.subr.mxu0 %v4675
  %v4677 = vand.u32 %v3210, 4294901760
  %v4678 = vsub.f32 %v3210, %v4677
  %v4679 = vand.u32 %v4678, 4294901760
  %v4680 = vsub.f32 %v4678, %v4679
  %v4681 = vand.u32 %v4680, 4294901760
  %4682 = vmatpush1.msra.mxu0 %v4681
  %v4683 = vand.u32 %v3218, 4294901760
  %v4684 = vsub.f32 %v3218, %v4683
  %v4685 = vand.u32 %v4684, 4294901760
  %v4686 = vsub.f32 %v4684, %v4685
  %v4687 = vand.u32 %v4686, 4294901760
  %4688 = vmatprep.subr.mxu0 %v4687
  %v4689 = vand.u32 %v3217, 4294901760
  %v4690 = vsub.f32 %v3217, %v4689
  %v4691 = vand.u32 %v4690, 4294901760
  %v4692 = vsub.f32 %v4690, %v4691
  %v4693 = vand.u32 %v4692, 4294901760
  %4694 = vmatpush1.msra.mxu0 %v4693
  %v4695 = vand.u32 %v3225, 4294901760
  %v4696 = vsub.f32 %v3225, %v4695
  %v4697 = vand.u32 %v4696, 4294901760
  %v4698 = vsub.f32 %v4696, %v4697
  %v4699 = vand.u32 %v4698, 4294901760
  %4700 = vmatprep.subr.mxu0 %v4699
  %v4701 = vand.u32 %v3224, 4294901760
  %v4702 = vsub.f32 %v3224, %v4701
  %v4703 = vand.u32 %v4702, 4294901760
  %v4704 = vsub.f32 %v4702, %v4703
  %v4705 = vand.u32 %v4704, 4294901760
  %4706 = vmatpush1.msra.mxu0 %v4705
  %v4707 = vand.u32 %v3232, 4294901760
  %v4708 = vsub.f32 %v3232, %v4707
  %v4709 = vand.u32 %v4708, 4294901760
  %v4710 = vsub.f32 %v4708, %v4709
  %v4711 = vand.u32 %v4710, 4294901760
  %4712 = vmatprep.subr.mxu0 %v4711
  %v4713 = vand.u32 %v3231, 4294901760
  %v4714 = vsub.f32 %v3231, %v4713
  %v4715 = vand.u32 %v4714, 4294901760
  %v4716 = vsub.f32 %v4714, %v4715
  %v4717 = vand.u32 %v4716, 4294901760
  %4718 = vmatpush1.msra.mxu0 %v4717
  %4719 = vmatprep.subr.mxu0 0.0
  %4720 = vmatpush1.msra.mxu0 0.0
  %4721 = vmatprep.subr.mxu0 0.0
  %4722 = vmatpush1.msra.mxu0 0.0
  %4723 = vmatprep.subr.mxu0 0.0
  %4724 = vmatpush1.msra.mxu0 0.0
  %4725 = vmatprep.subr.mxu0 0.0
  %4726 = vmatpush1.msra.mxu0 0.0
  %4727 = vmatprep.subr.mxu0 0.0
  %4728 = vmatpush1.msra.mxu0 0.0
  %4729 = vmatprep.subr.mxu0 0.0
  %4730 = vmatpush1.msra.mxu0 0.0
  %4731 = vmatprep.subr.mxu0 0.0
  %4732 = vmatpush1.msra.mxu0 0.0
  %4733 = vmatprep.subr.mxu0 0.0
  %4734 = vmatpush1.msra.mxu0 0.0
  %4735 = vmatprep.subr.mxu0 0.0
  %4736 = vmatpush1.msra.mxu0 0.0
  %4737 = vmatprep.subr.mxu0 0.0
  %4738 = vmatpush1.msra.mxu0 0.0
  %4739 = vmatprep.subr.mxu0 0.0
  %4740 = vmatpush1.msra.mxu0 0.0
  %4741 = vmatprep.subr.mxu0 0.0
  %4742 = vmatpush1.msra.mxu0 0.0
  %4743 = vmatprep.subr.mxu0 0.0
  %4744 = vmatpush1.msra.mxu0 0.0
  %4745 = vmatprep.subr.mxu0 0.0
  %4746 = vmatpush1.msra.mxu0 0.0
  %4747 = vmatprep.subr.mxu0 0.0
  %4748 = vmatpush1.msra.mxu0 0.0
  %4749 = vmatprep.subr.mxu0 0.0
  %4750 = vmatpush1.msra.mxu0 0.0
  %4751 = vmatprep.subr.mxu0 0.0
  %4752 = vmatpush1.msra.mxu0 0.0
  %4753 = vmatprep.subr.mxu0 0.0
  %4754 = vmatpush1.msra.mxu0 0.0
  %4755 = vmatprep.subr.mxu0 0.0
  %4756 = vmatpush1.msra.mxu0 0.0
  %4757 = vmatprep.subr.mxu0 0.0
  %4758 = vmatpush1.msra.mxu0 0.0
  %4759 = vmatprep.subr.mxu0 0.0
  %4760 = vmatpush1.msra.mxu0 0.0
  %4761 = vmatprep.subr.mxu0 0.0
  %4762 = vmatpush1.msra.mxu0 0.0
  %4763 = vmatprep.subr.mxu0 0.0
  %4764 = vmatpush1.msra.mxu0 0.0
  %4765 = vmatprep.subr.mxu0 0.0
  %4766 = vmatpush1.msra.mxu0 0.0
  %4767 = vmatprep.mubr.f32.mxu0 0.0
  %v4768 = vand.u32 %v3235, 4294901760
  %4769 = vmatmul.mubr.f32.gmra.mrb[0].mxu0 %v4768
  %v4770 = vpop.f32.mrb[0].mxu0
  %v4771 = vadd.f32 %v4619, %v4770
  %v4772 = vpop.f32.mrb[0].mxu0
  %v4773 = vadd.f32 %v4621, %v4772
  %4774 = vdwg.mxu0
  %v4775 = vand.u32 %v3183, 4294901760
  %v4776 = vsub.f32 %v3183, %v4775
  %4777 = vmatprep.subr.mxu0 %v4776
  %v4778 = vand.u32 %v3182, 4294901760
  %v4779 = vsub.f32 %v3182, %v4778
  %4780 = vmatpush1.msra.mxu0 %v4779
  %v4781 = vand.u32 %v3190, 4294901760
  %v4782 = vsub.f32 %v3190, %v4781
  %4783 = vmatprep.subr.mxu0 %v4782
  %v4784 = vand.u32 %v3189, 4294901760
  %v4785 = vsub.f32 %v3189, %v4784
  %4786 = vmatpush1.msra.mxu0 %v4785
  %v4787 = vand.u32 %v3197, 4294901760
  %v4788 = vsub.f32 %v3197, %v4787
  %4789 = vmatprep.subr.mxu0 %v4788
  %v4790 = vand.u32 %v3196, 4294901760
  %v4791 = vsub.f32 %v3196, %v4790
  %4792 = vmatpush1.msra.mxu0 %v4791
  %v4793 = vand.u32 %v3204, 4294901760
  %v4794 = vsub.f32 %v3204, %v4793
  %4795 = vmatprep.subr.mxu0 %v4794
  %v4796 = vand.u32 %v3203, 4294901760
  %v4797 = vsub.f32 %v3203, %v4796
  %4798 = vmatpush1.msra.mxu0 %v4797
  %v4799 = vand.u32 %v3211, 4294901760
  %v4800 = vsub.f32 %v3211, %v4799
  %4801 = vmatprep.subr.mxu0 %v4800
  %v4802 = vand.u32 %v3210, 4294901760
  %v4803 = vsub.f32 %v3210, %v4802
  %4804 = vmatpush1.msra.mxu0 %v4803
  %v4805 = vand.u32 %v3218, 4294901760
  %v4806 = vsub.f32 %v3218, %v4805
  %4807 = vmatprep.subr.mxu0 %v4806
  %v4808 = vand.u32 %v3217, 4294901760
  %v4809 = vsub.f32 %v3217, %v4808
  %4810 = vmatpush1.msra.mxu0 %v4809
  %v4811 = vand.u32 %v3225, 4294901760
  %v4812 = vsub.f32 %v3225, %v4811
  %4813 = vmatprep.subr.mxu0 %v4812
  %v4814 = vand.u32 %v3224, 4294901760
  %v4815 = vsub.f32 %v3224, %v4814
  %4816 = vmatpush1.msra.mxu0 %v4815
  %v4817 = vand.u32 %v3232, 4294901760
  %v4818 = vsub.f32 %v3232, %v4817
  %4819 = vmatprep.subr.mxu0 %v4818
  %v4820 = vand.u32 %v3231, 4294901760
  %v4821 = vsub.f32 %v3231, %v4820
  %4822 = vmatpush1.msra.mxu0 %v4821
  %4823 = vmatprep.subr.mxu0 0.0
  %4824 = vmatpush1.msra.mxu0 0.0
  %4825 = vmatprep.subr.mxu0 0.0
  %4826 = vmatpush1.msra.mxu0 0.0
  %4827 = vmatprep.subr.mxu0 0.0
  %4828 = vmatpush1.msra.mxu0 0.0
  %4829 = vmatprep.subr.mxu0 0.0
  %4830 = vmatpush1.msra.mxu0 0.0
  %4831 = vmatprep.subr.mxu0 0.0
  %4832 = vmatpush1.msra.mxu0 0.0
  %4833 = vmatprep.subr.mxu0 0.0
  %4834 = vmatpush1.msra.mxu0 0.0
  %4835 = vmatprep.subr.mxu0 0.0
  %4836 = vmatpush1.msra.mxu0 0.0
  %4837 = vmatprep.subr.mxu0 0.0
  %4838 = vmatpush1.msra.mxu0 0.0
  %4839 = vmatprep.subr.mxu0 0.0
  %4840 = vmatpush1.msra.mxu0 0.0
  %4841 = vmatprep.subr.mxu0 0.0
  %4842 = vmatpush1.msra.mxu0 0.0
  %4843 = vmatprep.subr.mxu0 0.0
  %4844 = vmatpush1.msra.mxu0 0.0
  %4845 = vmatprep.subr.mxu0 0.0
  %4846 = vmatpush1.msra.mxu0 0.0
  %4847 = vmatprep.subr.mxu0 0.0
  %4848 = vmatpush1.msra.mxu0 0.0
  %4849 = vmatprep.subr.mxu0 0.0
  %4850 = vmatpush1.msra.mxu0 0.0
  %4851 = vmatprep.subr.mxu0 0.0
  %4852 = vmatpush1.msra.mxu0 0.0
  %4853 = vmatprep.subr.mxu0 0.0
  %4854 = vmatpush1.msra.mxu0 0.0
  %4855 = vmatprep.subr.mxu0 0.0
  %4856 = vmatpush1.msra.mxu0 0.0
  %4857 = vmatprep.subr.mxu0 0.0
  %4858 = vmatpush1.msra.mxu0 0.0
  %4859 = vmatprep.subr.mxu0 0.0
  %4860 = vmatpush1.msra.mxu0 0.0
  %4861 = vmatprep.subr.mxu0 0.0
  %4862 = vmatpush1.msra.mxu0 0.0
  %4863 = vmatprep.subr.mxu0 0.0
  %4864 = vmatpush1.msra.mxu0 0.0
  %4865 = vmatprep.subr.mxu0 0.0
  %4866 = vmatpush1.msra.mxu0 0.0
  %4867 = vmatprep.subr.mxu0 0.0
  %4868 = vmatpush1.msra.mxu0 0.0
  %4869 = vmatprep.subr.mxu0 0.0
  %4870 = vmatpush1.msra.mxu0 0.0
  %4871 = vmatprep.mubr.f32.mxu0 0.0
  %v4872 = vand.u32 %v3235, 4294901760
  %v4873 = vsub.f32 %v3235, %v4872
  %4874 = vmatmul.mubr.f32.gmra.mrb[0].mxu0 %v4873
  %v4875 = vpop.f32.mrb[0].mxu0
  %v4876 = vadd.f32 %v4771, %v4875
  %v4877 = vpop.f32.mrb[0].mxu0
  %v4878 = vadd.f32 %v4773, %v4877
  %4879 = vdwg.mxu0
  %v4880 = vand.u32 %v3183, 4294901760
  %4881 = vmatprep.subr.mxu0 %v4880
  %v4882 = vand.u32 %v3182, 4294901760
  %4883 = vmatpush1.msra.mxu0 %v4882
  %v4884 = vand.u32 %v3190, 4294901760
  %4885 = vmatprep.subr.mxu0 %v4884
  %v4886 = vand.u32 %v3189, 4294901760
  %4887 = vmatpush1.msra.mxu0 %v4886
  %v4888 = vand.u32 %v3197, 4294901760
  %4889 = vmatprep.subr.mxu0 %v4888
  %v4890 = vand.u32 %v3196, 4294901760
  %4891 = vmatpush1.msra.mxu0 %v4890
  %v4892 = vand.u32 %v3204, 4294901760
  %4893 = vmatprep.subr.mxu0 %v4892
  %v4894 = vand.u32 %v3203, 4294901760
  %4895 = vmatpush1.msra.mxu0 %v4894
  %v4896 = vand.u32 %v3211, 4294901760
  %4897 = vmatprep.subr.mxu0 %v4896
  %v4898 = vand.u32 %v3210, 4294901760
  %4899 = vmatpush1.msra.mxu0 %v4898
  %v4900 = vand.u32 %v3218, 4294901760
  %4901 = vmatprep.subr.mxu0 %v4900
  %v4902 = vand.u32 %v3217, 4294901760
  %4903 = vmatpush1.msra.mxu0 %v4902
  %v4904 = vand.u32 %v3225, 4294901760
  %4905 = vmatprep.subr.mxu0 %v4904
  %v4906 = vand.u32 %v3224, 4294901760
  %4907 = vmatpush1.msra.mxu0 %v4906
  %v4908 = vand.u32 %v3232, 4294901760
  %4909 = vmatprep.subr.mxu0 %v4908
  %v4910 = vand.u32 %v3231, 4294901760
  %4911 = vmatpush1.msra.mxu0 %v4910
  %4912 = vmatprep.subr.mxu0 0.0
  %4913 = vmatpush1.msra.mxu0 0.0
  %4914 = vmatprep.subr.mxu0 0.0
  %4915 = vmatpush1.msra.mxu0 0.0
  %4916 = vmatprep.subr.mxu0 0.0
  %4917 = vmatpush1.msra.mxu0 0.0
  %4918 = vmatprep.subr.mxu0 0.0
  %4919 = vmatpush1.msra.mxu0 0.0
  %4920 = vmatprep.subr.mxu0 0.0
  %4921 = vmatpush1.msra.mxu0 0.0
  %4922 = vmatprep.subr.mxu0 0.0
  %4923 = vmatpush1.msra.mxu0 0.0
  %4924 = vmatprep.subr.mxu0 0.0
  %4925 = vmatpush1.msra.mxu0 0.0
  %4926 = vmatprep.subr.mxu0 0.0
  %4927 = vmatpush1.msra.mxu0 0.0
  %4928 = vmatprep.subr.mxu0 0.0
  %4929 = vmatpush1.msra.mxu0 0.0
  %4930 = vmatprep.subr.mxu0 0.0
  %4931 = vmatpush1.msra.mxu0 0.0
  %4932 = vmatprep.subr.mxu0 0.0
  %4933 = vmatpush1.msra.mxu0 0.0
  %4934 = vmatprep.subr.mxu0 0.0
  %4935 = vmatpush1.msra.mxu0 0.0
  %4936 = vmatprep.subr.mxu0 0.0
  %4937 = vmatpush1.msra.mxu0 0.0
  %4938 = vmatprep.subr.mxu0 0.0
  %4939 = vmatpush1.msra.mxu0 0.0
  %4940 = vmatprep.subr.mxu0 0.0
  %4941 = vmatpush1.msra.mxu0 0.0
  %4942 = vmatprep.subr.mxu0 0.0
  %4943 = vmatpush1.msra.mxu0 0.0
  %4944 = vmatprep.subr.mxu0 0.0
  %4945 = vmatpush1.msra.mxu0 0.0
  %4946 = vmatprep.subr.mxu0 0.0
  %4947 = vmatpush1.msra.mxu0 0.0
  %4948 = vmatprep.subr.mxu0 0.0
  %4949 = vmatpush1.msra.mxu0 0.0
  %4950 = vmatprep.subr.mxu0 0.0
  %4951 = vmatpush1.msra.mxu0 0.0
  %4952 = vmatprep.subr.mxu0 0.0
  %4953 = vmatpush1.msra.mxu0 0.0
  %4954 = vmatprep.subr.mxu0 0.0
  %4955 = vmatpush1.msra.mxu0 0.0
  %4956 = vmatprep.subr.mxu0 0.0
  %4957 = vmatpush1.msra.mxu0 0.0
  %4958 = vmatprep.subr.mxu0 0.0
  %4959 = vmatpush1.msra.mxu0 0.0
  %4960 = vmatprep.mubr.f32.mxu0 0.0
  %v4961 = vand.u32 %v3235, 4294901760
  %v4962 = vsub.f32 %v3235, %v4961
  %v4963 = vand.u32 %v4962, 4294901760
  %4964 = vmatmul.mubr.f32.gmra.mrb[0].mxu0 %v4963
  %v4965 = vpop.f32.mrb[0].mxu0
  %v4966 = vadd.f32 %v4876, %v4965
  %v4967 = vpop.f32.mrb[0].mxu0
  %v4968 = vadd.f32 %v4878, %v4967
  %4969 = vdwg.mxu0
  %v4970 = vand.u32 %v3183, 4294901760
  %v4971 = vsub.f32 %v3183, %v4970
  %v4972 = vand.u32 %v4971, 4294901760
  %4973 = vmatprep.subr.mxu0 %v4972
  %v4974 = vand.u32 %v3182, 4294901760
  %v4975 = vsub.f32 %v3182, %v4974
  %v4976 = vand.u32 %v4975, 4294901760
  %4977 = vmatpush1.msra.mxu0 %v4976
  %v4978 = vand.u32 %v3190, 4294901760
  %v4979 = vsub.f32 %v3190, %v4978
  %v4980 = vand.u32 %v4979, 4294901760
  %4981 = vmatprep.subr.mxu0 %v4980
  %v4982 = vand.u32 %v3189, 4294901760
  %v4983 = vsub.f32 %v3189, %v4982
  %v4984 = vand.u32 %v4983, 4294901760
  %4985 = vmatpush1.msra.mxu0 %v4984
  %v4986 = vand.u32 %v3197, 4294901760
  %v4987 = vsub.f32 %v3197, %v4986
  %v4988 = vand.u32 %v4987, 4294901760
  %4989 = vmatprep.subr.mxu0 %v4988
  %v4990 = vand.u32 %v3196, 4294901760
  %v4991 = vsub.f32 %v3196, %v4990
  %v4992 = vand.u32 %v4991, 4294901760
  %4993 = vmatpush1.msra.mxu0 %v4992
  %v4994 = vand.u32 %v3204, 4294901760
  %v4995 = vsub.f32 %v3204, %v4994
  %v4996 = vand.u32 %v4995, 4294901760
  %4997 = vmatprep.subr.mxu0 %v4996
  %v4998 = vand.u32 %v3203, 4294901760
  %v4999 = vsub.f32 %v3203, %v4998
  %v5000 = vand.u32 %v4999, 4294901760
  %5001 = vmatpush1.msra.mxu0 %v5000
  %v5002 = vand.u32 %v3211, 4294901760
  %v5003 = vsub.f32 %v3211, %v5002
  %v5004 = vand.u32 %v5003, 4294901760
  %5005 = vmatprep.subr.mxu0 %v5004
  %v5006 = vand.u32 %v3210, 4294901760
  %v5007 = vsub.f32 %v3210, %v5006
  %v5008 = vand.u32 %v5007, 4294901760
  %5009 = vmatpush1.msra.mxu0 %v5008
  %v5010 = vand.u32 %v3218, 4294901760
  %v5011 = vsub.f32 %v3218, %v5010
  %v5012 = vand.u32 %v5011, 4294901760
  %5013 = vmatprep.subr.mxu0 %v5012
  %v5014 = vand.u32 %v3217, 4294901760
  %v5015 = vsub.f32 %v3217, %v5014
  %v5016 = vand.u32 %v5015, 4294901760
  %5017 = vmatpush1.msra.mxu0 %v5016
  %v5018 = vand.u32 %v3225, 4294901760
  %v5019 = vsub.f32 %v3225, %v5018
  %v5020 = vand.u32 %v5019, 4294901760
  %5021 = vmatprep.subr.mxu0 %v5020
  %v5022 = vand.u32 %v3224, 4294901760
  %v5023 = vsub.f32 %v3224, %v5022
  %v5024 = vand.u32 %v5023, 4294901760
  %5025 = vmatpush1.msra.mxu0 %v5024
  %v5026 = vand.u32 %v3232, 4294901760
  %v5027 = vsub.f32 %v3232, %v5026
  %v5028 = vand.u32 %v5027, 4294901760
  %5029 = vmatprep.subr.mxu0 %v5028
  %v5030 = vand.u32 %v3231, 4294901760
  %v5031 = vsub.f32 %v3231, %v5030
  %v5032 = vand.u32 %v5031, 4294901760
  %5033 = vmatpush1.msra.mxu0 %v5032
  %5034 = vmatprep.subr.mxu0 0.0
  %5035 = vmatpush1.msra.mxu0 0.0
  %5036 = vmatprep.subr.mxu0 0.0
  %5037 = vmatpush1.msra.mxu0 0.0
  %5038 = vmatprep.subr.mxu0 0.0
  %5039 = vmatpush1.msra.mxu0 0.0
  %5040 = vmatprep.subr.mxu0 0.0
  %5041 = vmatpush1.msra.mxu0 0.0
  %5042 = vmatprep.subr.mxu0 0.0
  %5043 = vmatpush1.msra.mxu0 0.0
  %5044 = vmatprep.subr.mxu0 0.0
  %5045 = vmatpush1.msra.mxu0 0.0
  %5046 = vmatprep.subr.mxu0 0.0
  %5047 = vmatpush1.msra.mxu0 0.0
  %5048 = vmatprep.subr.mxu0 0.0
  %5049 = vmatpush1.msra.mxu0 0.0
  %5050 = vmatprep.subr.mxu0 0.0
  %5051 = vmatpush1.msra.mxu0 0.0
  %5052 = vmatprep.subr.mxu0 0.0
  %5053 = vmatpush1.msra.mxu0 0.0
  %5054 = vmatprep.subr.mxu0 0.0
  %5055 = vmatpush1.msra.mxu0 0.0
  %5056 = vmatprep.subr.mxu0 0.0
  %5057 = vmatpush1.msra.mxu0 0.0
  %5058 = vmatprep.subr.mxu0 0.0
  %5059 = vmatpush1.msra.mxu0 0.0
  %5060 = vmatprep.subr.mxu0 0.0
  %5061 = vmatpush1.msra.mxu0 0.0
  %5062 = vmatprep.subr.mxu0 0.0
  %5063 = vmatpush1.msra.mxu0 0.0
  %5064 = vmatprep.subr.mxu0 0.0
  %5065 = vmatpush1.msra.mxu0 0.0
  %5066 = vmatprep.subr.mxu0 0.0
  %5067 = vmatpush1.msra.mxu0 0.0
  %5068 = vmatprep.subr.mxu0 0.0
  %5069 = vmatpush1.msra.mxu0 0.0
  %5070 = vmatprep.subr.mxu0 0.0
  %5071 = vmatpush1.msra.mxu0 0.0
  %5072 = vmatprep.subr.mxu0 0.0
  %5073 = vmatpush1.msra.mxu0 0.0
  %5074 = vmatprep.subr.mxu0 0.0
  %5075 = vmatpush1.msra.mxu0 0.0
  %5076 = vmatprep.subr.mxu0 0.0
  %5077 = vmatpush1.msra.mxu0 0.0
  %5078 = vmatprep.subr.mxu0 0.0
  %5079 = vmatpush1.msra.mxu0 0.0
  %5080 = vmatprep.subr.mxu0 0.0
  %5081 = vmatpush1.msra.mxu0 0.0
  %5082 = vmatprep.mubr.f32.mxu0 0.0
  %v5083 = vand.u32 %v3235, 4294901760
  %5084 = vmatmul.mubr.f32.gmra.mrb[0].mxu0 %v5083
  %v5085 = vpop.f32.mrb[0].mxu0
  %v5086 = vadd.f32 %v4966, %v5085
  %v5087 = vpop.f32.mrb[0].mxu0
  %v5088 = vadd.f32 %v4968, %v5087
  %5089 = vdwg.mxu0
  %v5090 = vand.u32 %v3183, 4294901760
  %5091 = vmatprep.subr.mxu0 %v5090
  %v5092 = vand.u32 %v3182, 4294901760
  %5093 = vmatpush1.msra.mxu0 %v5092
  %v5094 = vand.u32 %v3190, 4294901760
  %5095 = vmatprep.subr.mxu0 %v5094
  %v5096 = vand.u32 %v3189, 4294901760
  %5097 = vmatpush1.msra.mxu0 %v5096
  %v5098 = vand.u32 %v3197, 4294901760
  %5099 = vmatprep.subr.mxu0 %v5098
  %v5100 = vand.u32 %v3196, 4294901760
  %5101 = vmatpush1.msra.mxu0 %v5100
  %v5102 = vand.u32 %v3204, 4294901760
  %5103 = vmatprep.subr.mxu0 %v5102
  %v5104 = vand.u32 %v3203, 4294901760
  %5105 = vmatpush1.msra.mxu0 %v5104
  %v5106 = vand.u32 %v3211, 4294901760
  %5107 = vmatprep.subr.mxu0 %v5106
  %v5108 = vand.u32 %v3210, 4294901760
  %5109 = vmatpush1.msra.mxu0 %v5108
  %v5110 = vand.u32 %v3218, 4294901760
  %5111 = vmatprep.subr.mxu0 %v5110
  %v5112 = vand.u32 %v3217, 4294901760
  %5113 = vmatpush1.msra.mxu0 %v5112
  %v5114 = vand.u32 %v3225, 4294901760
  %5115 = vmatprep.subr.mxu0 %v5114
  %v5116 = vand.u32 %v3224, 4294901760
  %5117 = vmatpush1.msra.mxu0 %v5116
  %v5118 = vand.u32 %v3232, 4294901760
  %5119 = vmatprep.subr.mxu0 %v5118
  %v5120 = vand.u32 %v3231, 4294901760
  %5121 = vmatpush1.msra.mxu0 %v5120
  %5122 = vmatprep.subr.mxu0 0.0
  %5123 = vmatpush1.msra.mxu0 0.0
  %5124 = vmatprep.subr.mxu0 0.0
  %5125 = vmatpush1.msra.mxu0 0.0
  %5126 = vmatprep.subr.mxu0 0.0
  %5127 = vmatpush1.msra.mxu0 0.0
  %5128 = vmatprep.subr.mxu0 0.0
  %5129 = vmatpush1.msra.mxu0 0.0
  %5130 = vmatprep.subr.mxu0 0.0
  %5131 = vmatpush1.msra.mxu0 0.0
  %5132 = vmatprep.subr.mxu0 0.0
  %5133 = vmatpush1.msra.mxu0 0.0
  %5134 = vmatprep.subr.mxu0 0.0
  %5135 = vmatpush1.msra.mxu0 0.0
  %5136 = vmatprep.subr.mxu0 0.0
  %5137 = vmatpush1.msra.mxu0 0.0
  %5138 = vmatprep.subr.mxu0 0.0
  %5139 = vmatpush1.msra.mxu0 0.0
  %5140 = vmatprep.subr.mxu0 0.0
  %5141 = vmatpush1.msra.mxu0 0.0
  %5142 = vmatprep.subr.mxu0 0.0
  %5143 = vmatpush1.msra.mxu0 0.0
  %5144 = vmatprep.subr.mxu0 0.0
  %5145 = vmatpush1.msra.mxu0 0.0
  %5146 = vmatprep.subr.mxu0 0.0
  %5147 = vmatpush1.msra.mxu0 0.0
  %5148 = vmatprep.subr.mxu0 0.0
  %5149 = vmatpush1.msra.mxu0 0.0
  %5150 = vmatprep.subr.mxu0 0.0
  %5151 = vmatpush1.msra.mxu0 0.0
  %5152 = vmatprep.subr.mxu0 0.0
  %5153 = vmatpush1.msra.mxu0 0.0
  %5154 = vmatprep.subr.mxu0 0.0
  %5155 = vmatpush1.msra.mxu0 0.0
  %5156 = vmatprep.subr.mxu0 0.0
  %5157 = vmatpush1.msra.mxu0 0.0
  %5158 = vmatprep.subr.mxu0 0.0
  %5159 = vmatpush1.msra.mxu0 0.0
  %5160 = vmatprep.subr.mxu0 0.0
  %5161 = vmatpush1.msra.mxu0 0.0
  %5162 = vmatprep.subr.mxu0 0.0
  %5163 = vmatpush1.msra.mxu0 0.0
  %5164 = vmatprep.subr.mxu0 0.0
  %5165 = vmatpush1.msra.mxu0 0.0
  %5166 = vmatprep.subr.mxu0 0.0
  %5167 = vmatpush1.msra.mxu0 0.0
  %5168 = vmatprep.subr.mxu0 0.0
  %5169 = vmatpush1.msra.mxu0 0.0
  %5170 = vmatprep.mubr.f32.mxu0 0.0
  %v5171 = vand.u32 %v3235, 4294901760
  %5172 = vmatmul.mubr.f32.gmra.mrb[0].mxu0 %v5171
  %v5173 = vpop.f32.mrb[0].mxu0
  %v5174 = vadd.f32 %v5086, %v5173
  %v5175 = vpop.f32.mrb[0].mxu0
  %v5176 = vadd.f32 %v5088, %v5175
  %5177 = vdwg.mxu0
  %5178 = vmatprep.subr.mxu0 0.0
  %v5179 = vand.u32 %v3184, 4294901760
  %5180 = vmatpush1.msra.mxu0 %v5179
  %5181 = vmatprep.subr.mxu0 0.0
  %v5182 = vand.u32 %v3191, 4294901760
  %5183 = vmatpush1.msra.mxu0 %v5182
  %5184 = vmatprep.subr.mxu0 0.0
  %v5185 = vand.u32 %v3198, 4294901760
  %5186 = vmatpush1.msra.mxu0 %v5185
  %5187 = vmatprep.subr.mxu0 0.0
  %v5188 = vand.u32 %v3205, 4294901760
  %5189 = vmatpush1.msra.mxu0 %v5188
  %5190 = vmatprep.subr.mxu0 0.0
  %v5191 = vand.u32 %v3212, 4294901760
  %5192 = vmatpush1.msra.mxu0 %v5191
  %5193 = vmatprep.subr.mxu0 0.0
  %v5194 = vand.u32 %v3219, 4294901760
  %5195 = vmatpush1.msra.mxu0 %v5194
  %5196 = vmatprep.subr.mxu0 0.0
  %v5197 = vand.u32 %v3226, 4294901760
  %5198 = vmatpush1.msra.mxu0 %v5197
  %5199 = vmatprep.subr.mxu0 0.0
  %v5200 = vand.u32 %v3233, 4294901760
  %5201 = vmatpush1.msra.mxu0 %v5200
  %5202 = vmatprep.subr.mxu0 0.0
  %5203 = vmatpush1.msra.mxu0 0.0
  %5204 = vmatprep.subr.mxu0 0.0
  %5205 = vmatpush1.msra.mxu0 0.0
  %5206 = vmatprep.subr.mxu0 0.0
  %5207 = vmatpush1.msra.mxu0 0.0
  %5208 = vmatprep.subr.mxu0 0.0
  %5209 = vmatpush1.msra.mxu0 0.0
  %5210 = vmatprep.subr.mxu0 0.0
  %5211 = vmatpush1.msra.mxu0 0.0
  %5212 = vmatprep.subr.mxu0 0.0
  %5213 = vmatpush1.msra.mxu0 0.0
  %5214 = vmatprep.subr.mxu0 0.0
  %5215 = vmatpush1.msra.mxu0 0.0
  %5216 = vmatprep.subr.mxu0 0.0
  %5217 = vmatpush1.msra.mxu0 0.0
  %5218 = vmatprep.subr.mxu0 0.0
  %5219 = vmatpush1.msra.mxu0 0.0
  %5220 = vmatprep.subr.mxu0 0.0
  %5221 = vmatpush1.msra.mxu0 0.0
  %5222 = vmatprep.subr.mxu0 0.0
  %5223 = vmatpush1.msra.mxu0 0.0
  %5224 = vmatprep.subr.mxu0 0.0
  %5225 = vmatpush1.msra.mxu0 0.0
  %5226 = vmatprep.subr.mxu0 0.0
  %5227 = vmatpush1.msra.mxu0 0.0
  %5228 = vmatprep.subr.mxu0 0.0
  %5229 = vmatpush1.msra.mxu0 0.0
  %5230 = vmatprep.subr.mxu0 0.0
  %5231 = vmatpush1.msra.mxu0 0.0
  %5232 = vmatprep.subr.mxu0 0.0
  %5233 = vmatpush1.msra.mxu0 0.0
  %5234 = vmatprep.subr.mxu0 0.0
  %5235 = vmatpush1.msra.mxu0 0.0
  %5236 = vmatprep.subr.mxu0 0.0
  %5237 = vmatpush1.msra.mxu0 0.0
  %5238 = vmatprep.subr.mxu0 0.0
  %5239 = vmatpush1.msra.mxu0 0.0
  %5240 = vmatprep.subr.mxu0 0.0
  %5241 = vmatpush1.msra.mxu0 0.0
  %5242 = vmatprep.subr.mxu0 0.0
  %5243 = vmatpush1.msra.mxu0 0.0
  %5244 = vmatprep.subr.mxu0 0.0
  %5245 = vmatpush1.msra.mxu0 0.0
  %5246 = vmatprep.subr.mxu0 0.0
  %5247 = vmatpush1.msra.mxu0 0.0
  %5248 = vmatprep.subr.mxu0 0.0
  %5249 = vmatpush1.msra.mxu0 0.0
  %5250 = vmatprep.mubr.f32.mxu0 0.0
  %v5251 = vand.u32 %v3235, 4294901760
  %v5252 = vsub.f32 %v3235, %v5251
  %v5253 = vand.u32 %v5252, 4294901760
  %v5254 = vsub.f32 %v5252, %v5253
  %v5255 = vand.u32 %v5254, 4294901760
  %5256 = vmatmul.mubr.f32.gmra.mrb[0].mxu0 %v5255
  %v5257 = vpop.f32.mrb[0].mxu0
  %v5258 = vadd.f32 0.0, %v5257
  %v5259 = vpop.f32.mrb[0].mxu0
  %5260 = vdwg.mxu0
  %5261 = vmatprep.subr.mxu0 0.0
  %v5262 = vand.u32 %v3184, 4294901760
  %v5263 = vsub.f32 %v3184, %v5262
  %v5264 = vand.u32 %v5263, 4294901760
  %v5265 = vsub.f32 %v5263, %v5264
  %v5266 = vand.u32 %v5265, 4294901760
  %5267 = vmatpush1.msra.mxu0 %v5266
  %5268 = vmatprep.subr.mxu0 0.0
  %v5269 = vand.u32 %v3191, 4294901760
  %v5270 = vsub.f32 %v3191, %v5269
  %v5271 = vand.u32 %v5270, 4294901760
  %v5272 = vsub.f32 %v5270, %v5271
  %v5273 = vand.u32 %v5272, 4294901760
  %5274 = vmatpush1.msra.mxu0 %v5273
  %5275 = vmatprep.subr.mxu0 0.0
  %v5276 = vand.u32 %v3198, 4294901760
  %v5277 = vsub.f32 %v3198, %v5276
  %v5278 = vand.u32 %v5277, 4294901760
  %v5279 = vsub.f32 %v5277, %v5278
  %v5280 = vand.u32 %v5279, 4294901760
  %5281 = vmatpush1.msra.mxu0 %v5280
  %5282 = vmatprep.subr.mxu0 0.0
  %v5283 = vand.u32 %v3205, 4294901760
  %v5284 = vsub.f32 %v3205, %v5283
  %v5285 = vand.u32 %v5284, 4294901760
  %v5286 = vsub.f32 %v5284, %v5285
  %v5287 = vand.u32 %v5286, 4294901760
  %5288 = vmatpush1.msra.mxu0 %v5287
  %5289 = vmatprep.subr.mxu0 0.0
  %v5290 = vand.u32 %v3212, 4294901760
  %v5291 = vsub.f32 %v3212, %v5290
  %v5292 = vand.u32 %v5291, 4294901760
  %v5293 = vsub.f32 %v5291, %v5292
  %v5294 = vand.u32 %v5293, 4294901760
  %5295 = vmatpush1.msra.mxu0 %v5294
  %5296 = vmatprep.subr.mxu0 0.0
  %v5297 = vand.u32 %v3219, 4294901760
  %v5298 = vsub.f32 %v3219, %v5297
  %v5299 = vand.u32 %v5298, 4294901760
  %v5300 = vsub.f32 %v5298, %v5299
  %v5301 = vand.u32 %v5300, 4294901760
  %5302 = vmatpush1.msra.mxu0 %v5301
  %5303 = vmatprep.subr.mxu0 0.0
  %v5304 = vand.u32 %v3226, 4294901760
  %v5305 = vsub.f32 %v3226, %v5304
  %v5306 = vand.u32 %v5305, 4294901760
  %v5307 = vsub.f32 %v5305, %v5306
  %v5308 = vand.u32 %v5307, 4294901760
  %5309 = vmatpush1.msra.mxu0 %v5308
  %5310 = vmatprep.subr.mxu0 0.0
  %v5311 = vand.u32 %v3233, 4294901760
  %v5312 = vsub.f32 %v3233, %v5311
  %v5313 = vand.u32 %v5312, 4294901760
  %v5314 = vsub.f32 %v5312, %v5313
  %v5315 = vand.u32 %v5314, 4294901760
  %5316 = vmatpush1.msra.mxu0 %v5315
  %5317 = vmatprep.subr.mxu0 0.0
  %5318 = vmatpush1.msra.mxu0 0.0
  %5319 = vmatprep.subr.mxu0 0.0
  %5320 = vmatpush1.msra.mxu0 0.0
  %5321 = vmatprep.subr.mxu0 0.0
  %5322 = vmatpush1.msra.mxu0 0.0
  %5323 = vmatprep.subr.mxu0 0.0
  %5324 = vmatpush1.msra.mxu0 0.0
  %5325 = vmatprep.subr.mxu0 0.0
  %5326 = vmatpush1.msra.mxu0 0.0
  %5327 = vmatprep.subr.mxu0 0.0
  %5328 = vmatpush1.msra.mxu0 0.0
  %5329 = vmatprep.subr.mxu0 0.0
  %5330 = vmatpush1.msra.mxu0 0.0
  %5331 = vmatprep.subr.mxu0 0.0
  %5332 = vmatpush1.msra.mxu0 0.0
  %5333 = vmatprep.subr.mxu0 0.0
  %5334 = vmatpush1.msra.mxu0 0.0
  %5335 = vmatprep.subr.mxu0 0.0
  %5336 = vmatpush1.msra.mxu0 0.0
  %5337 = vmatprep.subr.mxu0 0.0
  %5338 = vmatpush1.msra.mxu0 0.0
  %5339 = vmatprep.subr.mxu0 0.0
  %5340 = vmatpush1.msra.mxu0 0.0
  %5341 = vmatprep.subr.mxu0 0.0
  %5342 = vmatpush1.msra.mxu0 0.0
  %5343 = vmatprep.subr.mxu0 0.0
  %5344 = vmatpush1.msra.mxu0 0.0
  %5345 = vmatprep.subr.mxu0 0.0
  %5346 = vmatpush1.msra.mxu0 0.0
  %5347 = vmatprep.subr.mxu0 0.0
  %5348 = vmatpush1.msra.mxu0 0.0
  %5349 = vmatprep.subr.mxu0 0.0
  %5350 = vmatpush1.msra.mxu0 0.0
  %5351 = vmatprep.subr.mxu0 0.0
  %5352 = vmatpush1.msra.mxu0 0.0
  %5353 = vmatprep.subr.mxu0 0.0
  %5354 = vmatpush1.msra.mxu0 0.0
  %5355 = vmatprep.subr.mxu0 0.0
  %5356 = vmatpush1.msra.mxu0 0.0
  %5357 = vmatprep.subr.mxu0 0.0
  %5358 = vmatpush1.msra.mxu0 0.0
  %5359 = vmatprep.subr.mxu0 0.0
  %5360 = vmatpush1.msra.mxu0 0.0
  %5361 = vmatprep.subr.mxu0 0.0
  %5362 = vmatpush1.msra.mxu0 0.0
  %5363 = vmatprep.subr.mxu0 0.0
  %5364 = vmatpush1.msra.mxu0 0.0
  %5365 = vmatprep.mubr.f32.mxu0 0.0
  %v5366 = vand.u32 %v3235, 4294901760
  %5367 = vmatmul.mubr.f32.gmra.mrb[0].mxu0 %v5366
  %v5368 = vpop.f32.mrb[0].mxu0
  %v5369 = vadd.f32 %v5258, %v5368
  %v5370 = vpop.f32.mrb[0].mxu0
  %5371 = vdwg.mxu0
  %5372 = vmatprep.subr.mxu0 0.0
  %v5373 = vand.u32 %v3184, 4294901760
  %v5374 = vsub.f32 %v3184, %v5373
  %5375 = vmatpush1.msra.mxu0 %v5374
  %5376 = vmatprep.subr.mxu0 0.0
  %v5377 = vand.u32 %v3191, 4294901760
  %v5378 = vsub.f32 %v3191, %v5377
  %5379 = vmatpush1.msra.mxu0 %v5378
  %5380 = vmatprep.subr.mxu0 0.0
  %v5381 = vand.u32 %v3198, 4294901760
  %v5382 = vsub.f32 %v3198, %v5381
  %5383 = vmatpush1.msra.mxu0 %v5382
  %5384 = vmatprep.subr.mxu0 0.0
  %v5385 = vand.u32 %v3205, 4294901760
  %v5386 = vsub.f32 %v3205, %v5385
  %5387 = vmatpush1.msra.mxu0 %v5386
  %5388 = vmatprep.subr.mxu0 0.0
  %v5389 = vand.u32 %v3212, 4294901760
  %v5390 = vsub.f32 %v3212, %v5389
  %5391 = vmatpush1.msra.mxu0 %v5390
  %5392 = vmatprep.subr.mxu0 0.0
  %v5393 = vand.u32 %v3219, 4294901760
  %v5394 = vsub.f32 %v3219, %v5393
  %5395 = vmatpush1.msra.mxu0 %v5394
  %5396 = vmatprep.subr.mxu0 0.0
  %v5397 = vand.u32 %v3226, 4294901760
  %v5398 = vsub.f32 %v3226, %v5397
  %5399 = vmatpush1.msra.mxu0 %v5398
  %5400 = vmatprep.subr.mxu0 0.0
  %v5401 = vand.u32 %v3233, 4294901760
  %v5402 = vsub.f32 %v3233, %v5401
  %5403 = vmatpush1.msra.mxu0 %v5402
  %5404 = vmatprep.subr.mxu0 0.0
  %5405 = vmatpush1.msra.mxu0 0.0
  %5406 = vmatprep.subr.mxu0 0.0
  %5407 = vmatpush1.msra.mxu0 0.0
  %5408 = vmatprep.subr.mxu0 0.0
  %5409 = vmatpush1.msra.mxu0 0.0
  %5410 = vmatprep.subr.mxu0 0.0
  %5411 = vmatpush1.msra.mxu0 0.0
  %5412 = vmatprep.subr.mxu0 0.0
  %5413 = vmatpush1.msra.mxu0 0.0
  %5414 = vmatprep.subr.mxu0 0.0
  %5415 = vmatpush1.msra.mxu0 0.0
  %5416 = vmatprep.subr.mxu0 0.0
  %5417 = vmatpush1.msra.mxu0 0.0
  %5418 = vmatprep.subr.mxu0 0.0
  %5419 = vmatpush1.msra.mxu0 0.0
  %5420 = vmatprep.subr.mxu0 0.0
  %5421 = vmatpush1.msra.mxu0 0.0
  %5422 = vmatprep.subr.mxu0 0.0
  %5423 = vmatpush1.msra.mxu0 0.0
  %5424 = vmatprep.subr.mxu0 0.0
  %5425 = vmatpush1.msra.mxu0 0.0
  %5426 = vmatprep.subr.mxu0 0.0
  %5427 = vmatpush1.msra.mxu0 0.0
  %5428 = vmatprep.subr.mxu0 0.0
  %5429 = vmatpush1.msra.mxu0 0.0
  %5430 = vmatprep.subr.mxu0 0.0
  %5431 = vmatpush1.msra.mxu0 0.0
  %5432 = vmatprep.subr.mxu0 0.0
  %5433 = vmatpush1.msra.mxu0 0.0
  %5434 = vmatprep.subr.mxu0 0.0
  %5435 = vmatpush1.msra.mxu0 0.0
  %5436 = vmatprep.subr.mxu0 0.0
  %5437 = vmatpush1.msra.mxu0 0.0
  %5438 = vmatprep.subr.mxu0 0.0
  %5439 = vmatpush1.msra.mxu0 0.0
  %5440 = vmatprep.subr.mxu0 0.0
  %5441 = vmatpush1.msra.mxu0 0.0
  %5442 = vmatprep.subr.mxu0 0.0
  %5443 = vmatpush1.msra.mxu0 0.0
  %5444 = vmatprep.subr.mxu0 0.0
  %5445 = vmatpush1.msra.mxu0 0.0
  %5446 = vmatprep.subr.mxu0 0.0
  %5447 = vmatpush1.msra.mxu0 0.0
  %5448 = vmatprep.subr.mxu0 0.0
  %5449 = vmatpush1.msra.mxu0 0.0
  %5450 = vmatprep.subr.mxu0 0.0
  %5451 = vmatpush1.msra.mxu0 0.0
  %5452 = vmatprep.mubr.f32.mxu0 0.0
  %v5453 = vand.u32 %v3235, 4294901760
  %v5454 = vsub.f32 %v3235, %v5453
  %5455 = vmatmul.mubr.f32.gmra.mrb[0].mxu0 %v5454
  %v5456 = vpop.f32.mrb[0].mxu0
  %v5457 = vadd.f32 %v5369, %v5456
  %v5458 = vpop.f32.mrb[0].mxu0
  %5459 = vdwg.mxu0
  %5460 = vmatprep.subr.mxu0 0.0
  %v5461 = vand.u32 %v3184, 4294901760
  %5462 = vmatpush1.msra.mxu0 %v5461
  %5463 = vmatprep.subr.mxu0 0.0
  %v5464 = vand.u32 %v3191, 4294901760
  %5465 = vmatpush1.msra.mxu0 %v5464
  %5466 = vmatprep.subr.mxu0 0.0
  %v5467 = vand.u32 %v3198, 4294901760
  %5468 = vmatpush1.msra.mxu0 %v5467
  %5469 = vmatprep.subr.mxu0 0.0
  %v5470 = vand.u32 %v3205, 4294901760
  %5471 = vmatpush1.msra.mxu0 %v5470
  %5472 = vmatprep.subr.mxu0 0.0
  %v5473 = vand.u32 %v3212, 4294901760
  %5474 = vmatpush1.msra.mxu0 %v5473
  %5475 = vmatprep.subr.mxu0 0.0
  %v5476 = vand.u32 %v3219, 4294901760
  %5477 = vmatpush1.msra.mxu0 %v5476
  %5478 = vmatprep.subr.mxu0 0.0
  %v5479 = vand.u32 %v3226, 4294901760
  %5480 = vmatpush1.msra.mxu0 %v5479
  %5481 = vmatprep.subr.mxu0 0.0
  %v5482 = vand.u32 %v3233, 4294901760
  %5483 = vmatpush1.msra.mxu0 %v5482
  %5484 = vmatprep.subr.mxu0 0.0
  %5485 = vmatpush1.msra.mxu0 0.0
  %5486 = vmatprep.subr.mxu0 0.0
  %5487 = vmatpush1.msra.mxu0 0.0
  %5488 = vmatprep.subr.mxu0 0.0
  %5489 = vmatpush1.msra.mxu0 0.0
  %5490 = vmatprep.subr.mxu0 0.0
  %5491 = vmatpush1.msra.mxu0 0.0
  %5492 = vmatprep.subr.mxu0 0.0
  %5493 = vmatpush1.msra.mxu0 0.0
  %5494 = vmatprep.subr.mxu0 0.0
  %5495 = vmatpush1.msra.mxu0 0.0
  %5496 = vmatprep.subr.mxu0 0.0
  %5497 = vmatpush1.msra.mxu0 0.0
  %5498 = vmatprep.subr.mxu0 0.0
  %5499 = vmatpush1.msra.mxu0 0.0
  %5500 = vmatprep.subr.mxu0 0.0
  %5501 = vmatpush1.msra.mxu0 0.0
  %5502 = vmatprep.subr.mxu0 0.0
  %5503 = vmatpush1.msra.mxu0 0.0
  %5504 = vmatprep.subr.mxu0 0.0
  %5505 = vmatpush1.msra.mxu0 0.0
  %5506 = vmatprep.subr.mxu0 0.0
  %5507 = vmatpush1.msra.mxu0 0.0
  %5508 = vmatprep.subr.mxu0 0.0
  %5509 = vmatpush1.msra.mxu0 0.0
  %5510 = vmatprep.subr.mxu0 0.0
  %5511 = vmatpush1.msra.mxu0 0.0
  %5512 = vmatprep.subr.mxu0 0.0
  %5513 = vmatpush1.msra.mxu0 0.0
  %5514 = vmatprep.subr.mxu0 0.0
  %5515 = vmatpush1.msra.mxu0 0.0
  %5516 = vmatprep.subr.mxu0 0.0
  %5517 = vmatpush1.msra.mxu0 0.0
  %5518 = vmatprep.subr.mxu0 0.0
  %5519 = vmatpush1.msra.mxu0 0.0
  %5520 = vmatprep.subr.mxu0 0.0
  %5521 = vmatpush1.msra.mxu0 0.0
  %5522 = vmatprep.subr.mxu0 0.0
  %5523 = vmatpush1.msra.mxu0 0.0
  %5524 = vmatprep.subr.mxu0 0.0
  %5525 = vmatpush1.msra.mxu0 0.0
  %5526 = vmatprep.subr.mxu0 0.0
  %5527 = vmatpush1.msra.mxu0 0.0
  %5528 = vmatprep.subr.mxu0 0.0
  %5529 = vmatpush1.msra.mxu0 0.0
  %5530 = vmatprep.subr.mxu0 0.0
  %5531 = vmatpush1.msra.mxu0 0.0
  %5532 = vmatprep.mubr.f32.mxu0 0.0
  %v5533 = vand.u32 %v3235, 4294901760
  %v5534 = vsub.f32 %v3235, %v5533
  %v5535 = vand.u32 %v5534, 4294901760
  %5536 = vmatmul.mubr.f32.gmra.mrb[0].mxu0 %v5535
  %v5537 = vpop.f32.mrb[0].mxu0
  %v5538 = vadd.f32 %v5457, %v5537
  %v5539 = vpop.f32.mrb[0].mxu0
  %5540 = vdwg.mxu0
  %5541 = vmatprep.subr.mxu0 0.0
  %v5542 = vand.u32 %v3184, 4294901760
  %v5543 = vsub.f32 %v3184, %v5542
  %v5544 = vand.u32 %v5543, 4294901760
  %5545 = vmatpush1.msra.mxu0 %v5544
  %5546 = vmatprep.subr.mxu0 0.0
  %v5547 = vand.u32 %v3191, 4294901760
  %v5548 = vsub.f32 %v3191, %v5547
  %v5549 = vand.u32 %v5548, 4294901760
  %5550 = vmatpush1.msra.mxu0 %v5549
  %5551 = vmatprep.subr.mxu0 0.0
  %v5552 = vand.u32 %v3198, 4294901760
  %v5553 = vsub.f32 %v3198, %v5552
  %v5554 = vand.u32 %v5553, 4294901760
  %5555 = vmatpush1.msra.mxu0 %v5554
  %5556 = vmatprep.subr.mxu0 0.0
  %v5557 = vand.u32 %v3205, 4294901760
  %v5558 = vsub.f32 %v3205, %v5557
  %v5559 = vand.u32 %v5558, 4294901760
  %5560 = vmatpush1.msra.mxu0 %v5559
  %5561 = vmatprep.subr.mxu0 0.0
  %v5562 = vand.u32 %v3212, 4294901760
  %v5563 = vsub.f32 %v3212, %v5562
  %v5564 = vand.u32 %v5563, 4294901760
  %5565 = vmatpush1.msra.mxu0 %v5564
  %5566 = vmatprep.subr.mxu0 0.0
  %v5567 = vand.u32 %v3219, 4294901760
  %v5568 = vsub.f32 %v3219, %v5567
  %v5569 = vand.u32 %v5568, 4294901760
  %5570 = vmatpush1.msra.mxu0 %v5569
  %5571 = vmatprep.subr.mxu0 0.0
  %v5572 = vand.u32 %v3226, 4294901760
  %v5573 = vsub.f32 %v3226, %v5572
  %v5574 = vand.u32 %v5573, 4294901760
  %5575 = vmatpush1.msra.mxu0 %v5574
  %5576 = vmatprep.subr.mxu0 0.0
  %v5577 = vand.u32 %v3233, 4294901760
  %v5578 = vsub.f32 %v3233, %v5577
  %v5579 = vand.u32 %v5578, 4294901760
  %5580 = vmatpush1.msra.mxu0 %v5579
  %5581 = vmatprep.subr.mxu0 0.0
  %5582 = vmatpush1.msra.mxu0 0.0
  %5583 = vmatprep.subr.mxu0 0.0
  %5584 = vmatpush1.msra.mxu0 0.0
  %5585 = vmatprep.subr.mxu0 0.0
  %5586 = vmatpush1.msra.mxu0 0.0
  %5587 = vmatprep.subr.mxu0 0.0
  %5588 = vmatpush1.msra.mxu0 0.0
  %5589 = vmatprep.subr.mxu0 0.0
  %5590 = vmatpush1.msra.mxu0 0.0
  %5591 = vmatprep.subr.mxu0 0.0
  %5592 = vmatpush1.msra.mxu0 0.0
  %5593 = vmatprep.subr.mxu0 0.0
  %5594 = vmatpush1.msra.mxu0 0.0
  %5595 = vmatprep.subr.mxu0 0.0
  %5596 = vmatpush1.msra.mxu0 0.0
  %5597 = vmatprep.subr.mxu0 0.0
  %5598 = vmatpush1.msra.mxu0 0.0
  %5599 = vmatprep.subr.mxu0 0.0
  %5600 = vmatpush1.msra.mxu0 0.0
  %5601 = vmatprep.subr.mxu0 0.0
  %5602 = vmatpush1.msra.mxu0 0.0
  %5603 = vmatprep.subr.mxu0 0.0
  %5604 = vmatpush1.msra.mxu0 0.0
  %5605 = vmatprep.subr.mxu0 0.0
  %5606 = vmatpush1.msra.mxu0 0.0
  %5607 = vmatprep.subr.mxu0 0.0
  %5608 = vmatpush1.msra.mxu0 0.0
  %5609 = vmatprep.subr.mxu0 0.0
  %5610 = vmatpush1.msra.mxu0 0.0
  %5611 = vmatprep.subr.mxu0 0.0
  %5612 = vmatpush1.msra.mxu0 0.0
  %5613 = vmatprep.subr.mxu0 0.0
  %5614 = vmatpush1.msra.mxu0 0.0
  %5615 = vmatprep.subr.mxu0 0.0
  %5616 = vmatpush1.msra.mxu0 0.0
  %5617 = vmatprep.subr.mxu0 0.0
  %5618 = vmatpush1.msra.mxu0 0.0
  %5619 = vmatprep.subr.mxu0 0.0
  %5620 = vmatpush1.msra.mxu0 0.0
  %5621 = vmatprep.subr.mxu0 0.0
  %5622 = vmatpush1.msra.mxu0 0.0
  %5623 = vmatprep.subr.mxu0 0.0
  %5624 = vmatpush1.msra.mxu0 0.0
  %5625 = vmatprep.subr.mxu0 0.0
  %5626 = vmatpush1.msra.mxu0 0.0
  %5627 = vmatprep.subr.mxu0 0.0
  %5628 = vmatpush1.msra.mxu0 0.0
  %5629 = vmatprep.mubr.f32.mxu0 0.0
  %v5630 = vand.u32 %v3235, 4294901760
  %5631 = vmatmul.mubr.f32.gmra.mrb[0].mxu0 %v5630
  %v5632 = vpop.f32.mrb[0].mxu0
  %v5633 = vadd.f32 %v5538, %v5632
  %v5634 = vpop.f32.mrb[0].mxu0
  %5635 = vdwg.mxu0
  %5636 = vmatprep.subr.mxu0 0.0
  %v5637 = vand.u32 %v3184, 4294901760
  %5638 = vmatpush1.msra.mxu0 %v5637
  %5639 = vmatprep.subr.mxu0 0.0
  %v5640 = vand.u32 %v3191, 4294901760
  %5641 = vmatpush1.msra.mxu0 %v5640
  %5642 = vmatprep.subr.mxu0 0.0
  %v5643 = vand.u32 %v3198, 4294901760
  %5644 = vmatpush1.msra.mxu0 %v5643
  %5645 = vmatprep.subr.mxu0 0.0
  %v5646 = vand.u32 %v3205, 4294901760
  %5647 = vmatpush1.msra.mxu0 %v5646
  %5648 = vmatprep.subr.mxu0 0.0
  %v5649 = vand.u32 %v3212, 4294901760
  %5650 = vmatpush1.msra.mxu0 %v5649
  %5651 = vmatprep.subr.mxu0 0.0
  %v5652 = vand.u32 %v3219, 4294901760
  %5653 = vmatpush1.msra.mxu0 %v5652
  %5654 = vmatprep.subr.mxu0 0.0
  %v5655 = vand.u32 %v3226, 4294901760
  %5656 = vmatpush1.msra.mxu0 %v5655
  %5657 = vmatprep.subr.mxu0 0.0
  %v5658 = vand.u32 %v3233, 4294901760
  %5659 = vmatpush1.msra.mxu0 %v5658
  %5660 = vmatprep.subr.mxu0 0.0
  %5661 = vmatpush1.msra.mxu0 0.0
  %5662 = vmatprep.subr.mxu0 0.0
  %5663 = vmatpush1.msra.mxu0 0.0
  %5664 = vmatprep.subr.mxu0 0.0
  %5665 = vmatpush1.msra.mxu0 0.0
  %5666 = vmatprep.subr.mxu0 0.0
  %5667 = vmatpush1.msra.mxu0 0.0
  %5668 = vmatprep.subr.mxu0 0.0
  %5669 = vmatpush1.msra.mxu0 0.0
  %5670 = vmatprep.subr.mxu0 0.0
  %5671 = vmatpush1.msra.mxu0 0.0
  %5672 = vmatprep.subr.mxu0 0.0
  %5673 = vmatpush1.msra.mxu0 0.0
  %5674 = vmatprep.subr.mxu0 0.0
  %5675 = vmatpush1.msra.mxu0 0.0
  %5676 = vmatprep.subr.mxu0 0.0
  %5677 = vmatpush1.msra.mxu0 0.0
  %5678 = vmatprep.subr.mxu0 0.0
  %5679 = vmatpush1.msra.mxu0 0.0
  %5680 = vmatprep.subr.mxu0 0.0
  %5681 = vmatpush1.msra.mxu0 0.0
  %5682 = vmatprep.subr.mxu0 0.0
  %5683 = vmatpush1.msra.mxu0 0.0
  %5684 = vmatprep.subr.mxu0 0.0
  %5685 = vmatpush1.msra.mxu0 0.0
  %5686 = vmatprep.subr.mxu0 0.0
  %5687 = vmatpush1.msra.mxu0 0.0
  %5688 = vmatprep.subr.mxu0 0.0
  %5689 = vmatpush1.msra.mxu0 0.0
  %5690 = vmatprep.subr.mxu0 0.0
  %5691 = vmatpush1.msra.mxu0 0.0
  %5692 = vmatprep.subr.mxu0 0.0
  %5693 = vmatpush1.msra.mxu0 0.0
  %5694 = vmatprep.subr.mxu0 0.0
  %5695 = vmatpush1.msra.mxu0 0.0
  %5696 = vmatprep.subr.mxu0 0.0
  %5697 = vmatpush1.msra.mxu0 0.0
  %5698 = vmatprep.subr.mxu0 0.0
  %5699 = vmatpush1.msra.mxu0 0.0
  %5700 = vmatprep.subr.mxu0 0.0
  %5701 = vmatpush1.msra.mxu0 0.0
  %5702 = vmatprep.subr.mxu0 0.0
  %5703 = vmatpush1.msra.mxu0 0.0
  %5704 = vmatprep.subr.mxu0 0.0
  %5705 = vmatpush1.msra.mxu0 0.0
  %5706 = vmatprep.subr.mxu0 0.0
  %5707 = vmatpush1.msra.mxu0 0.0
  %5708 = vmatprep.mubr.f32.mxu0 0.0
  %v5709 = vand.u32 %v3235, 4294901760
  %5710 = vmatmul.mubr.f32.gmra.mrb[0].mxu0 %v5709
  %v5711 = vpop.f32.mrb[0].mxu0
  %v5712 = vadd.f32 %v5633, %v5711
  %v5713 = vpop.f32.mrb[0].mxu0
  %5714 = vdwg.mxu0
  %v5721 = vcombine.low %v3880, %v3882
  %v5722 = vcombine.low %v4527, %v4529
  %v5723 = vcombine.low %v5174, %v5176
  %s5727 = scalar_lea.vmem %s3, 28
  %5728 = vst [vmem:[%s5727] sm:$0x77] %v5721
  %5729 = vst [vmem:[%s5727 + $0x8] sm:$0x77] %v5722
  %5730 = vst [vmem:[%s5727 + $0x10] sm:$0x77] %v5723
  %5731 = vst.msk [vmem:[%s5727 + $0x18] sm:$0x7] %vm2878, %v5712
  // Predicated region
  $region14: #{mano_forward_pallas.3} parent=0 // pred_check
    _
  $region15: #{mano_forward_pallas.3} parent=0 // pred_check_branch
    %5733 = sbr.rel (0) target = $region17
  $region16: #{mano_forward_pallas.3} parent=0 // pred_region
    _
  $region17: #{mano_forward_pallas.3} parent=0 // pred_fallthru
    _
  // Predicated region
  $region18: #{mano_forward_pallas.3} parent=0 // pred_check
    _
  $region19: #{mano_forward_pallas.3} parent=0 // pred_check_branch
    %5735 = sbr.rel (0) target = $region21
  $region20: #{mano_forward_pallas.3} parent=0 // pred_region
    _
  $region21: #{mano_forward_pallas.3} parent=0 // pred_fallthru
    _

</llo_original>
